<compile_context>
chip_gen: v5e
topology: v5e:2x2
jax: 0.10.0
libtpu: 0.0.40
codegen_flags: <defaults>
</compile_context>

<pallas_src>
import math

import jax
import jax.numpy as jnp
from jax.experimental import pallas as pl
from jax.experimental.pallas import tpu as pltpu

LN_EPS = 1e-12                  # BertConfig.layer_norm_eps
MATMUL_DTYPE = jnp.bfloat16     # MXU input dtype; accumulation stays float32
_SQRT1_2 = 0.7071067811865476


# --------------------------- in-kernel helpers ---------------------------

def _ln(x, g, b):
    mu = jnp.mean(x, axis=-1, keepdims=True)
    xc = x - mu
    var = jnp.mean(xc * xc, axis=-1, keepdims=True)
    return xc * jax.lax.rsqrt(var + LN_EPS) * g + b


def _erf(x):
    # Abramowitz & Stegun 7.1.26 (max abs err ~1.5e-7) -> exact-GELU semantics
    # (HF Bert 'gelu' act) without relying on a Mosaic lax.erf lowering.
    a1, a2, a3, a4, a5 = 0.254829592, -0.284496736, 1.421413741, -1.453152027, 1.061405429
    pc = 0.3275911
    ax = jnp.abs(x)
    t = 1.0 / (1.0 + pc * ax)
    poly = ((((a5 * t + a4) * t + a3) * t + a2) * t + a1) * t
    y = 1.0 - poly * jnp.exp(-ax * ax)
    return jnp.where(x >= 0, y, -y)


def _gelu(x):
    return 0.5 * x * (1.0 + _erf(x * _SQRT1_2))


def _mha_into(ctx_ref, q, k, v, H, Dh, scale):
    # All heads of one batch element inside the kernel: per-head score block,
    # softmax (mask is all-ones -> additive term 0), per-head context written
    # lane-sliced into a resident VMEM scratch so the result stays packed (Q, D).
    for h in range(H):
        sl = slice(h * Dh, (h + 1) * Dh)
        qh = q[:, sl]
        kh = k[:, sl]
        vh = v[:, sl]
        s = jax.lax.dot_general(
            qh, kh, (((1,), (1,)), ((), ())),
            preferred_element_type=jnp.float32) * scale
        s = s - jnp.max(s, axis=-1, keepdims=True)
        p = jnp.exp(s)
        p = p * pl.reciprocal(jnp.sum(p, axis=-1, keepdims=True), approx=True)
        ctx_ref[:, sl] = jnp.dot(p, vh, preferred_element_type=jnp.float32)


# --------------------------- fused per-layer kernel ---------------------------

def _make_layer_kernel(H, Dh, D, has_cross, fuse_emb_ln, scale):
    cd = MATMUL_DTYPE

    def kernel(*refs):
        refs = list(refs)
        ctx_ref = refs.pop()            # VMEM scratch (Q, D) f32
        o_ref = refs.pop()              # (1, Q, D)
        it = iter(refs)
        h_ref = next(it)
        x_ref = next(it) if has_cross else None
        if fuse_emb_ln:
            emb_g, emb_b = next(it), next(it)
        sa_wqkv, sa_bqkv = next(it), next(it)
        sa_wo, sa_bo = next(it), next(it)
        sa_lng, sa_lnb = next(it), next(it)
        if has_cross:
            ca_wq, ca_bq = next(it), next(it)
            ca_wkv, ca_bkv = next(it), next(it)
            ca_wo, ca_bo = next(it), next(it)
            ca_lng, ca_lnb = next(it), next(it)
        w1, b1 = next(it), next(it)
        w2, b2 = next(it), next(it)
        f_lng, f_lnb = next(it), next(it)

        h = h_ref[0]                                    # (Q, D) f32
        if fuse_emb_ln:                                 # BertEmbeddings: LN(query_tokens)
            h = _ln(h, emb_g[...], emb_b[...])

        # ---- self-attention over the query tokens (fused QKV matmul) ----
        qkv = jnp.dot(h.astype(cd), sa_wqkv[...],
                      preferred_element_type=jnp.float32) + sa_bqkv[...]
        _mha_into(ctx_ref, qkv[:, :D], qkv[:, D:2 * D], qkv[:, 2 * D:], H, Dh, scale)
        attn = jnp.dot(ctx_ref[...].astype(cd), sa_wo[...],
                       preferred_element_type=jnp.float32) + sa_bo[...]
        h = _ln(attn + h, sa_lng[...], sa_lnb[...])

        # ---- cross-attention to the image features (fused KV matmul) ----
        if has_cross:
            xq = jnp.dot(h.astype(cd), ca_wq[...],
                         preferred_element_type=jnp.float32) + ca_bq[...]
            kv = jnp.dot(x_ref[0].astype(cd), ca_wkv[...],
                         preferred_element_type=jnp.float32) + ca_bkv[...]
            _mha_into(ctx_ref, xq, kv[:, :D], kv[:, D:], H, Dh, scale)
            cross = jnp.dot(ctx_ref[...].astype(cd), ca_wo[...],
                            preferred_element_type=jnp.float32) + ca_bo[...]
            h = _ln(cross + h, ca_lng[...], ca_lnb[...])

        # ---- query feed-forward: w1 -> exact GELU -> w2, residual + LN ----
        inter = jnp.dot(h.astype(cd), w1[...],
                        preferred_element_type=jnp.float32) + b1[...]
        inter = _gelu(inter)
        ffn = jnp.dot(inter.astype(cd), w2[...],
                      preferred_element_type=jnp.float32) + b2[...]
        h = _ln(ffn + h, f_lng[...], f_lnb[...])

        o_ref[0] = h.astype(o_ref.dtype)

    return kernel


def fused_layer(hidden, x, layer, H, *, has_cross, emb_ln=None):
    B, Q, D = hidden.shape
    Dh = D // H
    scale = 1.0 / math.sqrt(Dh)

    inputs = [hidden]
    in_specs = [pl.BlockSpec((1, Q, D), lambda b: (b, 0, 0))]
    if has_cross:
        S = x.shape[1]
        inputs.append(x)
        in_specs.append(pl.BlockSpec((1, S, D), lambda b: (b, 0, 0)))

    def add_mat(w):                       # weight matrix, whole-array block
        inputs.append(w)
        in_specs.append(pl.BlockSpec(w.shape, lambda b: (0, 0)))

    def add_vec(v):                       # bias / LN parameter as (1, N)
        v2 = v.reshape(1, v.shape[-1])
        inputs.append(v2)
        in_specs.append(pl.BlockSpec(v2.shape, lambda b: (0, 0)))

    if emb_ln is not None:
        add_vec(emb_ln[0]); add_vec(emb_ln[1])
    add_mat(layer["sa_wqkv"]); add_vec(layer["sa_bqkv"])
    add_mat(layer["sa_wo"]);   add_vec(layer["sa_bo"])
    add_vec(layer["sa_ln_g"]); add_vec(layer["sa_ln_b"])
    if has_cross:
        add_mat(layer["ca_wq"]);  add_vec(layer["ca_bq"])
        add_mat(layer["ca_wkv"]); add_vec(layer["ca_bkv"])
        add_mat(layer["ca_wo"]);  add_vec(layer["ca_bo"])
        add_vec(layer["ca_ln_g"]); add_vec(layer["ca_ln_b"])
    add_mat(layer["ffn_w1"]); add_vec(layer["ffn_b1"])
    add_mat(layer["ffn_w2"]); add_vec(layer["ffn_b2"])
    add_vec(layer["ffn_ln_g"]); add_vec(layer["ffn_ln_b"])

    kernel = _make_layer_kernel(H, Dh, D, has_cross, emb_ln is not None, scale)
    # TODO(synk): at bert-base / ViT-L scale, tile the FFN and cross-KV matmuls
    # over an (M, N, K) grid with pipelining and set vmem_limit_bytes explicitly
    # (v7x has 64 MiB VMEM vs 128 MiB on v5e/v6e); whole-array blocks are optimal
    # at this module's small shapes.
    return pl.pallas_call(
        kernel,
        out_shape=jax.ShapeDtypeStruct((B, Q, D), jnp.float32),
        grid=(B,),
        in_specs=in_specs,
        out_specs=pl.BlockSpec((1, Q, D), lambda b: (b, 0, 0)),
        scratch_shapes=[pltpu.VMEM((Q, D), jnp.float32)],
        compiler_params=pltpu.CompilerParams(
            dimension_semantics=("parallel",)),   # v7x: two TCs split the batch
    )(*inputs)


# --------------------------- MSE loss kernel ---------------------------

def _mse_kernel(a_ref, b_ref, o_ref):
    d = a_ref[...] - b_ref[...]
    o_ref[...] = (jnp.sum(d * d) * (1.0 / d.size)).reshape(1, 1)


def mse_loss(a2d, b2d):
    M, D = a2d.shape
    return pl.pallas_call(
        _mse_kernel,
        out_shape=jax.ShapeDtypeStruct((1, 1), jnp.float32),
        grid=(1,),
        in_specs=[pl.BlockSpec((M, D), lambda i: (0, 0)),
                  pl.BlockSpec((M, D), lambda i: (0, 0))],
        out_specs=pl.BlockSpec((1, 1), lambda i: (0, 0)),
    )(a2d, b2d)[0, 0]


# --------------------------- model (glue) ---------------------------

def cog_adapter_forward(params, cfg, x, text=None, tokens=None):
    B, S_img, D = x.shape
    Q = cfg["num_query_token"]
    H = cfg["num_heads"]
    freq = cfg["cross_attention_freq"]

    # Query tokens broadcast to the batch; BertEmbeddings' LayerNorm is fused
    # into the first layer kernel (dropout is a no-op in eval).
    hidden = jnp.broadcast_to(params["query_tokens"], (B, Q, D)).astype(jnp.float32)
    emb_ln = (params["emb_ln_g"], params["emb_ln_b"])

    for l, layer in enumerate(params["layers"]):
        hidden = fused_layer(
            hidden, x, layer, H,
            has_cross=(l % freq == 0),
            emb_ln=emb_ln if l == 0 else None)

    output = hidden                       # Qformer last_hidden_state, (B, Q, D)

    if text is None:
        return output

    # Text branch: per-example window of the last Q valid text embeddings.
    # TODO(synk): this data-dependent variable-window gather stays in JAX glue
    # (argmax + take_along_axis) rather than a Pallas DMA gather.
    cls_num = jnp.argmax(tokens, axis=-1) + 1                      # (B,)
    j = jnp.arange(Q, dtype=cls_num.dtype)[None, :]                # (1, Q)
    c = cls_num[:, None]                                           # (B, 1)
    # cls>=Q: indices [cls-Q, cls);  cls<Q: [0..cls) then repeat index cls-1
    idx = jnp.where(c >= Q, c - Q + j, jnp.minimum(j, c - 1))      # (B, Q)
    gathered = jnp.take_along_axis(text, idx[:, :, None], axis=1)  # (B, Q, D)
    loss = mse_loss(output.reshape(B * Q, D), gathered.reshape(B * Q, D))
    return output, loss


def init_params(key, cfg):
    D = cfg["hidden"]
    I = cfg["intermediate"]
    L = cfg["num_layers"]
    Q = cfg["num_query_token"]
    freq = cfg["cross_attention_freq"]
    std = 0.02  # BertConfig.initializer_range
    keys = iter(jax.random.split(key, 1 + L * 8))
    wdt = MATMUL_DTYPE

    def nrm(shape, dtype=jnp.float32):
        return (std * jax.random.normal(next(keys), shape)).astype(dtype)

    params = {
        "query_tokens": nrm((1, Q, D)),                 # nn.Parameter, normal(0, 0.02)
        "emb_ln_g": jnp.ones((D,), jnp.float32),
        "emb_ln_b": jnp.zeros((D,), jnp.float32),
        "layers": [],
    }
    for l in range(L):
        layer = {
            # fused QKV weight (D, 3D): [Wq | Wk | Wv]
            "sa_wqkv": nrm((D, 3 * D), wdt), "sa_bqkv": jnp.zeros((3 * D,), jnp.float32),
            "sa_wo": nrm((D, D), wdt), "sa_bo": jnp.zeros((D,), jnp.float32),
            "sa_ln_g": jnp.ones((D,), jnp.float32), "sa_ln_b": jnp.zeros((D,), jnp.float32),
            "ffn_w1": nrm((D, I), wdt), "ffn_b1": jnp.zeros((I,), jnp.float32),
            "ffn_w2": nrm((I, D), wdt), "ffn_b2": jnp.zeros((D,), jnp.float32),
            "ffn_ln_g": jnp.ones((D,), jnp.float32), "ffn_ln_b": jnp.zeros((D,), jnp.float32),
        }
        if l % freq == 0:  # layers with cross-attention
            layer.update({
                "ca_wq": nrm((D, D), wdt), "ca_bq": jnp.zeros((D,), jnp.float32),
                # fused KV weight (D, 2D): [Wk | Wv]
                "ca_wkv": nrm((D, 2 * D), wdt), "ca_bkv": jnp.zeros((2 * D,), jnp.float32),
                "ca_wo": nrm((D, D), wdt), "ca_bo": jnp.zeros((D,), jnp.float32),
                "ca_ln_g": jnp.ones((D,), jnp.float32), "ca_ln_b": jnp.zeros((D,), jnp.float32),
            })
        params["layers"].append(layer)
    return params


if __name__ == "__main__":
    cfg = dict(
        hidden=64,            # vision_width == hidden_size (16 heads -> head_dim 4)
        num_heads=16,         # hard-coded to 16 in CogAdapter.__init__
        intermediate=256,     # 4*hidden (small stand-in for bert-base's 3072)
        num_layers=2,         # num_hidden_layers (small for the demo)
        num_query_token=8,
        cross_attention_freq=2,
    )
    key = jax.random.PRNGKey(0)
    kp, kx, kt, ktok = jax.random.split(key, 4)
    params = init_params(kp, cfg)

    B, S_img, D = 2, 16, cfg["hidden"]
    T_text = 12
    x = jax.random.normal(kx, (B, S_img, D), dtype=jnp.float32)
    text = jax.random.normal(kt, (B, T_text, D), dtype=jnp.float32)
    tokens = jax.random.randint(ktok, (B, T_text), 0, 50, dtype=jnp.int32)
    # deterministic argmax positions -> cls_num = [10, 4]: exercises both branches
    tokens = tokens.at[0, 9].set(1000).at[1, 3].set(1000)

    fwd = jax.jit(lambda p, xx: cog_adapter_forward(p, cfg, xx))
    fwd_txt = jax.jit(lambda p, xx, tt, kk: cog_adapter_forward(p, cfg, xx, tt, kk))

    out_no_text = fwd(params, x)                         # last_hidden_state only
    out, loss = fwd_txt(params, x, text, tokens)         # (output, mse loss)
    jax.block_until_ready((out_no_text, out, loss))

    assert out_no_text.shape == (B, cfg["num_query_token"], D)
    assert out.shape == (B, cfg["num_query_token"], D)
    assert loss.shape == ()
    print("KERNEL_OK")
</pallas_src>

<mosaic_0001>
module attributes {stable_mosaic.version = 11 : i64} {
  func.func @kernel(%arg0: i32, %arg1: memref<1x8x64xf32, #tpu.memory_space<vmem>>, %arg2: memref<1x16x64xf32, #tpu.memory_space<vmem>>, %arg3: memref<1x64xf32, #tpu.memory_space<vmem>>, %arg4: memref<1x64xf32, #tpu.memory_space<vmem>>, %arg5: memref<64x192xbf16, #tpu.memory_space<vmem>>, %arg6: memref<1x192xf32, #tpu.memory_space<vmem>>, %arg7: memref<64x64xbf16, #tpu.memory_space<vmem>>, %arg8: memref<1x64xf32, #tpu.memory_space<vmem>>, %arg9: memref<1x64xf32, #tpu.memory_space<vmem>>, %arg10: memref<1x64xf32, #tpu.memory_space<vmem>>, %arg11: memref<64x64xbf16, #tpu.memory_space<vmem>>, %arg12: memref<1x64xf32, #tpu.memory_space<vmem>>, %arg13: memref<64x128xbf16, #tpu.memory_space<vmem>>, %arg14: memref<1x128xf32, #tpu.memory_space<vmem>>, %arg15: memref<64x64xbf16, #tpu.memory_space<vmem>>, %arg16: memref<1x64xf32, #tpu.memory_space<vmem>>, %arg17: memref<1x64xf32, #tpu.memory_space<vmem>>, %arg18: memref<1x64xf32, #tpu.memory_space<vmem>>, %arg19: memref<64x256xbf16, #tpu.memory_space<vmem>>, %arg20: memref<1x256xf32, #tpu.memory_space<vmem>>, %arg21: memref<256x64xbf16, #tpu.memory_space<vmem>>, %arg22: memref<1x64xf32, #tpu.memory_space<vmem>>, %arg23: memref<1x64xf32, #tpu.memory_space<vmem>>, %arg24: memref<1x64xf32, #tpu.memory_space<vmem>>, %arg25: memref<1x8x64xf32, #tpu.memory_space<vmem>>, %arg26: memref<8x64xf32, #tpu.memory_space<vmem>>) attributes {dimension_semantics = [#tpu.dimension_semantics<parallel>], iteration_bounds = array<i64: 2>, scalar_prefetch = 0 : i64, scratch_operands = 1 : i64, tpu.core_type = #tpu.core_type<tc>, window_params = [{transform_indices = @transform_0, window_bounds = array<i64: 1, 8, 64>}, {transform_indices = @transform_1, window_bounds = array<i64: 1, 16, 64>}, {pipeline_mode = #tpu.pipeline_mode<synchronous>, transform_indices = @transform_2, window_bounds = array<i64: 1, 64>}, {pipeline_mode = #tpu.pipeline_mode<synchronous>, transform_indices = @transform_3, window_bounds = array<i64: 1, 64>}, {pipeline_mode = #tpu.pipeline_mode<synchronous>, transform_indices = @transform_4, window_bounds = array<i64: 64, 192>}, {pipeline_mode = #tpu.pipeline_mode<synchronous>, transform_indices = @transform_5, window_bounds = array<i64: 1, 192>}, {pipeline_mode = #tpu.pipeline_mode<synchronous>, transform_indices = @transform_6, window_bounds = array<i64: 64, 64>}, {pipeline_mode = #tpu.pipeline_mode<synchronous>, transform_indices = @transform_7, window_bounds = array<i64: 1, 64>}, {pipeline_mode = #tpu.pipeline_mode<synchronous>, transform_indices = @transform_8, window_bounds = array<i64: 1, 64>}, {pipeline_mode = #tpu.pipeline_mode<synchronous>, transform_indices = @transform_9, window_bounds = array<i64: 1, 64>}, {pipeline_mode = #tpu.pipeline_mode<synchronous>, transform_indices = @transform_10, window_bounds = array<i64: 64, 64>}, {pipeline_mode = #tpu.pipeline_mode<synchronous>, transform_indices = @transform_11, window_bounds = array<i64: 1, 64>}, {pipeline_mode = #tpu.pipeline_mode<synchronous>, transform_indices = @transform_12, window_bounds = array<i64: 64, 128>}, {pipeline_mode = #tpu.pipeline_mode<synchronous>, transform_indices = @transform_13, window_bounds = array<i64: 1, 128>}, {pipeline_mode = #tpu.pipeline_mode<synchronous>, transform_indices = @transform_14, window_bounds = array<i64: 64, 64>}, {pipeline_mode = #tpu.pipeline_mode<synchronous>, transform_indices = @transform_15, window_bounds = array<i64: 1, 64>}, {pipeline_mode = #tpu.pipeline_mode<synchronous>, transform_indices = @transform_16, window_bounds = array<i64: 1, 64>}, {pipeline_mode = #tpu.pipeline_mode<synchronous>, transform_indices = @transform_17, window_bounds = array<i64: 1, 64>}, {pipeline_mode = #tpu.pipeline_mode<synchronous>, transform_indices = @transform_18, window_bounds = array<i64: 64, 256>}, {pipeline_mode = #tpu.pipeline_mode<synchronous>, transform_indices = @transform_19, window_bounds = array<i64: 1, 256>}, {pipeline_mode = #tpu.pipeline_mode<synchronous>, transform_indices = @transform_20, window_bounds = array<i64: 256, 64>}, {pipeline_mode = #tpu.pipeline_mode<synchronous>, transform_indices = @transform_21, window_bounds = array<i64: 1, 64>}, {pipeline_mode = #tpu.pipeline_mode<synchronous>, transform_indices = @transform_22, window_bounds = array<i64: 1, 64>}, {pipeline_mode = #tpu.pipeline_mode<synchronous>, transform_indices = @transform_23, window_bounds = array<i64: 1, 64>}, {transform_indices = @transform_24, window_bounds = array<i64: 1, 8, 64>}]} {
    %c0 = arith.constant 0 : index
    %c0_0 = arith.constant 0 : index
    %c0_1 = arith.constant 0 : index
    %0 = vector.load %arg1[%c0, %c0_0, %c0_1] : memref<1x8x64xf32, #tpu.memory_space<vmem>>, vector<1x8x64xf32>
    %1 = vector.shape_cast %0 : vector<1x8x64xf32> to vector<8x64xf32>
    %c0_2 = arith.constant 0 : index
    %c0_3 = arith.constant 0 : index
    %2 = vector.load %arg3[%c0_2, %c0_3] : memref<1x64xf32, #tpu.memory_space<vmem>>, vector<1x64xf32>
    %c0_4 = arith.constant 0 : index
    %c0_5 = arith.constant 0 : index
    %3 = vector.load %arg4[%c0_4, %c0_5] : memref<1x64xf32, #tpu.memory_space<vmem>>, vector<1x64xf32>
    %cst = arith.constant dense<0.000000e+00> : vector<8xf32>
    %4 = vector.multi_reduction <add>, %1, %cst [1] : vector<8x64xf32> to vector<8xf32>
    %5 = vector.shape_cast %4 : vector<8xf32> to vector<8x1xf32>
    %cst_6 = arith.constant 6.400000e+01 : f32
    %6 = vector.broadcast %cst_6 : f32 to vector<8x1xf32>
    %7 = arith.divf %5, %6 : vector<8x1xf32>
    %8 = vector.broadcast %7 : vector<8x1xf32> to vector<8x64xf32>
    %9 = arith.subf %1, %8 : vector<8x64xf32>
    %10 = arith.mulf %9, %9 : vector<8x64xf32>
    %cst_7 = arith.constant dense<0.000000e+00> : vector<8xf32>
    %11 = vector.multi_reduction <add>, %10, %cst_7 [1] : vector<8x64xf32> to vector<8xf32>
    %12 = vector.shape_cast %11 : vector<8xf32> to vector<8x1xf32>
    %cst_8 = arith.constant 6.400000e+01 : f32
    %13 = vector.broadcast %cst_8 : f32 to vector<8x1xf32>
    %14 = arith.divf %12, %13 : vector<8x1xf32>
    %cst_9 = arith.constant 9.99999996E-13 : f32
    %15 = vector.broadcast %cst_9 : f32 to vector<8x1xf32>
    %16 = arith.addf %14, %15 : vector<8x1xf32>
    %17 = math.rsqrt %16 : vector<8x1xf32>
    %18 = vector.broadcast %17 : vector<8x1xf32> to vector<8x64xf32>
    %19 = arith.mulf %9, %18 : vector<8x64xf32>
    %20 = vector.broadcast %2 : vector<1x64xf32> to vector<8x64xf32>
    %21 = arith.mulf %19, %20 : vector<8x64xf32>
    %22 = vector.broadcast %3 : vector<1x64xf32> to vector<8x64xf32>
    %23 = arith.addf %21, %22 : vector<8x64xf32>
    %24 = arith.truncf %23 : vector<8x64xf32> to vector<8x64xbf16>
    %c0_10 = arith.constant 0 : index
    %c0_11 = arith.constant 0 : index
    %25 = vector.load %arg5[%c0_10, %c0_11] : memref<64x192xbf16, #tpu.memory_space<vmem>>, vector<64x192xbf16>
    %cst_12 = arith.constant dense<0.000000e+00> : vector<8x192xf32>
    %26 = tpu.matmul %24, %25, %cst_12 {dimension_numbers = #tpu.dot_dimension_numbers<[1], [0], [0], [1], [0, 0, 1, 1], [], []>} : vector<8x64xbf16>, vector<64x192xbf16>, vector<8x192xf32> -> vector<8x192xf32>
    %c0_13 = arith.constant 0 : index
    %c0_14 = arith.constant 0 : index
    %27 = vector.load %arg6[%c0_13, %c0_14] : memref<1x192xf32, #tpu.memory_space<vmem>>, vector<1x192xf32>
    %28 = vector.broadcast %27 : vector<1x192xf32> to vector<8x192xf32>
    %29 = arith.addf %26, %28 : vector<8x192xf32>
    %30 = vector.extract_strided_slice %29 {offsets = [0, 0], sizes = [8, 64], strides = [1, 1]} : vector<8x192xf32> to vector<8x64xf32>
    %31 = vector.extract_strided_slice %29 {offsets = [0, 64], sizes = [8, 64], strides = [1, 1]} : vector<8x192xf32> to vector<8x64xf32>
    %32 = vector.extract_strided_slice %29 {offsets = [0, 128], sizes = [8, 64], strides = [1, 1]} : vector<8x192xf32> to vector<8x64xf32>
    %33 = vector.extract_strided_slice %30 {offsets = [0, 0], sizes = [8, 4], strides = [1, 1]} : vector<8x64xf32> to vector<8x4xf32>
    %34 = vector.extract_strided_slice %31 {offsets = [0, 0], sizes = [8, 4], strides = [1, 1]} : vector<8x64xf32> to vector<8x4xf32>
    %35 = vector.extract_strided_slice %32 {offsets = [0, 0], sizes = [8, 4], strides = [1, 1]} : vector<8x64xf32> to vector<8x4xf32>
    %cst_15 = arith.constant dense<0.000000e+00> : vector<8x8xf32>
    %36 = tpu.matmul %33, %34, %cst_15 {dimension_numbers = #tpu.dot_dimension_numbers<[1], [1], [0], [0], [0, 0, 1, 0], [], []>} : vector<8x4xf32>, vector<8x4xf32>, vector<8x8xf32> -> vector<8x8xf32>
    %cst_16 = arith.constant 5.000000e-01 : f32
    %37 = vector.broadcast %cst_16 : f32 to vector<8x8xf32>
    %38 = arith.mulf %36, %37 : vector<8x8xf32>
    %cst_17 = arith.constant dense<0xFF800000> : vector<8xf32>
    %39 = vector.multi_reduction <maximumf>, %38, %cst_17 [1] : vector<8x8xf32> to vector<8xf32>
    %40 = vector.shape_cast %39 : vector<8xf32> to vector<8x1xf32>
    %41 = vector.broadcast %40 : vector<8x1xf32> to vector<8x8xf32>
    %42 = arith.subf %38, %41 : vector<8x8xf32>
    %43 = math.exp %42 : vector<8x8xf32>
    %cst_18 = arith.constant dense<0.000000e+00> : vector<8xf32>
    %44 = vector.multi_reduction <add>, %43, %cst_18 [1] : vector<8x8xf32> to vector<8xf32>
    %45 = vector.shape_cast %44 : vector<8xf32> to vector<8x1xf32>
    %46 = tpu.reciprocal %45 {approx = true} : vector<8x1xf32> -> vector<8x1xf32>
    %47 = vector.broadcast %46 : vector<8x1xf32> to vector<8x8xf32>
    %48 = arith.mulf %43, %47 : vector<8x8xf32>
    %cst_19 = arith.constant dense<0.000000e+00> : vector<8x4xf32>
    %49 = tpu.matmul %48, %35, %cst_19 {dimension_numbers = #tpu.dot_dimension_numbers<[1], [0], [0], [1], [0, 0, 1, 1], [], []>} : vector<8x8xf32>, vector<8x4xf32>, vector<8x4xf32> -> vector<8x4xf32>
    %c0_20 = arith.constant 0 : index
    %c0_21 = arith.constant 0 : index
    %50 = vector.load %arg26[%c0_20, %c0_21] : memref<8x64xf32, #tpu.memory_space<vmem>>, vector<8x4xf32>
    tpu.vector_store %arg26[%c0_20, %c0_21], %49 {strides = array<i32>} : memref<8x64xf32, #tpu.memory_space<vmem>>, vector<8x4xf32>,
    %51 = vector.extract_strided_slice %30 {offsets = [0, 4], sizes = [8, 4], strides = [1, 1]} : vector<8x64xf32> to vector<8x4xf32>
    %52 = vector.extract_strided_slice %31 {offsets = [0, 4], sizes = [8, 4], strides = [1, 1]} : vector<8x64xf32> to vector<8x4xf32>
    %53 = vector.extract_strided_slice %32 {offsets = [0, 4], sizes = [8, 4], strides = [1, 1]} : vector<8x64xf32> to vector<8x4xf32>
    %cst_22 = arith.constant dense<0.000000e+00> : vector<8x8xf32>
    %54 = tpu.matmul %51, %52, %cst_22 {dimension_numbers = #tpu.dot_dimension_numbers<[1], [1], [0], [0], [0, 0, 1, 0], [], []>} : vector<8x4xf32>, vector<8x4xf32>, vector<8x8xf32> -> vector<8x8xf32>
    %cst_23 = arith.constant 5.000000e-01 : f32
    %55 = vector.broadcast %cst_23 : f32 to vector<8x8xf32>
    %56 = arith.mulf %54, %55 : vector<8x8xf32>
    %cst_24 = arith.constant dense<0xFF800000> : vector<8xf32>
    %57 = vector.multi_reduction <maximumf>, %56, %cst_24 [1] : vector<8x8xf32> to vector<8xf32>
    %58 = vector.shape_cast %57 : vector<8xf32> to vector<8x1xf32>
    %59 = vector.broadcast %58 : vector<8x1xf32> to vector<8x8xf32>
    %60 = arith.subf %56, %59 : vector<8x8xf32>
    %61 = math.exp %60 : vector<8x8xf32>
    %cst_25 = arith.constant dense<0.000000e+00> : vector<8xf32>
    %62 = vector.multi_reduction <add>, %61, %cst_25 [1] : vector<8x8xf32> to vector<8xf32>
    %63 = vector.shape_cast %62 : vector<8xf32> to vector<8x1xf32>
    %64 = tpu.reciprocal %63 {approx = true} : vector<8x1xf32> -> vector<8x1xf32>
    %65 = vector.broadcast %64 : vector<8x1xf32> to vector<8x8xf32>
    %66 = arith.mulf %61, %65 : vector<8x8xf32>
    %cst_26 = arith.constant dense<0.000000e+00> : vector<8x4xf32>
    %67 = tpu.matmul %66, %53, %cst_26 {dimension_numbers = #tpu.dot_dimension_numbers<[1], [0], [0], [1], [0, 0, 1, 1], [], []>} : vector<8x8xf32>, vector<8x4xf32>, vector<8x4xf32> -> vector<8x4xf32>
    %c0_27 = arith.constant 0 : index
    %c4 = arith.constant 4 : index
    %68 = vector.load %arg26[%c0_27, %c4] : memref<8x64xf32, #tpu.memory_space<vmem>>, vector<8x4xf32>
    tpu.vector_store %arg26[%c0_27, %c4], %67 {strides = array<i32>} : memref<8x64xf32, #tpu.memory_space<vmem>>, vector<8x4xf32>,
    %69 = vector.extract_strided_slice %30 {offsets = [0, 8], sizes = [8, 4], strides = [1, 1]} : vector<8x64xf32> to vector<8x4xf32>
    %70 = vector.extract_strided_slice %31 {offsets = [0, 8], sizes = [8, 4], strides = [1, 1]} : vector<8x64xf32> to vector<8x4xf32>
    %71 = vector.extract_strided_slice %32 {offsets = [0, 8], sizes = [8, 4], strides = [1, 1]} : vector<8x64xf32> to vector<8x4xf32>
    %cst_28 = arith.constant dense<0.000000e+00> : vector<8x8xf32>
    %72 = tpu.matmul %69, %70, %cst_28 {dimension_numbers = #tpu.dot_dimension_numbers<[1], [1], [0], [0], [0, 0, 1, 0], [], []>} : vector<8x4xf32>, vector<8x4xf32>, vector<8x8xf32> -> vector<8x8xf32>
    %cst_29 = arith.constant 5.000000e-01 : f32
    %73 = vector.broadcast %cst_29 : f32 to vector<8x8xf32>
    %74 = arith.mulf %72, %73 : vector<8x8xf32>
    %cst_30 = arith.constant dense<0xFF800000> : vector<8xf32>
    %75 = vector.multi_reduction <maximumf>, %74, %cst_30 [1] : vector<8x8xf32> to vector<8xf32>
    %76 = vector.shape_cast %75 : vector<8xf32> to vector<8x1xf32>
    %77 = vector.broadcast %76 : vector<8x1xf32> to vector<8x8xf32>
    %78 = arith.subf %74, %77 : vector<8x8xf32>
    %79 = math.exp %78 : vector<8x8xf32>
    %cst_31 = arith.constant dense<0.000000e+00> : vector<8xf32>
    %80 = vector.multi_reduction <add>, %79, %cst_31 [1] : vector<8x8xf32> to vector<8xf32>
    %81 = vector.shape_cast %80 : vector<8xf32> to vector<8x1xf32>
    %82 = tpu.reciprocal %81 {approx = true} : vector<8x1xf32> -> vector<8x1xf32>
    %83 = vector.broadcast %82 : vector<8x1xf32> to vector<8x8xf32>
    %84 = arith.mulf %79, %83 : vector<8x8xf32>
    %cst_32 = arith.constant dense<0.000000e+00> : vector<8x4xf32>
    %85 = tpu.matmul %84, %71, %cst_32 {dimension_numbers = #tpu.dot_dimension_numbers<[1], [0], [0], [1], [0, 0, 1, 1], [], []>} : vector<8x8xf32>, vector<8x4xf32>, vector<8x4xf32> -> vector<8x4xf32>
    %c0_33 = arith.constant 0 : index
    %c8 = arith.constant 8 : index
    %86 = vector.load %arg26[%c0_33, %c8] : memref<8x64xf32, #tpu.memory_space<vmem>>, vector<8x4xf32>
    tpu.vector_store %arg26[%c0_33, %c8], %85 {strides = array<i32>} : memref<8x64xf32, #tpu.memory_space<vmem>>, vector<8x4xf32>,
    %87 = vector.extract_strided_slice %30 {offsets = [0, 12], sizes = [8, 4], strides = [1, 1]} : vector<8x64xf32> to vector<8x4xf32>
    %88 = vector.extract_strided_slice %31 {offsets = [0, 12], sizes = [8, 4], strides = [1, 1]} : vector<8x64xf32> to vector<8x4xf32>
    %89 = vector.extract_strided_slice %32 {offsets = [0, 12], sizes = [8, 4], strides = [1, 1]} : vector<8x64xf32> to vector<8x4xf32>
    %cst_34 = arith.constant dense<0.000000e+00> : vector<8x8xf32>
    %90 = tpu.matmul %87, %88, %cst_34 {dimension_numbers = #tpu.dot_dimension_numbers<[1], [1], [0], [0], [0, 0, 1, 0], [], []>} : vector<8x4xf32>, vector<8x4xf32>, vector<8x8xf32> -> vector<8x8xf32>
    %cst_35 = arith.constant 5.000000e-01 : f32
    %91 = vector.broadcast %cst_35 : f32 to vector<8x8xf32>
    %92 = arith.mulf %90, %91 : vector<8x8xf32>
    %cst_36 = arith.constant dense<0xFF800000> : vector<8xf32>
    %93 = vector.multi_reduction <maximumf>, %92, %cst_36 [1] : vector<8x8xf32> to vector<8xf32>
    %94 = vector.shape_cast %93 : vector<8xf32> to vector<8x1xf32>
    %95 = vector.broadcast %94 : vector<8x1xf32> to vector<8x8xf32>
    %96 = arith.subf %92, %95 : vector<8x8xf32>
    %97 = math.exp %96 : vector<8x8xf32>
    %cst_37 = arith.constant dense<0.000000e+00> : vector<8xf32>
    %98 = vector.multi_reduction <add>, %97, %cst_37 [1] : vector<8x8xf32> to vector<8xf32>
    %99 = vector.shape_cast %98 : vector<8xf32> to vector<8x1xf32>
    %100 = tpu.reciprocal %99 {approx = true} : vector<8x1xf32> -> vector<8x1xf32>
    %101 = vector.broadcast %100 : vector<8x1xf32> to vector<8x8xf32>
    %102 = arith.mulf %97, %101 : vector<8x8xf32>
    %cst_38 = arith.constant dense<0.000000e+00> : vector<8x4xf32>
    %103 = tpu.matmul %102, %89, %cst_38 {dimension_numbers = #tpu.dot_dimension_numbers<[1], [0], [0], [1], [0, 0, 1, 1], [], []>} : vector<8x8xf32>, vector<8x4xf32>, vector<8x4xf32> -> vector<8x4xf32>
    %c0_39 = arith.constant 0 : index
    %c12 = arith.constant 12 : index
    %104 = vector.load %arg26[%c0_39, %c12] : memref<8x64xf32, #tpu.memory_space<vmem>>, vector<8x4xf32>
    tpu.vector_store %arg26[%c0_39, %c12], %103 {strides = array<i32>} : memref<8x64xf32, #tpu.memory_space<vmem>>, vector<8x4xf32>,
    %105 = vector.extract_strided_slice %30 {offsets = [0, 16], sizes = [8, 4], strides = [1, 1]} : vector<8x64xf32> to vector<8x4xf32>
    %106 = vector.extract_strided_slice %31 {offsets = [0, 16], sizes = [8, 4], strides = [1, 1]} : vector<8x64xf32> to vector<8x4xf32>
    %107 = vector.extract_strided_slice %32 {offsets = [0, 16], sizes = [8, 4], strides = [1, 1]} : vector<8x64xf32> to vector<8x4xf32>
    %cst_40 = arith.constant dense<0.000000e+00> : vector<8x8xf32>
    %108 = tpu.matmul %105, %106, %cst_40 {dimension_numbers = #tpu.dot_dimension_numbers<[1], [1], [0], [0], [0, 0, 1, 0], [], []>} : vector<8x4xf32>, vector<8x4xf32>, vector<8x8xf32> -> vector<8x8xf32>
    %cst_41 = arith.constant 5.000000e-01 : f32
    %109 = vector.broadcast %cst_41 : f32 to vector<8x8xf32>
    %110 = arith.mulf %108, %109 : vector<8x8xf32>
    %cst_42 = arith.constant dense<0xFF800000> : vector<8xf32>
    %111 = vector.multi_reduction <maximumf>, %110, %cst_42 [1] : vector<8x8xf32> to vector<8xf32>
    %112 = vector.shape_cast %111 : vector<8xf32> to vector<8x1xf32>
    %113 = vector.broadcast %112 : vector<8x1xf32> to vector<8x8xf32>
    %114 = arith.subf %110, %113 : vector<8x8xf32>
    %115 = math.exp %114 : vector<8x8xf32>
    %cst_43 = arith.constant dense<0.000000e+00> : vector<8xf32>
    %116 = vector.multi_reduction <add>, %115, %cst_43 [1] : vector<8x8xf32> to vector<8xf32>
    %117 = vector.shape_cast %116 : vector<8xf32> to vector<8x1xf32>
    %118 = tpu.reciprocal %117 {approx = true} : vector<8x1xf32> -> vector<8x1xf32>
    %119 = vector.broadcast %118 : vector<8x1xf32> to vector<8x8xf32>
    %120 = arith.mulf %115, %119 : vector<8x8xf32>
    %cst_44 = arith.constant dense<0.000000e+00> : vector<8x4xf32>
    %121 = tpu.matmul %120, %107, %cst_44 {dimension_numbers = #tpu.dot_dimension_numbers<[1], [0], [0], [1], [0, 0, 1, 1], [], []>} : vector<8x8xf32>, vector<8x4xf32>, vector<8x4xf32> -> vector<8x4xf32>
    %c0_45 = arith.constant 0 : index
    %c16 = arith.constant 16 : index
    %122 = vector.load %arg26[%c0_45, %c16] : memref<8x64xf32, #tpu.memory_space<vmem>>, vector<8x4xf32>
    tpu.vector_store %arg26[%c0_45, %c16], %121 {strides = array<i32>} : memref<8x64xf32, #tpu.memory_space<vmem>>, vector<8x4xf32>,
    %123 = vector.extract_strided_slice %30 {offsets = [0, 20], sizes = [8, 4], strides = [1, 1]} : vector<8x64xf32> to vector<8x4xf32>
    %124 = vector.extract_strided_slice %31 {offsets = [0, 20], sizes = [8, 4], strides = [1, 1]} : vector<8x64xf32> to vector<8x4xf32>
    %125 = vector.extract_strided_slice %32 {offsets = [0, 20], sizes = [8, 4], strides = [1, 1]} : vector<8x64xf32> to vector<8x4xf32>
    %cst_46 = arith.constant dense<0.000000e+00> : vector<8x8xf32>
    %126 = tpu.matmul %123, %124, %cst_46 {dimension_numbers = #tpu.dot_dimension_numbers<[1], [1], [0], [0], [0, 0, 1, 0], [], []>} : vector<8x4xf32>, vector<8x4xf32>, vector<8x8xf32> -> vector<8x8xf32>
    %cst_47 = arith.constant 5.000000e-01 : f32
    %127 = vector.broadcast %cst_47 : f32 to vector<8x8xf32>
    %128 = arith.mulf %126, %127 : vector<8x8xf32>
    %cst_48 = arith.constant dense<0xFF800000> : vector<8xf32>
    %129 = vector.multi_reduction <maximumf>, %128, %cst_48 [1] : vector<8x8xf32> to vector<8xf32>
    %130 = vector.shape_cast %129 : vector<8xf32> to vector<8x1xf32>
    %131 = vector.broadcast %130 : vector<8x1xf32> to vector<8x8xf32>
    %132 = arith.subf %128, %131 : vector<8x8xf32>
    %133 = math.exp %132 : vector<8x8xf32>
    %cst_49 = arith.constant dense<0.000000e+00> : vector<8xf32>
    %134 = vector.multi_reduction <add>, %133, %cst_49 [1] : vector<8x8xf32> to vector<8xf32>
    %135 = vector.shape_cast %134 : vector<8xf32> to vector<8x1xf32>
    %136 = tpu.reciprocal %135 {approx = true} : vector<8x1xf32> -> vector<8x1xf32>
    %137 = vector.broadcast %136 : vector<8x1xf32> to vector<8x8xf32>
    %138 = arith.mulf %133, %137 : vector<8x8xf32>
    %cst_50 = arith.constant dense<0.000000e+00> : vector<8x4xf32>
    %139 = tpu.matmul %138, %125, %cst_50 {dimension_numbers = #tpu.dot_dimension_numbers<[1], [0], [0], [1], [0, 0, 1, 1], [], []>} : vector<8x8xf32>, vector<8x4xf32>, vector<8x4xf32> -> vector<8x4xf32>
    %c0_51 = arith.constant 0 : index
    %c20 = arith.constant 20 : index
    %140 = vector.load %arg26[%c0_51, %c20] : memref<8x64xf32, #tpu.memory_space<vmem>>, vector<8x4xf32>
    tpu.vector_store %arg26[%c0_51, %c20], %139 {strides = array<i32>} : memref<8x64xf32, #tpu.memory_space<vmem>>, vector<8x4xf32>,
    %141 = vector.extract_strided_slice %30 {offsets = [0, 24], sizes = [8, 4], strides = [1, 1]} : vector<8x64xf32> to vector<8x4xf32>
    %142 = vector.extract_strided_slice %31 {offsets = [0, 24], sizes = [8, 4], strides = [1, 1]} : vector<8x64xf32> to vector<8x4xf32>
    %143 = vector.extract_strided_slice %32 {offsets = [0, 24], sizes = [8, 4], strides = [1, 1]} : vector<8x64xf32> to vector<8x4xf32>
    %cst_52 = arith.constant dense<0.000000e+00> : vector<8x8xf32>
    %144 = tpu.matmul %141, %142, %cst_52 {dimension_numbers = #tpu.dot_dimension_numbers<[1], [1], [0], [0], [0, 0, 1, 0], [], []>} : vector<8x4xf32>, vector<8x4xf32>, vector<8x8xf32> -> vector<8x8xf32>
    %cst_53 = arith.constant 5.000000e-01 : f32
    %145 = vector.broadcast %cst_53 : f32 to vector<8x8xf32>
    %146 = arith.mulf %144, %145 : vector<8x8xf32>
    %cst_54 = arith.constant dense<0xFF800000> : vector<8xf32>
    %147 = vector.multi_reduction <maximumf>, %146, %cst_54 [1] : vector<8x8xf32> to vector<8xf32>
    %148 = vector.shape_cast %147 : vector<8xf32> to vector<8x1xf32>
    %149 = vector.broadcast %148 : vector<8x1xf32> to vector<8x8xf32>
    %150 = arith.subf %146, %149 : vector<8x8xf32>
    %151 = math.exp %150 : vector<8x8xf32>
    %cst_55 = arith.constant dense<0.000000e+00> : vector<8xf32>
    %152 = vector.multi_reduction <add>, %151, %cst_55 [1] : vector<8x8xf32> to vector<8xf32>
    %153 = vector.shape_cast %152 : vector<8xf32> to vector<8x1xf32>
    %154 = tpu.reciprocal %153 {approx = true} : vector<8x1xf32> -> vector<8x1xf32>
    %155 = vector.broadcast %154 : vector<8x1xf32> to vector<8x8xf32>
    %156 = arith.mulf %151, %155 : vector<8x8xf32>
    %cst_56 = arith.constant dense<0.000000e+00> : vector<8x4xf32>
    %157 = tpu.matmul %156, %143, %cst_56 {dimension_numbers = #tpu.dot_dimension_numbers<[1], [0], [0], [1], [0, 0, 1, 1], [], []>} : vector<8x8xf32>, vector<8x4xf32>, vector<8x4xf32> -> vector<8x4xf32>
    %c0_57 = arith.constant 0 : index
    %c24 = arith.constant 24 : index
    %158 = vector.load %arg26[%c0_57, %c24] : memref<8x64xf32, #tpu.memory_space<vmem>>, vector<8x4xf32>
    tpu.vector_store %arg26[%c0_57, %c24], %157 {strides = array<i32>} : memref<8x64xf32, #tpu.memory_space<vmem>>, vector<8x4xf32>,
    %159 = vector.extract_strided_slice %30 {offsets = [0, 28], sizes = [8, 4], strides = [1, 1]} : vector<8x64xf32> to vector<8x4xf32>
    %160 = vector.extract_strided_slice %31 {offsets = [0, 28], sizes = [8, 4], strides = [1, 1]} : vector<8x64xf32> to vector<8x4xf32>
    %161 = vector.extract_strided_slice %32 {offsets = [0, 28], sizes = [8, 4], strides = [1, 1]} : vector<8x64xf32> to vector<8x4xf32>
    %cst_58 = arith.constant dense<0.000000e+00> : vector<8x8xf32>
    %162 = tpu.matmul %159, %160, %cst_58 {dimension_numbers = #tpu.dot_dimension_numbers<[1], [1], [0], [0], [0, 0, 1, 0], [], []>} : vector<8x4xf32>, vector<8x4xf32>, vector<8x8xf32> -> vector<8x8xf32>
    %cst_59 = arith.constant 5.000000e-01 : f32
    %163 = vector.broadcast %cst_59 : f32 to vector<8x8xf32>
    %164 = arith.mulf %162, %163 : vector<8x8xf32>
    %cst_60 = arith.constant dense<0xFF800000> : vector<8xf32>
    %165 = vector.multi_reduction <maximumf>, %164, %cst_60 [1] : vector<8x8xf32> to vector<8xf32>
    %166 = vector.shape_cast %165 : vector<8xf32> to vector<8x1xf32>
    %167 = vector.broadcast %166 : vector<8x1xf32> to vector<8x8xf32>
    %168 = arith.subf %164, %167 : vector<8x8xf32>
    %169 = math.exp %168 : vector<8x8xf32>
    %cst_61 = arith.constant dense<0.000000e+00> : vector<8xf32>
    %170 = vector.multi_reduction <add>, %169, %cst_61 [1] : vector<8x8xf32> to vector<8xf32>
    %171 = vector.shape_cast %170 : vector<8xf32> to vector<8x1xf32>
    %172 = tpu.reciprocal %171 {approx = true} : vector<8x1xf32> -> vector<8x1xf32>
    %173 = vector.broadcast %172 : vector<8x1xf32> to vector<8x8xf32>
    %174 = arith.mulf %169, %173 : vector<8x8xf32>
    %cst_62 = arith.constant dense<0.000000e+00> : vector<8x4xf32>
    %175 = tpu.matmul %174, %161, %cst_62 {dimension_numbers = #tpu.dot_dimension_numbers<[1], [0], [0], [1], [0, 0, 1, 1], [], []>} : vector<8x8xf32>, vector<8x4xf32>, vector<8x4xf32> -> vector<8x4xf32>
    %c0_63 = arith.constant 0 : index
    %c28 = arith.constant 28 : index
    %176 = vector.load %arg26[%c0_63, %c28] : memref<8x64xf32, #tpu.memory_space<vmem>>, vector<8x4xf32>
    tpu.vector_store %arg26[%c0_63, %c28], %175 {strides = array<i32>} : memref<8x64xf32, #tpu.memory_space<vmem>>, vector<8x4xf32>,
    %177 = vector.extract_strided_slice %30 {offsets = [0, 32], sizes = [8, 4], strides = [1, 1]} : vector<8x64xf32> to vector<8x4xf32>
    %178 = vector.extract_strided_slice %31 {offsets = [0, 32], sizes = [8, 4], strides = [1, 1]} : vector<8x64xf32> to vector<8x4xf32>
    %179 = vector.extract_strided_slice %32 {offsets = [0, 32], sizes = [8, 4], strides = [1, 1]} : vector<8x64xf32> to vector<8x4xf32>
    %cst_64 = arith.constant dense<0.000000e+00> : vector<8x8xf32>
    %180 = tpu.matmul %177, %178, %cst_64 {dimension_numbers = #tpu.dot_dimension_numbers<[1], [1], [0], [0], [0, 0, 1, 0], [], []>} : vector<8x4xf32>, vector<8x4xf32>, vector<8x8xf32> -> vector<8x8xf32>
    %cst_65 = arith.constant 5.000000e-01 : f32
    %181 = vector.broadcast %cst_65 : f32 to vector<8x8xf32>
    %182 = arith.mulf %180, %181 : vector<8x8xf32>
    %cst_66 = arith.constant dense<0xFF800000> : vector<8xf32>
    %183 = vector.multi_reduction <maximumf>, %182, %cst_66 [1] : vector<8x8xf32> to vector<8xf32>
    %184 = vector.shape_cast %183 : vector<8xf32> to vector<8x1xf32>
    %185 = vector.broadcast %184 : vector<8x1xf32> to vector<8x8xf32>
    %186 = arith.subf %182, %185 : vector<8x8xf32>
    %187 = math.exp %186 : vector<8x8xf32>
    %cst_67 = arith.constant dense<0.000000e+00> : vector<8xf32>
    %188 = vector.multi_reduction <add>, %187, %cst_67 [1] : vector<8x8xf32> to vector<8xf32>
    %189 = vector.shape_cast %188 : vector<8xf32> to vector<8x1xf32>
    %190 = tpu.reciprocal %189 {approx = true} : vector<8x1xf32> -> vector<8x1xf32>
    %191 = vector.broadcast %190 : vector<8x1xf32> to vector<8x8xf32>
    %192 = arith.mulf %187, %191 : vector<8x8xf32>
    %cst_68 = arith.constant dense<0.000000e+00> : vector<8x4xf32>
    %193 = tpu.matmul %192, %179, %cst_68 {dimension_numbers = #tpu.dot_dimension_numbers<[1], [0], [0], [1], [0, 0, 1, 1], [], []>} : vector<8x8xf32>, vector<8x4xf32>, vector<8x4xf32> -> vector<8x4xf32>
    %c0_69 = arith.constant 0 : index
    %c32 = arith.constant 32 : index
    %194 = vector.load %arg26[%c0_69, %c32] : memref<8x64xf32, #tpu.memory_space<vmem>>, vector<8x4xf32>
    tpu.vector_store %arg26[%c0_69, %c32], %193 {strides = array<i32>} : memref<8x64xf32, #tpu.memory_space<vmem>>, vector<8x4xf32>,
    %195 = vector.extract_strided_slice %30 {offsets = [0, 36], sizes = [8, 4], strides = [1, 1]} : vector<8x64xf32> to vector<8x4xf32>
    %196 = vector.extract_strided_slice %31 {offsets = [0, 36], sizes = [8, 4], strides = [1, 1]} : vector<8x64xf32> to vector<8x4xf32>
    %197 = vector.extract_strided_slice %32 {offsets = [0, 36], sizes = [8, 4], strides = [1, 1]} : vector<8x64xf32> to vector<8x4xf32>
    %cst_70 = arith.constant dense<0.000000e+00> : vector<8x8xf32>
    %198 = tpu.matmul %195, %196, %cst_70 {dimension_numbers = #tpu.dot_dimension_numbers<[1], [1], [0], [0], [0, 0, 1, 0], [], []>} : vector<8x4xf32>, vector<8x4xf32>, vector<8x8xf32> -> vector<8x8xf32>
    %cst_71 = arith.constant 5.000000e-01 : f32
    %199 = vector.broadcast %cst_71 : f32 to vector<8x8xf32>
    %200 = arith.mulf %198, %199 : vector<8x8xf32>
    %cst_72 = arith.constant dense<0xFF800000> : vector<8xf32>
    %201 = vector.multi_reduction <maximumf>, %200, %cst_72 [1] : vector<8x8xf32> to vector<8xf32>
    %202 = vector.shape_cast %201 : vector<8xf32> to vector<8x1xf32>
    %203 = vector.broadcast %202 : vector<8x1xf32> to vector<8x8xf32>
    %204 = arith.subf %200, %203 : vector<8x8xf32>
    %205 = math.exp %204 : vector<8x8xf32>
    %cst_73 = arith.constant dense<0.000000e+00> : vector<8xf32>
    %206 = vector.multi_reduction <add>, %205, %cst_73 [1] : vector<8x8xf32> to vector<8xf32>
    %207 = vector.shape_cast %206 : vector<8xf32> to vector<8x1xf32>
    %208 = tpu.reciprocal %207 {approx = true} : vector<8x1xf32> -> vector<8x1xf32>
    %209 = vector.broadcast %208 : vector<8x1xf32> to vector<8x8xf32>
    %210 = arith.mulf %205, %209 : vector<8x8xf32>
    %cst_74 = arith.constant dense<0.000000e+00> : vector<8x4xf32>
    %211 = tpu.matmul %210, %197, %cst_74 {dimension_numbers = #tpu.dot_dimension_numbers<[1], [0], [0], [1], [0, 0, 1, 1], [], []>} : vector<8x8xf32>, vector<8x4xf32>, vector<8x4xf32> -> vector<8x4xf32>
    %c0_75 = arith.constant 0 : index
    %c36 = arith.constant 36 : index
    %212 = vector.load %arg26[%c0_75, %c36] : memref<8x64xf32, #tpu.memory_space<vmem>>, vector<8x4xf32>
    tpu.vector_store %arg26[%c0_75, %c36], %211 {strides = array<i32>} : memref<8x64xf32, #tpu.memory_space<vmem>>, vector<8x4xf32>,
    %213 = vector.extract_strided_slice %30 {offsets = [0, 40], sizes = [8, 4], strides = [1, 1]} : vector<8x64xf32> to vector<8x4xf32>
    %214 = vector.extract_strided_slice %31 {offsets = [0, 40], sizes = [8, 4], strides = [1, 1]} : vector<8x64xf32> to vector<8x4xf32>
    %215 = vector.extract_strided_slice %32 {offsets = [0, 40], sizes = [8, 4], strides = [1, 1]} : vector<8x64xf32> to vector<8x4xf32>
    %cst_76 = arith.constant dense<0.000000e+00> : vector<8x8xf32>
    %216 = tpu.matmul %213, %214, %cst_76 {dimension_numbers = #tpu.dot_dimension_numbers<[1], [1], [0], [0], [0, 0, 1, 0], [], []>} : vector<8x4xf32>, vector<8x4xf32>, vector<8x8xf32> -> vector<8x8xf32>
    %cst_77 = arith.constant 5.000000e-01 : f32
    %217 = vector.broadcast %cst_77 : f32 to vector<8x8xf32>
    %218 = arith.mulf %216, %217 : vector<8x8xf32>
    %cst_78 = arith.constant dense<0xFF800000> : vector<8xf32>
    %219 = vector.multi_reduction <maximumf>, %218, %cst_78 [1] : vector<8x8xf32> to vector<8xf32>
    %220 = vector.shape_cast %219 : vector<8xf32> to vector<8x1xf32>
    %221 = vector.broadcast %220 : vector<8x1xf32> to vector<8x8xf32>
    %222 = arith.subf %218, %221 : vector<8x8xf32>
    %223 = math.exp %222 : vector<8x8xf32>
    %cst_79 = arith.constant dense<0.000000e+00> : vector<8xf32>
    %224 = vector.multi_reduction <add>, %223, %cst_79 [1] : vector<8x8xf32> to vector<8xf32>
    %225 = vector.shape_cast %224 : vector<8xf32> to vector<8x1xf32>
    %226 = tpu.reciprocal %225 {approx = true} : vector<8x1xf32> -> vector<8x1xf32>
    %227 = vector.broadcast %226 : vector<8x1xf32> to vector<8x8xf32>
    %228 = arith.mulf %223, %227 : vector<8x8xf32>
    %cst_80 = arith.constant dense<0.000000e+00> : vector<8x4xf32>
    %229 = tpu.matmul %228, %215, %cst_80 {dimension_numbers = #tpu.dot_dimension_numbers<[1], [0], [0], [1], [0, 0, 1, 1], [], []>} : vector<8x8xf32>, vector<8x4xf32>, vector<8x4xf32> -> vector<8x4xf32>
    %c0_81 = arith.constant 0 : index
    %c40 = arith.constant 40 : index
    %230 = vector.load %arg26[%c0_81, %c40] : memref<8x64xf32, #tpu.memory_space<vmem>>, vector<8x4xf32>
    tpu.vector_store %arg26[%c0_81, %c40], %229 {strides = array<i32>} : memref<8x64xf32, #tpu.memory_space<vmem>>, vector<8x4xf32>,
    %231 = vector.extract_strided_slice %30 {offsets = [0, 44], sizes = [8, 4], strides = [1, 1]} : vector<8x64xf32> to vector<8x4xf32>
    %232 = vector.extract_strided_slice %31 {offsets = [0, 44], sizes = [8, 4], strides = [1, 1]} : vector<8x64xf32> to vector<8x4xf32>
    %233 = vector.extract_strided_slice %32 {offsets = [0, 44], sizes = [8, 4], strides = [1, 1]} : vector<8x64xf32> to vector<8x4xf32>
    %cst_82 = arith.constant dense<0.000000e+00> : vector<8x8xf32>
    %234 = tpu.matmul %231, %232, %cst_82 {dimension_numbers = #tpu.dot_dimension_numbers<[1], [1], [0], [0], [0, 0, 1, 0], [], []>} : vector<8x4xf32>, vector<8x4xf32>, vector<8x8xf32> -> vector<8x8xf32>
    %cst_83 = arith.constant 5.000000e-01 : f32
    %235 = vector.broadcast %cst_83 : f32 to vector<8x8xf32>
    %236 = arith.mulf %234, %235 : vector<8x8xf32>
    %cst_84 = arith.constant dense<0xFF800000> : vector<8xf32>
    %237 = vector.multi_reduction <maximumf>, %236, %cst_84 [1] : vector<8x8xf32> to vector<8xf32>
    %238 = vector.shape_cast %237 : vector<8xf32> to vector<8x1xf32>
    %239 = vector.broadcast %238 : vector<8x1xf32> to vector<8x8xf32>
    %240 = arith.subf %236, %239 : vector<8x8xf32>
    %241 = math.exp %240 : vector<8x8xf32>
    %cst_85 = arith.constant dense<0.000000e+00> : vector<8xf32>
    %242 = vector.multi_reduction <add>, %241, %cst_85 [1] : vector<8x8xf32> to vector<8xf32>
    %243 = vector.shape_cast %242 : vector<8xf32> to vector<8x1xf32>
    %244 = tpu.reciprocal %243 {approx = true} : vector<8x1xf32> -> vector<8x1xf32>
    %245 = vector.broadcast %244 : vector<8x1xf32> to vector<8x8xf32>
    %246 = arith.mulf %241, %245 : vector<8x8xf32>
    %cst_86 = arith.constant dense<0.000000e+00> : vector<8x4xf32>
    %247 = tpu.matmul %246, %233, %cst_86 {dimension_numbers = #tpu.dot_dimension_numbers<[1], [0], [0], [1], [0, 0, 1, 1], [], []>} : vector<8x8xf32>, vector<8x4xf32>, vector<8x4xf32> -> vector<8x4xf32>
    %c0_87 = arith.constant 0 : index
    %c44 = arith.constant 44 : index
    %248 = vector.load %arg26[%c0_87, %c44] : memref<8x64xf32, #tpu.memory_space<vmem>>, vector<8x4xf32>
    tpu.vector_store %arg26[%c0_87, %c44], %247 {strides = array<i32>} : memref<8x64xf32, #tpu.memory_space<vmem>>, vector<8x4xf32>,
    %249 = vector.extract_strided_slice %30 {offsets = [0, 48], sizes = [8, 4], strides = [1, 1]} : vector<8x64xf32> to vector<8x4xf32>
    %250 = vector.extract_strided_slice %31 {offsets = [0, 48], sizes = [8, 4], strides = [1, 1]} : vector<8x64xf32> to vector<8x4xf32>
    %251 = vector.extract_strided_slice %32 {offsets = [0, 48], sizes = [8, 4], strides = [1, 1]} : vector<8x64xf32> to vector<8x4xf32>
    %cst_88 = arith.constant dense<0.000000e+00> : vector<8x8xf32>
    %252 = tpu.matmul %249, %250, %cst_88 {dimension_numbers = #tpu.dot_dimension_numbers<[1], [1], [0], [0], [0, 0, 1, 0], [], []>} : vector<8x4xf32>, vector<8x4xf32>, vector<8x8xf32> -> vector<8x8xf32>
    %cst_89 = arith.constant 5.000000e-01 : f32
    %253 = vector.broadcast %cst_89 : f32 to vector<8x8xf32>
    %254 = arith.mulf %252, %253 : vector<8x8xf32>
    %cst_90 = arith.constant dense<0xFF800000> : vector<8xf32>
    %255 = vector.multi_reduction <maximumf>, %254, %cst_90 [1] : vector<8x8xf32> to vector<8xf32>
    %256 = vector.shape_cast %255 : vector<8xf32> to vector<8x1xf32>
    %257 = vector.broadcast %256 : vector<8x1xf32> to vector<8x8xf32>
    %258 = arith.subf %254, %257 : vector<8x8xf32>
    %259 = math.exp %258 : vector<8x8xf32>
    %cst_91 = arith.constant dense<0.000000e+00> : vector<8xf32>
    %260 = vector.multi_reduction <add>, %259, %cst_91 [1] : vector<8x8xf32> to vector<8xf32>
    %261 = vector.shape_cast %260 : vector<8xf32> to vector<8x1xf32>
    %262 = tpu.reciprocal %261 {approx = true} : vector<8x1xf32> -> vector<8x1xf32>
    %263 = vector.broadcast %262 : vector<8x1xf32> to vector<8x8xf32>
    %264 = arith.mulf %259, %263 : vector<8x8xf32>
    %cst_92 = arith.constant dense<0.000000e+00> : vector<8x4xf32>
    %265 = tpu.matmul %264, %251, %cst_92 {dimension_numbers = #tpu.dot_dimension_numbers<[1], [0], [0], [1], [0, 0, 1, 1], [], []>} : vector<8x8xf32>, vector<8x4xf32>, vector<8x4xf32> -> vector<8x4xf32>
    %c0_93 = arith.constant 0 : index
    %c48 = arith.constant 48 : index
    %266 = vector.load %arg26[%c0_93, %c48] : memref<8x64xf32, #tpu.memory_space<vmem>>, vector<8x4xf32>
    tpu.vector_store %arg26[%c0_93, %c48], %265 {strides = array<i32>} : memref<8x64xf32, #tpu.memory_space<vmem>>, vector<8x4xf32>,
    %267 = vector.extract_strided_slice %30 {offsets = [0, 52], sizes = [8, 4], strides = [1, 1]} : vector<8x64xf32> to vector<8x4xf32>
    %268 = vector.extract_strided_slice %31 {offsets = [0, 52], sizes = [8, 4], strides = [1, 1]} : vector<8x64xf32> to vector<8x4xf32>
    %269 = vector.extract_strided_slice %32 {offsets = [0, 52], sizes = [8, 4], strides = [1, 1]} : vector<8x64xf32> to vector<8x4xf32>
    %cst_94 = arith.constant dense<0.000000e+00> : vector<8x8xf32>
    %270 = tpu.matmul %267, %268, %cst_94 {dimension_numbers = #tpu.dot_dimension_numbers<[1], [1], [0], [0], [0, 0, 1, 0], [], []>} : vector<8x4xf32>, vector<8x4xf32>, vector<8x8xf32> -> vector<8x8xf32>
    %cst_95 = arith.constant 5.000000e-01 : f32
    %271 = vector.broadcast %cst_95 : f32 to vector<8x8xf32>
    %272 = arith.mulf %270, %271 : vector<8x8xf32>
    %cst_96 = arith.constant dense<0xFF800000> : vector<8xf32>
    %273 = vector.multi_reduction <maximumf>, %272, %cst_96 [1] : vector<8x8xf32> to vector<8xf32>
    %274 = vector.shape_cast %273 : vector<8xf32> to vector<8x1xf32>
    %275 = vector.broadcast %274 : vector<8x1xf32> to vector<8x8xf32>
    %276 = arith.subf %272, %275 : vector<8x8xf32>
    %277 = math.exp %276 : vector<8x8xf32>
    %cst_97 = arith.constant dense<0.000000e+00> : vector<8xf32>
    %278 = vector.multi_reduction <add>, %277, %cst_97 [1] : vector<8x8xf32> to vector<8xf32>
    %279 = vector.shape_cast %278 : vector<8xf32> to vector<8x1xf32>
    %280 = tpu.reciprocal %279 {approx = true} : vector<8x1xf32> -> vector<8x1xf32>
    %281 = vector.broadcast %280 : vector<8x1xf32> to vector<8x8xf32>
    %282 = arith.mulf %277, %281 : vector<8x8xf32>
    %cst_98 = arith.constant dense<0.000000e+00> : vector<8x4xf32>
    %283 = tpu.matmul %282, %269, %cst_98 {dimension_numbers = #tpu.dot_dimension_numbers<[1], [0], [0], [1], [0, 0, 1, 1], [], []>} : vector<8x8xf32>, vector<8x4xf32>, vector<8x4xf32> -> vector<8x4xf32>
    %c0_99 = arith.constant 0 : index
    %c52 = arith.constant 52 : index
    %284 = vector.load %arg26[%c0_99, %c52] : memref<8x64xf32, #tpu.memory_space<vmem>>, vector<8x4xf32>
    tpu.vector_store %arg26[%c0_99, %c52], %283 {strides = array<i32>} : memref<8x64xf32, #tpu.memory_space<vmem>>, vector<8x4xf32>,
    %285 = vector.extract_strided_slice %30 {offsets = [0, 56], sizes = [8, 4], strides = [1, 1]} : vector<8x64xf32> to vector<8x4xf32>
    %286 = vector.extract_strided_slice %31 {offsets = [0, 56], sizes = [8, 4], strides = [1, 1]} : vector<8x64xf32> to vector<8x4xf32>
    %287 = vector.extract_strided_slice %32 {offsets = [0, 56], sizes = [8, 4], strides = [1, 1]} : vector<8x64xf32> to vector<8x4xf32>
    %cst_100 = arith.constant dense<0.000000e+00> : vector<8x8xf32>
    %288 = tpu.matmul %285, %286, %cst_100 {dimension_numbers = #tpu.dot_dimension_numbers<[1], [1], [0], [0], [0, 0, 1, 0], [], []>} : vector<8x4xf32>, vector<8x4xf32>, vector<8x8xf32> -> vector<8x8xf32>
    %cst_101 = arith.constant 5.000000e-01 : f32
    %289 = vector.broadcast %cst_101 : f32 to vector<8x8xf32>
    %290 = arith.mulf %288, %289 : vector<8x8xf32>
    %cst_102 = arith.constant dense<0xFF800000> : vector<8xf32>
    %291 = vector.multi_reduction <maximumf>, %290, %cst_102 [1] : vector<8x8xf32> to vector<8xf32>
    %292 = vector.shape_cast %291 : vector<8xf32> to vector<8x1xf32>
    %293 = vector.broadcast %292 : vector<8x1xf32> to vector<8x8xf32>
    %294 = arith.subf %290, %293 : vector<8x8xf32>
    %295 = math.exp %294 : vector<8x8xf32>
    %cst_103 = arith.constant dense<0.000000e+00> : vector<8xf32>
    %296 = vector.multi_reduction <add>, %295, %cst_103 [1] : vector<8x8xf32> to vector<8xf32>
    %297 = vector.shape_cast %296 : vector<8xf32> to vector<8x1xf32>
    %298 = tpu.reciprocal %297 {approx = true} : vector<8x1xf32> -> vector<8x1xf32>
    %299 = vector.broadcast %298 : vector<8x1xf32> to vector<8x8xf32>
    %300 = arith.mulf %295, %299 : vector<8x8xf32>
    %cst_104 = arith.constant dense<0.000000e+00> : vector<8x4xf32>
    %301 = tpu.matmul %300, %287, %cst_104 {dimension_numbers = #tpu.dot_dimension_numbers<[1], [0], [0], [1], [0, 0, 1, 1], [], []>} : vector<8x8xf32>, vector<8x4xf32>, vector<8x4xf32> -> vector<8x4xf32>
    %c0_105 = arith.constant 0 : index
    %c56 = arith.constant 56 : index
    %302 = vector.load %arg26[%c0_105, %c56] : memref<8x64xf32, #tpu.memory_space<vmem>>, vector<8x4xf32>
    tpu.vector_store %arg26[%c0_105, %c56], %301 {strides = array<i32>} : memref<8x64xf32, #tpu.memory_space<vmem>>, vector<8x4xf32>,
    %303 = vector.extract_strided_slice %30 {offsets = [0, 60], sizes = [8, 4], strides = [1, 1]} : vector<8x64xf32> to vector<8x4xf32>
    %304 = vector.extract_strided_slice %31 {offsets = [0, 60], sizes = [8, 4], strides = [1, 1]} : vector<8x64xf32> to vector<8x4xf32>
    %305 = vector.extract_strided_slice %32 {offsets = [0, 60], sizes = [8, 4], strides = [1, 1]} : vector<8x64xf32> to vector<8x4xf32>
    %cst_106 = arith.constant dense<0.000000e+00> : vector<8x8xf32>
    %306 = tpu.matmul %303, %304, %cst_106 {dimension_numbers = #tpu.dot_dimension_numbers<[1], [1], [0], [0], [0, 0, 1, 0], [], []>} : vector<8x4xf32>, vector<8x4xf32>, vector<8x8xf32> -> vector<8x8xf32>
    %cst_107 = arith.constant 5.000000e-01 : f32
    %307 = vector.broadcast %cst_107 : f32 to vector<8x8xf32>
    %308 = arith.mulf %306, %307 : vector<8x8xf32>
    %cst_108 = arith.constant dense<0xFF800000> : vector<8xf32>
    %309 = vector.multi_reduction <maximumf>, %308, %cst_108 [1] : vector<8x8xf32> to vector<8xf32>
    %310 = vector.shape_cast %309 : vector<8xf32> to vector<8x1xf32>
    %311 = vector.broadcast %310 : vector<8x1xf32> to vector<8x8xf32>
    %312 = arith.subf %308, %311 : vector<8x8xf32>
    %313 = math.exp %312 : vector<8x8xf32>
    %cst_109 = arith.constant dense<0.000000e+00> : vector<8xf32>
    %314 = vector.multi_reduction <add>, %313, %cst_109 [1] : vector<8x8xf32> to vector<8xf32>
    %315 = vector.shape_cast %314 : vector<8xf32> to vector<8x1xf32>
    %316 = tpu.reciprocal %315 {approx = true} : vector<8x1xf32> -> vector<8x1xf32>
    %317 = vector.broadcast %316 : vector<8x1xf32> to vector<8x8xf32>
    %318 = arith.mulf %313, %317 : vector<8x8xf32>
    %cst_110 = arith.constant dense<0.000000e+00> : vector<8x4xf32>
    %319 = tpu.matmul %318, %305, %cst_110 {dimension_numbers = #tpu.dot_dimension_numbers<[1], [0], [0], [1], [0, 0, 1, 1], [], []>} : vector<8x8xf32>, vector<8x4xf32>, vector<8x4xf32> -> vector<8x4xf32>
    %c0_111 = arith.constant 0 : index
    %c60 = arith.constant 60 : index
    %320 = vector.load %arg26[%c0_111, %c60] : memref<8x64xf32, #tpu.memory_space<vmem>>, vector<8x4xf32>
    tpu.vector_store %arg26[%c0_111, %c60], %319 {strides = array<i32>} : memref<8x64xf32, #tpu.memory_space<vmem>>, vector<8x4xf32>,
    %c0_112 = arith.constant 0 : index
    %c0_113 = arith.constant 0 : index
    %321 = vector.load %arg26[%c0_112, %c0_113] : memref<8x64xf32, #tpu.memory_space<vmem>>, vector<8x64xf32>
    %322 = arith.truncf %321 : vector<8x64xf32> to vector<8x64xbf16>
    %c0_114 = arith.constant 0 : index
    %c0_115 = arith.constant 0 : index
    %323 = vector.load %arg7[%c0_114, %c0_115] : memref<64x64xbf16, #tpu.memory_space<vmem>>, vector<64x64xbf16>
    %cst_116 = arith.constant dense<0.000000e+00> : vector<8x64xf32>
    %324 = tpu.matmul %322, %323, %cst_116 {dimension_numbers = #tpu.dot_dimension_numbers<[1], [0], [0], [1], [0, 0, 1, 1], [], []>} : vector<8x64xbf16>, vector<64x64xbf16>, vector<8x64xf32> -> vector<8x64xf32>
    %c0_117 = arith.constant 0 : index
    %c0_118 = arith.constant 0 : index
    %325 = vector.load %arg8[%c0_117, %c0_118] : memref<1x64xf32, #tpu.memory_space<vmem>>, vector<1x64xf32>
    %326 = vector.broadcast %325 : vector<1x64xf32> to vector<8x64xf32>
    %327 = arith.addf %324, %326 : vector<8x64xf32>
    %328 = arith.addf %327, %23 : vector<8x64xf32>
    %c0_119 = arith.constant 0 : index
    %c0_120 = arith.constant 0 : index
    %329 = vector.load %arg9[%c0_119, %c0_120] : memref<1x64xf32, #tpu.memory_space<vmem>>, vector<1x64xf32>
    %c0_121 = arith.constant 0 : index
    %c0_122 = arith.constant 0 : index
    %330 = vector.load %arg10[%c0_121, %c0_122] : memref<1x64xf32, #tpu.memory_space<vmem>>, vector<1x64xf32>
    %cst_123 = arith.constant dense<0.000000e+00> : vector<8xf32>
    %331 = vector.multi_reduction <add>, %328, %cst_123 [1] : vector<8x64xf32> to vector<8xf32>
    %332 = vector.shape_cast %331 : vector<8xf32> to vector<8x1xf32>
    %cst_124 = arith.constant 6.400000e+01 : f32
    %333 = vector.broadcast %cst_124 : f32 to vector<8x1xf32>
    %334 = arith.divf %332, %333 : vector<8x1xf32>
    %335 = vector.broadcast %334 : vector<8x1xf32> to vector<8x64xf32>
    %336 = arith.subf %328, %335 : vector<8x64xf32>
    %337 = arith.mulf %336, %336 : vector<8x64xf32>
    %cst_125 = arith.constant dense<0.000000e+00> : vector<8xf32>
    %338 = vector.multi_reduction <add>, %337, %cst_125 [1] : vector<8x64xf32> to vector<8xf32>
    %339 = vector.shape_cast %338 : vector<8xf32> to vector<8x1xf32>
    %cst_126 = arith.constant 6.400000e+01 : f32
    %340 = vector.broadcast %cst_126 : f32 to vector<8x1xf32>
    %341 = arith.divf %339, %340 : vector<8x1xf32>
    %cst_127 = arith.constant 9.99999996E-13 : f32
    %342 = vector.broadcast %cst_127 : f32 to vector<8x1xf32>
    %343 = arith.addf %341, %342 : vector<8x1xf32>
    %344 = math.rsqrt %343 : vector<8x1xf32>
    %345 = vector.broadcast %344 : vector<8x1xf32> to vector<8x64xf32>
    %346 = arith.mulf %336, %345 : vector<8x64xf32>
    %347 = vector.broadcast %329 : vector<1x64xf32> to vector<8x64xf32>
    %348 = arith.mulf %346, %347 : vector<8x64xf32>
    %349 = vector.broadcast %330 : vector<1x64xf32> to vector<8x64xf32>
    %350 = arith.addf %348, %349 : vector<8x64xf32>
    %351 = arith.truncf %350 : vector<8x64xf32> to vector<8x64xbf16>
    %c0_128 = arith.constant 0 : index
    %c0_129 = arith.constant 0 : index
    %352 = vector.load %arg11[%c0_128, %c0_129] : memref<64x64xbf16, #tpu.memory_space<vmem>>, vector<64x64xbf16>
    %cst_130 = arith.constant dense<0.000000e+00> : vector<8x64xf32>
    %353 = tpu.matmul %351, %352, %cst_130 {dimension_numbers = #tpu.dot_dimension_numbers<[1], [0], [0], [1], [0, 0, 1, 1], [], []>} : vector<8x64xbf16>, vector<64x64xbf16>, vector<8x64xf32> -> vector<8x64xf32>
    %c0_131 = arith.constant 0 : index
    %c0_132 = arith.constant 0 : index
    %354 = vector.load %arg12[%c0_131, %c0_132] : memref<1x64xf32, #tpu.memory_space<vmem>>, vector<1x64xf32>
    %355 = vector.broadcast %354 : vector<1x64xf32> to vector<8x64xf32>
    %356 = arith.addf %353, %355 : vector<8x64xf32>
    %c0_133 = arith.constant 0 : index
    %c0_134 = arith.constant 0 : index
    %c0_135 = arith.constant 0 : index
    %357 = vector.load %arg2[%c0_133, %c0_134, %c0_135] : memref<1x16x64xf32, #tpu.memory_space<vmem>>, vector<1x16x64xf32>
    %358 = vector.shape_cast %357 : vector<1x16x64xf32> to vector<16x64xf32>
    %359 = arith.truncf %358 : vector<16x64xf32> to vector<16x64xbf16>
    %c0_136 = arith.constant 0 : index
    %c0_137 = arith.constant 0 : index
    %360 = vector.load %arg13[%c0_136, %c0_137] : memref<64x128xbf16, #tpu.memory_space<vmem>>, vector<64x128xbf16>
    %cst_138 = arith.constant dense<0.000000e+00> : vector<16x128xf32>
    %361 = tpu.matmul %359, %360, %cst_138 {dimension_numbers = #tpu.dot_dimension_numbers<[1], [0], [0], [1], [0, 0, 1, 1], [], []>} : vector<16x64xbf16>, vector<64x128xbf16>, vector<16x128xf32> -> vector<16x128xf32>
    %c0_139 = arith.constant 0 : index
    %c0_140 = arith.constant 0 : index
    %362 = vector.load %arg14[%c0_139, %c0_140] : memref<1x128xf32, #tpu.memory_space<vmem>>, vector<1x128xf32>
    %363 = vector.broadcast %362 : vector<1x128xf32> to vector<16x128xf32>
    %364 = arith.addf %361, %363 : vector<16x128xf32>
    %365 = vector.extract_strided_slice %364 {offsets = [0, 0], sizes = [16, 64], strides = [1, 1]} : vector<16x128xf32> to vector<16x64xf32>
    %366 = vector.extract_strided_slice %364 {offsets = [0, 64], sizes = [16, 64], strides = [1, 1]} : vector<16x128xf32> to vector<16x64xf32>
    %367 = vector.extract_strided_slice %356 {offsets = [0, 0], sizes = [8, 4], strides = [1, 1]} : vector<8x64xf32> to vector<8x4xf32>
    %368 = vector.extract_strided_slice %365 {offsets = [0, 0], sizes = [16, 4], strides = [1, 1]} : vector<16x64xf32> to vector<16x4xf32>
    %369 = vector.extract_strided_slice %366 {offsets = [0, 0], sizes = [16, 4], strides = [1, 1]} : vector<16x64xf32> to vector<16x4xf32>
    %cst_141 = arith.constant dense<0.000000e+00> : vector<8x16xf32>
    %370 = tpu.matmul %367, %368, %cst_141 {dimension_numbers = #tpu.dot_dimension_numbers<[1], [1], [0], [0], [0, 0, 1, 0], [], []>} : vector<8x4xf32>, vector<16x4xf32>, vector<8x16xf32> -> vector<8x16xf32>
    %cst_142 = arith.constant 5.000000e-01 : f32
    %371 = vector.broadcast %cst_142 : f32 to vector<8x16xf32>
    %372 = arith.mulf %370, %371 : vector<8x16xf32>
    %cst_143 = arith.constant dense<0xFF800000> : vector<8xf32>
    %373 = vector.multi_reduction <maximumf>, %372, %cst_143 [1] : vector<8x16xf32> to vector<8xf32>
    %374 = vector.shape_cast %373 : vector<8xf32> to vector<8x1xf32>
    %375 = vector.broadcast %374 : vector<8x1xf32> to vector<8x16xf32>
    %376 = arith.subf %372, %375 : vector<8x16xf32>
    %377 = math.exp %376 : vector<8x16xf32>
    %cst_144 = arith.constant dense<0.000000e+00> : vector<8xf32>
    %378 = vector.multi_reduction <add>, %377, %cst_144 [1] : vector<8x16xf32> to vector<8xf32>
    %379 = vector.shape_cast %378 : vector<8xf32> to vector<8x1xf32>
    %380 = tpu.reciprocal %379 {approx = true} : vector<8x1xf32> -> vector<8x1xf32>
    %381 = vector.broadcast %380 : vector<8x1xf32> to vector<8x16xf32>
    %382 = arith.mulf %377, %381 : vector<8x16xf32>
    %cst_145 = arith.constant dense<0.000000e+00> : vector<8x4xf32>
    %383 = tpu.matmul %382, %369, %cst_145 {dimension_numbers = #tpu.dot_dimension_numbers<[1], [0], [0], [1], [0, 0, 1, 1], [], []>} : vector<8x16xf32>, vector<16x4xf32>, vector<8x4xf32> -> vector<8x4xf32>
    %c0_146 = arith.constant 0 : index
    %c0_147 = arith.constant 0 : index
    %384 = vector.load %arg26[%c0_146, %c0_147] : memref<8x64xf32, #tpu.memory_space<vmem>>, vector<8x4xf32>
    tpu.vector_store %arg26[%c0_146, %c0_147], %383 {strides = array<i32>} : memref<8x64xf32, #tpu.memory_space<vmem>>, vector<8x4xf32>,
    %385 = vector.extract_strided_slice %356 {offsets = [0, 4], sizes = [8, 4], strides = [1, 1]} : vector<8x64xf32> to vector<8x4xf32>
    %386 = vector.extract_strided_slice %365 {offsets = [0, 4], sizes = [16, 4], strides = [1, 1]} : vector<16x64xf32> to vector<16x4xf32>
    %387 = vector.extract_strided_slice %366 {offsets = [0, 4], sizes = [16, 4], strides = [1, 1]} : vector<16x64xf32> to vector<16x4xf32>
    %cst_148 = arith.constant dense<0.000000e+00> : vector<8x16xf32>
    %388 = tpu.matmul %385, %386, %cst_148 {dimension_numbers = #tpu.dot_dimension_numbers<[1], [1], [0], [0], [0, 0, 1, 0], [], []>} : vector<8x4xf32>, vector<16x4xf32>, vector<8x16xf32> -> vector<8x16xf32>
    %cst_149 = arith.constant 5.000000e-01 : f32
    %389 = vector.broadcast %cst_149 : f32 to vector<8x16xf32>
    %390 = arith.mulf %388, %389 : vector<8x16xf32>
    %cst_150 = arith.constant dense<0xFF800000> : vector<8xf32>
    %391 = vector.multi_reduction <maximumf>, %390, %cst_150 [1] : vector<8x16xf32> to vector<8xf32>
    %392 = vector.shape_cast %391 : vector<8xf32> to vector<8x1xf32>
    %393 = vector.broadcast %392 : vector<8x1xf32> to vector<8x16xf32>
    %394 = arith.subf %390, %393 : vector<8x16xf32>
    %395 = math.exp %394 : vector<8x16xf32>
    %cst_151 = arith.constant dense<0.000000e+00> : vector<8xf32>
    %396 = vector.multi_reduction <add>, %395, %cst_151 [1] : vector<8x16xf32> to vector<8xf32>
    %397 = vector.shape_cast %396 : vector<8xf32> to vector<8x1xf32>
    %398 = tpu.reciprocal %397 {approx = true} : vector<8x1xf32> -> vector<8x1xf32>
    %399 = vector.broadcast %398 : vector<8x1xf32> to vector<8x16xf32>
    %400 = arith.mulf %395, %399 : vector<8x16xf32>
    %cst_152 = arith.constant dense<0.000000e+00> : vector<8x4xf32>
    %401 = tpu.matmul %400, %387, %cst_152 {dimension_numbers = #tpu.dot_dimension_numbers<[1], [0], [0], [1], [0, 0, 1, 1], [], []>} : vector<8x16xf32>, vector<16x4xf32>, vector<8x4xf32> -> vector<8x4xf32>
    %c0_153 = arith.constant 0 : index
    %c4_154 = arith.constant 4 : index
    %402 = vector.load %arg26[%c0_153, %c4_154] : memref<8x64xf32, #tpu.memory_space<vmem>>, vector<8x4xf32>
    tpu.vector_store %arg26[%c0_153, %c4_154], %401 {strides = array<i32>} : memref<8x64xf32, #tpu.memory_space<vmem>>, vector<8x4xf32>,
    %403 = vector.extract_strided_slice %356 {offsets = [0, 8], sizes = [8, 4], strides = [1, 1]} : vector<8x64xf32> to vector<8x4xf32>
    %404 = vector.extract_strided_slice %365 {offsets = [0, 8], sizes = [16, 4], strides = [1, 1]} : vector<16x64xf32> to vector<16x4xf32>
    %405 = vector.extract_strided_slice %366 {offsets = [0, 8], sizes = [16, 4], strides = [1, 1]} : vector<16x64xf32> to vector<16x4xf32>
    %cst_155 = arith.constant dense<0.000000e+00> : vector<8x16xf32>
    %406 = tpu.matmul %403, %404, %cst_155 {dimension_numbers = #tpu.dot_dimension_numbers<[1], [1], [0], [0], [0, 0, 1, 0], [], []>} : vector<8x4xf32>, vector<16x4xf32>, vector<8x16xf32> -> vector<8x16xf32>
    %cst_156 = arith.constant 5.000000e-01 : f32
    %407 = vector.broadcast %cst_156 : f32 to vector<8x16xf32>
    %408 = arith.mulf %406, %407 : vector<8x16xf32>
    %cst_157 = arith.constant dense<0xFF800000> : vector<8xf32>
    %409 = vector.multi_reduction <maximumf>, %408, %cst_157 [1] : vector<8x16xf32> to vector<8xf32>
    %410 = vector.shape_cast %409 : vector<8xf32> to vector<8x1xf32>
    %411 = vector.broadcast %410 : vector<8x1xf32> to vector<8x16xf32>
    %412 = arith.subf %408, %411 : vector<8x16xf32>
    %413 = math.exp %412 : vector<8x16xf32>
    %cst_158 = arith.constant dense<0.000000e+00> : vector<8xf32>
    %414 = vector.multi_reduction <add>, %413, %cst_158 [1] : vector<8x16xf32> to vector<8xf32>
    %415 = vector.shape_cast %414 : vector<8xf32> to vector<8x1xf32>
    %416 = tpu.reciprocal %415 {approx = true} : vector<8x1xf32> -> vector<8x1xf32>
    %417 = vector.broadcast %416 : vector<8x1xf32> to vector<8x16xf32>
    %418 = arith.mulf %413, %417 : vector<8x16xf32>
    %cst_159 = arith.constant dense<0.000000e+00> : vector<8x4xf32>
    %419 = tpu.matmul %418, %405, %cst_159 {dimension_numbers = #tpu.dot_dimension_numbers<[1], [0], [0], [1], [0, 0, 1, 1], [], []>} : vector<8x16xf32>, vector<16x4xf32>, vector<8x4xf32> -> vector<8x4xf32>
    %c0_160 = arith.constant 0 : index
    %c8_161 = arith.constant 8 : index
    %420 = vector.load %arg26[%c0_160, %c8_161] : memref<8x64xf32, #tpu.memory_space<vmem>>, vector<8x4xf32>
    tpu.vector_store %arg26[%c0_160, %c8_161], %419 {strides = array<i32>} : memref<8x64xf32, #tpu.memory_space<vmem>>, vector<8x4xf32>,
    %421 = vector.extract_strided_slice %356 {offsets = [0, 12], sizes = [8, 4], strides = [1, 1]} : vector<8x64xf32> to vector<8x4xf32>
    %422 = vector.extract_strided_slice %365 {offsets = [0, 12], sizes = [16, 4], strides = [1, 1]} : vector<16x64xf32> to vector<16x4xf32>
    %423 = vector.extract_strided_slice %366 {offsets = [0, 12], sizes = [16, 4], strides = [1, 1]} : vector<16x64xf32> to vector<16x4xf32>
    %cst_162 = arith.constant dense<0.000000e+00> : vector<8x16xf32>
    %424 = tpu.matmul %421, %422, %cst_162 {dimension_numbers = #tpu.dot_dimension_numbers<[1], [1], [0], [0], [0, 0, 1, 0], [], []>} : vector<8x4xf32>, vector<16x4xf32>, vector<8x16xf32> -> vector<8x16xf32>
    %cst_163 = arith.constant 5.000000e-01 : f32
    %425 = vector.broadcast %cst_163 : f32 to vector<8x16xf32>
    %426 = arith.mulf %424, %425 : vector<8x16xf32>
    %cst_164 = arith.constant dense<0xFF800000> : vector<8xf32>
    %427 = vector.multi_reduction <maximumf>, %426, %cst_164 [1] : vector<8x16xf32> to vector<8xf32>
    %428 = vector.shape_cast %427 : vector<8xf32> to vector<8x1xf32>
    %429 = vector.broadcast %428 : vector<8x1xf32> to vector<8x16xf32>
    %430 = arith.subf %426, %429 : vector<8x16xf32>
    %431 = math.exp %430 : vector<8x16xf32>
    %cst_165 = arith.constant dense<0.000000e+00> : vector<8xf32>
    %432 = vector.multi_reduction <add>, %431, %cst_165 [1] : vector<8x16xf32> to vector<8xf32>
    %433 = vector.shape_cast %432 : vector<8xf32> to vector<8x1xf32>
    %434 = tpu.reciprocal %433 {approx = true} : vector<8x1xf32> -> vector<8x1xf32>
    %435 = vector.broadcast %434 : vector<8x1xf32> to vector<8x16xf32>
    %436 = arith.mulf %431, %435 : vector<8x16xf32>
    %cst_166 = arith.constant dense<0.000000e+00> : vector<8x4xf32>
    %437 = tpu.matmul %436, %423, %cst_166 {dimension_numbers = #tpu.dot_dimension_numbers<[1], [0], [0], [1], [0, 0, 1, 1], [], []>} : vector<8x16xf32>, vector<16x4xf32>, vector<8x4xf32> -> vector<8x4xf32>
    %c0_167 = arith.constant 0 : index
    %c12_168 = arith.constant 12 : index
    %438 = vector.load %arg26[%c0_167, %c12_168] : memref<8x64xf32, #tpu.memory_space<vmem>>, vector<8x4xf32>
    tpu.vector_store %arg26[%c0_167, %c12_168], %437 {strides = array<i32>} : memref<8x64xf32, #tpu.memory_space<vmem>>, vector<8x4xf32>,
    %439 = vector.extract_strided_slice %356 {offsets = [0, 16], sizes = [8, 4], strides = [1, 1]} : vector<8x64xf32> to vector<8x4xf32>
    %440 = vector.extract_strided_slice %365 {offsets = [0, 16], sizes = [16, 4], strides = [1, 1]} : vector<16x64xf32> to vector<16x4xf32>
    %441 = vector.extract_strided_slice %366 {offsets = [0, 16], sizes = [16, 4], strides = [1, 1]} : vector<16x64xf32> to vector<16x4xf32>
    %cst_169 = arith.constant dense<0.000000e+00> : vector<8x16xf32>
    %442 = tpu.matmul %439, %440, %cst_169 {dimension_numbers = #tpu.dot_dimension_numbers<[1], [1], [0], [0], [0, 0, 1, 0], [], []>} : vector<8x4xf32>, vector<16x4xf32>, vector<8x16xf32> -> vector<8x16xf32>
    %cst_170 = arith.constant 5.000000e-01 : f32
    %443 = vector.broadcast %cst_170 : f32 to vector<8x16xf32>
    %444 = arith.mulf %442, %443 : vector<8x16xf32>
    %cst_171 = arith.constant dense<0xFF800000> : vector<8xf32>
    %445 = vector.multi_reduction <maximumf>, %444, %cst_171 [1] : vector<8x16xf32> to vector<8xf32>
    %446 = vector.shape_cast %445 : vector<8xf32> to vector<8x1xf32>
    %447 = vector.broadcast %446 : vector<8x1xf32> to vector<8x16xf32>
    %448 = arith.subf %444, %447 : vector<8x16xf32>
    %449 = math.exp %448 : vector<8x16xf32>
    %cst_172 = arith.constant dense<0.000000e+00> : vector<8xf32>
    %450 = vector.multi_reduction <add>, %449, %cst_172 [1] : vector<8x16xf32> to vector<8xf32>
    %451 = vector.shape_cast %450 : vector<8xf32> to vector<8x1xf32>
    %452 = tpu.reciprocal %451 {approx = true} : vector<8x1xf32> -> vector<8x1xf32>
    %453 = vector.broadcast %452 : vector<8x1xf32> to vector<8x16xf32>
    %454 = arith.mulf %449, %453 : vector<8x16xf32>
    %cst_173 = arith.constant dense<0.000000e+00> : vector<8x4xf32>
    %455 = tpu.matmul %454, %441, %cst_173 {dimension_numbers = #tpu.dot_dimension_numbers<[1], [0], [0], [1], [0, 0, 1, 1], [], []>} : vector<8x16xf32>, vector<16x4xf32>, vector<8x4xf32> -> vector<8x4xf32>
    %c0_174 = arith.constant 0 : index
    %c16_175 = arith.constant 16 : index
    %456 = vector.load %arg26[%c0_174, %c16_175] : memref<8x64xf32, #tpu.memory_space<vmem>>, vector<8x4xf32>
    tpu.vector_store %arg26[%c0_174, %c16_175], %455 {strides = array<i32>} : memref<8x64xf32, #tpu.memory_space<vmem>>, vector<8x4xf32>,
    %457 = vector.extract_strided_slice %356 {offsets = [0, 20], sizes = [8, 4], strides = [1, 1]} : vector<8x64xf32> to vector<8x4xf32>
    %458 = vector.extract_strided_slice %365 {offsets = [0, 20], sizes = [16, 4], strides = [1, 1]} : vector<16x64xf32> to vector<16x4xf32>
    %459 = vector.extract_strided_slice %366 {offsets = [0, 20], sizes = [16, 4], strides = [1, 1]} : vector<16x64xf32> to vector<16x4xf32>
    %cst_176 = arith.constant dense<0.000000e+00> : vector<8x16xf32>
    %460 = tpu.matmul %457, %458, %cst_176 {dimension_numbers = #tpu.dot_dimension_numbers<[1], [1], [0], [0], [0, 0, 1, 0], [], []>} : vector<8x4xf32>, vector<16x4xf32>, vector<8x16xf32> -> vector<8x16xf32>
    %cst_177 = arith.constant 5.000000e-01 : f32
    %461 = vector.broadcast %cst_177 : f32 to vector<8x16xf32>
    %462 = arith.mulf %460, %461 : vector<8x16xf32>
    %cst_178 = arith.constant dense<0xFF800000> : vector<8xf32>
    %463 = vector.multi_reduction <maximumf>, %462, %cst_178 [1] : vector<8x16xf32> to vector<8xf32>
    %464 = vector.shape_cast %463 : vector<8xf32> to vector<8x1xf32>
    %465 = vector.broadcast %464 : vector<8x1xf32> to vector<8x16xf32>
    %466 = arith.subf %462, %465 : vector<8x16xf32>
    %467 = math.exp %466 : vector<8x16xf32>
    %cst_179 = arith.constant dense<0.000000e+00> : vector<8xf32>
    %468 = vector.multi_reduction <add>, %467, %cst_179 [1] : vector<8x16xf32> to vector<8xf32>
    %469 = vector.shape_cast %468 : vector<8xf32> to vector<8x1xf32>
    %470 = tpu.reciprocal %469 {approx = true} : vector<8x1xf32> -> vector<8x1xf32>
    %471 = vector.broadcast %470 : vector<8x1xf32> to vector<8x16xf32>
    %472 = arith.mulf %467, %471 : vector<8x16xf32>
    %cst_180 = arith.constant dense<0.000000e+00> : vector<8x4xf32>
    %473 = tpu.matmul %472, %459, %cst_180 {dimension_numbers = #tpu.dot_dimension_numbers<[1], [0], [0], [1], [0, 0, 1, 1], [], []>} : vector<8x16xf32>, vector<16x4xf32>, vector<8x4xf32> -> vector<8x4xf32>
    %c0_181 = arith.constant 0 : index
    %c20_182 = arith.constant 20 : index
    %474 = vector.load %arg26[%c0_181, %c20_182] : memref<8x64xf32, #tpu.memory_space<vmem>>, vector<8x4xf32>
    tpu.vector_store %arg26[%c0_181, %c20_182], %473 {strides = array<i32>} : memref<8x64xf32, #tpu.memory_space<vmem>>, vector<8x4xf32>,
    %475 = vector.extract_strided_slice %356 {offsets = [0, 24], sizes = [8, 4], strides = [1, 1]} : vector<8x64xf32> to vector<8x4xf32>
    %476 = vector.extract_strided_slice %365 {offsets = [0, 24], sizes = [16, 4], strides = [1, 1]} : vector<16x64xf32> to vector<16x4xf32>
    %477 = vector.extract_strided_slice %366 {offsets = [0, 24], sizes = [16, 4], strides = [1, 1]} : vector<16x64xf32> to vector<16x4xf32>
    %cst_183 = arith.constant dense<0.000000e+00> : vector<8x16xf32>
    %478 = tpu.matmul %475, %476, %cst_183 {dimension_numbers = #tpu.dot_dimension_numbers<[1], [1], [0], [0], [0, 0, 1, 0], [], []>} : vector<8x4xf32>, vector<16x4xf32>, vector<8x16xf32> -> vector<8x16xf32>
    %cst_184 = arith.constant 5.000000e-01 : f32
    %479 = vector.broadcast %cst_184 : f32 to vector<8x16xf32>
    %480 = arith.mulf %478, %479 : vector<8x16xf32>
    %cst_185 = arith.constant dense<0xFF800000> : vector<8xf32>
    %481 = vector.multi_reduction <maximumf>, %480, %cst_185 [1] : vector<8x16xf32> to vector<8xf32>
    %482 = vector.shape_cast %481 : vector<8xf32> to vector<8x1xf32>
    %483 = vector.broadcast %482 : vector<8x1xf32> to vector<8x16xf32>
    %484 = arith.subf %480, %483 : vector<8x16xf32>
    %485 = math.exp %484 : vector<8x16xf32>
    %cst_186 = arith.constant dense<0.000000e+00> : vector<8xf32>
    %486 = vector.multi_reduction <add>, %485, %cst_186 [1] : vector<8x16xf32> to vector<8xf32>
    %487 = vector.shape_cast %486 : vector<8xf32> to vector<8x1xf32>
    %488 = tpu.reciprocal %487 {approx = true} : vector<8x1xf32> -> vector<8x1xf32>
    %489 = vector.broadcast %488 : vector<8x1xf32> to vector<8x16xf32>
    %490 = arith.mulf %485, %489 : vector<8x16xf32>
    %cst_187 = arith.constant dense<0.000000e+00> : vector<8x4xf32>
    %491 = tpu.matmul %490, %477, %cst_187 {dimension_numbers = #tpu.dot_dimension_numbers<[1], [0], [0], [1], [0, 0, 1, 1], [], []>} : vector<8x16xf32>, vector<16x4xf32>, vector<8x4xf32> -> vector<8x4xf32>
    %c0_188 = arith.constant 0 : index
    %c24_189 = arith.constant 24 : index
    %492 = vector.load %arg26[%c0_188, %c24_189] : memref<8x64xf32, #tpu.memory_space<vmem>>, vector<8x4xf32>
    tpu.vector_store %arg26[%c0_188, %c24_189], %491 {strides = array<i32>} : memref<8x64xf32, #tpu.memory_space<vmem>>, vector<8x4xf32>,
    %493 = vector.extract_strided_slice %356 {offsets = [0, 28], sizes = [8, 4], strides = [1, 1]} : vector<8x64xf32> to vector<8x4xf32>
    %494 = vector.extract_strided_slice %365 {offsets = [0, 28], sizes = [16, 4], strides = [1, 1]} : vector<16x64xf32> to vector<16x4xf32>
    %495 = vector.extract_strided_slice %366 {offsets = [0, 28], sizes = [16, 4], strides = [1, 1]} : vector<16x64xf32> to vector<16x4xf32>
    %cst_190 = arith.constant dense<0.000000e+00> : vector<8x16xf32>
    %496 = tpu.matmul %493, %494, %cst_190 {dimension_numbers = #tpu.dot_dimension_numbers<[1], [1], [0], [0], [0, 0, 1, 0], [], []>} : vector<8x4xf32>, vector<16x4xf32>, vector<8x16xf32> -> vector<8x16xf32>
    %cst_191 = arith.constant 5.000000e-01 : f32
    %497 = vector.broadcast %cst_191 : f32 to vector<8x16xf32>
    %498 = arith.mulf %496, %497 : vector<8x16xf32>
    %cst_192 = arith.constant dense<0xFF800000> : vector<8xf32>
    %499 = vector.multi_reduction <maximumf>, %498, %cst_192 [1] : vector<8x16xf32> to vector<8xf32>
    %500 = vector.shape_cast %499 : vector<8xf32> to vector<8x1xf32>
    %501 = vector.broadcast %500 : vector<8x1xf32> to vector<8x16xf32>
    %502 = arith.subf %498, %501 : vector<8x16xf32>
    %503 = math.exp %502 : vector<8x16xf32>
    %cst_193 = arith.constant dense<0.000000e+00> : vector<8xf32>
    %504 = vector.multi_reduction <add>, %503, %cst_193 [1] : vector<8x16xf32> to vector<8xf32>
    %505 = vector.shape_cast %504 : vector<8xf32> to vector<8x1xf32>
    %506 = tpu.reciprocal %505 {approx = true} : vector<8x1xf32> -> vector<8x1xf32>
    %507 = vector.broadcast %506 : vector<8x1xf32> to vector<8x16xf32>
    %508 = arith.mulf %503, %507 : vector<8x16xf32>
    %cst_194 = arith.constant dense<0.000000e+00> : vector<8x4xf32>
    %509 = tpu.matmul %508, %495, %cst_194 {dimension_numbers = #tpu.dot_dimension_numbers<[1], [0], [0], [1], [0, 0, 1, 1], [], []>} : vector<8x16xf32>, vector<16x4xf32>, vector<8x4xf32> -> vector<8x4xf32>
    %c0_195 = arith.constant 0 : index
    %c28_196 = arith.constant 28 : index
    %510 = vector.load %arg26[%c0_195, %c28_196] : memref<8x64xf32, #tpu.memory_space<vmem>>, vector<8x4xf32>
    tpu.vector_store %arg26[%c0_195, %c28_196], %509 {strides = array<i32>} : memref<8x64xf32, #tpu.memory_space<vmem>>, vector<8x4xf32>,
    %511 = vector.extract_strided_slice %356 {offsets = [0, 32], sizes = [8, 4], strides = [1, 1]} : vector<8x64xf32> to vector<8x4xf32>
    %512 = vector.extract_strided_slice %365 {offsets = [0, 32], sizes = [16, 4], strides = [1, 1]} : vector<16x64xf32> to vector<16x4xf32>
    %513 = vector.extract_strided_slice %366 {offsets = [0, 32], sizes = [16, 4], strides = [1, 1]} : vector<16x64xf32> to vector<16x4xf32>
    %cst_197 = arith.constant dense<0.000000e+00> : vector<8x16xf32>
    %514 = tpu.matmul %511, %512, %cst_197 {dimension_numbers = #tpu.dot_dimension_numbers<[1], [1], [0], [0], [0, 0, 1, 0], [], []>} : vector<8x4xf32>, vector<16x4xf32>, vector<8x16xf32> -> vector<8x16xf32>
    %cst_198 = arith.constant 5.000000e-01 : f32
    %515 = vector.broadcast %cst_198 : f32 to vector<8x16xf32>
    %516 = arith.mulf %514, %515 : vector<8x16xf32>
    %cst_199 = arith.constant dense<0xFF800000> : vector<8xf32>
    %517 = vector.multi_reduction <maximumf>, %516, %cst_199 [1] : vector<8x16xf32> to vector<8xf32>
    %518 = vector.shape_cast %517 : vector<8xf32> to vector<8x1xf32>
    %519 = vector.broadcast %518 : vector<8x1xf32> to vector<8x16xf32>
    %520 = arith.subf %516, %519 : vector<8x16xf32>
    %521 = math.exp %520 : vector<8x16xf32>
    %cst_200 = arith.constant dense<0.000000e+00> : vector<8xf32>
    %522 = vector.multi_reduction <add>, %521, %cst_200 [1] : vector<8x16xf32> to vector<8xf32>
    %523 = vector.shape_cast %522 : vector<8xf32> to vector<8x1xf32>
    %524 = tpu.reciprocal %523 {approx = true} : vector<8x1xf32> -> vector<8x1xf32>
    %525 = vector.broadcast %524 : vector<8x1xf32> to vector<8x16xf32>
    %526 = arith.mulf %521, %525 : vector<8x16xf32>
    %cst_201 = arith.constant dense<0.000000e+00> : vector<8x4xf32>
    %527 = tpu.matmul %526, %513, %cst_201 {dimension_numbers = #tpu.dot_dimension_numbers<[1], [0], [0], [1], [0, 0, 1, 1], [], []>} : vector<8x16xf32>, vector<16x4xf32>, vector<8x4xf32> -> vector<8x4xf32>
    %c0_202 = arith.constant 0 : index
    %c32_203 = arith.constant 32 : index
    %528 = vector.load %arg26[%c0_202, %c32_203] : memref<8x64xf32, #tpu.memory_space<vmem>>, vector<8x4xf32>
    tpu.vector_store %arg26[%c0_202, %c32_203], %527 {strides = array<i32>} : memref<8x64xf32, #tpu.memory_space<vmem>>, vector<8x4xf32>,
    %529 = vector.extract_strided_slice %356 {offsets = [0, 36], sizes = [8, 4], strides = [1, 1]} : vector<8x64xf32> to vector<8x4xf32>
    %530 = vector.extract_strided_slice %365 {offsets = [0, 36], sizes = [16, 4], strides = [1, 1]} : vector<16x64xf32> to vector<16x4xf32>
    %531 = vector.extract_strided_slice %366 {offsets = [0, 36], sizes = [16, 4], strides = [1, 1]} : vector<16x64xf32> to vector<16x4xf32>
    %cst_204 = arith.constant dense<0.000000e+00> : vector<8x16xf32>
    %532 = tpu.matmul %529, %530, %cst_204 {dimension_numbers = #tpu.dot_dimension_numbers<[1], [1], [0], [0], [0, 0, 1, 0], [], []>} : vector<8x4xf32>, vector<16x4xf32>, vector<8x16xf32> -> vector<8x16xf32>
    %cst_205 = arith.constant 5.000000e-01 : f32
    %533 = vector.broadcast %cst_205 : f32 to vector<8x16xf32>
    %534 = arith.mulf %532, %533 : vector<8x16xf32>
    %cst_206 = arith.constant dense<0xFF800000> : vector<8xf32>
    %535 = vector.multi_reduction <maximumf>, %534, %cst_206 [1] : vector<8x16xf32> to vector<8xf32>
    %536 = vector.shape_cast %535 : vector<8xf32> to vector<8x1xf32>
    %537 = vector.broadcast %536 : vector<8x1xf32> to vector<8x16xf32>
    %538 = arith.subf %534, %537 : vector<8x16xf32>
    %539 = math.exp %538 : vector<8x16xf32>
    %cst_207 = arith.constant dense<0.000000e+00> : vector<8xf32>
    %540 = vector.multi_reduction <add>, %539, %cst_207 [1] : vector<8x16xf32> to vector<8xf32>
    %541 = vector.shape_cast %540 : vector<8xf32> to vector<8x1xf32>
    %542 = tpu.reciprocal %541 {approx = true} : vector<8x1xf32> -> vector<8x1xf32>
    %543 = vector.broadcast %542 : vector<8x1xf32> to vector<8x16xf32>
    %544 = arith.mulf %539, %543 : vector<8x16xf32>
    %cst_208 = arith.constant dense<0.000000e+00> : vector<8x4xf32>
    %545 = tpu.matmul %544, %531, %cst_208 {dimension_numbers = #tpu.dot_dimension_numbers<[1], [0], [0], [1], [0, 0, 1, 1], [], []>} : vector<8x16xf32>, vector<16x4xf32>, vector<8x4xf32> -> vector<8x4xf32>
    %c0_209 = arith.constant 0 : index
    %c36_210 = arith.constant 36 : index
    %546 = vector.load %arg26[%c0_209, %c36_210] : memref<8x64xf32, #tpu.memory_space<vmem>>, vector<8x4xf32>
    tpu.vector_store %arg26[%c0_209, %c36_210], %545 {strides = array<i32>} : memref<8x64xf32, #tpu.memory_space<vmem>>, vector<8x4xf32>,
    %547 = vector.extract_strided_slice %356 {offsets = [0, 40], sizes = [8, 4], strides = [1, 1]} : vector<8x64xf32> to vector<8x4xf32>
    %548 = vector.extract_strided_slice %365 {offsets = [0, 40], sizes = [16, 4], strides = [1, 1]} : vector<16x64xf32> to vector<16x4xf32>
    %549 = vector.extract_strided_slice %366 {offsets = [0, 40], sizes = [16, 4], strides = [1, 1]} : vector<16x64xf32> to vector<16x4xf32>
    %cst_211 = arith.constant dense<0.000000e+00> : vector<8x16xf32>
    %550 = tpu.matmul %547, %548, %cst_211 {dimension_numbers = #tpu.dot_dimension_numbers<[1], [1], [0], [0], [0, 0, 1, 0], [], []>} : vector<8x4xf32>, vector<16x4xf32>, vector<8x16xf32> -> vector<8x16xf32>
    %cst_212 = arith.constant 5.000000e-01 : f32
    %551 = vector.broadcast %cst_212 : f32 to vector<8x16xf32>
    %552 = arith.mulf %550, %551 : vector<8x16xf32>
    %cst_213 = arith.constant dense<0xFF800000> : vector<8xf32>
    %553 = vector.multi_reduction <maximumf>, %552, %cst_213 [1] : vector<8x16xf32> to vector<8xf32>
    %554 = vector.shape_cast %553 : vector<8xf32> to vector<8x1xf32>
    %555 = vector.broadcast %554 : vector<8x1xf32> to vector<8x16xf32>
    %556 = arith.subf %552, %555 : vector<8x16xf32>
    %557 = math.exp %556 : vector<8x16xf32>
    %cst_214 = arith.constant dense<0.000000e+00> : vector<8xf32>
    %558 = vector.multi_reduction <add>, %557, %cst_214 [1] : vector<8x16xf32> to vector<8xf32>
    %559 = vector.shape_cast %558 : vector<8xf32> to vector<8x1xf32>
    %560 = tpu.reciprocal %559 {approx = true} : vector<8x1xf32> -> vector<8x1xf32>
    %561 = vector.broadcast %560 : vector<8x1xf32> to vector<8x16xf32>
    %562 = arith.mulf %557, %561 : vector<8x16xf32>
    %cst_215 = arith.constant dense<0.000000e+00> : vector<8x4xf32>
    %563 = tpu.matmul %562, %549, %cst_215 {dimension_numbers = #tpu.dot_dimension_numbers<[1], [0], [0], [1], [0, 0, 1, 1], [], []>} : vector<8x16xf32>, vector<16x4xf32>, vector<8x4xf32> -> vector<8x4xf32>
    %c0_216 = arith.constant 0 : index
    %c40_217 = arith.constant 40 : index
    %564 = vector.load %arg26[%c0_216, %c40_217] : memref<8x64xf32, #tpu.memory_space<vmem>>, vector<8x4xf32>
    tpu.vector_store %arg26[%c0_216, %c40_217], %563 {strides = array<i32>} : memref<8x64xf32, #tpu.memory_space<vmem>>, vector<8x4xf32>,
    %565 = vector.extract_strided_slice %356 {offsets = [0, 44], sizes = [8, 4], strides = [1, 1]} : vector<8x64xf32> to vector<8x4xf32>
    %566 = vector.extract_strided_slice %365 {offsets = [0, 44], sizes = [16, 4], strides = [1, 1]} : vector<16x64xf32> to vector<16x4xf32>
    %567 = vector.extract_strided_slice %366 {offsets = [0, 44], sizes = [16, 4], strides = [1, 1]} : vector<16x64xf32> to vector<16x4xf32>
    %cst_218 = arith.constant dense<0.000000e+00> : vector<8x16xf32>
    %568 = tpu.matmul %565, %566, %cst_218 {dimension_numbers = #tpu.dot_dimension_numbers<[1], [1], [0], [0], [0, 0, 1, 0], [], []>} : vector<8x4xf32>, vector<16x4xf32>, vector<8x16xf32> -> vector<8x16xf32>
    %cst_219 = arith.constant 5.000000e-01 : f32
    %569 = vector.broadcast %cst_219 : f32 to vector<8x16xf32>
    %570 = arith.mulf %568, %569 : vector<8x16xf32>
    %cst_220 = arith.constant dense<0xFF800000> : vector<8xf32>
    %571 = vector.multi_reduction <maximumf>, %570, %cst_220 [1] : vector<8x16xf32> to vector<8xf32>
    %572 = vector.shape_cast %571 : vector<8xf32> to vector<8x1xf32>
    %573 = vector.broadcast %572 : vector<8x1xf32> to vector<8x16xf32>
    %574 = arith.subf %570, %573 : vector<8x16xf32>
    %575 = math.exp %574 : vector<8x16xf32>
    %cst_221 = arith.constant dense<0.000000e+00> : vector<8xf32>
    %576 = vector.multi_reduction <add>, %575, %cst_221 [1] : vector<8x16xf32> to vector<8xf32>
    %577 = vector.shape_cast %576 : vector<8xf32> to vector<8x1xf32>
    %578 = tpu.reciprocal %577 {approx = true} : vector<8x1xf32> -> vector<8x1xf32>
    %579 = vector.broadcast %578 : vector<8x1xf32> to vector<8x16xf32>
    %580 = arith.mulf %575, %579 : vector<8x16xf32>
    %cst_222 = arith.constant dense<0.000000e+00> : vector<8x4xf32>
    %581 = tpu.matmul %580, %567, %cst_222 {dimension_numbers = #tpu.dot_dimension_numbers<[1], [0], [0], [1], [0, 0, 1, 1], [], []>} : vector<8x16xf32>, vector<16x4xf32>, vector<8x4xf32> -> vector<8x4xf32>
    %c0_223 = arith.constant 0 : index
    %c44_224 = arith.constant 44 : index
    %582 = vector.load %arg26[%c0_223, %c44_224] : memref<8x64xf32, #tpu.memory_space<vmem>>, vector<8x4xf32>
    tpu.vector_store %arg26[%c0_223, %c44_224], %581 {strides = array<i32>} : memref<8x64xf32, #tpu.memory_space<vmem>>, vector<8x4xf32>,
    %583 = vector.extract_strided_slice %356 {offsets = [0, 48], sizes = [8, 4], strides = [1, 1]} : vector<8x64xf32> to vector<8x4xf32>
    %584 = vector.extract_strided_slice %365 {offsets = [0, 48], sizes = [16, 4], strides = [1, 1]} : vector<16x64xf32> to vector<16x4xf32>
    %585 = vector.extract_strided_slice %366 {offsets = [0, 48], sizes = [16, 4], strides = [1, 1]} : vector<16x64xf32> to vector<16x4xf32>
    %cst_225 = arith.constant dense<0.000000e+00> : vector<8x16xf32>
    %586 = tpu.matmul %583, %584, %cst_225 {dimension_numbers = #tpu.dot_dimension_numbers<[1], [1], [0], [0], [0, 0, 1, 0], [], []>} : vector<8x4xf32>, vector<16x4xf32>, vector<8x16xf32> -> vector<8x16xf32>
    %cst_226 = arith.constant 5.000000e-01 : f32
    %587 = vector.broadcast %cst_226 : f32 to vector<8x16xf32>
    %588 = arith.mulf %586, %587 : vector<8x16xf32>
    %cst_227 = arith.constant dense<0xFF800000> : vector<8xf32>
    %589 = vector.multi_reduction <maximumf>, %588, %cst_227 [1] : vector<8x16xf32> to vector<8xf32>
    %590 = vector.shape_cast %589 : vector<8xf32> to vector<8x1xf32>
    %591 = vector.broadcast %590 : vector<8x1xf32> to vector<8x16xf32>
    %592 = arith.subf %588, %591 : vector<8x16xf32>
    %593 = math.exp %592 : vector<8x16xf32>
    %cst_228 = arith.constant dense<0.000000e+00> : vector<8xf32>
    %594 = vector.multi_reduction <add>, %593, %cst_228 [1] : vector<8x16xf32> to vector<8xf32>
    %595 = vector.shape_cast %594 : vector<8xf32> to vector<8x1xf32>
    %596 = tpu.reciprocal %595 {approx = true} : vector<8x1xf32> -> vector<8x1xf32>
    %597 = vector.broadcast %596 : vector<8x1xf32> to vector<8x16xf32>
    %598 = arith.mulf %593, %597 : vector<8x16xf32>
    %cst_229 = arith.constant dense<0.000000e+00> : vector<8x4xf32>
    %599 = tpu.matmul %598, %585, %cst_229 {dimension_numbers = #tpu.dot_dimension_numbers<[1], [0], [0], [1], [0, 0, 1, 1], [], []>} : vector<8x16xf32>, vector<16x4xf32>, vector<8x4xf32> -> vector<8x4xf32>
    %c0_230 = arith.constant 0 : index
    %c48_231 = arith.constant 48 : index
    %600 = vector.load %arg26[%c0_230, %c48_231] : memref<8x64xf32, #tpu.memory_space<vmem>>, vector<8x4xf32>
    tpu.vector_store %arg26[%c0_230, %c48_231], %599 {strides = array<i32>} : memref<8x64xf32, #tpu.memory_space<vmem>>, vector<8x4xf32>,
    %601 = vector.extract_strided_slice %356 {offsets = [0, 52], sizes = [8, 4], strides = [1, 1]} : vector<8x64xf32> to vector<8x4xf32>
    %602 = vector.extract_strided_slice %365 {offsets = [0, 52], sizes = [16, 4], strides = [1, 1]} : vector<16x64xf32> to vector<16x4xf32>
    %603 = vector.extract_strided_slice %366 {offsets = [0, 52], sizes = [16, 4], strides = [1, 1]} : vector<16x64xf32> to vector<16x4xf32>
    %cst_232 = arith.constant dense<0.000000e+00> : vector<8x16xf32>
    %604 = tpu.matmul %601, %602, %cst_232 {dimension_numbers = #tpu.dot_dimension_numbers<[1], [1], [0], [0], [0, 0, 1, 0], [], []>} : vector<8x4xf32>, vector<16x4xf32>, vector<8x16xf32> -> vector<8x16xf32>
    %cst_233 = arith.constant 5.000000e-01 : f32
    %605 = vector.broadcast %cst_233 : f32 to vector<8x16xf32>
    %606 = arith.mulf %604, %605 : vector<8x16xf32>
    %cst_234 = arith.constant dense<0xFF800000> : vector<8xf32>
    %607 = vector.multi_reduction <maximumf>, %606, %cst_234 [1] : vector<8x16xf32> to vector<8xf32>
    %608 = vector.shape_cast %607 : vector<8xf32> to vector<8x1xf32>
    %609 = vector.broadcast %608 : vector<8x1xf32> to vector<8x16xf32>
    %610 = arith.subf %606, %609 : vector<8x16xf32>
    %611 = math.exp %610 : vector<8x16xf32>
    %cst_235 = arith.constant dense<0.000000e+00> : vector<8xf32>
    %612 = vector.multi_reduction <add>, %611, %cst_235 [1] : vector<8x16xf32> to vector<8xf32>
    %613 = vector.shape_cast %612 : vector<8xf32> to vector<8x1xf32>
    %614 = tpu.reciprocal %613 {approx = true} : vector<8x1xf32> -> vector<8x1xf32>
    %615 = vector.broadcast %614 : vector<8x1xf32> to vector<8x16xf32>
    %616 = arith.mulf %611, %615 : vector<8x16xf32>
    %cst_236 = arith.constant dense<0.000000e+00> : vector<8x4xf32>
    %617 = tpu.matmul %616, %603, %cst_236 {dimension_numbers = #tpu.dot_dimension_numbers<[1], [0], [0], [1], [0, 0, 1, 1], [], []>} : vector<8x16xf32>, vector<16x4xf32>, vector<8x4xf32> -> vector<8x4xf32>
    %c0_237 = arith.constant 0 : index
    %c52_238 = arith.constant 52 : index
    %618 = vector.load %arg26[%c0_237, %c52_238] : memref<8x64xf32, #tpu.memory_space<vmem>>, vector<8x4xf32>
    tpu.vector_store %arg26[%c0_237, %c52_238], %617 {strides = array<i32>} : memref<8x64xf32, #tpu.memory_space<vmem>>, vector<8x4xf32>,
    %619 = vector.extract_strided_slice %356 {offsets = [0, 56], sizes = [8, 4], strides = [1, 1]} : vector<8x64xf32> to vector<8x4xf32>
    %620 = vector.extract_strided_slice %365 {offsets = [0, 56], sizes = [16, 4], strides = [1, 1]} : vector<16x64xf32> to vector<16x4xf32>
    %621 = vector.extract_strided_slice %366 {offsets = [0, 56], sizes = [16, 4], strides = [1, 1]} : vector<16x64xf32> to vector<16x4xf32>
    %cst_239 = arith.constant dense<0.000000e+00> : vector<8x16xf32>
    %622 = tpu.matmul %619, %620, %cst_239 {dimension_numbers = #tpu.dot_dimension_numbers<[1], [1], [0], [0], [0, 0, 1, 0], [], []>} : vector<8x4xf32>, vector<16x4xf32>, vector<8x16xf32> -> vector<8x16xf32>
    %cst_240 = arith.constant 5.000000e-01 : f32
    %623 = vector.broadcast %cst_240 : f32 to vector<8x16xf32>
    %624 = arith.mulf %622, %623 : vector<8x16xf32>
    %cst_241 = arith.constant dense<0xFF800000> : vector<8xf32>
    %625 = vector.multi_reduction <maximumf>, %624, %cst_241 [1] : vector<8x16xf32> to vector<8xf32>
    %626 = vector.shape_cast %625 : vector<8xf32> to vector<8x1xf32>
    %627 = vector.broadcast %626 : vector<8x1xf32> to vector<8x16xf32>
    %628 = arith.subf %624, %627 : vector<8x16xf32>
    %629 = math.exp %628 : vector<8x16xf32>
    %cst_242 = arith.constant dense<0.000000e+00> : vector<8xf32>
    %630 = vector.multi_reduction <add>, %629, %cst_242 [1] : vector<8x16xf32> to vector<8xf32>
    %631 = vector.shape_cast %630 : vector<8xf32> to vector<8x1xf32>
    %632 = tpu.reciprocal %631 {approx = true} : vector<8x1xf32> -> vector<8x1xf32>
    %633 = vector.broadcast %632 : vector<8x1xf32> to vector<8x16xf32>
    %634 = arith.mulf %629, %633 : vector<8x16xf32>
    %cst_243 = arith.constant dense<0.000000e+00> : vector<8x4xf32>
    %635 = tpu.matmul %634, %621, %cst_243 {dimension_numbers = #tpu.dot_dimension_numbers<[1], [0], [0], [1], [0, 0, 1, 1], [], []>} : vector<8x16xf32>, vector<16x4xf32>, vector<8x4xf32> -> vector<8x4xf32>
    %c0_244 = arith.constant 0 : index
    %c56_245 = arith.constant 56 : index
    %636 = vector.load %arg26[%c0_244, %c56_245] : memref<8x64xf32, #tpu.memory_space<vmem>>, vector<8x4xf32>
    tpu.vector_store %arg26[%c0_244, %c56_245], %635 {strides = array<i32>} : memref<8x64xf32, #tpu.memory_space<vmem>>, vector<8x4xf32>,
    %637 = vector.extract_strided_slice %356 {offsets = [0, 60], sizes = [8, 4], strides = [1, 1]} : vector<8x64xf32> to vector<8x4xf32>
    %638 = vector.extract_strided_slice %365 {offsets = [0, 60], sizes = [16, 4], strides = [1, 1]} : vector<16x64xf32> to vector<16x4xf32>
    %639 = vector.extract_strided_slice %366 {offsets = [0, 60], sizes = [16, 4], strides = [1, 1]} : vector<16x64xf32> to vector<16x4xf32>
    %cst_246 = arith.constant dense<0.000000e+00> : vector<8x16xf32>
    %640 = tpu.matmul %637, %638, %cst_246 {dimension_numbers = #tpu.dot_dimension_numbers<[1], [1], [0], [0], [0, 0, 1, 0], [], []>} : vector<8x4xf32>, vector<16x4xf32>, vector<8x16xf32> -> vector<8x16xf32>
    %cst_247 = arith.constant 5.000000e-01 : f32
    %641 = vector.broadcast %cst_247 : f32 to vector<8x16xf32>
    %642 = arith.mulf %640, %641 : vector<8x16xf32>
    %cst_248 = arith.constant dense<0xFF800000> : vector<8xf32>
    %643 = vector.multi_reduction <maximumf>, %642, %cst_248 [1] : vector<8x16xf32> to vector<8xf32>
    %644 = vector.shape_cast %643 : vector<8xf32> to vector<8x1xf32>
    %645 = vector.broadcast %644 : vector<8x1xf32> to vector<8x16xf32>
    %646 = arith.subf %642, %645 : vector<8x16xf32>
    %647 = math.exp %646 : vector<8x16xf32>
    %cst_249 = arith.constant dense<0.000000e+00> : vector<8xf32>
    %648 = vector.multi_reduction <add>, %647, %cst_249 [1] : vector<8x16xf32> to vector<8xf32>
    %649 = vector.shape_cast %648 : vector<8xf32> to vector<8x1xf32>
    %650 = tpu.reciprocal %649 {approx = true} : vector<8x1xf32> -> vector<8x1xf32>
    %651 = vector.broadcast %650 : vector<8x1xf32> to vector<8x16xf32>
    %652 = arith.mulf %647, %651 : vector<8x16xf32>
    %cst_250 = arith.constant dense<0.000000e+00> : vector<8x4xf32>
    %653 = tpu.matmul %652, %639, %cst_250 {dimension_numbers = #tpu.dot_dimension_numbers<[1], [0], [0], [1], [0, 0, 1, 1], [], []>} : vector<8x16xf32>, vector<16x4xf32>, vector<8x4xf32> -> vector<8x4xf32>
    %c0_251 = arith.constant 0 : index
    %c60_252 = arith.constant 60 : index
    %654 = vector.load %arg26[%c0_251, %c60_252] : memref<8x64xf32, #tpu.memory_space<vmem>>, vector<8x4xf32>
    tpu.vector_store %arg26[%c0_251, %c60_252], %653 {strides = array<i32>} : memref<8x64xf32, #tpu.memory_space<vmem>>, vector<8x4xf32>,
    %c0_253 = arith.constant 0 : index
    %c0_254 = arith.constant 0 : index
    %655 = vector.load %arg26[%c0_253, %c0_254] : memref<8x64xf32, #tpu.memory_space<vmem>>, vector<8x64xf32>
    %656 = arith.truncf %655 : vector<8x64xf32> to vector<8x64xbf16>
    %c0_255 = arith.constant 0 : index
    %c0_256 = arith.constant 0 : index
    %657 = vector.load %arg15[%c0_255, %c0_256] : memref<64x64xbf16, #tpu.memory_space<vmem>>, vector<64x64xbf16>
    %cst_257 = arith.constant dense<0.000000e+00> : vector<8x64xf32>
    %658 = tpu.matmul %656, %657, %cst_257 {dimension_numbers = #tpu.dot_dimension_numbers<[1], [0], [0], [1], [0, 0, 1, 1], [], []>} : vector<8x64xbf16>, vector<64x64xbf16>, vector<8x64xf32> -> vector<8x64xf32>
    %c0_258 = arith.constant 0 : index
    %c0_259 = arith.constant 0 : index
    %659 = vector.load %arg16[%c0_258, %c0_259] : memref<1x64xf32, #tpu.memory_space<vmem>>, vector<1x64xf32>
    %660 = vector.broadcast %659 : vector<1x64xf32> to vector<8x64xf32>
    %661 = arith.addf %658, %660 : vector<8x64xf32>
    %662 = arith.addf %661, %350 : vector<8x64xf32>
    %c0_260 = arith.constant 0 : index
    %c0_261 = arith.constant 0 : index
    %663 = vector.load %arg17[%c0_260, %c0_261] : memref<1x64xf32, #tpu.memory_space<vmem>>, vector<1x64xf32>
    %c0_262 = arith.constant 0 : index
    %c0_263 = arith.constant 0 : index
    %664 = vector.load %arg18[%c0_262, %c0_263] : memref<1x64xf32, #tpu.memory_space<vmem>>, vector<1x64xf32>
    %cst_264 = arith.constant dense<0.000000e+00> : vector<8xf32>
    %665 = vector.multi_reduction <add>, %662, %cst_264 [1] : vector<8x64xf32> to vector<8xf32>
    %666 = vector.shape_cast %665 : vector<8xf32> to vector<8x1xf32>
    %cst_265 = arith.constant 6.400000e+01 : f32
    %667 = vector.broadcast %cst_265 : f32 to vector<8x1xf32>
    %668 = arith.divf %666, %667 : vector<8x1xf32>
    %669 = vector.broadcast %668 : vector<8x1xf32> to vector<8x64xf32>
    %670 = arith.subf %662, %669 : vector<8x64xf32>
    %671 = arith.mulf %670, %670 : vector<8x64xf32>
    %cst_266 = arith.constant dense<0.000000e+00> : vector<8xf32>
    %672 = vector.multi_reduction <add>, %671, %cst_266 [1] : vector<8x64xf32> to vector<8xf32>
    %673 = vector.shape_cast %672 : vector<8xf32> to vector<8x1xf32>
    %cst_267 = arith.constant 6.400000e+01 : f32
    %674 = vector.broadcast %cst_267 : f32 to vector<8x1xf32>
    %675 = arith.divf %673, %674 : vector<8x1xf32>
    %cst_268 = arith.constant 9.99999996E-13 : f32
    %676 = vector.broadcast %cst_268 : f32 to vector<8x1xf32>
    %677 = arith.addf %675, %676 : vector<8x1xf32>
    %678 = math.rsqrt %677 : vector<8x1xf32>
    %679 = vector.broadcast %678 : vector<8x1xf32> to vector<8x64xf32>
    %680 = arith.mulf %670, %679 : vector<8x64xf32>
    %681 = vector.broadcast %663 : vector<1x64xf32> to vector<8x64xf32>
    %682 = arith.mulf %680, %681 : vector<8x64xf32>
    %683 = vector.broadcast %664 : vector<1x64xf32> to vector<8x64xf32>
    %684 = arith.addf %682, %683 : vector<8x64xf32>
    %685 = arith.truncf %684 : vector<8x64xf32> to vector<8x64xbf16>
    %c0_269 = arith.constant 0 : index
    %c0_270 = arith.constant 0 : index
    %686 = vector.load %arg19[%c0_269, %c0_270] : memref<64x256xbf16, #tpu.memory_space<vmem>>, vector<64x256xbf16>
    %cst_271 = arith.constant dense<0.000000e+00> : vector<8x256xf32>
    %687 = tpu.matmul %685, %686, %cst_271 {dimension_numbers = #tpu.dot_dimension_numbers<[1], [0], [0], [1], [0, 0, 1, 1], [], []>} : vector<8x64xbf16>, vector<64x256xbf16>, vector<8x256xf32> -> vector<8x256xf32>
    %c0_272 = arith.constant 0 : index
    %c0_273 = arith.constant 0 : index
    %688 = vector.load %arg20[%c0_272, %c0_273] : memref<1x256xf32, #tpu.memory_space<vmem>>, vector<1x256xf32>
    %689 = vector.broadcast %688 : vector<1x256xf32> to vector<8x256xf32>
    %690 = arith.addf %687, %689 : vector<8x256xf32>
    %cst_274 = arith.constant 5.000000e-01 : f32
    %691 = vector.broadcast %cst_274 : f32 to vector<8x256xf32>
    %692 = arith.mulf %691, %690 : vector<8x256xf32>
    %cst_275 = arith.constant 0.707106769 : f32
    %693 = vector.broadcast %cst_275 : f32 to vector<8x256xf32>
    %694 = arith.mulf %690, %693 : vector<8x256xf32>
    %695 = math.absf %694 : vector<8x256xf32>
    %cst_276 = arith.constant 0.327591091 : f32
    %696 = vector.broadcast %cst_276 : f32 to vector<8x256xf32>
    %697 = arith.mulf %696, %695 : vector<8x256xf32>
    %cst_277 = arith.constant 1.000000e+00 : f32
    %698 = vector.broadcast %cst_277 : f32 to vector<8x256xf32>
    %699 = arith.addf %698, %697 : vector<8x256xf32>
    %cst_278 = arith.constant 1.000000e+00 : f32
    %700 = vector.broadcast %cst_278 : f32 to vector<8x256xf32>
    %701 = arith.divf %700, %699 : vector<8x256xf32>
    %cst_279 = arith.constant 1.06140542 : f32
    %702 = vector.broadcast %cst_279 : f32 to vector<8x256xf32>
    %703 = arith.mulf %702, %701 : vector<8x256xf32>
    %cst_280 = arith.constant -1.45315206 : f32
    %704 = vector.broadcast %cst_280 : f32 to vector<8x256xf32>
    %705 = arith.addf %703, %704 : vector<8x256xf32>
    %706 = arith.mulf %705, %701 : vector<8x256xf32>
    %cst_281 = arith.constant 1.42141378 : f32
    %707 = vector.broadcast %cst_281 : f32 to vector<8x256xf32>
    %708 = arith.addf %706, %707 : vector<8x256xf32>
    %709 = arith.mulf %708, %701 : vector<8x256xf32>
    %cst_282 = arith.constant -0.284496725 : f32
    %710 = vector.broadcast %cst_282 : f32 to vector<8x256xf32>
    %711 = arith.addf %709, %710 : vector<8x256xf32>
    %712 = arith.mulf %711, %701 : vector<8x256xf32>
    %cst_283 = arith.constant 0.254829586 : f32
    %713 = vector.broadcast %cst_283 : f32 to vector<8x256xf32>
    %714 = arith.addf %712, %713 : vector<8x256xf32>
    %715 = arith.mulf %714, %701 : vector<8x256xf32>
    %cst_284 = arith.constant 0.000000e+00 : f32
    %716 = vector.broadcast %cst_284 : f32 to vector<8x256xf32>
    %717 = arith.subf %716, %695 : vector<8x256xf32>
    %718 = arith.mulf %717, %695 : vector<8x256xf32>
    %719 = math.exp %718 : vector<8x256xf32>
    %720 = arith.mulf %715, %719 : vector<8x256xf32>
    %cst_285 = arith.constant 1.000000e+00 : f32
    %721 = vector.broadcast %cst_285 : f32 to vector<8x256xf32>
    %722 = arith.subf %721, %720 : vector<8x256xf32>
    %cst_286 = arith.constant 0.000000e+00 : f32
    %723 = vector.broadcast %cst_286 : f32 to vector<8x256xf32>
    %724 = arith.cmpf oge, %694, %723 : vector<8x256xf32>
    %cst_287 = arith.constant 0.000000e+00 : f32
    %725 = vector.broadcast %cst_287 : f32 to vector<8x256xf32>
    %726 = arith.subf %725, %722 : vector<8x256xf32>
    %727 = arith.select %724, %722, %726 : vector<8x256xi1>, vector<8x256xf32>
    %cst_288 = arith.constant 1.000000e+00 : f32
    %728 = vector.broadcast %cst_288 : f32 to vector<8x256xf32>
    %729 = arith.addf %728, %727 : vector<8x256xf32>
    %730 = arith.mulf %692, %729 : vector<8x256xf32>
    %731 = arith.truncf %730 : vector<8x256xf32> to vector<8x256xbf16>
    %c0_289 = arith.constant 0 : index
    %c0_290 = arith.constant 0 : index
    %732 = vector.load %arg21[%c0_289, %c0_290] : memref<256x64xbf16, #tpu.memory_space<vmem>>, vector<256x64xbf16>
    %cst_291 = arith.constant dense<0.000000e+00> : vector<8x64xf32>
    %733 = tpu.matmul %731, %732, %cst_291 {dimension_numbers = #tpu.dot_dimension_numbers<[1], [0], [0], [1], [0, 0, 1, 1], [], []>} : vector<8x256xbf16>, vector<256x64xbf16>, vector<8x64xf32> -> vector<8x64xf32>
    %c0_292 = arith.constant 0 : index
    %c0_293 = arith.constant 0 : index
    %734 = vector.load %arg22[%c0_292, %c0_293] : memref<1x64xf32, #tpu.memory_space<vmem>>, vector<1x64xf32>
    %735 = vector.broadcast %734 : vector<1x64xf32> to vector<8x64xf32>
    %736 = arith.addf %733, %735 : vector<8x64xf32>
    %737 = arith.addf %736, %684 : vector<8x64xf32>
    %c0_294 = arith.constant 0 : index
    %c0_295 = arith.constant 0 : index
    %738 = vector.load %arg23[%c0_294, %c0_295] : memref<1x64xf32, #tpu.memory_space<vmem>>, vector<1x64xf32>
    %c0_296 = arith.constant 0 : index
    %c0_297 = arith.constant 0 : index
    %739 = vector.load %arg24[%c0_296, %c0_297] : memref<1x64xf32, #tpu.memory_space<vmem>>, vector<1x64xf32>
    %cst_298 = arith.constant dense<0.000000e+00> : vector<8xf32>
    %740 = vector.multi_reduction <add>, %737, %cst_298 [1] : vector<8x64xf32> to vector<8xf32>
    %741 = vector.shape_cast %740 : vector<8xf32> to vector<8x1xf32>
    %cst_299 = arith.constant 6.400000e+01 : f32
    %742 = vector.broadcast %cst_299 : f32 to vector<8x1xf32>
    %743 = arith.divf %741, %742 : vector<8x1xf32>
    %744 = vector.broadcast %743 : vector<8x1xf32> to vector<8x64xf32>
    %745 = arith.subf %737, %744 : vector<8x64xf32>
    %746 = arith.mulf %745, %745 : vector<8x64xf32>
    %cst_300 = arith.constant dense<0.000000e+00> : vector<8xf32>
    %747 = vector.multi_reduction <add>, %746, %cst_300 [1] : vector<8x64xf32> to vector<8xf32>
    %748 = vector.shape_cast %747 : vector<8xf32> to vector<8x1xf32>
    %cst_301 = arith.constant 6.400000e+01 : f32
    %749 = vector.broadcast %cst_301 : f32 to vector<8x1xf32>
    %750 = arith.divf %748, %749 : vector<8x1xf32>
    %cst_302 = arith.constant 9.99999996E-13 : f32
    %751 = vector.broadcast %cst_302 : f32 to vector<8x1xf32>
    %752 = arith.addf %750, %751 : vector<8x1xf32>
    %753 = math.rsqrt %752 : vector<8x1xf32>
    %754 = vector.broadcast %753 : vector<8x1xf32> to vector<8x64xf32>
    %755 = arith.mulf %745, %754 : vector<8x64xf32>
    %756 = vector.broadcast %738 : vector<1x64xf32> to vector<8x64xf32>
    %757 = arith.mulf %755, %756 : vector<8x64xf32>
    %758 = vector.broadcast %739 : vector<1x64xf32> to vector<8x64xf32>
    %759 = arith.addf %757, %758 : vector<8x64xf32>
    %c0_303 = arith.constant 0 : index
    %c0_304 = arith.constant 0 : index
    %c0_305 = arith.constant 0 : index
    %760 = vector.load %arg25[%c0_303, %c0_304, %c0_305] : memref<1x8x64xf32, #tpu.memory_space<vmem>>, vector<1x8x64xf32>
    %761 = vector.shape_cast %760 : vector<1x8x64xf32> to vector<8x64xf32>
    %762 = vector.shape_cast %759 : vector<8x64xf32> to vector<1x8x64xf32>
    tpu.vector_store %arg25[%c0_303, %c0_304, %c0_305], %762 {strides = array<i32>} : memref<1x8x64xf32, #tpu.memory_space<vmem>>, vector<1x8x64xf32>,
    return
  }
  func.func @transform_0(%arg0: i32) -> (i32, i32, i32) {
    %c0_i32 = arith.constant 0 : i32
    %c0_i32_0 = arith.constant 0 : i32
    %c0_i32_1 = arith.constant 0 : i32
    return %arg0, %c0_i32, %c0_i32_0 : i32, i32, i32
  }
  func.func @transform_1(%arg0: i32) -> (i32, i32, i32) {
    %c0_i32 = arith.constant 0 : i32
    %c0_i32_0 = arith.constant 0 : i32
    %c0_i32_1 = arith.constant 0 : i32
    return %arg0, %c0_i32, %c0_i32_0 : i32, i32, i32
  }
  func.func @transform_2(%arg0: i32) -> (i32, i32) {
    %c0_i32 = arith.constant 0 : i32
    %c0_i32_0 = arith.constant 0 : i32
    %c0_i32_1 = arith.constant 0 : i32
    return %c0_i32, %c0_i32_0 : i32, i32
  }
  func.func @transform_3(%arg0: i32) -> (i32, i32) {
    %c0_i32 = arith.constant 0 : i32
    %c0_i32_0 = arith.constant 0 : i32
    %c0_i32_1 = arith.constant 0 : i32
    return %c0_i32, %c0_i32_0 : i32, i32
  }
  func.func @transform_4(%arg0: i32) -> (i32, i32) {
    %c0_i32 = arith.constant 0 : i32
    %c0_i32_0 = arith.constant 0 : i32
    %c0_i32_1 = arith.constant 0 : i32
    return %c0_i32, %c0_i32_0 : i32, i32
  }
  func.func @transform_5(%arg0: i32) -> (i32, i32) {
    %c0_i32 = arith.constant 0 : i32
    %c0_i32_0 = arith.constant 0 : i32
    %c0_i32_1 = arith.constant 0 : i32
    return %c0_i32, %c0_i32_0 : i32, i32
  }
  func.func @transform_6(%arg0: i32) -> (i32, i32) {
    %c0_i32 = arith.constant 0 : i32
    %c0_i32_0 = arith.constant 0 : i32
    %c0_i32_1 = arith.constant 0 : i32
    return %c0_i32, %c0_i32_0 : i32, i32
  }
  func.func @transform_7(%arg0: i32) -> (i32, i32) {
    %c0_i32 = arith.constant 0 : i32
    %c0_i32_0 = arith.constant 0 : i32
    %c0_i32_1 = arith.constant 0 : i32
    return %c0_i32, %c0_i32_0 : i32, i32
  }
  func.func @transform_8(%arg0: i32) -> (i32, i32) {
    %c0_i32 = arith.constant 0 : i32
    %c0_i32_0 = arith.constant 0 : i32
    %c0_i32_1 = arith.constant 0 : i32
    return %c0_i32, %c0_i32_0 : i32, i32
  }
  func.func @transform_9(%arg0: i32) -> (i32, i32) {
    %c0_i32 = arith.constant 0 : i32
    %c0_i32_0 = arith.constant 0 : i32
    %c0_i32_1 = arith.constant 0 : i32
    return %c0_i32, %c0_i32_0 : i32, i32
  }
  func.func @transform_10(%arg0: i32) -> (i32, i32) {
    %c0_i32 = arith.constant 0 : i32
    %c0_i32_0 = arith.constant 0 : i32
    %c0_i32_1 = arith.constant 0 : i32
    return %c0_i32, %c0_i32_0 : i32, i32
  }
  func.func @transform_11(%arg0: i32) -> (i32, i32) {
    %c0_i32 = arith.constant 0 : i32
    %c0_i32_0 = arith.constant 0 : i32
    %c0_i32_1 = arith.constant 0 : i32
    return %c0_i32, %c0_i32_0 : i32, i32
  }
  func.func @transform_12(%arg0: i32) -> (i32, i32) {
    %c0_i32 = arith.constant 0 : i32
    %c0_i32_0 = arith.constant 0 : i32
    %c0_i32_1 = arith.constant 0 : i32
    return %c0_i32, %c0_i32_0 : i32, i32
  }
  func.func @transform_13(%arg0: i32) -> (i32, i32) {
    %c0_i32 = arith.constant 0 : i32
    %c0_i32_0 = arith.constant 0 : i32
    %c0_i32_1 = arith.constant 0 : i32
    return %c0_i32, %c0_i32_0 : i32, i32
  }
  func.func @transform_14(%arg0: i32) -> (i32, i32) {
    %c0_i32 = arith.constant 0 : i32
    %c0_i32_0 = arith.constant 0 : i32
    %c0_i32_1 = arith.constant 0 : i32
    return %c0_i32, %c0_i32_0 : i32, i32
  }
  func.func @transform_15(%arg0: i32) -> (i32, i32) {
    %c0_i32 = arith.constant 0 : i32
    %c0_i32_0 = arith.constant 0 : i32
    %c0_i32_1 = arith.constant 0 : i32
    return %c0_i32, %c0_i32_0 : i32, i32
  }
  func.func @transform_16(%arg0: i32) -> (i32, i32) {
    %c0_i32 = arith.constant 0 : i32
    %c0_i32_0 = arith.constant 0 : i32
    %c0_i32_1 = arith.constant 0 : i32
    return %c0_i32, %c0_i32_0 : i32, i32
  }
  func.func @transform_17(%arg0: i32) -> (i32, i32) {
    %c0_i32 = arith.constant 0 : i32
    %c0_i32_0 = arith.constant 0 : i32
    %c0_i32_1 = arith.constant 0 : i32
    return %c0_i32, %c0_i32_0 : i32, i32
  }
  func.func @transform_18(%arg0: i32) -> (i32, i32) {
    %c0_i32 = arith.constant 0 : i32
    %c0_i32_0 = arith.constant 0 : i32
    %c0_i32_1 = arith.constant 0 : i32
    return %c0_i32, %c0_i32_0 : i32, i32
  }
  func.func @transform_19(%arg0: i32) -> (i32, i32) {
    %c0_i32 = arith.constant 0 : i32
    %c0_i32_0 = arith.constant 0 : i32
    %c0_i32_1 = arith.constant 0 : i32
    return %c0_i32, %c0_i32_0 : i32, i32
  }
  func.func @transform_20(%arg0: i32) -> (i32, i32) {
    %c0_i32 = arith.constant 0 : i32
    %c0_i32_0 = arith.constant 0 : i32
    %c0_i32_1 = arith.constant 0 : i32
    return %c0_i32, %c0_i32_0 : i32, i32
  }
  func.func @transform_21(%arg0: i32) -> (i32, i32) {
    %c0_i32 = arith.constant 0 : i32
    %c0_i32_0 = arith.constant 0 : i32
    %c0_i32_1 = arith.constant 0 : i32
    return %c0_i32, %c0_i32_0 : i32, i32
  }
  func.func @transform_22(%arg0: i32) -> (i32, i32) {
    %c0_i32 = arith.constant 0 : i32
    %c0_i32_0 = arith.constant 0 : i32
    %c0_i32_1 = arith.constant 0 : i32
    return %c0_i32, %c0_i32_0 : i32, i32
  }
  func.func @transform_23(%arg0: i32) -> (i32, i32) {
    %c0_i32 = arith.constant 0 : i32
    %c0_i32_0 = arith.constant 0 : i32
    %c0_i32_1 = arith.constant 0 : i32
    return %c0_i32, %c0_i32_0 : i32, i32
  }
  func.func @transform_24(%arg0: i32) -> (i32, i32, i32) {
    %c0_i32 = arith.constant 0 : i32
    %c0_i32_0 = arith.constant 0 : i32
    %c0_i32_1 = arith.constant 0 : i32
    return %arg0, %c0_i32, %c0_i32_0 : i32, i32, i32
  }
}

module attributes {stable_mosaic.version = 11 : i64} {
  func.func @kernel(%arg0: i32, %arg1: memref<1x8x64xf32, #tpu.memory_space<vmem>>, %arg2: memref<64x192xbf16, #tpu.memory_space<vmem>>, %arg3: memref<1x192xf32, #tpu.memory_space<vmem>>, %arg4: memref<64x64xbf16, #tpu.memory_space<vmem>>, %arg5: memref<1x64xf32, #tpu.memory_space<vmem>>, %arg6: memref<1x64xf32, #tpu.memory_space<vmem>>, %arg7: memref<1x64xf32, #tpu.memory_space<vmem>>, %arg8: memref<64x256xbf16, #tpu.memory_space<vmem>>, %arg9: memref<1x256xf32, #tpu.memory_space<vmem>>, %arg10: memref<256x64xbf16, #tpu.memory_space<vmem>>, %arg11: memref<1x64xf32, #tpu.memory_space<vmem>>, %arg12: memref<1x64xf32, #tpu.memory_space<vmem>>, %arg13: memref<1x64xf32, #tpu.memory_space<vmem>>, %arg14: memref<1x8x64xf32, #tpu.memory_space<vmem>>, %arg15: memref<8x64xf32, #tpu.memory_space<vmem>>) attributes {dimension_semantics = [#tpu.dimension_semantics<parallel>], iteration_bounds = array<i64: 2>, scalar_prefetch = 0 : i64, scratch_operands = 1 : i64, tpu.core_type = #tpu.core_type<tc>, window_params = [{transform_indices = @transform_0, window_bounds = array<i64: 1, 8, 64>}, {pipeline_mode = #tpu.pipeline_mode<synchronous>, transform_indices = @transform_1, window_bounds = array<i64: 64, 192>}, {pipeline_mode = #tpu.pipeline_mode<synchronous>, transform_indices = @transform_2, window_bounds = array<i64: 1, 192>}, {pipeline_mode = #tpu.pipeline_mode<synchronous>, transform_indices = @transform_3, window_bounds = array<i64: 64, 64>}, {pipeline_mode = #tpu.pipeline_mode<synchronous>, transform_indices = @transform_4, window_bounds = array<i64: 1, 64>}, {pipeline_mode = #tpu.pipeline_mode<synchronous>, transform_indices = @transform_5, window_bounds = array<i64: 1, 64>}, {pipeline_mode = #tpu.pipeline_mode<synchronous>, transform_indices = @transform_6, window_bounds = array<i64: 1, 64>}, {pipeline_mode = #tpu.pipeline_mode<synchronous>, transform_indices = @transform_7, window_bounds = array<i64: 64, 256>}, {pipeline_mode = #tpu.pipeline_mode<synchronous>, transform_indices = @transform_8, window_bounds = array<i64: 1, 256>}, {pipeline_mode = #tpu.pipeline_mode<synchronous>, transform_indices = @transform_9, window_bounds = array<i64: 256, 64>}, {pipeline_mode = #tpu.pipeline_mode<synchronous>, transform_indices = @transform_10, window_bounds = array<i64: 1, 64>}, {pipeline_mode = #tpu.pipeline_mode<synchronous>, transform_indices = @transform_11, window_bounds = array<i64: 1, 64>}, {pipeline_mode = #tpu.pipeline_mode<synchronous>, transform_indices = @transform_12, window_bounds = array<i64: 1, 64>}, {transform_indices = @transform_13, window_bounds = array<i64: 1, 8, 64>}]} {
    %c0 = arith.constant 0 : index
    %c0_0 = arith.constant 0 : index
    %c0_1 = arith.constant 0 : index
    %0 = vector.load %arg1[%c0, %c0_0, %c0_1] : memref<1x8x64xf32, #tpu.memory_space<vmem>>, vector<1x8x64xf32>
    %1 = vector.shape_cast %0 : vector<1x8x64xf32> to vector<8x64xf32>
    %2 = arith.truncf %1 : vector<8x64xf32> to vector<8x64xbf16>
    %c0_2 = arith.constant 0 : index
    %c0_3 = arith.constant 0 : index
    %3 = vector.load %arg2[%c0_2, %c0_3] : memref<64x192xbf16, #tpu.memory_space<vmem>>, vector<64x192xbf16>
    %cst = arith.constant dense<0.000000e+00> : vector<8x192xf32>
    %4 = tpu.matmul %2, %3, %cst {dimension_numbers = #tpu.dot_dimension_numbers<[1], [0], [0], [1], [0, 0, 1, 1], [], []>} : vector<8x64xbf16>, vector<64x192xbf16>, vector<8x192xf32> -> vector<8x192xf32>
    %c0_4 = arith.constant 0 : index
    %c0_5 = arith.constant 0 : index
    %5 = vector.load %arg3[%c0_4, %c0_5] : memref<1x192xf32, #tpu.memory_space<vmem>>, vector<1x192xf32>
    %6 = vector.broadcast %5 : vector<1x192xf32> to vector<8x192xf32>
    %7 = arith.addf %4, %6 : vector<8x192xf32>
    %8 = vector.extract_strided_slice %7 {offsets = [0, 0], sizes = [8, 64], strides = [1, 1]} : vector<8x192xf32> to vector<8x64xf32>
    %9 = vector.extract_strided_slice %7 {offsets = [0, 64], sizes = [8, 64], strides = [1, 1]} : vector<8x192xf32> to vector<8x64xf32>
    %10 = vector.extract_strided_slice %7 {offsets = [0, 128], sizes = [8, 64], strides = [1, 1]} : vector<8x192xf32> to vector<8x64xf32>
    %11 = vector.extract_strided_slice %8 {offsets = [0, 0], sizes = [8, 4], strides = [1, 1]} : vector<8x64xf32> to vector<8x4xf32>
    %12 = vector.extract_strided_slice %9 {offsets = [0, 0], sizes = [8, 4], strides = [1, 1]} : vector<8x64xf32> to vector<8x4xf32>
    %13 = vector.extract_strided_slice %10 {offsets = [0, 0], sizes = [8, 4], strides = [1, 1]} : vector<8x64xf32> to vector<8x4xf32>
    %cst_6 = arith.constant dense<0.000000e+00> : vector<8x8xf32>
    %14 = tpu.matmul %11, %12, %cst_6 {dimension_numbers = #tpu.dot_dimension_numbers<[1], [1], [0], [0], [0, 0, 1, 0], [], []>} : vector<8x4xf32>, vector<8x4xf32>, vector<8x8xf32> -> vector<8x8xf32>
    %cst_7 = arith.constant 5.000000e-01 : f32
    %15 = vector.broadcast %cst_7 : f32 to vector<8x8xf32>
    %16 = arith.mulf %14, %15 : vector<8x8xf32>
    %cst_8 = arith.constant dense<0xFF800000> : vector<8xf32>
    %17 = vector.multi_reduction <maximumf>, %16, %cst_8 [1] : vector<8x8xf32> to vector<8xf32>
    %18 = vector.shape_cast %17 : vector<8xf32> to vector<8x1xf32>
    %19 = vector.broadcast %18 : vector<8x1xf32> to vector<8x8xf32>
    %20 = arith.subf %16, %19 : vector<8x8xf32>
    %21 = math.exp %20 : vector<8x8xf32>
    %cst_9 = arith.constant dense<0.000000e+00> : vector<8xf32>
    %22 = vector.multi_reduction <add>, %21, %cst_9 [1] : vector<8x8xf32> to vector<8xf32>
    %23 = vector.shape_cast %22 : vector<8xf32> to vector<8x1xf32>
    %24 = tpu.reciprocal %23 {approx = true} : vector<8x1xf32> -> vector<8x1xf32>
    %25 = vector.broadcast %24 : vector<8x1xf32> to vector<8x8xf32>
    %26 = arith.mulf %21, %25 : vector<8x8xf32>
    %cst_10 = arith.constant dense<0.000000e+00> : vector<8x4xf32>
    %27 = tpu.matmul %26, %13, %cst_10 {dimension_numbers = #tpu.dot_dimension_numbers<[1], [0], [0], [1], [0, 0, 1, 1], [], []>} : vector<8x8xf32>, vector<8x4xf32>, vector<8x4xf32> -> vector<8x4xf32>
    %c0_11 = arith.constant 0 : index
    %c0_12 = arith.constant 0 : index
    %28 = vector.load %arg15[%c0_11, %c0_12] : memref<8x64xf32, #tpu.memory_space<vmem>>, vector<8x4xf32>
    tpu.vector_store %arg15[%c0_11, %c0_12], %27 {strides = array<i32>} : memref<8x64xf32, #tpu.memory_space<vmem>>, vector<8x4xf32>,
    %29 = vector.extract_strided_slice %8 {offsets = [0, 4], sizes = [8, 4], strides = [1, 1]} : vector<8x64xf32> to vector<8x4xf32>
    %30 = vector.extract_strided_slice %9 {offsets = [0, 4], sizes = [8, 4], strides = [1, 1]} : vector<8x64xf32> to vector<8x4xf32>
    %31 = vector.extract_strided_slice %10 {offsets = [0, 4], sizes = [8, 4], strides = [1, 1]} : vector<8x64xf32> to vector<8x4xf32>
    %cst_13 = arith.constant dense<0.000000e+00> : vector<8x8xf32>
    %32 = tpu.matmul %29, %30, %cst_13 {dimension_numbers = #tpu.dot_dimension_numbers<[1], [1], [0], [0], [0, 0, 1, 0], [], []>} : vector<8x4xf32>, vector<8x4xf32>, vector<8x8xf32> -> vector<8x8xf32>
    %cst_14 = arith.constant 5.000000e-01 : f32
    %33 = vector.broadcast %cst_14 : f32 to vector<8x8xf32>
    %34 = arith.mulf %32, %33 : vector<8x8xf32>
    %cst_15 = arith.constant dense<0xFF800000> : vector<8xf32>
    %35 = vector.multi_reduction <maximumf>, %34, %cst_15 [1] : vector<8x8xf32> to vector<8xf32>
    %36 = vector.shape_cast %35 : vector<8xf32> to vector<8x1xf32>
    %37 = vector.broadcast %36 : vector<8x1xf32> to vector<8x8xf32>
    %38 = arith.subf %34, %37 : vector<8x8xf32>
    %39 = math.exp %38 : vector<8x8xf32>
    %cst_16 = arith.constant dense<0.000000e+00> : vector<8xf32>
    %40 = vector.multi_reduction <add>, %39, %cst_16 [1] : vector<8x8xf32> to vector<8xf32>
    %41 = vector.shape_cast %40 : vector<8xf32> to vector<8x1xf32>
    %42 = tpu.reciprocal %41 {approx = true} : vector<8x1xf32> -> vector<8x1xf32>
    %43 = vector.broadcast %42 : vector<8x1xf32> to vector<8x8xf32>
    %44 = arith.mulf %39, %43 : vector<8x8xf32>
    %cst_17 = arith.constant dense<0.000000e+00> : vector<8x4xf32>
    %45 = tpu.matmul %44, %31, %cst_17 {dimension_numbers = #tpu.dot_dimension_numbers<[1], [0], [0], [1], [0, 0, 1, 1], [], []>} : vector<8x8xf32>, vector<8x4xf32>, vector<8x4xf32> -> vector<8x4xf32>
    %c0_18 = arith.constant 0 : index
    %c4 = arith.constant 4 : index
    %46 = vector.load %arg15[%c0_18, %c4] : memref<8x64xf32, #tpu.memory_space<vmem>>, vector<8x4xf32>
    tpu.vector_store %arg15[%c0_18, %c4], %45 {strides = array<i32>} : memref<8x64xf32, #tpu.memory_space<vmem>>, vector<8x4xf32>,
    %47 = vector.extract_strided_slice %8 {offsets = [0, 8], sizes = [8, 4], strides = [1, 1]} : vector<8x64xf32> to vector<8x4xf32>
    %48 = vector.extract_strided_slice %9 {offsets = [0, 8], sizes = [8, 4], strides = [1, 1]} : vector<8x64xf32> to vector<8x4xf32>
    %49 = vector.extract_strided_slice %10 {offsets = [0, 8], sizes = [8, 4], strides = [1, 1]} : vector<8x64xf32> to vector<8x4xf32>
    %cst_19 = arith.constant dense<0.000000e+00> : vector<8x8xf32>
    %50 = tpu.matmul %47, %48, %cst_19 {dimension_numbers = #tpu.dot_dimension_numbers<[1], [1], [0], [0], [0, 0, 1, 0], [], []>} : vector<8x4xf32>, vector<8x4xf32>, vector<8x8xf32> -> vector<8x8xf32>
    %cst_20 = arith.constant 5.000000e-01 : f32
    %51 = vector.broadcast %cst_20 : f32 to vector<8x8xf32>
    %52 = arith.mulf %50, %51 : vector<8x8xf32>
    %cst_21 = arith.constant dense<0xFF800000> : vector<8xf32>
    %53 = vector.multi_reduction <maximumf>, %52, %cst_21 [1] : vector<8x8xf32> to vector<8xf32>
    %54 = vector.shape_cast %53 : vector<8xf32> to vector<8x1xf32>
    %55 = vector.broadcast %54 : vector<8x1xf32> to vector<8x8xf32>
    %56 = arith.subf %52, %55 : vector<8x8xf32>
    %57 = math.exp %56 : vector<8x8xf32>
    %cst_22 = arith.constant dense<0.000000e+00> : vector<8xf32>
    %58 = vector.multi_reduction <add>, %57, %cst_22 [1] : vector<8x8xf32> to vector<8xf32>
    %59 = vector.shape_cast %58 : vector<8xf32> to vector<8x1xf32>
    %60 = tpu.reciprocal %59 {approx = true} : vector<8x1xf32> -> vector<8x1xf32>
    %61 = vector.broadcast %60 : vector<8x1xf32> to vector<8x8xf32>
    %62 = arith.mulf %57, %61 : vector<8x8xf32>
    %cst_23 = arith.constant dense<0.000000e+00> : vector<8x4xf32>
    %63 = tpu.matmul %62, %49, %cst_23 {dimension_numbers = #tpu.dot_dimension_numbers<[1], [0], [0], [1], [0, 0, 1, 1], [], []>} : vector<8x8xf32>, vector<8x4xf32>, vector<8x4xf32> -> vector<8x4xf32>
    %c0_24 = arith.constant 0 : index
    %c8 = arith.constant 8 : index
    %64 = vector.load %arg15[%c0_24, %c8] : memref<8x64xf32, #tpu.memory_space<vmem>>, vector<8x4xf32>
    tpu.vector_store %arg15[%c0_24, %c8], %63 {strides = array<i32>} : memref<8x64xf32, #tpu.memory_space<vmem>>, vector<8x4xf32>,
    %65 = vector.extract_strided_slice %8 {offsets = [0, 12], sizes = [8, 4], strides = [1, 1]} : vector<8x64xf32> to vector<8x4xf32>
    %66 = vector.extract_strided_slice %9 {offsets = [0, 12], sizes = [8, 4], strides = [1, 1]} : vector<8x64xf32> to vector<8x4xf32>
    %67 = vector.extract_strided_slice %10 {offsets = [0, 12], sizes = [8, 4], strides = [1, 1]} : vector<8x64xf32> to vector<8x4xf32>
    %cst_25 = arith.constant dense<0.000000e+00> : vector<8x8xf32>
    %68 = tpu.matmul %65, %66, %cst_25 {dimension_numbers = #tpu.dot_dimension_numbers<[1], [1], [0], [0], [0, 0, 1, 0], [], []>} : vector<8x4xf32>, vector<8x4xf32>, vector<8x8xf32> -> vector<8x8xf32>
    %cst_26 = arith.constant 5.000000e-01 : f32
    %69 = vector.broadcast %cst_26 : f32 to vector<8x8xf32>
    %70 = arith.mulf %68, %69 : vector<8x8xf32>
    %cst_27 = arith.constant dense<0xFF800000> : vector<8xf32>
    %71 = vector.multi_reduction <maximumf>, %70, %cst_27 [1] : vector<8x8xf32> to vector<8xf32>
    %72 = vector.shape_cast %71 : vector<8xf32> to vector<8x1xf32>
    %73 = vector.broadcast %72 : vector<8x1xf32> to vector<8x8xf32>
    %74 = arith.subf %70, %73 : vector<8x8xf32>
    %75 = math.exp %74 : vector<8x8xf32>
    %cst_28 = arith.constant dense<0.000000e+00> : vector<8xf32>
    %76 = vector.multi_reduction <add>, %75, %cst_28 [1] : vector<8x8xf32> to vector<8xf32>
    %77 = vector.shape_cast %76 : vector<8xf32> to vector<8x1xf32>
    %78 = tpu.reciprocal %77 {approx = true} : vector<8x1xf32> -> vector<8x1xf32>
    %79 = vector.broadcast %78 : vector<8x1xf32> to vector<8x8xf32>
    %80 = arith.mulf %75, %79 : vector<8x8xf32>
    %cst_29 = arith.constant dense<0.000000e+00> : vector<8x4xf32>
    %81 = tpu.matmul %80, %67, %cst_29 {dimension_numbers = #tpu.dot_dimension_numbers<[1], [0], [0], [1], [0, 0, 1, 1], [], []>} : vector<8x8xf32>, vector<8x4xf32>, vector<8x4xf32> -> vector<8x4xf32>
    %c0_30 = arith.constant 0 : index
    %c12 = arith.constant 12 : index
    %82 = vector.load %arg15[%c0_30, %c12] : memref<8x64xf32, #tpu.memory_space<vmem>>, vector<8x4xf32>
    tpu.vector_store %arg15[%c0_30, %c12], %81 {strides = array<i32>} : memref<8x64xf32, #tpu.memory_space<vmem>>, vector<8x4xf32>,
    %83 = vector.extract_strided_slice %8 {offsets = [0, 16], sizes = [8, 4], strides = [1, 1]} : vector<8x64xf32> to vector<8x4xf32>
    %84 = vector.extract_strided_slice %9 {offsets = [0, 16], sizes = [8, 4], strides = [1, 1]} : vector<8x64xf32> to vector<8x4xf32>
    %85 = vector.extract_strided_slice %10 {offsets = [0, 16], sizes = [8, 4], strides = [1, 1]} : vector<8x64xf32> to vector<8x4xf32>
    %cst_31 = arith.constant dense<0.000000e+00> : vector<8x8xf32>
    %86 = tpu.matmul %83, %84, %cst_31 {dimension_numbers = #tpu.dot_dimension_numbers<[1], [1], [0], [0], [0, 0, 1, 0], [], []>} : vector<8x4xf32>, vector<8x4xf32>, vector<8x8xf32> -> vector<8x8xf32>
    %cst_32 = arith.constant 5.000000e-01 : f32
    %87 = vector.broadcast %cst_32 : f32 to vector<8x8xf32>
    %88 = arith.mulf %86, %87 : vector<8x8xf32>
    %cst_33 = arith.constant dense<0xFF800000> : vector<8xf32>
    %89 = vector.multi_reduction <maximumf>, %88, %cst_33 [1] : vector<8x8xf32> to vector<8xf32>
    %90 = vector.shape_cast %89 : vector<8xf32> to vector<8x1xf32>
    %91 = vector.broadcast %90 : vector<8x1xf32> to vector<8x8xf32>
    %92 = arith.subf %88, %91 : vector<8x8xf32>
    %93 = math.exp %92 : vector<8x8xf32>
    %cst_34 = arith.constant dense<0.000000e+00> : vector<8xf32>
    %94 = vector.multi_reduction <add>, %93, %cst_34 [1] : vector<8x8xf32> to vector<8xf32>
    %95 = vector.shape_cast %94 : vector<8xf32> to vector<8x1xf32>
    %96 = tpu.reciprocal %95 {approx = true} : vector<8x1xf32> -> vector<8x1xf32>
    %97 = vector.broadcast %96 : vector<8x1xf32> to vector<8x8xf32>
    %98 = arith.mulf %93, %97 : vector<8x8xf32>
    %cst_35 = arith.constant dense<0.000000e+00> : vector<8x4xf32>
    %99 = tpu.matmul %98, %85, %cst_35 {dimension_numbers = #tpu.dot_dimension_numbers<[1], [0], [0], [1], [0, 0, 1, 1], [], []>} : vector<8x8xf32>, vector<8x4xf32>, vector<8x4xf32> -> vector<8x4xf32>
    %c0_36 = arith.constant 0 : index
    %c16 = arith.constant 16 : index
    %100 = vector.load %arg15[%c0_36, %c16] : memref<8x64xf32, #tpu.memory_space<vmem>>, vector<8x4xf32>
    tpu.vector_store %arg15[%c0_36, %c16], %99 {strides = array<i32>} : memref<8x64xf32, #tpu.memory_space<vmem>>, vector<8x4xf32>,
    %101 = vector.extract_strided_slice %8 {offsets = [0, 20], sizes = [8, 4], strides = [1, 1]} : vector<8x64xf32> to vector<8x4xf32>
    %102 = vector.extract_strided_slice %9 {offsets = [0, 20], sizes = [8, 4], strides = [1, 1]} : vector<8x64xf32> to vector<8x4xf32>
    %103 = vector.extract_strided_slice %10 {offsets = [0, 20], sizes = [8, 4], strides = [1, 1]} : vector<8x64xf32> to vector<8x4xf32>
    %cst_37 = arith.constant dense<0.000000e+00> : vector<8x8xf32>
    %104 = tpu.matmul %101, %102, %cst_37 {dimension_numbers = #tpu.dot_dimension_numbers<[1], [1], [0], [0], [0, 0, 1, 0], [], []>} : vector<8x4xf32>, vector<8x4xf32>, vector<8x8xf32> -> vector<8x8xf32>
    %cst_38 = arith.constant 5.000000e-01 : f32
    %105 = vector.broadcast %cst_38 : f32 to vector<8x8xf32>
    %106 = arith.mulf %104, %105 : vector<8x8xf32>
    %cst_39 = arith.constant dense<0xFF800000> : vector<8xf32>
    %107 = vector.multi_reduction <maximumf>, %106, %cst_39 [1] : vector<8x8xf32> to vector<8xf32>
    %108 = vector.shape_cast %107 : vector<8xf32> to vector<8x1xf32>
    %109 = vector.broadcast %108 : vector<8x1xf32> to vector<8x8xf32>
    %110 = arith.subf %106, %109 : vector<8x8xf32>
    %111 = math.exp %110 : vector<8x8xf32>
    %cst_40 = arith.constant dense<0.000000e+00> : vector<8xf32>
    %112 = vector.multi_reduction <add>, %111, %cst_40 [1] : vector<8x8xf32> to vector<8xf32>
    %113 = vector.shape_cast %112 : vector<8xf32> to vector<8x1xf32>
    %114 = tpu.reciprocal %113 {approx = true} : vector<8x1xf32> -> vector<8x1xf32>
    %115 = vector.broadcast %114 : vector<8x1xf32> to vector<8x8xf32>
    %116 = arith.mulf %111, %115 : vector<8x8xf32>
    %cst_41 = arith.constant dense<0.000000e+00> : vector<8x4xf32>
    %117 = tpu.matmul %116, %103, %cst_41 {dimension_numbers = #tpu.dot_dimension_numbers<[1], [0], [0], [1], [0, 0, 1, 1], [], []>} : vector<8x8xf32>, vector<8x4xf32>, vector<8x4xf32> -> vector<8x4xf32>
    %c0_42 = arith.constant 0 : index
    %c20 = arith.constant 20 : index
    %118 = vector.load %arg15[%c0_42, %c20] : memref<8x64xf32, #tpu.memory_space<vmem>>, vector<8x4xf32>
    tpu.vector_store %arg15[%c0_42, %c20], %117 {strides = array<i32>} : memref<8x64xf32, #tpu.memory_space<vmem>>, vector<8x4xf32>,
    %119 = vector.extract_strided_slice %8 {offsets = [0, 24], sizes = [8, 4], strides = [1, 1]} : vector<8x64xf32> to vector<8x4xf32>
    %120 = vector.extract_strided_slice %9 {offsets = [0, 24], sizes = [8, 4], strides = [1, 1]} : vector<8x64xf32> to vector<8x4xf32>
    %121 = vector.extract_strided_slice %10 {offsets = [0, 24], sizes = [8, 4], strides = [1, 1]} : vector<8x64xf32> to vector<8x4xf32>
    %cst_43 = arith.constant dense<0.000000e+00> : vector<8x8xf32>
    %122 = tpu.matmul %119, %120, %cst_43 {dimension_numbers = #tpu.dot_dimension_numbers<[1], [1], [0], [0], [0, 0, 1, 0], [], []>} : vector<8x4xf32>, vector<8x4xf32>, vector<8x8xf32> -> vector<8x8xf32>
    %cst_44 = arith.constant 5.000000e-01 : f32
    %123 = vector.broadcast %cst_44 : f32 to vector<8x8xf32>
    %124 = arith.mulf %122, %123 : vector<8x8xf32>
    %cst_45 = arith.constant dense<0xFF800000> : vector<8xf32>
    %125 = vector.multi_reduction <maximumf>, %124, %cst_45 [1] : vector<8x8xf32> to vector<8xf32>
    %126 = vector.shape_cast %125 : vector<8xf32> to vector<8x1xf32>
    %127 = vector.broadcast %126 : vector<8x1xf32> to vector<8x8xf32>
    %128 = arith.subf %124, %127 : vector<8x8xf32>
    %129 = math.exp %128 : vector<8x8xf32>
    %cst_46 = arith.constant dense<0.000000e+00> : vector<8xf32>
    %130 = vector.multi_reduction <add>, %129, %cst_46 [1] : vector<8x8xf32> to vector<8xf32>
    %131 = vector.shape_cast %130 : vector<8xf32> to vector<8x1xf32>
    %132 = tpu.reciprocal %131 {approx = true} : vector<8x1xf32> -> vector<8x1xf32>
    %133 = vector.broadcast %132 : vector<8x1xf32> to vector<8x8xf32>
    %134 = arith.mulf %129, %133 : vector<8x8xf32>
    %cst_47 = arith.constant dense<0.000000e+00> : vector<8x4xf32>
    %135 = tpu.matmul %134, %121, %cst_47 {dimension_numbers = #tpu.dot_dimension_numbers<[1], [0], [0], [1], [0, 0, 1, 1], [], []>} : vector<8x8xf32>, vector<8x4xf32>, vector<8x4xf32> -> vector<8x4xf32>
    %c0_48 = arith.constant 0 : index
    %c24 = arith.constant 24 : index
    %136 = vector.load %arg15[%c0_48, %c24] : memref<8x64xf32, #tpu.memory_space<vmem>>, vector<8x4xf32>
    tpu.vector_store %arg15[%c0_48, %c24], %135 {strides = array<i32>} : memref<8x64xf32, #tpu.memory_space<vmem>>, vector<8x4xf32>,
    %137 = vector.extract_strided_slice %8 {offsets = [0, 28], sizes = [8, 4], strides = [1, 1]} : vector<8x64xf32> to vector<8x4xf32>
    %138 = vector.extract_strided_slice %9 {offsets = [0, 28], sizes = [8, 4], strides = [1, 1]} : vector<8x64xf32> to vector<8x4xf32>
    %139 = vector.extract_strided_slice %10 {offsets = [0, 28], sizes = [8, 4], strides = [1, 1]} : vector<8x64xf32> to vector<8x4xf32>
    %cst_49 = arith.constant dense<0.000000e+00> : vector<8x8xf32>
    %140 = tpu.matmul %137, %138, %cst_49 {dimension_numbers = #tpu.dot_dimension_numbers<[1], [1], [0], [0], [0, 0, 1, 0], [], []>} : vector<8x4xf32>, vector<8x4xf32>, vector<8x8xf32> -> vector<8x8xf32>
    %cst_50 = arith.constant 5.000000e-01 : f32
    %141 = vector.broadcast %cst_50 : f32 to vector<8x8xf32>
    %142 = arith.mulf %140, %141 : vector<8x8xf32>
    %cst_51 = arith.constant dense<0xFF800000> : vector<8xf32>
    %143 = vector.multi_reduction <maximumf>, %142, %cst_51 [1] : vector<8x8xf32> to vector<8xf32>
    %144 = vector.shape_cast %143 : vector<8xf32> to vector<8x1xf32>
    %145 = vector.broadcast %144 : vector<8x1xf32> to vector<8x8xf32>
    %146 = arith.subf %142, %145 : vector<8x8xf32>
    %147 = math.exp %146 : vector<8x8xf32>
    %cst_52 = arith.constant dense<0.000000e+00> : vector<8xf32>
    %148 = vector.multi_reduction <add>, %147, %cst_52 [1] : vector<8x8xf32> to vector<8xf32>
    %149 = vector.shape_cast %148 : vector<8xf32> to vector<8x1xf32>
    %150 = tpu.reciprocal %149 {approx = true} : vector<8x1xf32> -> vector<8x1xf32>
    %151 = vector.broadcast %150 : vector<8x1xf32> to vector<8x8xf32>
    %152 = arith.mulf %147, %151 : vector<8x8xf32>
    %cst_53 = arith.constant dense<0.000000e+00> : vector<8x4xf32>
    %153 = tpu.matmul %152, %139, %cst_53 {dimension_numbers = #tpu.dot_dimension_numbers<[1], [0], [0], [1], [0, 0, 1, 1], [], []>} : vector<8x8xf32>, vector<8x4xf32>, vector<8x4xf32> -> vector<8x4xf32>
    %c0_54 = arith.constant 0 : index
    %c28 = arith.constant 28 : index
    %154 = vector.load %arg15[%c0_54, %c28] : memref<8x64xf32, #tpu.memory_space<vmem>>, vector<8x4xf32>
    tpu.vector_store %arg15[%c0_54, %c28], %153 {strides = array<i32>} : memref<8x64xf32, #tpu.memory_space<vmem>>, vector<8x4xf32>,
    %155 = vector.extract_strided_slice %8 {offsets = [0, 32], sizes = [8, 4], strides = [1, 1]} : vector<8x64xf32> to vector<8x4xf32>
    %156 = vector.extract_strided_slice %9 {offsets = [0, 32], sizes = [8, 4], strides = [1, 1]} : vector<8x64xf32> to vector<8x4xf32>
    %157 = vector.extract_strided_slice %10 {offsets = [0, 32], sizes = [8, 4], strides = [1, 1]} : vector<8x64xf32> to vector<8x4xf32>
    %cst_55 = arith.constant dense<0.000000e+00> : vector<8x8xf32>
    %158 = tpu.matmul %155, %156, %cst_55 {dimension_numbers = #tpu.dot_dimension_numbers<[1], [1], [0], [0], [0, 0, 1, 0], [], []>} : vector<8x4xf32>, vector<8x4xf32>, vector<8x8xf32> -> vector<8x8xf32>
    %cst_56 = arith.constant 5.000000e-01 : f32
    %159 = vector.broadcast %cst_56 : f32 to vector<8x8xf32>
    %160 = arith.mulf %158, %159 : vector<8x8xf32>
    %cst_57 = arith.constant dense<0xFF800000> : vector<8xf32>
    %161 = vector.multi_reduction <maximumf>, %160, %cst_57 [1] : vector<8x8xf32> to vector<8xf32>
    %162 = vector.shape_cast %161 : vector<8xf32> to vector<8x1xf32>
    %163 = vector.broadcast %162 : vector<8x1xf32> to vector<8x8xf32>
    %164 = arith.subf %160, %163 : vector<8x8xf32>
    %165 = math.exp %164 : vector<8x8xf32>
    %cst_58 = arith.constant dense<0.000000e+00> : vector<8xf32>
    %166 = vector.multi_reduction <add>, %165, %cst_58 [1] : vector<8x8xf32> to vector<8xf32>
    %167 = vector.shape_cast %166 : vector<8xf32> to vector<8x1xf32>
    %168 = tpu.reciprocal %167 {approx = true} : vector<8x1xf32> -> vector<8x1xf32>
    %169 = vector.broadcast %168 : vector<8x1xf32> to vector<8x8xf32>
    %170 = arith.mulf %165, %169 : vector<8x8xf32>
    %cst_59 = arith.constant dense<0.000000e+00> : vector<8x4xf32>
    %171 = tpu.matmul %170, %157, %cst_59 {dimension_numbers = #tpu.dot_dimension_numbers<[1], [0], [0], [1], [0, 0, 1, 1], [], []>} : vector<8x8xf32>, vector<8x4xf32>, vector<8x4xf32> -> vector<8x4xf32>
    %c0_60 = arith.constant 0 : index
    %c32 = arith.constant 32 : index
    %172 = vector.load %arg15[%c0_60, %c32] : memref<8x64xf32, #tpu.memory_space<vmem>>, vector<8x4xf32>
    tpu.vector_store %arg15[%c0_60, %c32], %171 {strides = array<i32>} : memref<8x64xf32, #tpu.memory_space<vmem>>, vector<8x4xf32>,
    %173 = vector.extract_strided_slice %8 {offsets = [0, 36], sizes = [8, 4], strides = [1, 1]} : vector<8x64xf32> to vector<8x4xf32>
    %174 = vector.extract_strided_slice %9 {offsets = [0, 36], sizes = [8, 4], strides = [1, 1]} : vector<8x64xf32> to vector<8x4xf32>
    %175 = vector.extract_strided_slice %10 {offsets = [0, 36], sizes = [8, 4], strides = [1, 1]} : vector<8x64xf32> to vector<8x4xf32>
    %cst_61 = arith.constant dense<0.000000e+00> : vector<8x8xf32>
    %176 = tpu.matmul %173, %174, %cst_61 {dimension_numbers = #tpu.dot_dimension_numbers<[1], [1], [0], [0], [0, 0, 1, 0], [], []>} : vector<8x4xf32>, vector<8x4xf32>, vector<8x8xf32> -> vector<8x8xf32>
    %cst_62 = arith.constant 5.000000e-01 : f32
    %177 = vector.broadcast %cst_62 : f32 to vector<8x8xf32>
    %178 = arith.mulf %176, %177 : vector<8x8xf32>
    %cst_63 = arith.constant dense<0xFF800000> : vector<8xf32>
    %179 = vector.multi_reduction <maximumf>, %178, %cst_63 [1] : vector<8x8xf32> to vector<8xf32>
    %180 = vector.shape_cast %179 : vector<8xf32> to vector<8x1xf32>
    %181 = vector.broadcast %180 : vector<8x1xf32> to vector<8x8xf32>
    %182 = arith.subf %178, %181 : vector<8x8xf32>
    %183 = math.exp %182 : vector<8x8xf32>
    %cst_64 = arith.constant dense<0.000000e+00> : vector<8xf32>
    %184 = vector.multi_reduction <add>, %183, %cst_64 [1] : vector<8x8xf32> to vector<8xf32>
    %185 = vector.shape_cast %184 : vector<8xf32> to vector<8x1xf32>
    %186 = tpu.reciprocal %185 {approx = true} : vector<8x1xf32> -> vector<8x1xf32>
    %187 = vector.broadcast %186 : vector<8x1xf32> to vector<8x8xf32>
    %188 = arith.mulf %183, %187 : vector<8x8xf32>
    %cst_65 = arith.constant dense<0.000000e+00> : vector<8x4xf32>
    %189 = tpu.matmul %188, %175, %cst_65 {dimension_numbers = #tpu.dot_dimension_numbers<[1], [0], [0], [1], [0, 0, 1, 1], [], []>} : vector<8x8xf32>, vector<8x4xf32>, vector<8x4xf32> -> vector<8x4xf32>
    %c0_66 = arith.constant 0 : index
    %c36 = arith.constant 36 : index
    %190 = vector.load %arg15[%c0_66, %c36] : memref<8x64xf32, #tpu.memory_space<vmem>>, vector<8x4xf32>
    tpu.vector_store %arg15[%c0_66, %c36], %189 {strides = array<i32>} : memref<8x64xf32, #tpu.memory_space<vmem>>, vector<8x4xf32>,
    %191 = vector.extract_strided_slice %8 {offsets = [0, 40], sizes = [8, 4], strides = [1, 1]} : vector<8x64xf32> to vector<8x4xf32>
    %192 = vector.extract_strided_slice %9 {offsets = [0, 40], sizes = [8, 4], strides = [1, 1]} : vector<8x64xf32> to vector<8x4xf32>
    %193 = vector.extract_strided_slice %10 {offsets = [0, 40], sizes = [8, 4], strides = [1, 1]} : vector<8x64xf32> to vector<8x4xf32>
    %cst_67 = arith.constant dense<0.000000e+00> : vector<8x8xf32>
    %194 = tpu.matmul %191, %192, %cst_67 {dimension_numbers = #tpu.dot_dimension_numbers<[1], [1], [0], [0], [0, 0, 1, 0], [], []>} : vector<8x4xf32>, vector<8x4xf32>, vector<8x8xf32> -> vector<8x8xf32>
    %cst_68 = arith.constant 5.000000e-01 : f32
    %195 = vector.broadcast %cst_68 : f32 to vector<8x8xf32>
    %196 = arith.mulf %194, %195 : vector<8x8xf32>
    %cst_69 = arith.constant dense<0xFF800000> : vector<8xf32>
    %197 = vector.multi_reduction <maximumf>, %196, %cst_69 [1] : vector<8x8xf32> to vector<8xf32>
    %198 = vector.shape_cast %197 : vector<8xf32> to vector<8x1xf32>
    %199 = vector.broadcast %198 : vector<8x1xf32> to vector<8x8xf32>
    %200 = arith.subf %196, %199 : vector<8x8xf32>
    %201 = math.exp %200 : vector<8x8xf32>
    %cst_70 = arith.constant dense<0.000000e+00> : vector<8xf32>
    %202 = vector.multi_reduction <add>, %201, %cst_70 [1] : vector<8x8xf32> to vector<8xf32>
    %203 = vector.shape_cast %202 : vector<8xf32> to vector<8x1xf32>
    %204 = tpu.reciprocal %203 {approx = true} : vector<8x1xf32> -> vector<8x1xf32>
    %205 = vector.broadcast %204 : vector<8x1xf32> to vector<8x8xf32>
    %206 = arith.mulf %201, %205 : vector<8x8xf32>
    %cst_71 = arith.constant dense<0.000000e+00> : vector<8x4xf32>
    %207 = tpu.matmul %206, %193, %cst_71 {dimension_numbers = #tpu.dot_dimension_numbers<[1], [0], [0], [1], [0, 0, 1, 1], [], []>} : vector<8x8xf32>, vector<8x4xf32>, vector<8x4xf32> -> vector<8x4xf32>
    %c0_72 = arith.constant 0 : index
    %c40 = arith.constant 40 : index
    %208 = vector.load %arg15[%c0_72, %c40] : memref<8x64xf32, #tpu.memory_space<vmem>>, vector<8x4xf32>
    tpu.vector_store %arg15[%c0_72, %c40], %207 {strides = array<i32>} : memref<8x64xf32, #tpu.memory_space<vmem>>, vector<8x4xf32>,
    %209 = vector.extract_strided_slice %8 {offsets = [0, 44], sizes = [8, 4], strides = [1, 1]} : vector<8x64xf32> to vector<8x4xf32>
    %210 = vector.extract_strided_slice %9 {offsets = [0, 44], sizes = [8, 4], strides = [1, 1]} : vector<8x64xf32> to vector<8x4xf32>
    %211 = vector.extract_strided_slice %10 {offsets = [0, 44], sizes = [8, 4], strides = [1, 1]} : vector<8x64xf32> to vector<8x4xf32>
    %cst_73 = arith.constant dense<0.000000e+00> : vector<8x8xf32>
    %212 = tpu.matmul %209, %210, %cst_73 {dimension_numbers = #tpu.dot_dimension_numbers<[1], [1], [0], [0], [0, 0, 1, 0], [], []>} : vector<8x4xf32>, vector<8x4xf32>, vector<8x8xf32> -> vector<8x8xf32>
    %cst_74 = arith.constant 5.000000e-01 : f32
    %213 = vector.broadcast %cst_74 : f32 to vector<8x8xf32>
    %214 = arith.mulf %212, %213 : vector<8x8xf32>
    %cst_75 = arith.constant dense<0xFF800000> : vector<8xf32>
    %215 = vector.multi_reduction <maximumf>, %214, %cst_75 [1] : vector<8x8xf32> to vector<8xf32>
    %216 = vector.shape_cast %215 : vector<8xf32> to vector<8x1xf32>
    %217 = vector.broadcast %216 : vector<8x1xf32> to vector<8x8xf32>
    %218 = arith.subf %214, %217 : vector<8x8xf32>
    %219 = math.exp %218 : vector<8x8xf32>
    %cst_76 = arith.constant dense<0.000000e+00> : vector<8xf32>
    %220 = vector.multi_reduction <add>, %219, %cst_76 [1] : vector<8x8xf32> to vector<8xf32>
    %221 = vector.shape_cast %220 : vector<8xf32> to vector<8x1xf32>
    %222 = tpu.reciprocal %221 {approx = true} : vector<8x1xf32> -> vector<8x1xf32>
    %223 = vector.broadcast %222 : vector<8x1xf32> to vector<8x8xf32>
    %224 = arith.mulf %219, %223 : vector<8x8xf32>
    %cst_77 = arith.constant dense<0.000000e+00> : vector<8x4xf32>
    %225 = tpu.matmul %224, %211, %cst_77 {dimension_numbers = #tpu.dot_dimension_numbers<[1], [0], [0], [1], [0, 0, 1, 1], [], []>} : vector<8x8xf32>, vector<8x4xf32>, vector<8x4xf32> -> vector<8x4xf32>
    %c0_78 = arith.constant 0 : index
    %c44 = arith.constant 44 : index
    %226 = vector.load %arg15[%c0_78, %c44] : memref<8x64xf32, #tpu.memory_space<vmem>>, vector<8x4xf32>
    tpu.vector_store %arg15[%c0_78, %c44], %225 {strides = array<i32>} : memref<8x64xf32, #tpu.memory_space<vmem>>, vector<8x4xf32>,
    %227 = vector.extract_strided_slice %8 {offsets = [0, 48], sizes = [8, 4], strides = [1, 1]} : vector<8x64xf32> to vector<8x4xf32>
    %228 = vector.extract_strided_slice %9 {offsets = [0, 48], sizes = [8, 4], strides = [1, 1]} : vector<8x64xf32> to vector<8x4xf32>
    %229 = vector.extract_strided_slice %10 {offsets = [0, 48], sizes = [8, 4], strides = [1, 1]} : vector<8x64xf32> to vector<8x4xf32>
    %cst_79 = arith.constant dense<0.000000e+00> : vector<8x8xf32>
    %230 = tpu.matmul %227, %228, %cst_79 {dimension_numbers = #tpu.dot_dimension_numbers<[1], [1], [0], [0], [0, 0, 1, 0], [], []>} : vector<8x4xf32>, vector<8x4xf32>, vector<8x8xf32> -> vector<8x8xf32>
    %cst_80 = arith.constant 5.000000e-01 : f32
    %231 = vector.broadcast %cst_80 : f32 to vector<8x8xf32>
    %232 = arith.mulf %230, %231 : vector<8x8xf32>
    %cst_81 = arith.constant dense<0xFF800000> : vector<8xf32>
    %233 = vector.multi_reduction <maximumf>, %232, %cst_81 [1] : vector<8x8xf32> to vector<8xf32>
    %234 = vector.shape_cast %233 : vector<8xf32> to vector<8x1xf32>
    %235 = vector.broadcast %234 : vector<8x1xf32> to vector<8x8xf32>
    %236 = arith.subf %232, %235 : vector<8x8xf32>
    %237 = math.exp %236 : vector<8x8xf32>
    %cst_82 = arith.constant dense<0.000000e+00> : vector<8xf32>
    %238 = vector.multi_reduction <add>, %237, %cst_82 [1] : vector<8x8xf32> to vector<8xf32>
    %239 = vector.shape_cast %238 : vector<8xf32> to vector<8x1xf32>
    %240 = tpu.reciprocal %239 {approx = true} : vector<8x1xf32> -> vector<8x1xf32>
    %241 = vector.broadcast %240 : vector<8x1xf32> to vector<8x8xf32>
    %242 = arith.mulf %237, %241 : vector<8x8xf32>
    %cst_83 = arith.constant dense<0.000000e+00> : vector<8x4xf32>
    %243 = tpu.matmul %242, %229, %cst_83 {dimension_numbers = #tpu.dot_dimension_numbers<[1], [0], [0], [1], [0, 0, 1, 1], [], []>} : vector<8x8xf32>, vector<8x4xf32>, vector<8x4xf32> -> vector<8x4xf32>
    %c0_84 = arith.constant 0 : index
    %c48 = arith.constant 48 : index
    %244 = vector.load %arg15[%c0_84, %c48] : memref<8x64xf32, #tpu.memory_space<vmem>>, vector<8x4xf32>
    tpu.vector_store %arg15[%c0_84, %c48], %243 {strides = array<i32>} : memref<8x64xf32, #tpu.memory_space<vmem>>, vector<8x4xf32>,
    %245 = vector.extract_strided_slice %8 {offsets = [0, 52], sizes = [8, 4], strides = [1, 1]} : vector<8x64xf32> to vector<8x4xf32>
    %246 = vector.extract_strided_slice %9 {offsets = [0, 52], sizes = [8, 4], strides = [1, 1]} : vector<8x64xf32> to vector<8x4xf32>
    %247 = vector.extract_strided_slice %10 {offsets = [0, 52], sizes = [8, 4], strides = [1, 1]} : vector<8x64xf32> to vector<8x4xf32>
    %cst_85 = arith.constant dense<0.000000e+00> : vector<8x8xf32>
    %248 = tpu.matmul %245, %246, %cst_85 {dimension_numbers = #tpu.dot_dimension_numbers<[1], [1], [0], [0], [0, 0, 1, 0], [], []>} : vector<8x4xf32>, vector<8x4xf32>, vector<8x8xf32> -> vector<8x8xf32>
    %cst_86 = arith.constant 5.000000e-01 : f32
    %249 = vector.broadcast %cst_86 : f32 to vector<8x8xf32>
    %250 = arith.mulf %248, %249 : vector<8x8xf32>
    %cst_87 = arith.constant dense<0xFF800000> : vector<8xf32>
    %251 = vector.multi_reduction <maximumf>, %250, %cst_87 [1] : vector<8x8xf32> to vector<8xf32>
    %252 = vector.shape_cast %251 : vector<8xf32> to vector<8x1xf32>
    %253 = vector.broadcast %252 : vector<8x1xf32> to vector<8x8xf32>
    %254 = arith.subf %250, %253 : vector<8x8xf32>
    %255 = math.exp %254 : vector<8x8xf32>
    %cst_88 = arith.constant dense<0.000000e+00> : vector<8xf32>
    %256 = vector.multi_reduction <add>, %255, %cst_88 [1] : vector<8x8xf32> to vector<8xf32>
    %257 = vector.shape_cast %256 : vector<8xf32> to vector<8x1xf32>
    %258 = tpu.reciprocal %257 {approx = true} : vector<8x1xf32> -> vector<8x1xf32>
    %259 = vector.broadcast %258 : vector<8x1xf32> to vector<8x8xf32>
    %260 = arith.mulf %255, %259 : vector<8x8xf32>
    %cst_89 = arith.constant dense<0.000000e+00> : vector<8x4xf32>
    %261 = tpu.matmul %260, %247, %cst_89 {dimension_numbers = #tpu.dot_dimension_numbers<[1], [0], [0], [1], [0, 0, 1, 1], [], []>} : vector<8x8xf32>, vector<8x4xf32>, vector<8x4xf32> -> vector<8x4xf32>
    %c0_90 = arith.constant 0 : index
    %c52 = arith.constant 52 : index
    %262 = vector.load %arg15[%c0_90, %c52] : memref<8x64xf32, #tpu.memory_space<vmem>>, vector<8x4xf32>
    tpu.vector_store %arg15[%c0_90, %c52], %261 {strides = array<i32>} : memref<8x64xf32, #tpu.memory_space<vmem>>, vector<8x4xf32>,
    %263 = vector.extract_strided_slice %8 {offsets = [0, 56], sizes = [8, 4], strides = [1, 1]} : vector<8x64xf32> to vector<8x4xf32>
    %264 = vector.extract_strided_slice %9 {offsets = [0, 56], sizes = [8, 4], strides = [1, 1]} : vector<8x64xf32> to vector<8x4xf32>
    %265 = vector.extract_strided_slice %10 {offsets = [0, 56], sizes = [8, 4], strides = [1, 1]} : vector<8x64xf32> to vector<8x4xf32>
    %cst_91 = arith.constant dense<0.000000e+00> : vector<8x8xf32>
    %266 = tpu.matmul %263, %264, %cst_91 {dimension_numbers = #tpu.dot_dimension_numbers<[1], [1], [0], [0], [0, 0, 1, 0], [], []>} : vector<8x4xf32>, vector<8x4xf32>, vector<8x8xf32> -> vector<8x8xf32>
    %cst_92 = arith.constant 5.000000e-01 : f32
    %267 = vector.broadcast %cst_92 : f32 to vector<8x8xf32>
    %268 = arith.mulf %266, %267 : vector<8x8xf32>
    %cst_93 = arith.constant dense<0xFF800000> : vector<8xf32>
    %269 = vector.multi_reduction <maximumf>, %268, %cst_93 [1] : vector<8x8xf32> to vector<8xf32>
    %270 = vector.shape_cast %269 : vector<8xf32> to vector<8x1xf32>
    %271 = vector.broadcast %270 : vector<8x1xf32> to vector<8x8xf32>
    %272 = arith.subf %268, %271 : vector<8x8xf32>
    %273 = math.exp %272 : vector<8x8xf32>
    %cst_94 = arith.constant dense<0.000000e+00> : vector<8xf32>
    %274 = vector.multi_reduction <add>, %273, %cst_94 [1] : vector<8x8xf32> to vector<8xf32>
    %275 = vector.shape_cast %274 : vector<8xf32> to vector<8x1xf32>
    %276 = tpu.reciprocal %275 {approx = true} : vector<8x1xf32> -> vector<8x1xf32>
    %277 = vector.broadcast %276 : vector<8x1xf32> to vector<8x8xf32>
    %278 = arith.mulf %273, %277 : vector<8x8xf32>
    %cst_95 = arith.constant dense<0.000000e+00> : vector<8x4xf32>
    %279 = tpu.matmul %278, %265, %cst_95 {dimension_numbers = #tpu.dot_dimension_numbers<[1], [0], [0], [1], [0, 0, 1, 1], [], []>} : vector<8x8xf32>, vector<8x4xf32>, vector<8x4xf32> -> vector<8x4xf32>
    %c0_96 = arith.constant 0 : index
    %c56 = arith.constant 56 : index
    %280 = vector.load %arg15[%c0_96, %c56] : memref<8x64xf32, #tpu.memory_space<vmem>>, vector<8x4xf32>
    tpu.vector_store %arg15[%c0_96, %c56], %279 {strides = array<i32>} : memref<8x64xf32, #tpu.memory_space<vmem>>, vector<8x4xf32>,
    %281 = vector.extract_strided_slice %8 {offsets = [0, 60], sizes = [8, 4], strides = [1, 1]} : vector<8x64xf32> to vector<8x4xf32>
    %282 = vector.extract_strided_slice %9 {offsets = [0, 60], sizes = [8, 4], strides = [1, 1]} : vector<8x64xf32> to vector<8x4xf32>
    %283 = vector.extract_strided_slice %10 {offsets = [0, 60], sizes = [8, 4], strides = [1, 1]} : vector<8x64xf32> to vector<8x4xf32>
    %cst_97 = arith.constant dense<0.000000e+00> : vector<8x8xf32>
    %284 = tpu.matmul %281, %282, %cst_97 {dimension_numbers = #tpu.dot_dimension_numbers<[1], [1], [0], [0], [0, 0, 1, 0], [], []>} : vector<8x4xf32>, vector<8x4xf32>, vector<8x8xf32> -> vector<8x8xf32>
    %cst_98 = arith.constant 5.000000e-01 : f32
    %285 = vector.broadcast %cst_98 : f32 to vector<8x8xf32>
    %286 = arith.mulf %284, %285 : vector<8x8xf32>
    %cst_99 = arith.constant dense<0xFF800000> : vector<8xf32>
    %287 = vector.multi_reduction <maximumf>, %286, %cst_99 [1] : vector<8x8xf32> to vector<8xf32>
    %288 = vector.shape_cast %287 : vector<8xf32> to vector<8x1xf32>
    %289 = vector.broadcast %288 : vector<8x1xf32> to vector<8x8xf32>
    %290 = arith.subf %286, %289 : vector<8x8xf32>
    %291 = math.exp %290 : vector<8x8xf32>
    %cst_100 = arith.constant dense<0.000000e+00> : vector<8xf32>
    %292 = vector.multi_reduction <add>, %291, %cst_100 [1] : vector<8x8xf32> to vector<8xf32>
    %293 = vector.shape_cast %292 : vector<8xf32> to vector<8x1xf32>
    %294 = tpu.reciprocal %293 {approx = true} : vector<8x1xf32> -> vector<8x1xf32>
    %295 = vector.broadcast %294 : vector<8x1xf32> to vector<8x8xf32>
    %296 = arith.mulf %291, %295 : vector<8x8xf32>
    %cst_101 = arith.constant dense<0.000000e+00> : vector<8x4xf32>
    %297 = tpu.matmul %296, %283, %cst_101 {dimension_numbers = #tpu.dot_dimension_numbers<[1], [0], [0], [1], [0, 0, 1, 1], [], []>} : vector<8x8xf32>, vector<8x4xf32>, vector<8x4xf32> -> vector<8x4xf32>
    %c0_102 = arith.constant 0 : index
    %c60 = arith.constant 60 : index
    %298 = vector.load %arg15[%c0_102, %c60] : memref<8x64xf32, #tpu.memory_space<vmem>>, vector<8x4xf32>
    tpu.vector_store %arg15[%c0_102, %c60], %297 {strides = array<i32>} : memref<8x64xf32, #tpu.memory_space<vmem>>, vector<8x4xf32>,
    %c0_103 = arith.constant 0 : index
    %c0_104 = arith.constant 0 : index
    %299 = vector.load %arg15[%c0_103, %c0_104] : memref<8x64xf32, #tpu.memory_space<vmem>>, vector<8x64xf32>
    %300 = arith.truncf %299 : vector<8x64xf32> to vector<8x64xbf16>
    %c0_105 = arith.constant 0 : index
    %c0_106 = arith.constant 0 : index
    %301 = vector.load %arg4[%c0_105, %c0_106] : memref<64x64xbf16, #tpu.memory_space<vmem>>, vector<64x64xbf16>
    %cst_107 = arith.constant dense<0.000000e+00> : vector<8x64xf32>
    %302 = tpu.matmul %300, %301, %cst_107 {dimension_numbers = #tpu.dot_dimension_numbers<[1], [0], [0], [1], [0, 0, 1, 1], [], []>} : vector<8x64xbf16>, vector<64x64xbf16>, vector<8x64xf32> -> vector<8x64xf32>
    %c0_108 = arith.constant 0 : index
    %c0_109 = arith.constant 0 : index
    %303 = vector.load %arg5[%c0_108, %c0_109] : memref<1x64xf32, #tpu.memory_space<vmem>>, vector<1x64xf32>
    %304 = vector.broadcast %303 : vector<1x64xf32> to vector<8x64xf32>
    %305 = arith.addf %302, %304 : vector<8x64xf32>
    %306 = arith.addf %305, %1 : vector<8x64xf32>
    %c0_110 = arith.constant 0 : index
    %c0_111 = arith.constant 0 : index
    %307 = vector.load %arg6[%c0_110, %c0_111] : memref<1x64xf32, #tpu.memory_space<vmem>>, vector<1x64xf32>
    %c0_112 = arith.constant 0 : index
    %c0_113 = arith.constant 0 : index
    %308 = vector.load %arg7[%c0_112, %c0_113] : memref<1x64xf32, #tpu.memory_space<vmem>>, vector<1x64xf32>
    %cst_114 = arith.constant dense<0.000000e+00> : vector<8xf32>
    %309 = vector.multi_reduction <add>, %306, %cst_114 [1] : vector<8x64xf32> to vector<8xf32>
    %310 = vector.shape_cast %309 : vector<8xf32> to vector<8x1xf32>
    %cst_115 = arith.constant 6.400000e+01 : f32
    %311 = vector.broadcast %cst_115 : f32 to vector<8x1xf32>
    %312 = arith.divf %310, %311 : vector<8x1xf32>
    %313 = vector.broadcast %312 : vector<8x1xf32> to vector<8x64xf32>
    %314 = arith.subf %306, %313 : vector<8x64xf32>
    %315 = arith.mulf %314, %314 : vector<8x64xf32>
    %cst_116 = arith.constant dense<0.000000e+00> : vector<8xf32>
    %316 = vector.multi_reduction <add>, %315, %cst_116 [1] : vector<8x64xf32> to vector<8xf32>
    %317 = vector.shape_cast %316 : vector<8xf32> to vector<8x1xf32>
    %cst_117 = arith.constant 6.400000e+01 : f32
    %318 = vector.broadcast %cst_117 : f32 to vector<8x1xf32>
    %319 = arith.divf %317, %318 : vector<8x1xf32>
    %cst_118 = arith.constant 9.99999996E-13 : f32
    %320 = vector.broadcast %cst_118 : f32 to vector<8x1xf32>
    %321 = arith.addf %319, %320 : vector<8x1xf32>
    %322 = math.rsqrt %321 : vector<8x1xf32>
    %323 = vector.broadcast %322 : vector<8x1xf32> to vector<8x64xf32>
    %324 = arith.mulf %314, %323 : vector<8x64xf32>
    %325 = vector.broadcast %307 : vector<1x64xf32> to vector<8x64xf32>
    %326 = arith.mulf %324, %325 : vector<8x64xf32>
    %327 = vector.broadcast %308 : vector<1x64xf32> to vector<8x64xf32>
    %328 = arith.addf %326, %327 : vector<8x64xf32>
    %329 = arith.truncf %328 : vector<8x64xf32> to vector<8x64xbf16>
    %c0_119 = arith.constant 0 : index
    %c0_120 = arith.constant 0 : index
    %330 = vector.load %arg8[%c0_119, %c0_120] : memref<64x256xbf16, #tpu.memory_space<vmem>>, vector<64x256xbf16>
    %cst_121 = arith.constant dense<0.000000e+00> : vector<8x256xf32>
    %331 = tpu.matmul %329, %330, %cst_121 {dimension_numbers = #tpu.dot_dimension_numbers<[1], [0], [0], [1], [0, 0, 1, 1], [], []>} : vector<8x64xbf16>, vector<64x256xbf16>, vector<8x256xf32> -> vector<8x256xf32>
    %c0_122 = arith.constant 0 : index
    %c0_123 = arith.constant 0 : index
    %332 = vector.load %arg9[%c0_122, %c0_123] : memref<1x256xf32, #tpu.memory_space<vmem>>, vector<1x256xf32>
    %333 = vector.broadcast %332 : vector<1x256xf32> to vector<8x256xf32>
    %334 = arith.addf %331, %333 : vector<8x256xf32>
    %cst_124 = arith.constant 5.000000e-01 : f32
    %335 = vector.broadcast %cst_124 : f32 to vector<8x256xf32>
    %336 = arith.mulf %335, %334 : vector<8x256xf32>
    %cst_125 = arith.constant 0.707106769 : f32
    %337 = vector.broadcast %cst_125 : f32 to vector<8x256xf32>
    %338 = arith.mulf %334, %337 : vector<8x256xf32>
    %339 = math.absf %338 : vector<8x256xf32>
    %cst_126 = arith.constant 0.327591091 : f32
    %340 = vector.broadcast %cst_126 : f32 to vector<8x256xf32>
    %341 = arith.mulf %340, %339 : vector<8x256xf32>
    %cst_127 = arith.constant 1.000000e+00 : f32
    %342 = vector.broadcast %cst_127 : f32 to vector<8x256xf32>
    %343 = arith.addf %342, %341 : vector<8x256xf32>
    %cst_128 = arith.constant 1.000000e+00 : f32
    %344 = vector.broadcast %cst_128 : f32 to vector<8x256xf32>
    %345 = arith.divf %344, %343 : vector<8x256xf32>
    %cst_129 = arith.constant 1.06140542 : f32
    %346 = vector.broadcast %cst_129 : f32 to vector<8x256xf32>
    %347 = arith.mulf %346, %345 : vector<8x256xf32>
    %cst_130 = arith.constant -1.45315206 : f32
    %348 = vector.broadcast %cst_130 : f32 to vector<8x256xf32>
    %349 = arith.addf %347, %348 : vector<8x256xf32>
    %350 = arith.mulf %349, %345 : vector<8x256xf32>
    %cst_131 = arith.constant 1.42141378 : f32
    %351 = vector.broadcast %cst_131 : f32 to vector<8x256xf32>
    %352 = arith.addf %350, %351 : vector<8x256xf32>
    %353 = arith.mulf %352, %345 : vector<8x256xf32>
    %cst_132 = arith.constant -0.284496725 : f32
    %354 = vector.broadcast %cst_132 : f32 to vector<8x256xf32>
    %355 = arith.addf %353, %354 : vector<8x256xf32>
    %356 = arith.mulf %355, %345 : vector<8x256xf32>
    %cst_133 = arith.constant 0.254829586 : f32
    %357 = vector.broadcast %cst_133 : f32 to vector<8x256xf32>
    %358 = arith.addf %356, %357 : vector<8x256xf32>
    %359 = arith.mulf %358, %345 : vector<8x256xf32>
    %cst_134 = arith.constant 0.000000e+00 : f32
    %360 = vector.broadcast %cst_134 : f32 to vector<8x256xf32>
    %361 = arith.subf %360, %339 : vector<8x256xf32>
    %362 = arith.mulf %361, %339 : vector<8x256xf32>
    %363 = math.exp %362 : vector<8x256xf32>
    %364 = arith.mulf %359, %363 : vector<8x256xf32>
    %cst_135 = arith.constant 1.000000e+00 : f32
    %365 = vector.broadcast %cst_135 : f32 to vector<8x256xf32>
    %366 = arith.subf %365, %364 : vector<8x256xf32>
    %cst_136 = arith.constant 0.000000e+00 : f32
    %367 = vector.broadcast %cst_136 : f32 to vector<8x256xf32>
    %368 = arith.cmpf oge, %338, %367 : vector<8x256xf32>
    %cst_137 = arith.constant 0.000000e+00 : f32
    %369 = vector.broadcast %cst_137 : f32 to vector<8x256xf32>
    %370 = arith.subf %369, %366 : vector<8x256xf32>
    %371 = arith.select %368, %366, %370 : vector<8x256xi1>, vector<8x256xf32>
    %cst_138 = arith.constant 1.000000e+00 : f32
    %372 = vector.broadcast %cst_138 : f32 to vector<8x256xf32>
    %373 = arith.addf %372, %371 : vector<8x256xf32>
    %374 = arith.mulf %336, %373 : vector<8x256xf32>
    %375 = arith.truncf %374 : vector<8x256xf32> to vector<8x256xbf16>
    %c0_139 = arith.constant 0 : index
    %c0_140 = arith.constant 0 : index
    %376 = vector.load %arg10[%c0_139, %c0_140] : memref<256x64xbf16, #tpu.memory_space<vmem>>, vector<256x64xbf16>
    %cst_141 = arith.constant dense<0.000000e+00> : vector<8x64xf32>
    %377 = tpu.matmul %375, %376, %cst_141 {dimension_numbers = #tpu.dot_dimension_numbers<[1], [0], [0], [1], [0, 0, 1, 1], [], []>} : vector<8x256xbf16>, vector<256x64xbf16>, vector<8x64xf32> -> vector<8x64xf32>
    %c0_142 = arith.constant 0 : index
    %c0_143 = arith.constant 0 : index
    %378 = vector.load %arg11[%c0_142, %c0_143] : memref<1x64xf32, #tpu.memory_space<vmem>>, vector<1x64xf32>
    %379 = vector.broadcast %378 : vector<1x64xf32> to vector<8x64xf32>
    %380 = arith.addf %377, %379 : vector<8x64xf32>
    %381 = arith.addf %380, %328 : vector<8x64xf32>
    %c0_144 = arith.constant 0 : index
    %c0_145 = arith.constant 0 : index
    %382 = vector.load %arg12[%c0_144, %c0_145] : memref<1x64xf32, #tpu.memory_space<vmem>>, vector<1x64xf32>
    %c0_146 = arith.constant 0 : index
    %c0_147 = arith.constant 0 : index
    %383 = vector.load %arg13[%c0_146, %c0_147] : memref<1x64xf32, #tpu.memory_space<vmem>>, vector<1x64xf32>
    %cst_148 = arith.constant dense<0.000000e+00> : vector<8xf32>
    %384 = vector.multi_reduction <add>, %381, %cst_148 [1] : vector<8x64xf32> to vector<8xf32>
    %385 = vector.shape_cast %384 : vector<8xf32> to vector<8x1xf32>
    %cst_149 = arith.constant 6.400000e+01 : f32
    %386 = vector.broadcast %cst_149 : f32 to vector<8x1xf32>
    %387 = arith.divf %385, %386 : vector<8x1xf32>
    %388 = vector.broadcast %387 : vector<8x1xf32> to vector<8x64xf32>
    %389 = arith.subf %381, %388 : vector<8x64xf32>
    %390 = arith.mulf %389, %389 : vector<8x64xf32>
    %cst_150 = arith.constant dense<0.000000e+00> : vector<8xf32>
    %391 = vector.multi_reduction <add>, %390, %cst_150 [1] : vector<8x64xf32> to vector<8xf32>
    %392 = vector.shape_cast %391 : vector<8xf32> to vector<8x1xf32>
    %cst_151 = arith.constant 6.400000e+01 : f32
    %393 = vector.broadcast %cst_151 : f32 to vector<8x1xf32>
    %394 = arith.divf %392, %393 : vector<8x1xf32>
    %cst_152 = arith.constant 9.99999996E-13 : f32
    %395 = vector.broadcast %cst_152 : f32 to vector<8x1xf32>
    %396 = arith.addf %394, %395 : vector<8x1xf32>
    %397 = math.rsqrt %396 : vector<8x1xf32>
    %398 = vector.broadcast %397 : vector<8x1xf32> to vector<8x64xf32>
    %399 = arith.mulf %389, %398 : vector<8x64xf32>
    %400 = vector.broadcast %382 : vector<1x64xf32> to vector<8x64xf32>
    %401 = arith.mulf %399, %400 : vector<8x64xf32>
    %402 = vector.broadcast %383 : vector<1x64xf32> to vector<8x64xf32>
    %403 = arith.addf %401, %402 : vector<8x64xf32>
    %c0_153 = arith.constant 0 : index
    %c0_154 = arith.constant 0 : index
    %c0_155 = arith.constant 0 : index
    %404 = vector.load %arg14[%c0_153, %c0_154, %c0_155] : memref<1x8x64xf32, #tpu.memory_space<vmem>>, vector<1x8x64xf32>
    %405 = vector.shape_cast %404 : vector<1x8x64xf32> to vector<8x64xf32>
    %406 = vector.shape_cast %403 : vector<8x64xf32> to vector<1x8x64xf32>
    tpu.vector_store %arg14[%c0_153, %c0_154, %c0_155], %406 {strides = array<i32>} : memref<1x8x64xf32, #tpu.memory_space<vmem>>, vector<1x8x64xf32>,
    return
  }
  func.func @transform_0(%arg0: i32) -> (i32, i32, i32) {
    %c0_i32 = arith.constant 0 : i32
    %c0_i32_0 = arith.constant 0 : i32
    %c0_i32_1 = arith.constant 0 : i32
    return %arg0, %c0_i32, %c0_i32_0 : i32, i32, i32
  }
  func.func @transform_1(%arg0: i32) -> (i32, i32) {
    %c0_i32 = arith.constant 0 : i32
    %c0_i32_0 = arith.constant 0 : i32
    %c0_i32_1 = arith.constant 0 : i32
    return %c0_i32, %c0_i32_0 : i32, i32
  }
  func.func @transform_2(%arg0: i32) -> (i32, i32) {
    %c0_i32 = arith.constant 0 : i32
    %c0_i32_0 = arith.constant 0 : i32
    %c0_i32_1 = arith.constant 0 : i32
    return %c0_i32, %c0_i32_0 : i32, i32
  }
  func.func @transform_3(%arg0: i32) -> (i32, i32) {
    %c0_i32 = arith.constant 0 : i32
    %c0_i32_0 = arith.constant 0 : i32
    %c0_i32_1 = arith.constant 0 : i32
    return %c0_i32, %c0_i32_0 : i32, i32
  }
  func.func @transform_4(%arg0: i32) -> (i32, i32) {
    %c0_i32 = arith.constant 0 : i32
    %c0_i32_0 = arith.constant 0 : i32
    %c0_i32_1 = arith.constant 0 : i32
    return %c0_i32, %c0_i32_0 : i32, i32
  }
  func.func @transform_5(%arg0: i32) -> (i32, i32) {
    %c0_i32 = arith.constant 0 : i32
    %c0_i32_0 = arith.constant 0 : i32
    %c0_i32_1 = arith.constant 0 : i32
    return %c0_i32, %c0_i32_0 : i32, i32
  }
  func.func @transform_6(%arg0: i32) -> (i32, i32) {
    %c0_i32 = arith.constant 0 : i32
    %c0_i32_0 = arith.constant 0 : i32
    %c0_i32_1 = arith.constant 0 : i32
    return %c0_i32, %c0_i32_0 : i32, i32
  }
  func.func @transform_7(%arg0: i32) -> (i32, i32) {
    %c0_i32 = arith.constant 0 : i32
    %c0_i32_0 = arith.constant 0 : i32
    %c0_i32_1 = arith.constant 0 : i32
    return %c0_i32, %c0_i32_0 : i32, i32
  }
  func.func @transform_8(%arg0: i32) -> (i32, i32) {
    %c0_i32 = arith.constant 0 : i32
    %c0_i32_0 = arith.constant 0 : i32
    %c0_i32_1 = arith.constant 0 : i32
    return %c0_i32, %c0_i32_0 : i32, i32
  }
  func.func @transform_9(%arg0: i32) -> (i32, i32) {
    %c0_i32 = arith.constant 0 : i32
    %c0_i32_0 = arith.constant 0 : i32
    %c0_i32_1 = arith.constant 0 : i32
    return %c0_i32, %c0_i32_0 : i32, i32
  }
  func.func @transform_10(%arg0: i32) -> (i32, i32) {
    %c0_i32 = arith.constant 0 : i32
    %c0_i32_0 = arith.constant 0 : i32
    %c0_i32_1 = arith.constant 0 : i32
    return %c0_i32, %c0_i32_0 : i32, i32
  }
  func.func @transform_11(%arg0: i32) -> (i32, i32) {
    %c0_i32 = arith.constant 0 : i32
    %c0_i32_0 = arith.constant 0 : i32
    %c0_i32_1 = arith.constant 0 : i32
    return %c0_i32, %c0_i32_0 : i32, i32
  }
  func.func @transform_12(%arg0: i32) -> (i32, i32) {
    %c0_i32 = arith.constant 0 : i32
    %c0_i32_0 = arith.constant 0 : i32
    %c0_i32_1 = arith.constant 0 : i32
    return %c0_i32, %c0_i32_0 : i32, i32
  }
  func.func @transform_13(%arg0: i32) -> (i32, i32, i32) {
    %c0_i32 = arith.constant 0 : i32
    %c0_i32_0 = arith.constant 0 : i32
    %c0_i32_1 = arith.constant 0 : i32
    return %arg0, %c0_i32, %c0_i32_0 : i32, i32, i32
  }
}

</mosaic_0001>

<llo_original>
// kernel: _lambda_.3
$region0: #{_lambda_.3}
  #allocation0 [shape = 'u32[]', space=smem, size = 0x4, offset = 0x4, fixed_abs, tag = 'smem constant byte address 0x4 - core index']
  #allocation1 [shape = 'u32[72,128]{1,0:T(1,128)}', space=vmem, size = 0x9000, scoped, tag = 'internal scratch']
  #allocation2 [shape = 'f32[8,64]{1,0:T(8,128)}', space=vmem, size = 0x1000, scoped, tag = 'scratch operand']
  %s0 = inlined_call_operand.vmem [shape: f32[2,8,64], index: 0, kind: input, shape index: {}]
  %s1 = inlined_call_operand.vmem [shape: bf16[64,192], index: 1, kind: input, shape index: {}]
  %s2 = inlined_call_operand.vmem [shape: f32[1,192], index: 2, kind: input, shape index: {}]
  %s3 = inlined_call_operand.vmem [shape: bf16[64,64], index: 3, kind: input, shape index: {}]
  %s4 = inlined_call_operand.vmem [shape: f32[1,64], index: 4, kind: input, shape index: {}]
  %s5 = inlined_call_operand.vmem [shape: f32[1,64], index: 5, kind: input, shape index: {}]
  %s6 = inlined_call_operand.vmem [shape: f32[1,64], index: 6, kind: input, shape index: {}]
  %s7 = inlined_call_operand.vmem [shape: bf16[64,256], index: 7, kind: input, shape index: {}]
  %s8 = inlined_call_operand.vmem [shape: f32[1,256], index: 8, kind: input, shape index: {}]
  %s9 = inlined_call_operand.vmem [shape: bf16[256,64], index: 9, kind: input, shape index: {}]
  %s10 = inlined_call_operand.vmem [shape: f32[1,64], index: 10, kind: input, shape index: {}]
  %s11 = inlined_call_operand.vmem [shape: f32[1,64], index: 11, kind: input, shape index: {}]
  %s12 = inlined_call_operand.vmem [shape: f32[1,64], index: 12, kind: input, shape index: {}]
  %s13 = inlined_call_operand.hbm [shape: f32[2,8,64], index: 13, kind: output, shape index: {}]
  %s14 = sld [smem:[#allocation0]]
  $region85: #{_lambda_.3} parent=0
    _
  %s16 = ssub.s32 1, %s14
  %s17 = scalar_select 0, %s16, %s14
  $region1: #{_lambda_.3} parent=0
    #allocation3 [shape = 'u8[8192]{0}', space=vmem, size = 0x2000, scoped, tag = 'output window, operand 0']
    #allocation4 [shape = 's32[2]{0}', space=sflag, size = 0x8, scoped, tag = 'scoped memory for _lambda_.3']
    %18 = vsyncpa [#allocation4], 0
    %s19 = scalar_lea.sflag [#allocation4], 1
    %20 = vsyncpa %s19, 0
    loop: start=0, step=1, limit=4
    $region2: #{_lambda_.3} parent=1 // loop_pre_header
      _
    $region3: #{_lambda_.3} parent=1 // loop_header
      %s22 = sphi 0, %s26
      %p23 = scmp.ge.s32.totalorder %s22, 4
      %s32 = sphi 0, %s34
      %s35 = sphi 0, %s32
      %s36 = sphi 0, %s35
      %s52 = sphi 0, %s36
      %s56 = sphi 0, %s56
      %s58 = sphi 0, %s56
      %s59 = sphi 0, %s58
      %s73 = sphi 0, %s59
      %s77 = sphi 0, %s77
      %s79 = sphi 0, %s77
      %s80 = sphi 0, %s79
      %s94 = sphi 0, %s80
      %s98 = sphi 0, %s98
      %s100 = sphi 0, %s98
      %s101 = sphi 0, %s100
      %s115 = sphi 0, %s101
      %s119 = sphi 0, %s119
      %s121 = sphi 0, %s119
      %s122 = sphi 0, %s121
      %s136 = sphi 0, %s122
      %s140 = sphi 0, %s140
      %s142 = sphi 0, %s140
      %s143 = sphi 0, %s142
      %s157 = sphi 0, %s143
      %s161 = sphi 0, %s161
      %s163 = sphi 0, %s161
      %s164 = sphi 0, %s163
      %s178 = sphi 0, %s164
      %s182 = sphi 0, %s182
      %s184 = sphi 0, %s182
      %s185 = sphi 0, %s184
      %s199 = sphi 0, %s185
      %s203 = sphi 0, %s203
      %s205 = sphi 0, %s203
      %s206 = sphi 0, %s205
      %s220 = sphi 0, %s206
      %s224 = sphi 0, %s224
      %s226 = sphi 0, %s224
      %s227 = sphi 0, %s226
      %s241 = sphi 0, %s227
      %s245 = sphi 0, %s245
      %s247 = sphi 0, %s245
      %s248 = sphi 0, %s247
      %s262 = sphi 0, %s248
      %s266 = sphi 0, %s266
      %s268 = sphi 0, %s266
      %s269 = sphi 0, %s268
      %s283 = sphi 0, %s269
      %s287 = sphi 0, %s287
      %s289 = sphi 0, %s287
      %s290 = sphi 0, %s289
      %s304 = sphi 0, %s290
      %s310 = sphi 0, %s312
      %s313 = sphi 0, %s310
      %s314 = sphi 0, %s313
      %s330 = sphi 0, %s314
    $region4: #{_lambda_.3} parent=1 // loop_header_branch
      %25 = sbr.rel (%p23) target = $region8
    $region5: #{_lambda_.3} parent=1 // loop_body
      %s27 = ssub.s32 %s22, 1
      %s28 = ssub.s32 %s22, 2
      %s29 = sadd.s32 %s22, 1
      %s30 = ssub.s32 %s22, %s29
      %p31 = scmp.eq.s32.totalorder %s30, 0
      %s33 = sadd.s32 %s32, 1
      %s34 = scalar_select %p31, %s32, %s33
      %p37 = pneg %p31
      %p38 = scmp.eq.s32.totalorder %s22, 1
      %p39 = por %p37, %p38
      %p40 = scmp.ne.s32.totalorder %s32, %s35
      %p41 = scmp.eq.s32.totalorder %s22, 0
      %p42 = por %p40, %p41
      %p43 = scmp.ne.s32.totalorder %s32, %s35
      %p44 = scmp.eq.s32.totalorder %s27, 1
      %p45 = por %p43, %p44
      %p46 = scmp.ne.s32.totalorder %s35, %s36
      %p47 = scmp.eq.s32.totalorder %s27, 0
      %p48 = por %p46, %p47
      %p49 = scmp.ne.s32.totalorder %s35, %s36
      %p50 = scmp.eq.s32.totalorder %s28, 1
      %p51 = por %p49, %p50
      %p53 = scmp.ne.s32.totalorder %s36, %s52
      %p54 = scmp.eq.s32.totalorder %s28, 0
      %p55 = por %p53, %p54
      %s57 = sadd.s32 %s56, 1
      %p60 = scmp.eq.s32.totalorder %s22, 1
      %p61 = scmp.ne.s32.totalorder %s56, %s58
      %p62 = scmp.eq.s32.totalorder %s22, 0
      %p63 = por %p61, %p62
      %p64 = scmp.ne.s32.totalorder %s56, %s58
      %p65 = scmp.eq.s32.totalorder %s27, 1
      %p66 = por %p64, %p65
      %p67 = scmp.ne.s32.totalorder %s58, %s59
      %p68 = scmp.eq.s32.totalorder %s27, 0
      %p69 = por %p67, %p68
      %p70 = scmp.ne.s32.totalorder %s58, %s59
      %p71 = scmp.eq.s32.totalorder %s28, 1
      %p72 = por %p70, %p71
      %p74 = scmp.ne.s32.totalorder %s59, %s73
      %p75 = scmp.eq.s32.totalorder %s28, 0
      %p76 = por %p74, %p75
      %s78 = sadd.s32 %s77, 1
      %p81 = scmp.eq.s32.totalorder %s22, 1
      %p82 = scmp.ne.s32.totalorder %s77, %s79
      %p83 = scmp.eq.s32.totalorder %s22, 0
      %p84 = por %p82, %p83
      %p85 = scmp.ne.s32.totalorder %s77, %s79
      %p86 = scmp.eq.s32.totalorder %s27, 1
      %p87 = por %p85, %p86
      %p88 = scmp.ne.s32.totalorder %s79, %s80
      %p89 = scmp.eq.s32.totalorder %s27, 0
      %p90 = por %p88, %p89
      %p91 = scmp.ne.s32.totalorder %s79, %s80
      %p92 = scmp.eq.s32.totalorder %s28, 1
      %p93 = por %p91, %p92
      %p95 = scmp.ne.s32.totalorder %s80, %s94
      %p96 = scmp.eq.s32.totalorder %s28, 0
      %p97 = por %p95, %p96
      %s99 = sadd.s32 %s98, 1
      %p102 = scmp.eq.s32.totalorder %s22, 1
      %p103 = scmp.ne.s32.totalorder %s98, %s100
      %p104 = scmp.eq.s32.totalorder %s22, 0
      %p105 = por %p103, %p104
      %p106 = scmp.ne.s32.totalorder %s98, %s100
      %p107 = scmp.eq.s32.totalorder %s27, 1
      %p108 = por %p106, %p107
      %p109 = scmp.ne.s32.totalorder %s100, %s101
      %p110 = scmp.eq.s32.totalorder %s27, 0
      %p111 = por %p109, %p110
      %p112 = scmp.ne.s32.totalorder %s100, %s101
      %p113 = scmp.eq.s32.totalorder %s28, 1
      %p114 = por %p112, %p113
      %p116 = scmp.ne.s32.totalorder %s101, %s115
      %p117 = scmp.eq.s32.totalorder %s28, 0
      %p118 = por %p116, %p117
      %s120 = sadd.s32 %s119, 1
      %p123 = scmp.eq.s32.totalorder %s22, 1
      %p124 = scmp.ne.s32.totalorder %s119, %s121
      %p125 = scmp.eq.s32.totalorder %s22, 0
      %p126 = por %p124, %p125
      %p127 = scmp.ne.s32.totalorder %s119, %s121
      %p128 = scmp.eq.s32.totalorder %s27, 1
      %p129 = por %p127, %p128
      %p130 = scmp.ne.s32.totalorder %s121, %s122
      %p131 = scmp.eq.s32.totalorder %s27, 0
      %p132 = por %p130, %p131
      %p133 = scmp.ne.s32.totalorder %s121, %s122
      %p134 = scmp.eq.s32.totalorder %s28, 1
      %p135 = por %p133, %p134
      %p137 = scmp.ne.s32.totalorder %s122, %s136
      %p138 = scmp.eq.s32.totalorder %s28, 0
      %p139 = por %p137, %p138
      %s141 = sadd.s32 %s140, 1
      %p144 = scmp.eq.s32.totalorder %s22, 1
      %p145 = scmp.ne.s32.totalorder %s140, %s142
      %p146 = scmp.eq.s32.totalorder %s22, 0
      %p147 = por %p145, %p146
      %p148 = scmp.ne.s32.totalorder %s140, %s142
      %p149 = scmp.eq.s32.totalorder %s27, 1
      %p150 = por %p148, %p149
      %p151 = scmp.ne.s32.totalorder %s142, %s143
      %p152 = scmp.eq.s32.totalorder %s27, 0
      %p153 = por %p151, %p152
      %p154 = scmp.ne.s32.totalorder %s142, %s143
      %p155 = scmp.eq.s32.totalorder %s28, 1
      %p156 = por %p154, %p155
      %p158 = scmp.ne.s32.totalorder %s143, %s157
      %p159 = scmp.eq.s32.totalorder %s28, 0
      %p160 = por %p158, %p159
      %s162 = sadd.s32 %s161, 1
      %p165 = scmp.eq.s32.totalorder %s22, 1
      %p166 = scmp.ne.s32.totalorder %s161, %s163
      %p167 = scmp.eq.s32.totalorder %s22, 0
      %p168 = por %p166, %p167
      %p169 = scmp.ne.s32.totalorder %s161, %s163
      %p170 = scmp.eq.s32.totalorder %s27, 1
      %p171 = por %p169, %p170
      %p172 = scmp.ne.s32.totalorder %s163, %s164
      %p173 = scmp.eq.s32.totalorder %s27, 0
      %p174 = por %p172, %p173
      %p175 = scmp.ne.s32.totalorder %s163, %s164
      %p176 = scmp.eq.s32.totalorder %s28, 1
      %p177 = por %p175, %p176
      %p179 = scmp.ne.s32.totalorder %s164, %s178
      %p180 = scmp.eq.s32.totalorder %s28, 0
      %p181 = por %p179, %p180
      %s183 = sadd.s32 %s182, 1
      %p186 = scmp.eq.s32.totalorder %s22, 1
      %p187 = scmp.ne.s32.totalorder %s182, %s184
      %p188 = scmp.eq.s32.totalorder %s22, 0
      %p189 = por %p187, %p188
      %p190 = scmp.ne.s32.totalorder %s182, %s184
      %p191 = scmp.eq.s32.totalorder %s27, 1
      %p192 = por %p190, %p191
      %p193 = scmp.ne.s32.totalorder %s184, %s185
      %p194 = scmp.eq.s32.totalorder %s27, 0
      %p195 = por %p193, %p194
      %p196 = scmp.ne.s32.totalorder %s184, %s185
      %p197 = scmp.eq.s32.totalorder %s28, 1
      %p198 = por %p196, %p197
      %p200 = scmp.ne.s32.totalorder %s185, %s199
      %p201 = scmp.eq.s32.totalorder %s28, 0
      %p202 = por %p200, %p201
      %s204 = sadd.s32 %s203, 1
      %p207 = scmp.eq.s32.totalorder %s22, 1
      %p208 = scmp.ne.s32.totalorder %s203, %s205
      %p209 = scmp.eq.s32.totalorder %s22, 0
      %p210 = por %p208, %p209
      %p211 = scmp.ne.s32.totalorder %s203, %s205
      %p212 = scmp.eq.s32.totalorder %s27, 1
      %p213 = por %p211, %p212
      %p214 = scmp.ne.s32.totalorder %s205, %s206
      %p215 = scmp.eq.s32.totalorder %s27, 0
      %p216 = por %p214, %p215
      %p217 = scmp.ne.s32.totalorder %s205, %s206
      %p218 = scmp.eq.s32.totalorder %s28, 1
      %p219 = por %p217, %p218
      %p221 = scmp.ne.s32.totalorder %s206, %s220
      %p222 = scmp.eq.s32.totalorder %s28, 0
      %p223 = por %p221, %p222
      %s225 = sadd.s32 %s224, 1
      %p228 = scmp.eq.s32.totalorder %s22, 1
      %p229 = scmp.ne.s32.totalorder %s224, %s226
      %p230 = scmp.eq.s32.totalorder %s22, 0
      %p231 = por %p229, %p230
      %p232 = scmp.ne.s32.totalorder %s224, %s226
      %p233 = scmp.eq.s32.totalorder %s27, 1
      %p234 = por %p232, %p233
      %p235 = scmp.ne.s32.totalorder %s226, %s227
      %p236 = scmp.eq.s32.totalorder %s27, 0
      %p237 = por %p235, %p236
      %p238 = scmp.ne.s32.totalorder %s226, %s227
      %p239 = scmp.eq.s32.totalorder %s28, 1
      %p240 = por %p238, %p239
      %p242 = scmp.ne.s32.totalorder %s227, %s241
      %p243 = scmp.eq.s32.totalorder %s28, 0
      %p244 = por %p242, %p243
      %s246 = sadd.s32 %s245, 1
      %p249 = scmp.eq.s32.totalorder %s22, 1
      %p250 = scmp.ne.s32.totalorder %s245, %s247
      %p251 = scmp.eq.s32.totalorder %s22, 0
      %p252 = por %p250, %p251
      %p253 = scmp.ne.s32.totalorder %s245, %s247
      %p254 = scmp.eq.s32.totalorder %s27, 1
      %p255 = por %p253, %p254
      %p256 = scmp.ne.s32.totalorder %s247, %s248
      %p257 = scmp.eq.s32.totalorder %s27, 0
      %p258 = por %p256, %p257
      %p259 = scmp.ne.s32.totalorder %s247, %s248
      %p260 = scmp.eq.s32.totalorder %s28, 1
      %p261 = por %p259, %p260
      %p263 = scmp.ne.s32.totalorder %s248, %s262
      %p264 = scmp.eq.s32.totalorder %s28, 0
      %p265 = por %p263, %p264
      %s267 = sadd.s32 %s266, 1
      %p270 = scmp.eq.s32.totalorder %s22, 1
      %p271 = scmp.ne.s32.totalorder %s266, %s268
      %p272 = scmp.eq.s32.totalorder %s22, 0
      %p273 = por %p271, %p272
      %p274 = scmp.ne.s32.totalorder %s266, %s268
      %p275 = scmp.eq.s32.totalorder %s27, 1
      %p276 = por %p274, %p275
      %p277 = scmp.ne.s32.totalorder %s268, %s269
      %p278 = scmp.eq.s32.totalorder %s27, 0
      %p279 = por %p277, %p278
      %p280 = scmp.ne.s32.totalorder %s268, %s269
      %p281 = scmp.eq.s32.totalorder %s28, 1
      %p282 = por %p280, %p281
      %p284 = scmp.ne.s32.totalorder %s269, %s283
      %p285 = scmp.eq.s32.totalorder %s28, 0
      %p286 = por %p284, %p285
      %s288 = sadd.s32 %s287, 1
      %p291 = scmp.eq.s32.totalorder %s22, 1
      %p292 = scmp.ne.s32.totalorder %s287, %s289
      %p293 = scmp.eq.s32.totalorder %s22, 0
      %p294 = por %p292, %p293
      %p295 = scmp.ne.s32.totalorder %s287, %s289
      %p296 = scmp.eq.s32.totalorder %s27, 1
      %p297 = por %p295, %p296
      %p298 = scmp.ne.s32.totalorder %s289, %s290
      %p299 = scmp.eq.s32.totalorder %s27, 0
      %p300 = por %p298, %p299
      %p301 = scmp.ne.s32.totalorder %s289, %s290
      %p302 = scmp.eq.s32.totalorder %s28, 1
      %p303 = por %p301, %p302
      %p305 = scmp.ne.s32.totalorder %s290, %s304
      %p306 = scmp.eq.s32.totalorder %s28, 0
      %p307 = por %p305, %p306
      %s308 = ssub.s32 %s22, %s29
      %p309 = scmp.eq.s32.totalorder %s308, 0
      %s311 = sadd.s32 %s310, 1
      %s312 = scalar_select %p309, %s310, %s311
      %p315 = pneg %p309
      %p316 = scmp.eq.s32.totalorder %s22, 1
      %p317 = por %p315, %p316
      %p318 = scmp.ne.s32.totalorder %s310, %s313
      %p319 = scmp.eq.s32.totalorder %s22, 0
      %p320 = por %p318, %p319
      %p321 = scmp.ne.s32.totalorder %s310, %s313
      %p322 = scmp.eq.s32.totalorder %s27, 1
      %p323 = por %p321, %p322
      %p324 = scmp.ne.s32.totalorder %s313, %s314
      %p325 = scmp.eq.s32.totalorder %s27, 0
      %p326 = por %p324, %p325
      %p327 = scmp.ne.s32.totalorder %s313, %s314
      %p328 = scmp.eq.s32.totalorder %s28, 1
      %p329 = por %p327, %p328
      %p331 = scmp.ne.s32.totalorder %s314, %s330
      %p332 = scmp.eq.s32.totalorder %s28, 0
      %p333 = por %p331, %p332
      %p334 = scmp.le.s32.totalorder 1, %s22
      %p335 = scmp.lt.s32.totalorder %s22, 3
      %p336 = pnand %p334, %p335
      %p337 = pneg %p336
      // Predicated region
      $region9: #{_lambda_.3} parent=5 // pred_check
        _
      $region10: #{_lambda_.3} parent=5 // pred_check_branch
        %339 = sbr.rel (%p336) target = $region12
      $region11: #{_lambda_.3} parent=5 // pred_region
        %s340 = ssub.s32 %s22, 1
        // Predicated region
        $region13: #{_lambda_.3} parent=11 // pred_check
          %p341 = pneg %p69
        $region14: #{_lambda_.3} parent=11 // pred_check_branch
          %343 = sbr.rel (%p341) target = $region16
        $region15: #{_lambda_.3} parent=11 // pred_region
          _
        $region16: #{_lambda_.3} parent=11 // pred_fallthru
          _
        // Predicated region
        $region17: #{_lambda_.3} parent=11 // pred_check
          %p344 = pneg %p90
        $region18: #{_lambda_.3} parent=11 // pred_check_branch
          %346 = sbr.rel (%p344) target = $region20
        $region19: #{_lambda_.3} parent=11 // pred_region
          _
        $region20: #{_lambda_.3} parent=11 // pred_fallthru
          _
        // Predicated region
        $region21: #{_lambda_.3} parent=11 // pred_check
          %p347 = pneg %p111
        $region22: #{_lambda_.3} parent=11 // pred_check_branch
          %349 = sbr.rel (%p347) target = $region24
        $region23: #{_lambda_.3} parent=11 // pred_region
          _
        $region24: #{_lambda_.3} parent=11 // pred_fallthru
          _
        // Predicated region
        $region25: #{_lambda_.3} parent=11 // pred_check
          %p350 = pneg %p132
        $region26: #{_lambda_.3} parent=11 // pred_check_branch
          %352 = sbr.rel (%p350) target = $region28
        $region27: #{_lambda_.3} parent=11 // pred_region
          _
        $region28: #{_lambda_.3} parent=11 // pred_fallthru
          _
        // Predicated region
        $region29: #{_lambda_.3} parent=11 // pred_check
          %p353 = pneg %p153
        $region30: #{_lambda_.3} parent=11 // pred_check_branch
          %355 = sbr.rel (%p353) target = $region32
        $region31: #{_lambda_.3} parent=11 // pred_region
          _
        $region32: #{_lambda_.3} parent=11 // pred_fallthru
          _
        // Predicated region
        $region33: #{_lambda_.3} parent=11 // pred_check
          %p356 = pneg %p174
        $region34: #{_lambda_.3} parent=11 // pred_check_branch
          %358 = sbr.rel (%p356) target = $region36
        $region35: #{_lambda_.3} parent=11 // pred_region
          _
        $region36: #{_lambda_.3} parent=11 // pred_fallthru
          _
        // Predicated region
        $region37: #{_lambda_.3} parent=11 // pred_check
          %p359 = pneg %p195
        $region38: #{_lambda_.3} parent=11 // pred_check_branch
          %361 = sbr.rel (%p359) target = $region40
        $region39: #{_lambda_.3} parent=11 // pred_region
          _
        $region40: #{_lambda_.3} parent=11 // pred_fallthru
          _
        // Predicated region
        $region41: #{_lambda_.3} parent=11 // pred_check
          %p362 = pneg %p216
        $region42: #{_lambda_.3} parent=11 // pred_check_branch
          %364 = sbr.rel (%p362) target = $region44
        $region43: #{_lambda_.3} parent=11 // pred_region
          _
        $region44: #{_lambda_.3} parent=11 // pred_fallthru
          _
        // Predicated region
        $region45: #{_lambda_.3} parent=11 // pred_check
          %p365 = pneg %p237
        $region46: #{_lambda_.3} parent=11 // pred_check_branch
          %367 = sbr.rel (%p365) target = $region48
        $region47: #{_lambda_.3} parent=11 // pred_region
          _
        $region48: #{_lambda_.3} parent=11 // pred_fallthru
          _
        // Predicated region
        $region49: #{_lambda_.3} parent=11 // pred_check
          %p368 = pneg %p258
        $region50: #{_lambda_.3} parent=11 // pred_check_branch
          %370 = sbr.rel (%p368) target = $region52
        $region51: #{_lambda_.3} parent=11 // pred_region
          _
        $region52: #{_lambda_.3} parent=11 // pred_fallthru
          _
        // Predicated region
        $region53: #{_lambda_.3} parent=11 // pred_check
          %p371 = pneg %p279
        $region54: #{_lambda_.3} parent=11 // pred_check_branch
          %373 = sbr.rel (%p371) target = $region56
        $region55: #{_lambda_.3} parent=11 // pred_region
          _
        $region56: #{_lambda_.3} parent=11 // pred_fallthru
          _
        // Predicated region
        $region57: #{_lambda_.3} parent=11 // pred_check
          %p374 = pneg %p300
        $region58: #{_lambda_.3} parent=11 // pred_check_branch
          %376 = sbr.rel (%p374) target = $region60
        $region59: #{_lambda_.3} parent=11 // pred_region
          _
        $region60: #{_lambda_.3} parent=11 // pred_fallthru
          _
      $region12: #{_lambda_.3} parent=5 // pred_fallthru
        _
      %p377 = scmp.lt.s32.totalorder %s22, 2
      // Predicated region
      $region61: #{_lambda_.3} parent=5 // pred_check
        %p378 = pneg %p377
      $region62: #{_lambda_.3} parent=5 // pred_check_branch
        %380 = sbr.rel (%p378) target = $region64
      $region63: #{_lambda_.3} parent=5 // pred_region
        // Predicated region
        $region65: #{_lambda_.3} parent=63 // pred_check
          %p381 = pneg %p42
        $region66: #{_lambda_.3} parent=63 // pred_check_branch
          %383 = sbr.rel (%p381) target = $region68
        $region67: #{_lambda_.3} parent=63 // pred_region
          %p384 = scmp.lt.s32.totalorder %s22, 1
          %s385 = scalar_select %p384, %s22, 1
          %s386 = smul.addr %s385, 8
          %s387 = scalar_lea.vmem %s0, %s386
        $region68: #{_lambda_.3} parent=63 // pred_fallthru
          _
      $region64: #{_lambda_.3} parent=5 // pred_fallthru
        _
      %p388 = scmp.le.s32.totalorder 1, %s22
      %p389 = scmp.lt.s32.totalorder %s22, 3
      %p390 = pnand %p388, %p389
      %p391 = pneg %p390
      // Predicated region
      $region69: #{_lambda_.3} parent=5 // pred_check
        _
      $region70: #{_lambda_.3} parent=5 // pred_check_branch
        %393 = sbr.rel (%p390) target = $region72
      $region71: #{_lambda_.3} parent=5 // pred_region
        %s394 = ssub.s32 %s22, 1
        %p395 = scmp.lt.s32.totalorder %s27, 1
        %s396 = scalar_select %p395, %s27, 1
        %s397 = smul.addr %s396, 8
        %s398 = scalar_lea.vmem %s0, %s397
        %p399 = pneg %p48
        %p400 = pneg %p45
        %p401 = pneg %p69
        %p402 = pneg %p66
        %p403 = pneg %p90
        %p404 = pneg %p87
        %p405 = pneg %p111
        %p406 = pneg %p108
        %p407 = pneg %p132
        %p408 = pneg %p129
        %p409 = pneg %p153
        %p410 = pneg %p150
        %p411 = pneg %p174
        %p412 = pneg %p171
        %p413 = pneg %p195
        %p414 = pneg %p192
        %p415 = pneg %p216
        %p416 = pneg %p213
        %p417 = pneg %p237
        %p418 = pneg %p234
        %p419 = pneg %p258
        %p420 = pneg %p255
        %p421 = pneg %p279
        %p422 = pneg %p276
        %p423 = pneg %p300
        %p424 = pneg %p297
        %p425 = pneg %p326
        %p426 = pneg %p323
        %s427 = sand.u32 %s313, 1
        %s428 = scalar_lea.sflag [#allocation4], %s427
        %s429 = sand.u32 %s313, 1
        %s430 = smul.addr %s429, 8
        %s431 = scalar_lea.vmem [#allocation3], %s430
        %p432 = scmp.lt.s32.totalorder %s27, 1
        %s433 = scalar_select %p432, %s27, 1
        %s434 = smul.addr %s433, 8
        %s435 = scalar_lea.vmem %s0, %s434
        %v437 = vld [vmem:[%s435] sm:$0xff]
        %v438 = vpack.c.bf16 %v437, %v437
        %v439 = vld [vmem:[%s1] sm:$0xff]
        %v440 = vld [vmem:[%s1 + $0x8] sm:$0xff]
        %v441 = vld [vmem:[%s1 + $0x10] sm:$0xff]
        %v442 = vld [vmem:[%s1 + $0x18] sm:$0xff]
        %v443 = vld [vmem:[%s1 + $0x20] sm:$0xff]
        %v444 = vld [vmem:[%s1 + $0x28] sm:$0xff]
        %v445 = vld [vmem:[%s1 + $0x30] sm:$0xff]
        %v446 = vld [vmem:[%s1 + $0x38] sm:$0xff]
        %v447 = vld [vmem:[%s2] sm:$0x3]
        %v449 = vperm.slane %v447, 0
        %v450 = vperm.slane %v447, 1
        %v461 = vunpack.c.l.b16 %v439
        %v462 = vunpack.c.h.b16 %v439
        %v463 = vunpack.c.l.b16 %v440
        %v464 = vunpack.c.h.b16 %v440
        %v465 = vunpack.c.l.b16 %v441
        %v466 = vunpack.c.h.b16 %v441
        %v467 = vunpack.c.l.b16 %v442
        %v468 = vunpack.c.h.b16 %v442
        %v469 = vunpack.c.l.b16 %v443
        %v470 = vunpack.c.h.b16 %v443
        %v471 = vunpack.c.l.b16 %v444
        %v472 = vunpack.c.h.b16 %v444
        %v473 = vunpack.c.l.b16 %v445
        %v474 = vunpack.c.h.b16 %v445
        %v475 = vunpack.c.l.b16 %v446
        %v476 = vunpack.c.h.b16 %v446
        %v477 = vpack.c.b16 %v463, %v461
        %v478 = vpack.c.b16 %v464, %v462
        %v479 = vpack.c.b16 %v467, %v465
        %v480 = vpack.c.b16 %v468, %v466
        %v481 = vpack.c.b16 %v471, %v469
        %v482 = vpack.c.b16 %v472, %v470
        %v483 = vpack.c.b16 %v475, %v473
        %v484 = vpack.c.b16 %v476, %v474
        %vm493 = vcmask 523264
        %v495 = vsel %vm493, %v438, 0
        %497 = vmatpush.bf16.msra.mxu0 0
        %498 = vmatpush.bf16.msra.mxu0 0
        %499 = vmatpush.bf16.msra.mxu0 0
        %500 = vmatpush.bf16.msra.mxu0 0
        %501 = vmatpush.bf16.msra.mxu0 %v483
        %502 = vmatpush.bf16.msra.mxu0 %v481
        %503 = vmatpush.bf16.msra.mxu0 %v479
        %504 = vmatpush.bf16.msra.mxu0 %v477
        %505 = vmatmul.bf16.gmra.mxu0 %v495
        %v506 = vpop.f32.mrf.mxu0
        %v507 = vadd.f32 %v449, %v506
        %v508 = vpop.f32.mrf.mxu0
        %509 = vdwg.mxu0
        %510 = vmatpush.bf16.msra.mxu0 0
        %511 = vmatpush.bf16.msra.mxu0 0
        %512 = vmatpush.bf16.msra.mxu0 0
        %513 = vmatpush.bf16.msra.mxu0 0
        %514 = vmatpush.bf16.msra.mxu0 %v484
        %515 = vmatpush.bf16.msra.mxu0 %v482
        %516 = vmatpush.bf16.msra.mxu0 %v480
        %517 = vmatpush.bf16.msra.mxu0 %v478
        %518 = vmatmul.bf16.gmra.mxu0 %v495
        %v519 = vpop.f32.mrf.mxu0
        %v520 = vadd.f32 %v450, %v519
        %v521 = vpop.f32.mrf.mxu0
        %522 = vdwg.mxu0
        %524 = vrot.lane.b32.xlu0 %v507, 64
        %v525 = vpop.permute.xlu0 %524
        %vm526 = vcmask 31744
        %v527 = vsel %vm526, %v507, 0
        %v529 = vsel %vm526, %v525, 0
        %531 = vmatpush.xpose.msra.mxu0 0.0
        %532 = vmatpush.xpose.msra.mxu0 0.0
        %533 = vmatpush.xpose.msra.mxu0 0.0
        %534 = vmatpush.xpose.msra.mxu0 0.0
        %535 = vmatpush.xpose.msra.mxu0 0.0
        %536 = vmatpush.xpose.msra.mxu0 0.0
        %537 = vmatpush.xpose.msra.mxu0 0.0
        %538 = vmatpush.xpose.msra.mxu0 0.0
        %539 = vmatpush.xpose.msra.mxu0 0.0
        %540 = vmatpush.xpose.msra.mxu0 0.0
        %541 = vmatpush.xpose.msra.mxu0 0.0
        %542 = vmatpush.xpose.msra.mxu0 0.0
        %543 = vmatpush.xpose.msra.mxu0 0.0
        %544 = vmatpush.xpose.msra.mxu0 0.0
        %545 = vmatpush.xpose.msra.mxu0 0.0
        %546 = vmatpush.xpose.msra.mxu0 %v529
        %547 = vmatmul.f32.gmra.mxu0 %v527
        %v548 = vpop.f32.mrf.mxu0
        %v549 = vadd.f32 0.0, %v548
        %550 = vdwg.mxu0
        %v551 = vmul.f32 %v549, 0.5
        %vm552 = vcmask 64512
        %v553 = vsel %vm552, %v551, -inf
        %554 = vmax.xlane.f32.xlu0 %v553
        %v555 = vpop.xlane.xlu0 %554
        %v556 = vsub.f32 %v551, %v555
        %v557 = vmul.f32 %v556, 1.442695
        %v558 = vpow.pop %v557
        %v559 = vsel %vm552, %v558, 0.0
        %560 = vadd.xlane.f32.xlu0 %v559
        %v561 = vpop.xlane.xlu0 %560
        %v562 = vrcp.pop %v561
        %v563 = vmul.f32 %v558, %v562
        %v565 = vsel %vm552, %v563, 0
        %567 = vmatpush.msra.mxu0 0.0
        %568 = vmatpush.msra.mxu0 0.0
        %569 = vmatpush.msra.mxu0 0.0
        %570 = vmatpush.msra.mxu0 0.0
        %571 = vmatpush.msra.mxu0 0.0
        %572 = vmatpush.msra.mxu0 0.0
        %573 = vmatpush.msra.mxu0 0.0
        %574 = vmatpush.msra.mxu0 0.0
        %575 = vmatpush.msra.mxu0 0.0
        %576 = vmatpush.msra.mxu0 0.0
        %577 = vmatpush.msra.mxu0 0.0
        %578 = vmatpush.msra.mxu0 0.0
        %579 = vmatpush.msra.mxu0 0.0
        %580 = vmatpush.msra.mxu0 0.0
        %581 = vmatpush.msra.mxu0 0.0
        %582 = vmatpush.msra.mxu0 %v520
        %583 = vmatmul.f32.gmra.mxu0 %v565
        %v584 = vpop.f32.mrf.mxu0
        %v585 = vadd.f32 0.0, %v584
        %586 = vdwg.mxu0
        %587 = vst.msk [vmem:[#allocation2] sm:$0xff] %vm526, %v585
        %588 = vrot.lane.b32.xlu0 %v507, 124
        %v589 = vpop.permute.xlu0 %588
        %590 = vrot.lane.b32.xlu0 %v507, 60
        %v591 = vpop.permute.xlu0 %590
        %v592 = vsel %vm526, %v589, 0
        %v594 = vsel %vm526, %v591, 0
        %596 = vmatpush.xpose.msra.mxu0 0.0
        %597 = vmatpush.xpose.msra.mxu0 0.0
        %598 = vmatpush.xpose.msra.mxu0 0.0
        %599 = vmatpush.xpose.msra.mxu0 0.0
        %600 = vmatpush.xpose.msra.mxu0 0.0
        %601 = vmatpush.xpose.msra.mxu0 0.0
        %602 = vmatpush.xpose.msra.mxu0 0.0
        %603 = vmatpush.xpose.msra.mxu0 0.0
        %604 = vmatpush.xpose.msra.mxu0 0.0
        %605 = vmatpush.xpose.msra.mxu0 0.0
        %606 = vmatpush.xpose.msra.mxu0 0.0
        %607 = vmatpush.xpose.msra.mxu0 0.0
        %608 = vmatpush.xpose.msra.mxu0 0.0
        %609 = vmatpush.xpose.msra.mxu0 0.0
        %610 = vmatpush.xpose.msra.mxu0 0.0
        %611 = vmatpush.xpose.msra.mxu0 %v594
        %612 = vmatmul.f32.gmra.mxu0 %v592
        %v613 = vpop.f32.mrf.mxu0
        %v614 = vadd.f32 0.0, %v613
        %615 = vdwg.mxu0
        %v616 = vmul.f32 %v614, 0.5
        %v617 = vsel %vm552, %v616, -inf
        %618 = vmax.xlane.f32.xlu0 %v617
        %v619 = vpop.xlane.xlu0 %618
        %v620 = vsub.f32 %v616, %v619
        %v621 = vmul.f32 %v620, 1.442695
        %v622 = vpow.pop %v621
        %v623 = vsel %vm552, %v622, 0.0
        %624 = vadd.xlane.f32.xlu0 %v623
        %v625 = vpop.xlane.xlu0 %624
        %v626 = vrcp.pop %v625
        %v627 = vmul.f32 %v622, %v626
        %629 = vrot.lane.b32.xlu0 %v520, 124
        %v630 = vpop.permute.xlu0 %629
        %v633 = vsel %vm552, %v627, 0
        %635 = vmatpush.msra.mxu0 0.0
        %636 = vmatpush.msra.mxu0 0.0
        %637 = vmatpush.msra.mxu0 0.0
        %638 = vmatpush.msra.mxu0 0.0
        %639 = vmatpush.msra.mxu0 0.0
        %640 = vmatpush.msra.mxu0 0.0
        %641 = vmatpush.msra.mxu0 0.0
        %642 = vmatpush.msra.mxu0 0.0
        %643 = vmatpush.msra.mxu0 0.0
        %644 = vmatpush.msra.mxu0 0.0
        %645 = vmatpush.msra.mxu0 0.0
        %646 = vmatpush.msra.mxu0 0.0
        %647 = vmatpush.msra.mxu0 0.0
        %648 = vmatpush.msra.mxu0 0.0
        %649 = vmatpush.msra.mxu0 0.0
        %650 = vmatpush.msra.mxu0 %v630
        %651 = vmatmul.f32.gmra.mxu0 %v633
        %v652 = vpop.f32.mrf.mxu0
        %v653 = vadd.f32 0.0, %v652
        %654 = vdwg.mxu0
        %656 = vrot.lane.b32.xlu0 %v653, 4
        %v657 = vpop.permute.xlu0 %656
        %vm659 = vcmask 64544
        %660 = vst.msk [vmem:[#allocation2] sm:$0xff] %vm659, %v657
        %661 = vrot.lane.b32.xlu0 %v507, 120
        %v662 = vpop.permute.xlu0 %661
        %663 = vrot.lane.b32.xlu0 %v507, 56
        %v664 = vpop.permute.xlu0 %663
        %v665 = vsel %vm526, %v662, 0
        %v667 = vsel %vm526, %v664, 0
        %669 = vmatpush.xpose.msra.mxu0 0.0
        %670 = vmatpush.xpose.msra.mxu0 0.0
        %671 = vmatpush.xpose.msra.mxu0 0.0
        %672 = vmatpush.xpose.msra.mxu0 0.0
        %673 = vmatpush.xpose.msra.mxu0 0.0
        %674 = vmatpush.xpose.msra.mxu0 0.0
        %675 = vmatpush.xpose.msra.mxu0 0.0
        %676 = vmatpush.xpose.msra.mxu0 0.0
        %677 = vmatpush.xpose.msra.mxu0 0.0
        %678 = vmatpush.xpose.msra.mxu0 0.0
        %679 = vmatpush.xpose.msra.mxu0 0.0
        %680 = vmatpush.xpose.msra.mxu0 0.0
        %681 = vmatpush.xpose.msra.mxu0 0.0
        %682 = vmatpush.xpose.msra.mxu0 0.0
        %683 = vmatpush.xpose.msra.mxu0 0.0
        %684 = vmatpush.xpose.msra.mxu0 %v667
        %685 = vmatmul.f32.gmra.mxu0 %v665
        %v686 = vpop.f32.mrf.mxu0
        %v687 = vadd.f32 0.0, %v686
        %688 = vdwg.mxu0
        %v689 = vmul.f32 %v687, 0.5
        %v690 = vsel %vm552, %v689, -inf
        %691 = vmax.xlane.f32.xlu0 %v690
        %v692 = vpop.xlane.xlu0 %691
        %v693 = vsub.f32 %v689, %v692
        %v694 = vmul.f32 %v693, 1.442695
        %v695 = vpow.pop %v694
        %v696 = vsel %vm552, %v695, 0.0
        %697 = vadd.xlane.f32.xlu0 %v696
        %v698 = vpop.xlane.xlu0 %697
        %v699 = vrcp.pop %v698
        %v700 = vmul.f32 %v695, %v699
        %701 = vrot.lane.b32.xlu0 %v520, 120
        %v702 = vpop.permute.xlu0 %701
        %v705 = vsel %vm552, %v700, 0
        %707 = vmatpush.msra.mxu0 0.0
        %708 = vmatpush.msra.mxu0 0.0
        %709 = vmatpush.msra.mxu0 0.0
        %710 = vmatpush.msra.mxu0 0.0
        %711 = vmatpush.msra.mxu0 0.0
        %712 = vmatpush.msra.mxu0 0.0
        %713 = vmatpush.msra.mxu0 0.0
        %714 = vmatpush.msra.mxu0 0.0
        %715 = vmatpush.msra.mxu0 0.0
        %716 = vmatpush.msra.mxu0 0.0
        %717 = vmatpush.msra.mxu0 0.0
        %718 = vmatpush.msra.mxu0 0.0
        %719 = vmatpush.msra.mxu0 0.0
        %720 = vmatpush.msra.mxu0 0.0
        %721 = vmatpush.msra.mxu0 0.0
        %722 = vmatpush.msra.mxu0 %v702
        %723 = vmatmul.f32.gmra.mxu0 %v705
        %v724 = vpop.f32.mrf.mxu0
        %v725 = vadd.f32 0.0, %v724
        %726 = vdwg.mxu0
        %728 = vrot.lane.b32.xlu0 %v725, 8
        %v729 = vpop.permute.xlu0 %728
        %vm731 = vcmask 97344
        %732 = vst.msk [vmem:[#allocation2] sm:$0xff] %vm731, %v729
        %733 = vrot.lane.b32.xlu0 %v507, 116
        %v734 = vpop.permute.xlu0 %733
        %735 = vrot.lane.b32.xlu0 %v507, 52
        %v736 = vpop.permute.xlu0 %735
        %v737 = vsel %vm526, %v734, 0
        %v739 = vsel %vm526, %v736, 0
        %741 = vmatpush.xpose.msra.mxu0 0.0
        %742 = vmatpush.xpose.msra.mxu0 0.0
        %743 = vmatpush.xpose.msra.mxu0 0.0
        %744 = vmatpush.xpose.msra.mxu0 0.0
        %745 = vmatpush.xpose.msra.mxu0 0.0
        %746 = vmatpush.xpose.msra.mxu0 0.0
        %747 = vmatpush.xpose.msra.mxu0 0.0
        %748 = vmatpush.xpose.msra.mxu0 0.0
        %749 = vmatpush.xpose.msra.mxu0 0.0
        %750 = vmatpush.xpose.msra.mxu0 0.0
        %751 = vmatpush.xpose.msra.mxu0 0.0
        %752 = vmatpush.xpose.msra.mxu0 0.0
        %753 = vmatpush.xpose.msra.mxu0 0.0
        %754 = vmatpush.xpose.msra.mxu0 0.0
        %755 = vmatpush.xpose.msra.mxu0 0.0
        %756 = vmatpush.xpose.msra.mxu0 %v739
        %757 = vmatmul.f32.gmra.mxu0 %v737
        %v758 = vpop.f32.mrf.mxu0
        %v759 = vadd.f32 0.0, %v758
        %760 = vdwg.mxu0
        %v761 = vmul.f32 %v759, 0.5
        %v762 = vsel %vm552, %v761, -inf
        %763 = vmax.xlane.f32.xlu0 %v762
        %v764 = vpop.xlane.xlu0 %763
        %v765 = vsub.f32 %v761, %v764
        %v766 = vmul.f32 %v765, 1.442695
        %v767 = vpow.pop %v766
        %v768 = vsel %vm552, %v767, 0.0
        %769 = vadd.xlane.f32.xlu0 %v768
        %v770 = vpop.xlane.xlu0 %769
        %v771 = vrcp.pop %v770
        %v772 = vmul.f32 %v767, %v771
        %773 = vrot.lane.b32.xlu0 %v520, 116
        %v774 = vpop.permute.xlu0 %773
        %v777 = vsel %vm552, %v772, 0
        %779 = vmatpush.msra.mxu0 0.0
        %780 = vmatpush.msra.mxu0 0.0
        %781 = vmatpush.msra.mxu0 0.0
        %782 = vmatpush.msra.mxu0 0.0
        %783 = vmatpush.msra.mxu0 0.0
        %784 = vmatpush.msra.mxu0 0.0
        %785 = vmatpush.msra.mxu0 0.0
        %786 = vmatpush.msra.mxu0 0.0
        %787 = vmatpush.msra.mxu0 0.0
        %788 = vmatpush.msra.mxu0 0.0
        %789 = vmatpush.msra.mxu0 0.0
        %790 = vmatpush.msra.mxu0 0.0
        %791 = vmatpush.msra.mxu0 0.0
        %792 = vmatpush.msra.mxu0 0.0
        %793 = vmatpush.msra.mxu0 0.0
        %794 = vmatpush.msra.mxu0 %v774
        %795 = vmatmul.f32.gmra.mxu0 %v777
        %v796 = vpop.f32.mrf.mxu0
        %v797 = vadd.f32 0.0, %v796
        %798 = vdwg.mxu0
        %800 = vrot.lane.b32.xlu0 %v797, 12
        %v801 = vpop.permute.xlu0 %800
        %vm803 = vcmask 130144
        %804 = vst.msk [vmem:[#allocation2] sm:$0xff] %vm803, %v801
        %805 = vrot.lane.b32.xlu0 %v507, 112
        %v806 = vpop.permute.xlu0 %805
        %807 = vrot.lane.b32.xlu0 %v507, 48
        %v808 = vpop.permute.xlu0 %807
        %v809 = vsel %vm526, %v806, 0
        %v811 = vsel %vm526, %v808, 0
        %813 = vmatpush.xpose.msra.mxu0 0.0
        %814 = vmatpush.xpose.msra.mxu0 0.0
        %815 = vmatpush.xpose.msra.mxu0 0.0
        %816 = vmatpush.xpose.msra.mxu0 0.0
        %817 = vmatpush.xpose.msra.mxu0 0.0
        %818 = vmatpush.xpose.msra.mxu0 0.0
        %819 = vmatpush.xpose.msra.mxu0 0.0
        %820 = vmatpush.xpose.msra.mxu0 0.0
        %821 = vmatpush.xpose.msra.mxu0 0.0
        %822 = vmatpush.xpose.msra.mxu0 0.0
        %823 = vmatpush.xpose.msra.mxu0 0.0
        %824 = vmatpush.xpose.msra.mxu0 0.0
        %825 = vmatpush.xpose.msra.mxu0 0.0
        %826 = vmatpush.xpose.msra.mxu0 0.0
        %827 = vmatpush.xpose.msra.mxu0 0.0
        %828 = vmatpush.xpose.msra.mxu0 %v811
        %829 = vmatmul.f32.gmra.mxu0 %v809
        %v830 = vpop.f32.mrf.mxu0
        %v831 = vadd.f32 0.0, %v830
        %832 = vdwg.mxu0
        %v833 = vmul.f32 %v831, 0.5
        %v834 = vsel %vm552, %v833, -inf
        %835 = vmax.xlane.f32.xlu0 %v834
        %v836 = vpop.xlane.xlu0 %835
        %v837 = vsub.f32 %v833, %v836
        %v838 = vmul.f32 %v837, 1.442695
        %v839 = vpow.pop %v838
        %v840 = vsel %vm552, %v839, 0.0
        %841 = vadd.xlane.f32.xlu0 %v840
        %v842 = vpop.xlane.xlu0 %841
        %v843 = vrcp.pop %v842
        %v844 = vmul.f32 %v839, %v843
        %845 = vrot.lane.b32.xlu0 %v520, 112
        %v846 = vpop.permute.xlu0 %845
        %v849 = vsel %vm552, %v844, 0
        %851 = vmatpush.msra.mxu0 0.0
        %852 = vmatpush.msra.mxu0 0.0
        %853 = vmatpush.msra.mxu0 0.0
        %854 = vmatpush.msra.mxu0 0.0
        %855 = vmatpush.msra.mxu0 0.0
        %856 = vmatpush.msra.mxu0 0.0
        %857 = vmatpush.msra.mxu0 0.0
        %858 = vmatpush.msra.mxu0 0.0
        %859 = vmatpush.msra.mxu0 0.0
        %860 = vmatpush.msra.mxu0 0.0
        %861 = vmatpush.msra.mxu0 0.0
        %862 = vmatpush.msra.mxu0 0.0
        %863 = vmatpush.msra.mxu0 0.0
        %864 = vmatpush.msra.mxu0 0.0
        %865 = vmatpush.msra.mxu0 0.0
        %866 = vmatpush.msra.mxu0 %v846
        %867 = vmatmul.f32.gmra.mxu0 %v849
        %v868 = vpop.f32.mrf.mxu0
        %v869 = vadd.f32 0.0, %v868
        %870 = vdwg.mxu0
        %872 = vrot.lane.b32.xlu0 %v869, 16
        %v873 = vpop.permute.xlu0 %872
        %vm875 = vcmask 162944
        %876 = vst.msk [vmem:[#allocation2] sm:$0xff] %vm875, %v873
        %877 = vrot.lane.b32.xlu0 %v507, 108
        %v878 = vpop.permute.xlu0 %877
        %879 = vrot.lane.b32.xlu0 %v507, 44
        %v880 = vpop.permute.xlu0 %879
        %v881 = vsel %vm526, %v878, 0
        %v883 = vsel %vm526, %v880, 0
        %885 = vmatpush.xpose.msra.mxu0 0.0
        %886 = vmatpush.xpose.msra.mxu0 0.0
        %887 = vmatpush.xpose.msra.mxu0 0.0
        %888 = vmatpush.xpose.msra.mxu0 0.0
        %889 = vmatpush.xpose.msra.mxu0 0.0
        %890 = vmatpush.xpose.msra.mxu0 0.0
        %891 = vmatpush.xpose.msra.mxu0 0.0
        %892 = vmatpush.xpose.msra.mxu0 0.0
        %893 = vmatpush.xpose.msra.mxu0 0.0
        %894 = vmatpush.xpose.msra.mxu0 0.0
        %895 = vmatpush.xpose.msra.mxu0 0.0
        %896 = vmatpush.xpose.msra.mxu0 0.0
        %897 = vmatpush.xpose.msra.mxu0 0.0
        %898 = vmatpush.xpose.msra.mxu0 0.0
        %899 = vmatpush.xpose.msra.mxu0 0.0
        %900 = vmatpush.xpose.msra.mxu0 %v883
        %901 = vmatmul.f32.gmra.mxu0 %v881
        %v902 = vpop.f32.mrf.mxu0
        %v903 = vadd.f32 0.0, %v902
        %904 = vdwg.mxu0
        %v905 = vmul.f32 %v903, 0.5
        %v906 = vsel %vm552, %v905, -inf
        %907 = vmax.xlane.f32.xlu0 %v906
        %v908 = vpop.xlane.xlu0 %907
        %v909 = vsub.f32 %v905, %v908
        %v910 = vmul.f32 %v909, 1.442695
        %v911 = vpow.pop %v910
        %v912 = vsel %vm552, %v911, 0.0
        %913 = vadd.xlane.f32.xlu0 %v912
        %v914 = vpop.xlane.xlu0 %913
        %v915 = vrcp.pop %v914
        %v916 = vmul.f32 %v911, %v915
        %917 = vrot.lane.b32.xlu0 %v520, 108
        %v918 = vpop.permute.xlu0 %917
        %v921 = vsel %vm552, %v916, 0
        %923 = vmatpush.msra.mxu0 0.0
        %924 = vmatpush.msra.mxu0 0.0
        %925 = vmatpush.msra.mxu0 0.0
        %926 = vmatpush.msra.mxu0 0.0
        %927 = vmatpush.msra.mxu0 0.0
        %928 = vmatpush.msra.mxu0 0.0
        %929 = vmatpush.msra.mxu0 0.0
        %930 = vmatpush.msra.mxu0 0.0
        %931 = vmatpush.msra.mxu0 0.0
        %932 = vmatpush.msra.mxu0 0.0
        %933 = vmatpush.msra.mxu0 0.0
        %934 = vmatpush.msra.mxu0 0.0
        %935 = vmatpush.msra.mxu0 0.0
        %936 = vmatpush.msra.mxu0 0.0
        %937 = vmatpush.msra.mxu0 0.0
        %938 = vmatpush.msra.mxu0 %v918
        %939 = vmatmul.f32.gmra.mxu0 %v921
        %v940 = vpop.f32.mrf.mxu0
        %v941 = vadd.f32 0.0, %v940
        %942 = vdwg.mxu0
        %944 = vrot.lane.b32.xlu0 %v941, 20
        %v945 = vpop.permute.xlu0 %944
        %vm947 = vcmask 195744
        %948 = vst.msk [vmem:[#allocation2] sm:$0xff] %vm947, %v945
        %949 = vrot.lane.b32.xlu0 %v507, 104
        %v950 = vpop.permute.xlu0 %949
        %951 = vrot.lane.b32.xlu0 %v507, 40
        %v952 = vpop.permute.xlu0 %951
        %v953 = vsel %vm526, %v950, 0
        %v955 = vsel %vm526, %v952, 0
        %957 = vmatpush.xpose.msra.mxu0 0.0
        %958 = vmatpush.xpose.msra.mxu0 0.0
        %959 = vmatpush.xpose.msra.mxu0 0.0
        %960 = vmatpush.xpose.msra.mxu0 0.0
        %961 = vmatpush.xpose.msra.mxu0 0.0
        %962 = vmatpush.xpose.msra.mxu0 0.0
        %963 = vmatpush.xpose.msra.mxu0 0.0
        %964 = vmatpush.xpose.msra.mxu0 0.0
        %965 = vmatpush.xpose.msra.mxu0 0.0
        %966 = vmatpush.xpose.msra.mxu0 0.0
        %967 = vmatpush.xpose.msra.mxu0 0.0
        %968 = vmatpush.xpose.msra.mxu0 0.0
        %969 = vmatpush.xpose.msra.mxu0 0.0
        %970 = vmatpush.xpose.msra.mxu0 0.0
        %971 = vmatpush.xpose.msra.mxu0 0.0
        %972 = vmatpush.xpose.msra.mxu0 %v955
        %973 = vmatmul.f32.gmra.mxu0 %v953
        %v974 = vpop.f32.mrf.mxu0
        %v975 = vadd.f32 0.0, %v974
        %976 = vdwg.mxu0
        %v977 = vmul.f32 %v975, 0.5
        %v978 = vsel %vm552, %v977, -inf
        %979 = vmax.xlane.f32.xlu0 %v978
        %v980 = vpop.xlane.xlu0 %979
        %v981 = vsub.f32 %v977, %v980
        %v982 = vmul.f32 %v981, 1.442695
        %v983 = vpow.pop %v982
        %v984 = vsel %vm552, %v983, 0.0
        %985 = vadd.xlane.f32.xlu0 %v984
        %v986 = vpop.xlane.xlu0 %985
        %v987 = vrcp.pop %v986
        %v988 = vmul.f32 %v983, %v987
        %989 = vrot.lane.b32.xlu0 %v520, 104
        %v990 = vpop.permute.xlu0 %989
        %v993 = vsel %vm552, %v988, 0
        %995 = vmatpush.msra.mxu0 0.0
        %996 = vmatpush.msra.mxu0 0.0
        %997 = vmatpush.msra.mxu0 0.0
        %998 = vmatpush.msra.mxu0 0.0
        %999 = vmatpush.msra.mxu0 0.0
        %1000 = vmatpush.msra.mxu0 0.0
        %1001 = vmatpush.msra.mxu0 0.0
        %1002 = vmatpush.msra.mxu0 0.0
        %1003 = vmatpush.msra.mxu0 0.0
        %1004 = vmatpush.msra.mxu0 0.0
        %1005 = vmatpush.msra.mxu0 0.0
        %1006 = vmatpush.msra.mxu0 0.0
        %1007 = vmatpush.msra.mxu0 0.0
        %1008 = vmatpush.msra.mxu0 0.0
        %1009 = vmatpush.msra.mxu0 0.0
        %1010 = vmatpush.msra.mxu0 %v990
        %1011 = vmatmul.f32.gmra.mxu0 %v993
        %v1012 = vpop.f32.mrf.mxu0
        %v1013 = vadd.f32 0.0, %v1012
        %1014 = vdwg.mxu0
        %1016 = vrot.lane.b32.xlu0 %v1013, 24
        %v1017 = vpop.permute.xlu0 %1016
        %vm1019 = vcmask 228544
        %1020 = vst.msk [vmem:[#allocation2] sm:$0xff] %vm1019, %v1017
        %1021 = vrot.lane.b32.xlu0 %v507, 100
        %v1022 = vpop.permute.xlu0 %1021
        %1023 = vrot.lane.b32.xlu0 %v507, 36
        %v1024 = vpop.permute.xlu0 %1023
        %v1025 = vsel %vm526, %v1022, 0
        %v1027 = vsel %vm526, %v1024, 0
        %1029 = vmatpush.xpose.msra.mxu0 0.0
        %1030 = vmatpush.xpose.msra.mxu0 0.0
        %1031 = vmatpush.xpose.msra.mxu0 0.0
        %1032 = vmatpush.xpose.msra.mxu0 0.0
        %1033 = vmatpush.xpose.msra.mxu0 0.0
        %1034 = vmatpush.xpose.msra.mxu0 0.0
        %1035 = vmatpush.xpose.msra.mxu0 0.0
        %1036 = vmatpush.xpose.msra.mxu0 0.0
        %1037 = vmatpush.xpose.msra.mxu0 0.0
        %1038 = vmatpush.xpose.msra.mxu0 0.0
        %1039 = vmatpush.xpose.msra.mxu0 0.0
        %1040 = vmatpush.xpose.msra.mxu0 0.0
        %1041 = vmatpush.xpose.msra.mxu0 0.0
        %1042 = vmatpush.xpose.msra.mxu0 0.0
        %1043 = vmatpush.xpose.msra.mxu0 0.0
        %1044 = vmatpush.xpose.msra.mxu0 %v1027
        %1045 = vmatmul.f32.gmra.mxu0 %v1025
        %v1046 = vpop.f32.mrf.mxu0
        %v1047 = vadd.f32 0.0, %v1046
        %1048 = vdwg.mxu0
        %v1049 = vmul.f32 %v1047, 0.5
        %v1050 = vsel %vm552, %v1049, -inf
        %1051 = vmax.xlane.f32.xlu0 %v1050
        %v1052 = vpop.xlane.xlu0 %1051
        %v1053 = vsub.f32 %v1049, %v1052
        %v1054 = vmul.f32 %v1053, 1.442695
        %v1055 = vpow.pop %v1054
        %v1056 = vsel %vm552, %v1055, 0.0
        %1057 = vadd.xlane.f32.xlu0 %v1056
        %v1058 = vpop.xlane.xlu0 %1057
        %v1059 = vrcp.pop %v1058
        %v1060 = vmul.f32 %v1055, %v1059
        %1061 = vrot.lane.b32.xlu0 %v520, 100
        %v1062 = vpop.permute.xlu0 %1061
        %v1065 = vsel %vm552, %v1060, 0
        %1067 = vmatpush.msra.mxu0 0.0
        %1068 = vmatpush.msra.mxu0 0.0
        %1069 = vmatpush.msra.mxu0 0.0
        %1070 = vmatpush.msra.mxu0 0.0
        %1071 = vmatpush.msra.mxu0 0.0
        %1072 = vmatpush.msra.mxu0 0.0
        %1073 = vmatpush.msra.mxu0 0.0
        %1074 = vmatpush.msra.mxu0 0.0
        %1075 = vmatpush.msra.mxu0 0.0
        %1076 = vmatpush.msra.mxu0 0.0
        %1077 = vmatpush.msra.mxu0 0.0
        %1078 = vmatpush.msra.mxu0 0.0
        %1079 = vmatpush.msra.mxu0 0.0
        %1080 = vmatpush.msra.mxu0 0.0
        %1081 = vmatpush.msra.mxu0 0.0
        %1082 = vmatpush.msra.mxu0 %v1062
        %1083 = vmatmul.f32.gmra.mxu0 %v1065
        %v1084 = vpop.f32.mrf.mxu0
        %v1085 = vadd.f32 0.0, %v1084
        %1086 = vdwg.mxu0
        %1088 = vrot.lane.b32.xlu0 %v1085, 28
        %v1089 = vpop.permute.xlu0 %1088
        %vm1091 = vcmask 261344
        %1092 = vst.msk [vmem:[#allocation2] sm:$0xff] %vm1091, %v1089
        %1093 = vrot.lane.b32.xlu0 %v507, 96
        %v1094 = vpop.permute.xlu0 %1093
        %1095 = vrot.lane.b32.xlu0 %v507, 32
        %v1096 = vpop.permute.xlu0 %1095
        %v1097 = vsel %vm526, %v1094, 0
        %v1099 = vsel %vm526, %v1096, 0
        %1101 = vmatpush.xpose.msra.mxu0 0.0
        %1102 = vmatpush.xpose.msra.mxu0 0.0
        %1103 = vmatpush.xpose.msra.mxu0 0.0
        %1104 = vmatpush.xpose.msra.mxu0 0.0
        %1105 = vmatpush.xpose.msra.mxu0 0.0
        %1106 = vmatpush.xpose.msra.mxu0 0.0
        %1107 = vmatpush.xpose.msra.mxu0 0.0
        %1108 = vmatpush.xpose.msra.mxu0 0.0
        %1109 = vmatpush.xpose.msra.mxu0 0.0
        %1110 = vmatpush.xpose.msra.mxu0 0.0
        %1111 = vmatpush.xpose.msra.mxu0 0.0
        %1112 = vmatpush.xpose.msra.mxu0 0.0
        %1113 = vmatpush.xpose.msra.mxu0 0.0
        %1114 = vmatpush.xpose.msra.mxu0 0.0
        %1115 = vmatpush.xpose.msra.mxu0 0.0
        %1116 = vmatpush.xpose.msra.mxu0 %v1099
        %1117 = vmatmul.f32.gmra.mxu0 %v1097
        %v1118 = vpop.f32.mrf.mxu0
        %v1119 = vadd.f32 0.0, %v1118
        %1120 = vdwg.mxu0
        %v1121 = vmul.f32 %v1119, 0.5
        %v1122 = vsel %vm552, %v1121, -inf
        %1123 = vmax.xlane.f32.xlu0 %v1122
        %v1124 = vpop.xlane.xlu0 %1123
        %v1125 = vsub.f32 %v1121, %v1124
        %v1126 = vmul.f32 %v1125, 1.442695
        %v1127 = vpow.pop %v1126
        %v1128 = vsel %vm552, %v1127, 0.0
        %1129 = vadd.xlane.f32.xlu0 %v1128
        %v1130 = vpop.xlane.xlu0 %1129
        %v1131 = vrcp.pop %v1130
        %v1132 = vmul.f32 %v1127, %v1131
        %1133 = vrot.lane.b32.xlu0 %v520, 96
        %v1134 = vpop.permute.xlu0 %1133
        %v1137 = vsel %vm552, %v1132, 0
        %1139 = vmatpush.msra.mxu0 0.0
        %1140 = vmatpush.msra.mxu0 0.0
        %1141 = vmatpush.msra.mxu0 0.0
        %1142 = vmatpush.msra.mxu0 0.0
        %1143 = vmatpush.msra.mxu0 0.0
        %1144 = vmatpush.msra.mxu0 0.0
        %1145 = vmatpush.msra.mxu0 0.0
        %1146 = vmatpush.msra.mxu0 0.0
        %1147 = vmatpush.msra.mxu0 0.0
        %1148 = vmatpush.msra.mxu0 0.0
        %1149 = vmatpush.msra.mxu0 0.0
        %1150 = vmatpush.msra.mxu0 0.0
        %1151 = vmatpush.msra.mxu0 0.0
        %1152 = vmatpush.msra.mxu0 0.0
        %1153 = vmatpush.msra.mxu0 0.0
        %1154 = vmatpush.msra.mxu0 %v1134
        %1155 = vmatmul.f32.gmra.mxu0 %v1137
        %v1156 = vpop.f32.mrf.mxu0
        %v1157 = vadd.f32 0.0, %v1156
        %1158 = vdwg.mxu0
        %1160 = vrot.lane.b32.xlu0 %v1157, 32
        %v1161 = vpop.permute.xlu0 %1160
        %vm1163 = vcmask 294144
        %1164 = vst.msk [vmem:[#allocation2] sm:$0xff] %vm1163, %v1161
        %1165 = vrot.lane.b32.xlu0 %v507, 92
        %v1166 = vpop.permute.xlu0 %1165
        %1167 = vrot.lane.b32.xlu0 %v507, 28
        %v1168 = vpop.permute.xlu0 %1167
        %v1169 = vsel %vm526, %v1166, 0
        %v1171 = vsel %vm526, %v1168, 0
        %1173 = vmatpush.xpose.msra.mxu0 0.0
        %1174 = vmatpush.xpose.msra.mxu0 0.0
        %1175 = vmatpush.xpose.msra.mxu0 0.0
        %1176 = vmatpush.xpose.msra.mxu0 0.0
        %1177 = vmatpush.xpose.msra.mxu0 0.0
        %1178 = vmatpush.xpose.msra.mxu0 0.0
        %1179 = vmatpush.xpose.msra.mxu0 0.0
        %1180 = vmatpush.xpose.msra.mxu0 0.0
        %1181 = vmatpush.xpose.msra.mxu0 0.0
        %1182 = vmatpush.xpose.msra.mxu0 0.0
        %1183 = vmatpush.xpose.msra.mxu0 0.0
        %1184 = vmatpush.xpose.msra.mxu0 0.0
        %1185 = vmatpush.xpose.msra.mxu0 0.0
        %1186 = vmatpush.xpose.msra.mxu0 0.0
        %1187 = vmatpush.xpose.msra.mxu0 0.0
        %1188 = vmatpush.xpose.msra.mxu0 %v1171
        %1189 = vmatmul.f32.gmra.mxu0 %v1169
        %v1190 = vpop.f32.mrf.mxu0
        %v1191 = vadd.f32 0.0, %v1190
        %1192 = vdwg.mxu0
        %v1193 = vmul.f32 %v1191, 0.5
        %v1194 = vsel %vm552, %v1193, -inf
        %1195 = vmax.xlane.f32.xlu0 %v1194
        %v1196 = vpop.xlane.xlu0 %1195
        %v1197 = vsub.f32 %v1193, %v1196
        %v1198 = vmul.f32 %v1197, 1.442695
        %v1199 = vpow.pop %v1198
        %v1200 = vsel %vm552, %v1199, 0.0
        %1201 = vadd.xlane.f32.xlu0 %v1200
        %v1202 = vpop.xlane.xlu0 %1201
        %v1203 = vrcp.pop %v1202
        %v1204 = vmul.f32 %v1199, %v1203
        %1205 = vrot.lane.b32.xlu0 %v520, 92
        %v1206 = vpop.permute.xlu0 %1205
        %v1209 = vsel %vm552, %v1204, 0
        %1211 = vmatpush.msra.mxu0 0.0
        %1212 = vmatpush.msra.mxu0 0.0
        %1213 = vmatpush.msra.mxu0 0.0
        %1214 = vmatpush.msra.mxu0 0.0
        %1215 = vmatpush.msra.mxu0 0.0
        %1216 = vmatpush.msra.mxu0 0.0
        %1217 = vmatpush.msra.mxu0 0.0
        %1218 = vmatpush.msra.mxu0 0.0
        %1219 = vmatpush.msra.mxu0 0.0
        %1220 = vmatpush.msra.mxu0 0.0
        %1221 = vmatpush.msra.mxu0 0.0
        %1222 = vmatpush.msra.mxu0 0.0
        %1223 = vmatpush.msra.mxu0 0.0
        %1224 = vmatpush.msra.mxu0 0.0
        %1225 = vmatpush.msra.mxu0 0.0
        %1226 = vmatpush.msra.mxu0 %v1206
        %1227 = vmatmul.f32.gmra.mxu0 %v1209
        %v1228 = vpop.f32.mrf.mxu0
        %v1229 = vadd.f32 0.0, %v1228
        %1230 = vdwg.mxu0
        %1232 = vrot.lane.b32.xlu0 %v1229, 36
        %v1233 = vpop.permute.xlu0 %1232
        %vm1235 = vcmask 326944
        %1236 = vst.msk [vmem:[#allocation2] sm:$0xff] %vm1235, %v1233
        %1237 = vrot.lane.b32.xlu0 %v507, 88
        %v1238 = vpop.permute.xlu0 %1237
        %1239 = vrot.lane.b32.xlu0 %v507, 24
        %v1240 = vpop.permute.xlu0 %1239
        %v1241 = vsel %vm526, %v1238, 0
        %v1243 = vsel %vm526, %v1240, 0
        %1245 = vmatpush.xpose.msra.mxu0 0.0
        %1246 = vmatpush.xpose.msra.mxu0 0.0
        %1247 = vmatpush.xpose.msra.mxu0 0.0
        %1248 = vmatpush.xpose.msra.mxu0 0.0
        %1249 = vmatpush.xpose.msra.mxu0 0.0
        %1250 = vmatpush.xpose.msra.mxu0 0.0
        %1251 = vmatpush.xpose.msra.mxu0 0.0
        %1252 = vmatpush.xpose.msra.mxu0 0.0
        %1253 = vmatpush.xpose.msra.mxu0 0.0
        %1254 = vmatpush.xpose.msra.mxu0 0.0
        %1255 = vmatpush.xpose.msra.mxu0 0.0
        %1256 = vmatpush.xpose.msra.mxu0 0.0
        %1257 = vmatpush.xpose.msra.mxu0 0.0
        %1258 = vmatpush.xpose.msra.mxu0 0.0
        %1259 = vmatpush.xpose.msra.mxu0 0.0
        %1260 = vmatpush.xpose.msra.mxu0 %v1243
        %1261 = vmatmul.f32.gmra.mxu0 %v1241
        %v1262 = vpop.f32.mrf.mxu0
        %v1263 = vadd.f32 0.0, %v1262
        %1264 = vdwg.mxu0
        %v1265 = vmul.f32 %v1263, 0.5
        %v1266 = vsel %vm552, %v1265, -inf
        %1267 = vmax.xlane.f32.xlu0 %v1266
        %v1268 = vpop.xlane.xlu0 %1267
        %v1269 = vsub.f32 %v1265, %v1268
        %v1270 = vmul.f32 %v1269, 1.442695
        %v1271 = vpow.pop %v1270
        %v1272 = vsel %vm552, %v1271, 0.0
        %1273 = vadd.xlane.f32.xlu0 %v1272
        %v1274 = vpop.xlane.xlu0 %1273
        %v1275 = vrcp.pop %v1274
        %v1276 = vmul.f32 %v1271, %v1275
        %1277 = vrot.lane.b32.xlu0 %v520, 88
        %v1278 = vpop.permute.xlu0 %1277
        %v1281 = vsel %vm552, %v1276, 0
        %1283 = vmatpush.msra.mxu0 0.0
        %1284 = vmatpush.msra.mxu0 0.0
        %1285 = vmatpush.msra.mxu0 0.0
        %1286 = vmatpush.msra.mxu0 0.0
        %1287 = vmatpush.msra.mxu0 0.0
        %1288 = vmatpush.msra.mxu0 0.0
        %1289 = vmatpush.msra.mxu0 0.0
        %1290 = vmatpush.msra.mxu0 0.0
        %1291 = vmatpush.msra.mxu0 0.0
        %1292 = vmatpush.msra.mxu0 0.0
        %1293 = vmatpush.msra.mxu0 0.0
        %1294 = vmatpush.msra.mxu0 0.0
        %1295 = vmatpush.msra.mxu0 0.0
        %1296 = vmatpush.msra.mxu0 0.0
        %1297 = vmatpush.msra.mxu0 0.0
        %1298 = vmatpush.msra.mxu0 %v1278
        %1299 = vmatmul.f32.gmra.mxu0 %v1281
        %v1300 = vpop.f32.mrf.mxu0
        %v1301 = vadd.f32 0.0, %v1300
        %1302 = vdwg.mxu0
        %1304 = vrot.lane.b32.xlu0 %v1301, 40
        %v1305 = vpop.permute.xlu0 %1304
        %vm1307 = vcmask 359744
        %1308 = vst.msk [vmem:[#allocation2] sm:$0xff] %vm1307, %v1305
        %1309 = vrot.lane.b32.xlu0 %v507, 84
        %v1310 = vpop.permute.xlu0 %1309
        %1311 = vrot.lane.b32.xlu0 %v507, 20
        %v1312 = vpop.permute.xlu0 %1311
        %v1313 = vsel %vm526, %v1310, 0
        %v1315 = vsel %vm526, %v1312, 0
        %1317 = vmatpush.xpose.msra.mxu0 0.0
        %1318 = vmatpush.xpose.msra.mxu0 0.0
        %1319 = vmatpush.xpose.msra.mxu0 0.0
        %1320 = vmatpush.xpose.msra.mxu0 0.0
        %1321 = vmatpush.xpose.msra.mxu0 0.0
        %1322 = vmatpush.xpose.msra.mxu0 0.0
        %1323 = vmatpush.xpose.msra.mxu0 0.0
        %1324 = vmatpush.xpose.msra.mxu0 0.0
        %1325 = vmatpush.xpose.msra.mxu0 0.0
        %1326 = vmatpush.xpose.msra.mxu0 0.0
        %1327 = vmatpush.xpose.msra.mxu0 0.0
        %1328 = vmatpush.xpose.msra.mxu0 0.0
        %1329 = vmatpush.xpose.msra.mxu0 0.0
        %1330 = vmatpush.xpose.msra.mxu0 0.0
        %1331 = vmatpush.xpose.msra.mxu0 0.0
        %1332 = vmatpush.xpose.msra.mxu0 %v1315
        %1333 = vmatmul.f32.gmra.mxu0 %v1313
        %v1334 = vpop.f32.mrf.mxu0
        %v1335 = vadd.f32 0.0, %v1334
        %1336 = vdwg.mxu0
        %v1337 = vmul.f32 %v1335, 0.5
        %v1338 = vsel %vm552, %v1337, -inf
        %1339 = vmax.xlane.f32.xlu0 %v1338
        %v1340 = vpop.xlane.xlu0 %1339
        %v1341 = vsub.f32 %v1337, %v1340
        %v1342 = vmul.f32 %v1341, 1.442695
        %v1343 = vpow.pop %v1342
        %v1344 = vsel %vm552, %v1343, 0.0
        %1345 = vadd.xlane.f32.xlu0 %v1344
        %v1346 = vpop.xlane.xlu0 %1345
        %v1347 = vrcp.pop %v1346
        %v1348 = vmul.f32 %v1343, %v1347
        %1349 = vrot.lane.b32.xlu0 %v520, 84
        %v1350 = vpop.permute.xlu0 %1349
        %v1353 = vsel %vm552, %v1348, 0
        %1355 = vmatpush.msra.mxu0 0.0
        %1356 = vmatpush.msra.mxu0 0.0
        %1357 = vmatpush.msra.mxu0 0.0
        %1358 = vmatpush.msra.mxu0 0.0
        %1359 = vmatpush.msra.mxu0 0.0
        %1360 = vmatpush.msra.mxu0 0.0
        %1361 = vmatpush.msra.mxu0 0.0
        %1362 = vmatpush.msra.mxu0 0.0
        %1363 = vmatpush.msra.mxu0 0.0
        %1364 = vmatpush.msra.mxu0 0.0
        %1365 = vmatpush.msra.mxu0 0.0
        %1366 = vmatpush.msra.mxu0 0.0
        %1367 = vmatpush.msra.mxu0 0.0
        %1368 = vmatpush.msra.mxu0 0.0
        %1369 = vmatpush.msra.mxu0 0.0
        %1370 = vmatpush.msra.mxu0 %v1350
        %1371 = vmatmul.f32.gmra.mxu0 %v1353
        %v1372 = vpop.f32.mrf.mxu0
        %v1373 = vadd.f32 0.0, %v1372
        %1374 = vdwg.mxu0
        %1376 = vrot.lane.b32.xlu0 %v1373, 44
        %v1377 = vpop.permute.xlu0 %1376
        %vm1379 = vcmask 392544
        %1380 = vst.msk [vmem:[#allocation2] sm:$0xff] %vm1379, %v1377
        %1381 = vrot.lane.b32.xlu0 %v507, 80
        %v1382 = vpop.permute.xlu0 %1381
        %1383 = vrot.lane.b32.xlu0 %v507, 16
        %v1384 = vpop.permute.xlu0 %1383
        %v1385 = vsel %vm526, %v1382, 0
        %v1387 = vsel %vm526, %v1384, 0
        %1389 = vmatpush.xpose.msra.mxu0 0.0
        %1390 = vmatpush.xpose.msra.mxu0 0.0
        %1391 = vmatpush.xpose.msra.mxu0 0.0
        %1392 = vmatpush.xpose.msra.mxu0 0.0
        %1393 = vmatpush.xpose.msra.mxu0 0.0
        %1394 = vmatpush.xpose.msra.mxu0 0.0
        %1395 = vmatpush.xpose.msra.mxu0 0.0
        %1396 = vmatpush.xpose.msra.mxu0 0.0
        %1397 = vmatpush.xpose.msra.mxu0 0.0
        %1398 = vmatpush.xpose.msra.mxu0 0.0
        %1399 = vmatpush.xpose.msra.mxu0 0.0
        %1400 = vmatpush.xpose.msra.mxu0 0.0
        %1401 = vmatpush.xpose.msra.mxu0 0.0
        %1402 = vmatpush.xpose.msra.mxu0 0.0
        %1403 = vmatpush.xpose.msra.mxu0 0.0
        %1404 = vmatpush.xpose.msra.mxu0 %v1387
        %1405 = vmatmul.f32.gmra.mxu0 %v1385
        %v1406 = vpop.f32.mrf.mxu0
        %v1407 = vadd.f32 0.0, %v1406
        %1408 = vdwg.mxu0
        %v1409 = vmul.f32 %v1407, 0.5
        %v1410 = vsel %vm552, %v1409, -inf
        %1411 = vmax.xlane.f32.xlu0 %v1410
        %v1412 = vpop.xlane.xlu0 %1411
        %v1413 = vsub.f32 %v1409, %v1412
        %v1414 = vmul.f32 %v1413, 1.442695
        %v1415 = vpow.pop %v1414
        %v1416 = vsel %vm552, %v1415, 0.0
        %1417 = vadd.xlane.f32.xlu0 %v1416
        %v1418 = vpop.xlane.xlu0 %1417
        %v1419 = vrcp.pop %v1418
        %v1420 = vmul.f32 %v1415, %v1419
        %1421 = vrot.lane.b32.xlu0 %v520, 80
        %v1422 = vpop.permute.xlu0 %1421
        %v1425 = vsel %vm552, %v1420, 0
        %1427 = vmatpush.msra.mxu0 0.0
        %1428 = vmatpush.msra.mxu0 0.0
        %1429 = vmatpush.msra.mxu0 0.0
        %1430 = vmatpush.msra.mxu0 0.0
        %1431 = vmatpush.msra.mxu0 0.0
        %1432 = vmatpush.msra.mxu0 0.0
        %1433 = vmatpush.msra.mxu0 0.0
        %1434 = vmatpush.msra.mxu0 0.0
        %1435 = vmatpush.msra.mxu0 0.0
        %1436 = vmatpush.msra.mxu0 0.0
        %1437 = vmatpush.msra.mxu0 0.0
        %1438 = vmatpush.msra.mxu0 0.0
        %1439 = vmatpush.msra.mxu0 0.0
        %1440 = vmatpush.msra.mxu0 0.0
        %1441 = vmatpush.msra.mxu0 0.0
        %1442 = vmatpush.msra.mxu0 %v1422
        %1443 = vmatmul.f32.gmra.mxu0 %v1425
        %v1444 = vpop.f32.mrf.mxu0
        %v1445 = vadd.f32 0.0, %v1444
        %1446 = vdwg.mxu0
        %1448 = vrot.lane.b32.xlu0 %v1445, 48
        %v1449 = vpop.permute.xlu0 %1448
        %vm1451 = vcmask 425344
        %1452 = vst.msk [vmem:[#allocation2] sm:$0xff] %vm1451, %v1449
        %1453 = vrot.lane.b32.xlu0 %v507, 76
        %v1454 = vpop.permute.xlu0 %1453
        %1455 = vrot.lane.b32.xlu0 %v507, 12
        %v1456 = vpop.permute.xlu0 %1455
        %v1457 = vsel %vm526, %v1454, 0
        %v1459 = vsel %vm526, %v1456, 0
        %1461 = vmatpush.xpose.msra.mxu0 0.0
        %1462 = vmatpush.xpose.msra.mxu0 0.0
        %1463 = vmatpush.xpose.msra.mxu0 0.0
        %1464 = vmatpush.xpose.msra.mxu0 0.0
        %1465 = vmatpush.xpose.msra.mxu0 0.0
        %1466 = vmatpush.xpose.msra.mxu0 0.0
        %1467 = vmatpush.xpose.msra.mxu0 0.0
        %1468 = vmatpush.xpose.msra.mxu0 0.0
        %1469 = vmatpush.xpose.msra.mxu0 0.0
        %1470 = vmatpush.xpose.msra.mxu0 0.0
        %1471 = vmatpush.xpose.msra.mxu0 0.0
        %1472 = vmatpush.xpose.msra.mxu0 0.0
        %1473 = vmatpush.xpose.msra.mxu0 0.0
        %1474 = vmatpush.xpose.msra.mxu0 0.0
        %1475 = vmatpush.xpose.msra.mxu0 0.0
        %1476 = vmatpush.xpose.msra.mxu0 %v1459
        %1477 = vmatmul.f32.gmra.mxu0 %v1457
        %v1478 = vpop.f32.mrf.mxu0
        %v1479 = vadd.f32 0.0, %v1478
        %1480 = vdwg.mxu0
        %v1481 = vmul.f32 %v1479, 0.5
        %v1482 = vsel %vm552, %v1481, -inf
        %1483 = vmax.xlane.f32.xlu0 %v1482
        %v1484 = vpop.xlane.xlu0 %1483
        %v1485 = vsub.f32 %v1481, %v1484
        %v1486 = vmul.f32 %v1485, 1.442695
        %v1487 = vpow.pop %v1486
        %v1488 = vsel %vm552, %v1487, 0.0
        %1489 = vadd.xlane.f32.xlu0 %v1488
        %v1490 = vpop.xlane.xlu0 %1489
        %v1491 = vrcp.pop %v1490
        %v1492 = vmul.f32 %v1487, %v1491
        %1493 = vrot.lane.b32.xlu0 %v520, 76
        %v1494 = vpop.permute.xlu0 %1493
        %v1497 = vsel %vm552, %v1492, 0
        %1499 = vmatpush.msra.mxu0 0.0
        %1500 = vmatpush.msra.mxu0 0.0
        %1501 = vmatpush.msra.mxu0 0.0
        %1502 = vmatpush.msra.mxu0 0.0
        %1503 = vmatpush.msra.mxu0 0.0
        %1504 = vmatpush.msra.mxu0 0.0
        %1505 = vmatpush.msra.mxu0 0.0
        %1506 = vmatpush.msra.mxu0 0.0
        %1507 = vmatpush.msra.mxu0 0.0
        %1508 = vmatpush.msra.mxu0 0.0
        %1509 = vmatpush.msra.mxu0 0.0
        %1510 = vmatpush.msra.mxu0 0.0
        %1511 = vmatpush.msra.mxu0 0.0
        %1512 = vmatpush.msra.mxu0 0.0
        %1513 = vmatpush.msra.mxu0 0.0
        %1514 = vmatpush.msra.mxu0 %v1494
        %1515 = vmatmul.f32.gmra.mxu0 %v1497
        %v1516 = vpop.f32.mrf.mxu0
        %v1517 = vadd.f32 0.0, %v1516
        %1518 = vdwg.mxu0
        %1520 = vrot.lane.b32.xlu0 %v1517, 52
        %v1521 = vpop.permute.xlu0 %1520
        %vm1523 = vcmask 458144
        %1524 = vst.msk [vmem:[#allocation2] sm:$0xff] %vm1523, %v1521
        %1525 = vrot.lane.b32.xlu0 %v507, 72
        %v1526 = vpop.permute.xlu0 %1525
        %1527 = vrot.lane.b32.xlu0 %v507, 8
        %v1528 = vpop.permute.xlu0 %1527
        %v1529 = vsel %vm526, %v1526, 0
        %v1531 = vsel %vm526, %v1528, 0
        %1533 = vmatpush.xpose.msra.mxu0 0.0
        %1534 = vmatpush.xpose.msra.mxu0 0.0
        %1535 = vmatpush.xpose.msra.mxu0 0.0
        %1536 = vmatpush.xpose.msra.mxu0 0.0
        %1537 = vmatpush.xpose.msra.mxu0 0.0
        %1538 = vmatpush.xpose.msra.mxu0 0.0
        %1539 = vmatpush.xpose.msra.mxu0 0.0
        %1540 = vmatpush.xpose.msra.mxu0 0.0
        %1541 = vmatpush.xpose.msra.mxu0 0.0
        %1542 = vmatpush.xpose.msra.mxu0 0.0
        %1543 = vmatpush.xpose.msra.mxu0 0.0
        %1544 = vmatpush.xpose.msra.mxu0 0.0
        %1545 = vmatpush.xpose.msra.mxu0 0.0
        %1546 = vmatpush.xpose.msra.mxu0 0.0
        %1547 = vmatpush.xpose.msra.mxu0 0.0
        %1548 = vmatpush.xpose.msra.mxu0 %v1531
        %1549 = vmatmul.f32.gmra.mxu0 %v1529
        %v1550 = vpop.f32.mrf.mxu0
        %v1551 = vadd.f32 0.0, %v1550
        %1552 = vdwg.mxu0
        %v1553 = vmul.f32 %v1551, 0.5
        %v1554 = vsel %vm552, %v1553, -inf
        %1555 = vmax.xlane.f32.xlu0 %v1554
        %v1556 = vpop.xlane.xlu0 %1555
        %v1557 = vsub.f32 %v1553, %v1556
        %v1558 = vmul.f32 %v1557, 1.442695
        %v1559 = vpow.pop %v1558
        %v1560 = vsel %vm552, %v1559, 0.0
        %1561 = vadd.xlane.f32.xlu0 %v1560
        %v1562 = vpop.xlane.xlu0 %1561
        %v1563 = vrcp.pop %v1562
        %v1564 = vmul.f32 %v1559, %v1563
        %1565 = vrot.lane.b32.xlu0 %v520, 72
        %v1566 = vpop.permute.xlu0 %1565
        %v1569 = vsel %vm552, %v1564, 0
        %1571 = vmatpush.msra.mxu0 0.0
        %1572 = vmatpush.msra.mxu0 0.0
        %1573 = vmatpush.msra.mxu0 0.0
        %1574 = vmatpush.msra.mxu0 0.0
        %1575 = vmatpush.msra.mxu0 0.0
        %1576 = vmatpush.msra.mxu0 0.0
        %1577 = vmatpush.msra.mxu0 0.0
        %1578 = vmatpush.msra.mxu0 0.0
        %1579 = vmatpush.msra.mxu0 0.0
        %1580 = vmatpush.msra.mxu0 0.0
        %1581 = vmatpush.msra.mxu0 0.0
        %1582 = vmatpush.msra.mxu0 0.0
        %1583 = vmatpush.msra.mxu0 0.0
        %1584 = vmatpush.msra.mxu0 0.0
        %1585 = vmatpush.msra.mxu0 0.0
        %1586 = vmatpush.msra.mxu0 %v1566
        %1587 = vmatmul.f32.gmra.mxu0 %v1569
        %v1588 = vpop.f32.mrf.mxu0
        %v1589 = vadd.f32 0.0, %v1588
        %1590 = vdwg.mxu0
        %1592 = vrot.lane.b32.xlu0 %v1589, 56
        %v1593 = vpop.permute.xlu0 %1592
        %vm1595 = vcmask 490944
        %1596 = vst.msk [vmem:[#allocation2] sm:$0xff] %vm1595, %v1593
        %1597 = vrot.lane.b32.xlu0 %v507, 68
        %v1598 = vpop.permute.xlu0 %1597
        %1599 = vrot.lane.b32.xlu0 %v507, 4
        %v1600 = vpop.permute.xlu0 %1599
        %v1601 = vsel %vm526, %v1598, 0
        %v1603 = vsel %vm526, %v1600, 0
        %1605 = vmatpush.xpose.msra.mxu0 0.0
        %1606 = vmatpush.xpose.msra.mxu0 0.0
        %1607 = vmatpush.xpose.msra.mxu0 0.0
        %1608 = vmatpush.xpose.msra.mxu0 0.0
        %1609 = vmatpush.xpose.msra.mxu0 0.0
        %1610 = vmatpush.xpose.msra.mxu0 0.0
        %1611 = vmatpush.xpose.msra.mxu0 0.0
        %1612 = vmatpush.xpose.msra.mxu0 0.0
        %1613 = vmatpush.xpose.msra.mxu0 0.0
        %1614 = vmatpush.xpose.msra.mxu0 0.0
        %1615 = vmatpush.xpose.msra.mxu0 0.0
        %1616 = vmatpush.xpose.msra.mxu0 0.0
        %1617 = vmatpush.xpose.msra.mxu0 0.0
        %1618 = vmatpush.xpose.msra.mxu0 0.0
        %1619 = vmatpush.xpose.msra.mxu0 0.0
        %1620 = vmatpush.xpose.msra.mxu0 %v1603
        %1621 = vmatmul.f32.gmra.mxu0 %v1601
        %v1622 = vpop.f32.mrf.mxu0
        %v1623 = vadd.f32 0.0, %v1622
        %1624 = vdwg.mxu0
        %v1625 = vmul.f32 %v1623, 0.5
        %v1626 = vsel %vm552, %v1625, -inf
        %1627 = vmax.xlane.f32.xlu0 %v1626
        %v1628 = vpop.xlane.xlu0 %1627
        %v1629 = vsub.f32 %v1625, %v1628
        %v1630 = vmul.f32 %v1629, 1.442695
        %v1631 = vpow.pop %v1630
        %v1632 = vsel %vm552, %v1631, 0.0
        %1633 = vadd.xlane.f32.xlu0 %v1632
        %v1634 = vpop.xlane.xlu0 %1633
        %v1635 = vrcp.pop %v1634
        %v1636 = vmul.f32 %v1631, %v1635
        %1637 = vrot.lane.b32.xlu0 %v520, 68
        %v1638 = vpop.permute.xlu0 %1637
        %v1641 = vsel %vm552, %v1636, 0
        %1643 = vmatpush.msra.mxu0 0.0
        %1644 = vmatpush.msra.mxu0 0.0
        %1645 = vmatpush.msra.mxu0 0.0
        %1646 = vmatpush.msra.mxu0 0.0
        %1647 = vmatpush.msra.mxu0 0.0
        %1648 = vmatpush.msra.mxu0 0.0
        %1649 = vmatpush.msra.mxu0 0.0
        %1650 = vmatpush.msra.mxu0 0.0
        %1651 = vmatpush.msra.mxu0 0.0
        %1652 = vmatpush.msra.mxu0 0.0
        %1653 = vmatpush.msra.mxu0 0.0
        %1654 = vmatpush.msra.mxu0 0.0
        %1655 = vmatpush.msra.mxu0 0.0
        %1656 = vmatpush.msra.mxu0 0.0
        %1657 = vmatpush.msra.mxu0 0.0
        %1658 = vmatpush.msra.mxu0 %v1638
        %1659 = vmatmul.f32.gmra.mxu0 %v1641
        %v1660 = vpop.f32.mrf.mxu0
        %v1661 = vadd.f32 0.0, %v1660
        %1662 = vdwg.mxu0
        %1664 = vrot.lane.b32.xlu0 %v1661, 60
        %v1665 = vpop.permute.xlu0 %1664
        %vm1667 = vcmask 523744
        %1668 = vst.msk [vmem:[#allocation2] sm:$0xff] %vm1667, %v1665
        %v1669 = vld [vmem:[#allocation2] sm:$0xff]
        %v1670 = vpack.c.bf16 %v1669, %v1669
        %v1671 = vld [vmem:[%s3] sm:$0xf]
        %v1672 = vld [vmem:[%s3 + $0x4] sm:$0xf]
        %v1673 = vld [vmem:[%s3 + $0x8] sm:$0xf]
        %v1674 = vld [vmem:[%s3 + $0xc] sm:$0xf]
        %v1675 = vld [vmem:[%s3 + $0x10] sm:$0xf]
        %v1676 = vld [vmem:[%s3 + $0x14] sm:$0xf]
        %v1677 = vld [vmem:[%s3 + $0x18] sm:$0xf]
        %v1678 = vld [vmem:[%s3 + $0x1c] sm:$0xf]
        %v1679 = vld [vmem:[%s4] sm:$0x1]
        %v1681 = vperm.slane %v1679, 0
        %v1691 = vunpack.c.l.b16 %v1671
        %v1692 = vunpack.c.l.b16 %v1672
        %v1693 = vunpack.c.l.b16 %v1673
        %v1694 = vunpack.c.l.b16 %v1674
        %v1695 = vunpack.c.l.b16 %v1675
        %v1696 = vunpack.c.l.b16 %v1676
        %v1697 = vunpack.c.l.b16 %v1677
        %v1698 = vunpack.c.l.b16 %v1678
        %v1699 = vpack.c.b16 %v1692, %v1691
        %v1700 = vpack.c.b16 %v1694, %v1693
        %v1701 = vpack.c.b16 %v1696, %v1695
        %v1702 = vpack.c.b16 %v1698, %v1697
        %v1708 = vsel %vm493, %v1670, 0
        %1710 = vmatpush.bf16.msra.mxu0 0
        %1711 = vmatpush.bf16.msra.mxu0 0
        %1712 = vmatpush.bf16.msra.mxu0 0
        %1713 = vmatpush.bf16.msra.mxu0 0
        %1714 = vmatpush.bf16.msra.mxu0 %v1702
        %1715 = vmatpush.bf16.msra.mxu0 %v1701
        %1716 = vmatpush.bf16.msra.mxu0 %v1700
        %1717 = vmatpush.bf16.msra.mxu0 %v1699
        %1718 = vmatmul.bf16.gmra.mxu0 %v1708
        %v1719 = vpop.f32.mrf.mxu0
        %v1720 = vadd.f32 %v1681, %v1719
        %v1721 = vpop.f32.mrf.mxu0
        %1722 = vdwg.mxu0
        %v1723 = vadd.f32 %v1720, %v437
        %v1724 = vld [vmem:[%s5] sm:$0x1]
        %v1725 = vld [vmem:[%s6] sm:$0x1]
        %v1726 = vsel %vm493, %v1723, 0.0
        %1727 = vadd.xlane.f32.xlu0 %v1726
        %v1728 = vpop.xlane.xlu0 %1727
        %v1729 = vrcp.pop 64.0
        %v1730 = vmul.f32 64.0, %v1729
        %v1731 = vsub.f32 1.0, %v1730
        %v1732 = vmul.f32 %v1729, %v1731
        %v1733 = vadd.f32 %v1729, %v1732
        %vm1734 = vweird.f32 %v1729
        %v1735 = vsel %vm1734, %v1729, %v1733
        %v1736 = vmul.f32 %v1728, %v1735
        %v1737 = vsub.f32 %v1723, %v1736
        %v1738 = vmul.f32 %v1737, %v1737
        %v1739 = vsel %vm493, %v1738, 0.0
        %1740 = vadd.xlane.f32.xlu0 %v1739
        %v1741 = vpop.xlane.xlu0 %1740
        %v1742 = vmul.f32 %v1741, %v1735
        %v1743 = vadd.f32 %v1742, 1e-12
        %v1744 = vrsqrt.pop %v1743
        %v1745 = vmul.f32 %v1744, %v1743
        %v1746 = vmul.f32 %v1745, %v1744
        %v1747 = vmul.f32 0.5, %v1746
        %v1748 = vsub.f32 1.5, %v1747
        %v1749 = vmul.f32 %v1744, %v1748
        %vm1750 = vweird.f32 %v1743
        %vm1751 = vweird.f32 %v1744
        %vm1752 = vmor %vm1750, %vm1751
        %v1753 = vsel %vm1752, %v1744, %v1749
        %v1754 = vmul.f32 %v1737, %v1753
        %v1756 = vperm.slane %v1724, 0
        %v1758 = vmul.f32 %v1754, %v1756
        %v1760 = vperm.slane %v1725, 0
        %v1762 = vadd.f32 %v1758, %v1760
        %v1763 = vpack.c.bf16 %v1762, %v1762
        %v1764 = vld [vmem:[%s7] sm:$0xff]
        %v1765 = vld [vmem:[%s7 + $0x8] sm:$0xff]
        %v1766 = vld [vmem:[%s7 + $0x10] sm:$0xff]
        %v1767 = vld [vmem:[%s7 + $0x18] sm:$0xff]
        %v1768 = vld [vmem:[%s7 + $0x20] sm:$0xff]
        %v1769 = vld [vmem:[%s7 + $0x28] sm:$0xff]
        %v1770 = vld [vmem:[%s7 + $0x30] sm:$0xff]
        %v1771 = vld [vmem:[%s7 + $0x38] sm:$0xff]
        %v1772 = vld [vmem:[%s8] sm:$0x3]
        %v1774 = vperm.slane %v1772, 0
        %v1775 = vperm.slane %v1772, 1
        %v1786 = vunpack.c.l.b16 %v1764
        %v1787 = vunpack.c.h.b16 %v1764
        %v1788 = vunpack.c.l.b16 %v1765
        %v1789 = vunpack.c.h.b16 %v1765
        %v1790 = vunpack.c.l.b16 %v1766
        %v1791 = vunpack.c.h.b16 %v1766
        %v1792 = vunpack.c.l.b16 %v1767
        %v1793 = vunpack.c.h.b16 %v1767
        %v1794 = vunpack.c.l.b16 %v1768
        %v1795 = vunpack.c.h.b16 %v1768
        %v1796 = vunpack.c.l.b16 %v1769
        %v1797 = vunpack.c.h.b16 %v1769
        %v1798 = vunpack.c.l.b16 %v1770
        %v1799 = vunpack.c.h.b16 %v1770
        %v1800 = vunpack.c.l.b16 %v1771
        %v1801 = vunpack.c.h.b16 %v1771
        %v1802 = vpack.c.b16 %v1788, %v1786
        %v1803 = vpack.c.b16 %v1789, %v1787
        %v1804 = vpack.c.b16 %v1792, %v1790
        %v1805 = vpack.c.b16 %v1793, %v1791
        %v1806 = vpack.c.b16 %v1796, %v1794
        %v1807 = vpack.c.b16 %v1797, %v1795
        %v1808 = vpack.c.b16 %v1800, %v1798
        %v1809 = vpack.c.b16 %v1801, %v1799
        %v1819 = vsel %vm493, %v1763, 0
        %1821 = vmatpush.bf16.msra.mxu0 0
        %1822 = vmatpush.bf16.msra.mxu0 0
        %1823 = vmatpush.bf16.msra.mxu0 0
        %1824 = vmatpush.bf16.msra.mxu0 0
        %1825 = vmatpush.bf16.msra.mxu0 %v1808
        %1826 = vmatpush.bf16.msra.mxu0 %v1806
        %1827 = vmatpush.bf16.msra.mxu0 %v1804
        %1828 = vmatpush.bf16.msra.mxu0 %v1802
        %1829 = vmatmul.bf16.gmra.mxu0 %v1819
        %v1830 = vpop.f32.mrf.mxu0
        %v1831 = vadd.f32 %v1774, %v1830
        %v1832 = vpop.f32.mrf.mxu0
        %1833 = vdwg.mxu0
        %1834 = vmatpush.bf16.msra.mxu0 0
        %1835 = vmatpush.bf16.msra.mxu0 0
        %1836 = vmatpush.bf16.msra.mxu0 0
        %1837 = vmatpush.bf16.msra.mxu0 0
        %1838 = vmatpush.bf16.msra.mxu0 %v1809
        %1839 = vmatpush.bf16.msra.mxu0 %v1807
        %1840 = vmatpush.bf16.msra.mxu0 %v1805
        %1841 = vmatpush.bf16.msra.mxu0 %v1803
        %1842 = vmatmul.bf16.gmra.mxu0 %v1819
        %v1843 = vpop.f32.mrf.mxu0
        %v1844 = vadd.f32 %v1775, %v1843
        %v1845 = vpop.f32.mrf.mxu0
        %1846 = vdwg.mxu0
        %v1847 = vmul.f32 %v1831, 0.5
        %v1848 = vmul.f32 %v1844, 0.5
        %v1849 = vmul.f32 %v1831, 0.70710677
        %v1850 = vmul.f32 %v1844, 0.70710677
        %v1851 = vand.u32 2147483647, %v1849
        %v1852 = vand.u32 2147483647, %v1850
        %v1853 = vmul.f32 %v1851, 0.3275911
        %v1854 = vmul.f32 %v1852, 0.3275911
        %v1855 = vadd.f32 %v1853, 1.0
        %v1856 = vadd.f32 %v1854, 1.0
        %v1857 = vrcp.pop %v1855
        %v1858 = vmul.f32 %v1855, %v1857
        %v1859 = vsub.f32 1.0, %v1858
        %v1860 = vmul.f32 %v1857, %v1859
        %v1861 = vadd.f32 %v1857, %v1860
        %vm1862 = vweird.f32 %v1855
        %vm1863 = vweird.f32 %v1857
        %vm1864 = vmor %vm1862, %vm1863
        %v1865 = vsel %vm1864, %v1857, %v1861
        %v1866 = vand.u32 2147483647, %v1855
        %vm1867 = vcmp.eq.f32.partialorder %v1866, 8.507059e+37
        %v1868 = vand.u32 %v1855, 2147483648
        %v1869 = vor.u32 1.1754944e-38, %v1868
        %v1870 = vsel %vm1867, %v1869, %v1865
        %v1871 = vmul.f32 1.0, %v1870
        %v1872 = vrcp.pop %v1856
        %v1873 = vmul.f32 %v1856, %v1872
        %v1874 = vsub.f32 1.0, %v1873
        %v1875 = vmul.f32 %v1872, %v1874
        %v1876 = vadd.f32 %v1872, %v1875
        %vm1877 = vweird.f32 %v1856
        %vm1878 = vweird.f32 %v1872
        %vm1879 = vmor %vm1877, %vm1878
        %v1880 = vsel %vm1879, %v1872, %v1876
        %v1881 = vand.u32 2147483647, %v1856
        %vm1882 = vcmp.eq.f32.partialorder %v1881, 8.507059e+37
        %v1883 = vand.u32 %v1856, 2147483648
        %v1884 = vor.u32 1.1754944e-38, %v1883
        %v1885 = vsel %vm1882, %v1884, %v1880
        %v1886 = vmul.f32 1.0, %v1885
        %v1887 = vmul.f32 %v1871, 1.0614054
        %v1888 = vmul.f32 %v1886, 1.0614054
        %v1889 = vadd.f32 %v1887, -1.4531521
        %v1890 = vadd.f32 %v1888, -1.4531521
        %v1891 = vmul.f32 %v1889, %v1871
        %v1892 = vmul.f32 %v1890, %v1886
        %v1893 = vadd.f32 %v1891, 1.4214138
        %v1894 = vadd.f32 %v1892, 1.4214138
        %v1895 = vmul.f32 %v1893, %v1871
        %v1896 = vmul.f32 %v1894, %v1886
        %v1897 = vadd.f32 %v1895, -0.28449672
        %v1898 = vadd.f32 %v1896, -0.28449672
        %v1899 = vmul.f32 %v1897, %v1871
        %v1900 = vmul.f32 %v1898, %v1886
        %v1901 = vadd.f32 %v1899, 0.2548296
        %v1902 = vadd.f32 %v1900, 0.2548296
        %v1903 = vmul.f32 %v1901, %v1871
        %v1904 = vmul.f32 %v1902, %v1886
        %v1905 = vsub.f32 0.0, %v1851
        %v1906 = vsub.f32 0.0, %v1852
        %v1907 = vmul.f32 %v1905, %v1851
        %v1908 = vmul.f32 %v1906, %v1852
        %v1909 = vmul.f32 %v1907, 1.442695
        %v1910 = vpow.pop %v1909
        %v1911 = vmul.f32 %v1908, 1.442695
        %v1912 = vpow.pop %v1911
        %v1913 = vmul.f32 %v1903, %v1910
        %v1914 = vmul.f32 %v1904, %v1912
        %v1915 = vsub.f32 1.0, %v1913
        %v1916 = vsub.f32 1.0, %v1914
        %vm1917 = vcmp.ge.f32.partialorder %v1849, 0.0
        %vm1918 = vcmp.ge.f32.partialorder %v1850, 0.0
        %v1919 = vsub.f32 0.0, %v1915
        %v1920 = vsub.f32 0.0, %v1916
        %v1921 = vsel %vm1917, %v1915, %v1919
        %v1922 = vsel %vm1918, %v1916, %v1920
        %v1923 = vadd.f32 %v1921, 1.0
        %v1924 = vadd.f32 %v1922, 1.0
        %v1925 = vmul.f32 %v1847, %v1923
        %v1926 = vmul.f32 %v1848, %v1924
        %v1927 = vpack.c.bf16 %v1925, %v1925
        %v1928 = vpack.c.bf16 %v1926, %v1926
        %v1929 = vld [vmem:[%s9] sm:$0xf]
        %v1930 = vld [vmem:[%s9 + $0x4] sm:$0xf]
        %v1931 = vld [vmem:[%s9 + $0x8] sm:$0xf]
        %v1932 = vld [vmem:[%s9 + $0xc] sm:$0xf]
        %v1933 = vld [vmem:[%s9 + $0x10] sm:$0xf]
        %v1934 = vld [vmem:[%s9 + $0x14] sm:$0xf]
        %v1935 = vld [vmem:[%s9 + $0x18] sm:$0xf]
        %v1936 = vld [vmem:[%s9 + $0x1c] sm:$0xf]
        %v1937 = vld [vmem:[%s9 + $0x20] sm:$0xf]
        %v1938 = vld [vmem:[%s9 + $0x24] sm:$0xf]
        %v1939 = vld [vmem:[%s9 + $0x28] sm:$0xf]
        %v1940 = vld [vmem:[%s9 + $0x2c] sm:$0xf]
        %v1941 = vld [vmem:[%s9 + $0x30] sm:$0xf]
        %v1942 = vld [vmem:[%s9 + $0x34] sm:$0xf]
        %v1943 = vld [vmem:[%s9 + $0x38] sm:$0xf]
        %v1944 = vld [vmem:[%s9 + $0x3c] sm:$0xf]
        %v1945 = vld [vmem:[%s9 + $0x40] sm:$0xf]
        %v1946 = vld [vmem:[%s9 + $0x44] sm:$0xf]
        %v1947 = vld [vmem:[%s9 + $0x48] sm:$0xf]
        %v1948 = vld [vmem:[%s9 + $0x4c] sm:$0xf]
        %v1949 = vld [vmem:[%s9 + $0x50] sm:$0xf]
        %v1950 = vld [vmem:[%s9 + $0x54] sm:$0xf]
        %v1951 = vld [vmem:[%s9 + $0x58] sm:$0xf]
        %v1952 = vld [vmem:[%s9 + $0x5c] sm:$0xf]
        %v1953 = vld [vmem:[%s9 + $0x60] sm:$0xf]
        %v1954 = vld [vmem:[%s9 + $0x64] sm:$0xf]
        %v1955 = vld [vmem:[%s9 + $0x68] sm:$0xf]
        %v1956 = vld [vmem:[%s9 + $0x6c] sm:$0xf]
        %v1957 = vld [vmem:[%s9 + $0x70] sm:$0xf]
        %v1958 = vld [vmem:[%s9 + $0x74] sm:$0xf]
        %v1959 = vld [vmem:[%s9 + $0x78] sm:$0xf]
        %v1960 = vld [vmem:[%s9 + $0x7c] sm:$0xf]
        %v1961 = vld [vmem:[%s10] sm:$0x1]
        %v1963 = vperm.slane %v1961, 0
        %v1997 = vunpack.c.l.b16 %v1929
        %v1998 = vunpack.c.l.b16 %v1930
        %v1999 = vunpack.c.l.b16 %v1931
        %v2000 = vunpack.c.l.b16 %v1932
        %v2001 = vunpack.c.l.b16 %v1933
        %v2002 = vunpack.c.l.b16 %v1934
        %v2003 = vunpack.c.l.b16 %v1935
        %v2004 = vunpack.c.l.b16 %v1936
        %v2005 = vunpack.c.l.b16 %v1937
        %v2006 = vunpack.c.l.b16 %v1938
        %v2007 = vunpack.c.l.b16 %v1939
        %v2008 = vunpack.c.l.b16 %v1940
        %v2009 = vunpack.c.l.b16 %v1941
        %v2010 = vunpack.c.l.b16 %v1942
        %v2011 = vunpack.c.l.b16 %v1943
        %v2012 = vunpack.c.l.b16 %v1944
        %v2013 = vunpack.c.l.b16 %v1945
        %v2014 = vunpack.c.l.b16 %v1946
        %v2015 = vunpack.c.l.b16 %v1947
        %v2016 = vunpack.c.l.b16 %v1948
        %v2017 = vunpack.c.l.b16 %v1949
        %v2018 = vunpack.c.l.b16 %v1950
        %v2019 = vunpack.c.l.b16 %v1951
        %v2020 = vunpack.c.l.b16 %v1952
        %v2021 = vunpack.c.l.b16 %v1953
        %v2022 = vunpack.c.l.b16 %v1954
        %v2023 = vunpack.c.l.b16 %v1955
        %v2024 = vunpack.c.l.b16 %v1956
        %v2025 = vunpack.c.l.b16 %v1957
        %v2026 = vunpack.c.l.b16 %v1958
        %v2027 = vunpack.c.l.b16 %v1959
        %v2028 = vunpack.c.l.b16 %v1960
        %v2029 = vpack.c.b16 %v1998, %v1997
        %v2030 = vpack.c.b16 %v2000, %v1999
        %v2031 = vpack.c.b16 %v2002, %v2001
        %v2032 = vpack.c.b16 %v2004, %v2003
        %v2033 = vpack.c.b16 %v2006, %v2005
        %v2034 = vpack.c.b16 %v2008, %v2007
        %v2035 = vpack.c.b16 %v2010, %v2009
        %v2036 = vpack.c.b16 %v2012, %v2011
        %v2037 = vpack.c.b16 %v2014, %v2013
        %v2038 = vpack.c.b16 %v2016, %v2015
        %v2039 = vpack.c.b16 %v2018, %v2017
        %v2040 = vpack.c.b16 %v2020, %v2019
        %v2041 = vpack.c.b16 %v2022, %v2021
        %v2042 = vpack.c.b16 %v2024, %v2023
        %v2043 = vpack.c.b16 %v2026, %v2025
        %v2044 = vpack.c.b16 %v2028, %v2027
        %2061 = vmatpush.bf16.msra.mxu0 %v2036
        %2062 = vmatpush.bf16.msra.mxu0 %v2035
        %2063 = vmatpush.bf16.msra.mxu0 %v2034
        %2064 = vmatpush.bf16.msra.mxu0 %v2033
        %2065 = vmatpush.bf16.msra.mxu0 %v2032
        %2066 = vmatpush.bf16.msra.mxu0 %v2031
        %2067 = vmatpush.bf16.msra.mxu0 %v2030
        %2068 = vmatpush.bf16.msra.mxu0 %v2029
        %2069 = vmatmul.bf16.gmra.mxu0 %v1927
        %v2070 = vpop.f32.mrf.mxu0
        %v2071 = vadd.f32 %v1963, %v2070
        %v2072 = vpop.f32.mrf.mxu0
        %2073 = vdwg.mxu0
        %2074 = vmatpush.bf16.msra.mxu0 %v2044
        %2075 = vmatpush.bf16.msra.mxu0 %v2043
        %2076 = vmatpush.bf16.msra.mxu0 %v2042
        %2077 = vmatpush.bf16.msra.mxu0 %v2041
        %2078 = vmatpush.bf16.msra.mxu0 %v2040
        %2079 = vmatpush.bf16.msra.mxu0 %v2039
        %2080 = vmatpush.bf16.msra.mxu0 %v2038
        %2081 = vmatpush.bf16.msra.mxu0 %v2037
        %2082 = vmatmul.bf16.gmra.mxu0 %v1928
        %v2083 = vpop.f32.mrf.mxu0
        %v2084 = vadd.f32 %v2071, %v2083
        %v2085 = vpop.f32.mrf.mxu0
        %2086 = vdwg.mxu0
        %v2087 = vadd.f32 %v2084, %v1762
        %v2088 = vld [vmem:[%s11] sm:$0x1]
        %v2089 = vld [vmem:[%s12] sm:$0x1]
        %v2090 = vsel %vm493, %v2087, 0.0
        %2091 = vadd.xlane.f32.xlu0 %v2090
        %v2092 = vpop.xlane.xlu0 %2091
        %v2093 = vmul.f32 %v2092, %v1735
        %v2094 = vsub.f32 %v2087, %v2093
        %v2095 = vmul.f32 %v2094, %v2094
        %v2096 = vsel %vm493, %v2095, 0.0
        %2097 = vadd.xlane.f32.xlu0 %v2096
        %v2098 = vpop.xlane.xlu0 %2097
        %v2099 = vmul.f32 %v2098, %v1735
        %v2100 = vadd.f32 %v2099, 1e-12
        %v2101 = vrsqrt.pop %v2100
        %v2102 = vmul.f32 %v2101, %v2100
        %v2103 = vmul.f32 %v2102, %v2101
        %v2104 = vmul.f32 0.5, %v2103
        %v2105 = vsub.f32 1.5, %v2104
        %v2106 = vmul.f32 %v2101, %v2105
        %vm2107 = vweird.f32 %v2100
        %vm2108 = vweird.f32 %v2101
        %vm2109 = vmor %vm2107, %vm2108
        %v2110 = vsel %vm2109, %v2101, %v2106
        %v2111 = vmul.f32 %v2094, %v2110
        %v2113 = vperm.slane %v2088, 0
        %v2115 = vmul.f32 %v2111, %v2113
        %v2117 = vperm.slane %v2089, 0
        %v2119 = vadd.f32 %v2115, %v2117
        %2120 = vst.msk [vmem:[%s431] sm:$0xff] %vm493, %v2119
        %s2121 = sand.u32 %s313, 1
        %s2122 = scalar_lea.sflag [#allocation4], %s2121
        %s2123 = sand.u32 %s313, 1
        %s2124 = smul.addr %s2123, 8
        %s2125 = scalar_lea.vmem [#allocation3], %s2124
        // Predicated region
        $region73: #{_lambda_.3} parent=71 // pred_check
          %p2126 = pneg %p323
        $region74: #{_lambda_.3} parent=71 // pred_check_branch
          %2128 = sbr.rel (%p2126) target = $region76
        $region75: #{_lambda_.3} parent=71 // pred_region
          %2130 = vsyncadd %s2122, 0
          %s2131 = smul.addr %s27, 8
          %s2132 = scalar_lea.hbm %s13, %s2131
          %s2134 = sshll.u32 %s2125, 4
          %s2135 = int_to_ptr.vmem [resolvable:$true] %s2134
          %s2136 = sshll.u32 %s2132, 4
          %s2137 = int_to_ptr.hbm [resolvable:$true] %s2136
          %2139 = dma.vmem_to_hbm [thread:$0]  %s2135, 128, %s2137, %s2122
        $region76: #{_lambda_.3} parent=71 // pred_fallthru
          _
      $region72: #{_lambda_.3} parent=5 // pred_fallthru
        _
      %p2140 = scmp.le.s32.totalorder 2, %s22
      // Predicated region
      $region77: #{_lambda_.3} parent=5 // pred_check
        %p2141 = pneg %p2140
      $region78: #{_lambda_.3} parent=5 // pred_check_branch
        %2143 = sbr.rel (%p2141) target = $region80
      $region79: #{_lambda_.3} parent=5 // pred_region
        %s2144 = ssub.s32 %s22, 2
        // Predicated region
        $region81: #{_lambda_.3} parent=79 // pred_check
          %p2145 = pneg %p329
        $region82: #{_lambda_.3} parent=79 // pred_check_branch
          %2147 = sbr.rel (%p2145) target = $region84
        $region83: #{_lambda_.3} parent=79 // pred_region
          %s2148 = sand.u32 %s314, 1
          %s2149 = scalar_lea.sflag [#allocation4], %s2148
          %s2150 = sand.u32 %s314, 1
          %s2151 = smul.addr %s2150, 8
          %s2152 = scalar_lea.vmem [#allocation3], %s2151
          %2154 = dma.done %s2149, 128
        $region84: #{_lambda_.3} parent=79 // pred_fallthru
          _
      $region80: #{_lambda_.3} parent=5 // pred_fallthru
        _
    $region6: #{_lambda_.3} parent=1 // loop_footer
      %s26 = sadd.s32 1, %s22
    $region7: #{_lambda_.3} parent=1 // loop_footer_branch
      %21 = sbr.rel target = $region3
    $region8: #{_lambda_.3} parent=1 // loop_exit
      _
    %2155 = vsyncpa [#allocation4], 1
    %s2156 = scalar_lea.sflag [#allocation4], 1
    %2157 = vsyncpa %s2156, 1

// kernel: _lambda_.2
$region0: #{_lambda_.2}
  #allocation0 [shape = 'u32[]', space=smem, size = 0x4, offset = 0x4, fixed_abs, tag = 'smem constant byte address 0x4 - core index']
  #allocation1 [shape = 'u32[72,128]{1,0:T(1,128)}', space=vmem, size = 0x9000, scoped, tag = 'internal scratch']
  #allocation2 [shape = 'f32[8,64]{1,0:T(8,128)}', space=vmem, size = 0x1000, scoped, tag = 'scratch operand']
  %s0 = inlined_call_operand.vmem [shape: f32[2,8,64], index: 0, kind: input, shape index: {}]
  %s1 = inlined_call_operand.vmem [shape: f32[2,16,64], index: 1, kind: input, shape index: {}]
  %s2 = inlined_call_operand.vmem [shape: f32[1,64], index: 2, kind: input, shape index: {}]
  %s3 = inlined_call_operand.vmem [shape: f32[1,64], index: 3, kind: input, shape index: {}]
  %s4 = inlined_call_operand.vmem [shape: bf16[64,192], index: 4, kind: input, shape index: {}]
  %s5 = inlined_call_operand.vmem [shape: f32[1,192], index: 5, kind: input, shape index: {}]
  %s6 = inlined_call_operand.hbm [shape: bf16[64,64], index: 6, kind: input, shape index: {}]
  %s7 = inlined_call_operand.vmem [shape: f32[1,64], index: 7, kind: input, shape index: {}]
  %s8 = inlined_call_operand.vmem [shape: f32[1,64], index: 8, kind: input, shape index: {}]
  %s9 = inlined_call_operand.vmem [shape: f32[1,64], index: 9, kind: input, shape index: {}]
  %s10 = inlined_call_operand.hbm [shape: bf16[64,64], index: 10, kind: input, shape index: {}]
  %s11 = inlined_call_operand.hbm [shape: f32[1,64], index: 11, kind: input, shape index: {}]
  %s12 = inlined_call_operand.hbm [shape: bf16[64,128], index: 12, kind: input, shape index: {}]
  %s13 = inlined_call_operand.hbm [shape: f32[1,128], index: 13, kind: input, shape index: {}]
  %s14 = inlined_call_operand.hbm [shape: bf16[64,64], index: 14, kind: input, shape index: {}]
  %s15 = inlined_call_operand.hbm [shape: f32[1,64], index: 15, kind: input, shape index: {}]
  %s16 = inlined_call_operand.vmem [shape: f32[1,64], index: 16, kind: input, shape index: {}]
  %s17 = inlined_call_operand.hbm [shape: f32[1,64], index: 17, kind: input, shape index: {}]
  %s18 = inlined_call_operand.vmem [shape: bf16[64,256], index: 18, kind: input, shape index: {}]
  %s19 = inlined_call_operand.vmem [shape: f32[1,256], index: 19, kind: input, shape index: {}]
  %s20 = inlined_call_operand.vmem [shape: bf16[256,64], index: 20, kind: input, shape index: {}]
  %s21 = inlined_call_operand.vmem [shape: f32[1,64], index: 21, kind: input, shape index: {}]
  %s22 = inlined_call_operand.vmem [shape: f32[1,64], index: 22, kind: input, shape index: {}]
  %s23 = inlined_call_operand.vmem [shape: f32[1,64], index: 23, kind: input, shape index: {}]
  %s24 = inlined_call_operand.vmem [shape: f32[2,8,64], index: 24, kind: output, shape index: {}]
  %s25 = sld [smem:[#allocation0]]
  $region161: #{_lambda_.2} parent=0
    _
  %s27 = ssub.s32 1, %s25
  %s28 = scalar_select 0, %s27, %s25
  $region1: #{_lambda_.2} parent=0
    #allocation3 [shape = 'u8[16384]{0}', space=vmem, size = 0x4000, scoped, tag = 'input window, operand 6, single buffered']
    #allocation4 [shape = 's32[2]{0}', space=sflag, size = 0x8, scoped, tag = 'scoped memory for _lambda_.2']
    #allocation5 [shape = 'u8[16384]{0}', space=vmem, size = 0x4000, scoped, tag = 'input window, operand 10, single buffered']
    #allocation6 [shape = 's32[1]{0}', space=sflag, size = 0x4, scoped, tag = 'scoped memory for _lambda_.2']
    #allocation7 [shape = 'u8[512]{0}', space=vmem, size = 0x400, scoped, tag = 'input window, operand 11, single buffered']
    #allocation8 [shape = 'u8[16384]{0}', space=vmem, size = 0x4000, scoped, tag = 'input window, operand 12, single buffered']
    #allocation9 [shape = 's32[1]{0}', space=sflag, size = 0x4, scoped, tag = 'scoped memory for _lambda_.2']
    #allocation10 [shape = 'u8[512]{0}', space=vmem, size = 0x400, scoped, tag = 'input window, operand 13, single buffered']
    #allocation11 [shape = 'u8[16384]{0}', space=vmem, size = 0x4000, scoped, tag = 'input window, operand 14, single buffered']
    #allocation12 [shape = 's32[1]{0}', space=sflag, size = 0x4, scoped, tag = 'scoped memory for _lambda_.2']
    #allocation13 [shape = 'u8[512]{0}', space=vmem, size = 0x400, scoped, tag = 'input window, operand 15, single buffered']
    #allocation14 [shape = 'u8[512]{0}', space=vmem, size = 0x400, scoped, tag = 'input window, operand 17, single buffered']
    #allocation15 [shape = 's32[1]{0}', space=sflag, size = 0x4, scoped, tag = 'scoped memory for _lambda_.2']
    %29 = vsyncpa [#allocation4], 0
    %30 = vsyncpa [#allocation6], 0
    %31 = vsyncpa [#allocation9], 0
    %32 = vsyncpa [#allocation12], 0
    %33 = vsyncpa [#allocation15], 0
    loop: start=0, step=1, limit=4
    $region2: #{_lambda_.2} parent=1 // loop_pre_header
      _
    $region3: #{_lambda_.2} parent=1 // loop_header
      %s35 = sphi 0, %s39
      %p36 = scmp.ge.s32.totalorder %s35, 4
      %s45 = sphi 0, %s47
      %s48 = sphi 0, %s45
      %s49 = sphi 0, %s48
      %s65 = sphi 0, %s49
      %s71 = sphi 0, %s73
      %s74 = sphi 0, %s71
      %s75 = sphi 0, %s74
      %s91 = sphi 0, %s75
      %s95 = sphi 0, %s95
      %s97 = sphi 0, %s95
      %s98 = sphi 0, %s97
      %s112 = sphi 0, %s98
      %s116 = sphi 0, %s116
      %s118 = sphi 0, %s116
      %s119 = sphi 0, %s118
      %s133 = sphi 0, %s119
      %s137 = sphi 0, %s137
      %s139 = sphi 0, %s137
      %s140 = sphi 0, %s139
      %s154 = sphi 0, %s140
      %s158 = sphi 0, %s158
      %s160 = sphi 0, %s158
      %s161 = sphi 0, %s160
      %s175 = sphi 0, %s161
      %s179 = sphi 0, %s179
      %s181 = sphi 0, %s179
      %s182 = sphi 0, %s181
      %s196 = sphi 0, %s182
      %s200 = sphi 0, %s200
      %s202 = sphi 0, %s200
      %s203 = sphi 0, %s202
      %s217 = sphi 0, %s203
      %s221 = sphi 0, %s221
      %s223 = sphi 0, %s221
      %s224 = sphi 0, %s223
      %s238 = sphi 0, %s224
      %s242 = sphi 0, %s242
      %s244 = sphi 0, %s242
      %s245 = sphi 0, %s244
      %s259 = sphi 0, %s245
      %s263 = sphi 0, %s263
      %s265 = sphi 0, %s263
      %s266 = sphi 0, %s265
      %s280 = sphi 0, %s266
      %s284 = sphi 0, %s284
      %s286 = sphi 0, %s284
      %s287 = sphi 0, %s286
      %s301 = sphi 0, %s287
      %s305 = sphi 0, %s305
      %s307 = sphi 0, %s305
      %s308 = sphi 0, %s307
      %s322 = sphi 0, %s308
      %s326 = sphi 0, %s326
      %s328 = sphi 0, %s326
      %s329 = sphi 0, %s328
      %s343 = sphi 0, %s329
      %s347 = sphi 0, %s347
      %s349 = sphi 0, %s347
      %s350 = sphi 0, %s349
      %s364 = sphi 0, %s350
      %s368 = sphi 0, %s368
      %s370 = sphi 0, %s368
      %s371 = sphi 0, %s370
      %s385 = sphi 0, %s371
      %s389 = sphi 0, %s389
      %s391 = sphi 0, %s389
      %s392 = sphi 0, %s391
      %s406 = sphi 0, %s392
      %s410 = sphi 0, %s410
      %s412 = sphi 0, %s410
      %s413 = sphi 0, %s412
      %s427 = sphi 0, %s413
      %s431 = sphi 0, %s431
      %s433 = sphi 0, %s431
      %s434 = sphi 0, %s433
      %s448 = sphi 0, %s434
      %s452 = sphi 0, %s452
      %s454 = sphi 0, %s452
      %s455 = sphi 0, %s454
      %s469 = sphi 0, %s455
      %s473 = sphi 0, %s473
      %s475 = sphi 0, %s473
      %s476 = sphi 0, %s475
      %s490 = sphi 0, %s476
      %s494 = sphi 0, %s494
      %s496 = sphi 0, %s494
      %s497 = sphi 0, %s496
      %s511 = sphi 0, %s497
      %s515 = sphi 0, %s515
      %s517 = sphi 0, %s515
      %s518 = sphi 0, %s517
      %s532 = sphi 0, %s518
      %s536 = sphi 0, %s536
      %s538 = sphi 0, %s536
      %s539 = sphi 0, %s538
      %s553 = sphi 0, %s539
      %s559 = sphi 0, %s561
      %s562 = sphi 0, %s559
      %s563 = sphi 0, %s562
      %s579 = sphi 0, %s563
    $region4: #{_lambda_.2} parent=1 // loop_header_branch
      %38 = sbr.rel (%p36) target = $region8
    $region5: #{_lambda_.2} parent=1 // loop_body
      %s40 = ssub.s32 %s35, 1
      %s41 = ssub.s32 %s35, 2
      %s42 = sadd.s32 %s35, 1
      %s43 = ssub.s32 %s35, %s42
      %p44 = scmp.eq.s32.totalorder %s43, 0
      %s46 = sadd.s32 %s45, 1
      %s47 = scalar_select %p44, %s45, %s46
      %p50 = pneg %p44
      %p51 = scmp.eq.s32.totalorder %s35, 1
      %p52 = por %p50, %p51
      %p53 = scmp.ne.s32.totalorder %s45, %s48
      %p54 = scmp.eq.s32.totalorder %s35, 0
      %p55 = por %p53, %p54
      %p56 = scmp.ne.s32.totalorder %s45, %s48
      %p57 = scmp.eq.s32.totalorder %s40, 1
      %p58 = por %p56, %p57
      %p59 = scmp.ne.s32.totalorder %s48, %s49
      %p60 = scmp.eq.s32.totalorder %s40, 0
      %p61 = por %p59, %p60
      %p62 = scmp.ne.s32.totalorder %s48, %s49
      %p63 = scmp.eq.s32.totalorder %s41, 1
      %p64 = por %p62, %p63
      %p66 = scmp.ne.s32.totalorder %s49, %s65
      %p67 = scmp.eq.s32.totalorder %s41, 0
      %p68 = por %p66, %p67
      %s69 = ssub.s32 %s35, %s42
      %p70 = scmp.eq.s32.totalorder %s69, 0
      %s72 = sadd.s32 %s71, 1
      %s73 = scalar_select %p70, %s71, %s72
      %p76 = pneg %p70
      %p77 = scmp.eq.s32.totalorder %s35, 1
      %p78 = por %p76, %p77
      %p79 = scmp.ne.s32.totalorder %s71, %s74
      %p80 = scmp.eq.s32.totalorder %s35, 0
      %p81 = por %p79, %p80
      %p82 = scmp.ne.s32.totalorder %s71, %s74
      %p83 = scmp.eq.s32.totalorder %s40, 1
      %p84 = por %p82, %p83
      %p85 = scmp.ne.s32.totalorder %s74, %s75
      %p86 = scmp.eq.s32.totalorder %s40, 0
      %p87 = por %p85, %p86
      %p88 = scmp.ne.s32.totalorder %s74, %s75
      %p89 = scmp.eq.s32.totalorder %s41, 1
      %p90 = por %p88, %p89
      %p92 = scmp.ne.s32.totalorder %s75, %s91
      %p93 = scmp.eq.s32.totalorder %s41, 0
      %p94 = por %p92, %p93
      %s96 = sadd.s32 %s95, 1
      %p99 = scmp.eq.s32.totalorder %s35, 1
      %p100 = scmp.ne.s32.totalorder %s95, %s97
      %p101 = scmp.eq.s32.totalorder %s35, 0
      %p102 = por %p100, %p101
      %p103 = scmp.ne.s32.totalorder %s95, %s97
      %p104 = scmp.eq.s32.totalorder %s40, 1
      %p105 = por %p103, %p104
      %p106 = scmp.ne.s32.totalorder %s97, %s98
      %p107 = scmp.eq.s32.totalorder %s40, 0
      %p108 = por %p106, %p107
      %p109 = scmp.ne.s32.totalorder %s97, %s98
      %p110 = scmp.eq.s32.totalorder %s41, 1
      %p111 = por %p109, %p110
      %p113 = scmp.ne.s32.totalorder %s98, %s112
      %p114 = scmp.eq.s32.totalorder %s41, 0
      %p115 = por %p113, %p114
      %s117 = sadd.s32 %s116, 1
      %p120 = scmp.eq.s32.totalorder %s35, 1
      %p121 = scmp.ne.s32.totalorder %s116, %s118
      %p122 = scmp.eq.s32.totalorder %s35, 0
      %p123 = por %p121, %p122
      %p124 = scmp.ne.s32.totalorder %s116, %s118
      %p125 = scmp.eq.s32.totalorder %s40, 1
      %p126 = por %p124, %p125
      %p127 = scmp.ne.s32.totalorder %s118, %s119
      %p128 = scmp.eq.s32.totalorder %s40, 0
      %p129 = por %p127, %p128
      %p130 = scmp.ne.s32.totalorder %s118, %s119
      %p131 = scmp.eq.s32.totalorder %s41, 1
      %p132 = por %p130, %p131
      %p134 = scmp.ne.s32.totalorder %s119, %s133
      %p135 = scmp.eq.s32.totalorder %s41, 0
      %p136 = por %p134, %p135
      %s138 = sadd.s32 %s137, 1
      %p141 = scmp.eq.s32.totalorder %s35, 1
      %p142 = scmp.ne.s32.totalorder %s137, %s139
      %p143 = scmp.eq.s32.totalorder %s35, 0
      %p144 = por %p142, %p143
      %p145 = scmp.ne.s32.totalorder %s137, %s139
      %p146 = scmp.eq.s32.totalorder %s40, 1
      %p147 = por %p145, %p146
      %p148 = scmp.ne.s32.totalorder %s139, %s140
      %p149 = scmp.eq.s32.totalorder %s40, 0
      %p150 = por %p148, %p149
      %p151 = scmp.ne.s32.totalorder %s139, %s140
      %p152 = scmp.eq.s32.totalorder %s41, 1
      %p153 = por %p151, %p152
      %p155 = scmp.ne.s32.totalorder %s140, %s154
      %p156 = scmp.eq.s32.totalorder %s41, 0
      %p157 = por %p155, %p156
      %s159 = sadd.s32 %s158, 1
      %p162 = scmp.eq.s32.totalorder %s35, 1
      %p163 = scmp.ne.s32.totalorder %s158, %s160
      %p164 = scmp.eq.s32.totalorder %s35, 0
      %p165 = por %p163, %p164
      %p166 = scmp.ne.s32.totalorder %s158, %s160
      %p167 = scmp.eq.s32.totalorder %s40, 1
      %p168 = por %p166, %p167
      %p169 = scmp.ne.s32.totalorder %s160, %s161
      %p170 = scmp.eq.s32.totalorder %s40, 0
      %p171 = por %p169, %p170
      %p172 = scmp.ne.s32.totalorder %s160, %s161
      %p173 = scmp.eq.s32.totalorder %s41, 1
      %p174 = por %p172, %p173
      %p176 = scmp.ne.s32.totalorder %s161, %s175
      %p177 = scmp.eq.s32.totalorder %s41, 0
      %p178 = por %p176, %p177
      %s180 = sadd.s32 %s179, 1
      %p183 = scmp.eq.s32.totalorder %s35, 1
      %p184 = scmp.ne.s32.totalorder %s179, %s181
      %p185 = scmp.eq.s32.totalorder %s35, 0
      %p186 = por %p184, %p185
      %p187 = scmp.ne.s32.totalorder %s179, %s181
      %p188 = scmp.eq.s32.totalorder %s40, 1
      %p189 = por %p187, %p188
      %p190 = scmp.ne.s32.totalorder %s181, %s182
      %p191 = scmp.eq.s32.totalorder %s40, 0
      %p192 = por %p190, %p191
      %p193 = scmp.ne.s32.totalorder %s181, %s182
      %p194 = scmp.eq.s32.totalorder %s41, 1
      %p195 = por %p193, %p194
      %p197 = scmp.ne.s32.totalorder %s182, %s196
      %p198 = scmp.eq.s32.totalorder %s41, 0
      %p199 = por %p197, %p198
      %s201 = sadd.s32 %s200, 1
      %p204 = scmp.eq.s32.totalorder %s35, 1
      %p205 = scmp.ne.s32.totalorder %s200, %s202
      %p206 = scmp.eq.s32.totalorder %s35, 0
      %p207 = por %p205, %p206
      %p208 = scmp.ne.s32.totalorder %s200, %s202
      %p209 = scmp.eq.s32.totalorder %s40, 1
      %p210 = por %p208, %p209
      %p211 = scmp.ne.s32.totalorder %s202, %s203
      %p212 = scmp.eq.s32.totalorder %s40, 0
      %p213 = por %p211, %p212
      %p214 = scmp.ne.s32.totalorder %s202, %s203
      %p215 = scmp.eq.s32.totalorder %s41, 1
      %p216 = por %p214, %p215
      %p218 = scmp.ne.s32.totalorder %s203, %s217
      %p219 = scmp.eq.s32.totalorder %s41, 0
      %p220 = por %p218, %p219
      %s222 = sadd.s32 %s221, 1
      %p225 = scmp.eq.s32.totalorder %s35, 1
      %p226 = scmp.ne.s32.totalorder %s221, %s223
      %p227 = scmp.eq.s32.totalorder %s35, 0
      %p228 = por %p226, %p227
      %p229 = scmp.ne.s32.totalorder %s221, %s223
      %p230 = scmp.eq.s32.totalorder %s40, 1
      %p231 = por %p229, %p230
      %p232 = scmp.ne.s32.totalorder %s223, %s224
      %p233 = scmp.eq.s32.totalorder %s40, 0
      %p234 = por %p232, %p233
      %p235 = scmp.ne.s32.totalorder %s223, %s224
      %p236 = scmp.eq.s32.totalorder %s41, 1
      %p237 = por %p235, %p236
      %p239 = scmp.ne.s32.totalorder %s224, %s238
      %p240 = scmp.eq.s32.totalorder %s41, 0
      %p241 = por %p239, %p240
      %s243 = sadd.s32 %s242, 1
      %p246 = scmp.eq.s32.totalorder %s35, 1
      %p247 = scmp.ne.s32.totalorder %s242, %s244
      %p248 = scmp.eq.s32.totalorder %s35, 0
      %p249 = por %p247, %p248
      %p250 = scmp.ne.s32.totalorder %s242, %s244
      %p251 = scmp.eq.s32.totalorder %s40, 1
      %p252 = por %p250, %p251
      %p253 = scmp.ne.s32.totalorder %s244, %s245
      %p254 = scmp.eq.s32.totalorder %s40, 0
      %p255 = por %p253, %p254
      %p256 = scmp.ne.s32.totalorder %s244, %s245
      %p257 = scmp.eq.s32.totalorder %s41, 1
      %p258 = por %p256, %p257
      %p260 = scmp.ne.s32.totalorder %s245, %s259
      %p261 = scmp.eq.s32.totalorder %s41, 0
      %p262 = por %p260, %p261
      %s264 = sadd.s32 %s263, 1
      %p267 = scmp.eq.s32.totalorder %s35, 1
      %p268 = scmp.ne.s32.totalorder %s263, %s265
      %p269 = scmp.eq.s32.totalorder %s35, 0
      %p270 = por %p268, %p269
      %p271 = scmp.ne.s32.totalorder %s263, %s265
      %p272 = scmp.eq.s32.totalorder %s40, 1
      %p273 = por %p271, %p272
      %p274 = scmp.ne.s32.totalorder %s265, %s266
      %p275 = scmp.eq.s32.totalorder %s40, 0
      %p276 = por %p274, %p275
      %p277 = scmp.ne.s32.totalorder %s265, %s266
      %p278 = scmp.eq.s32.totalorder %s41, 1
      %p279 = por %p277, %p278
      %p281 = scmp.ne.s32.totalorder %s266, %s280
      %p282 = scmp.eq.s32.totalorder %s41, 0
      %p283 = por %p281, %p282
      %s285 = sadd.s32 %s284, 1
      %p288 = scmp.eq.s32.totalorder %s35, 1
      %p289 = scmp.ne.s32.totalorder %s284, %s286
      %p290 = scmp.eq.s32.totalorder %s35, 0
      %p291 = por %p289, %p290
      %p292 = scmp.ne.s32.totalorder %s284, %s286
      %p293 = scmp.eq.s32.totalorder %s40, 1
      %p294 = por %p292, %p293
      %p295 = scmp.ne.s32.totalorder %s286, %s287
      %p296 = scmp.eq.s32.totalorder %s40, 0
      %p297 = por %p295, %p296
      %p298 = scmp.ne.s32.totalorder %s286, %s287
      %p299 = scmp.eq.s32.totalorder %s41, 1
      %p300 = por %p298, %p299
      %p302 = scmp.ne.s32.totalorder %s287, %s301
      %p303 = scmp.eq.s32.totalorder %s41, 0
      %p304 = por %p302, %p303
      %s306 = sadd.s32 %s305, 1
      %p309 = scmp.eq.s32.totalorder %s35, 1
      %p310 = scmp.ne.s32.totalorder %s305, %s307
      %p311 = scmp.eq.s32.totalorder %s35, 0
      %p312 = por %p310, %p311
      %p313 = scmp.ne.s32.totalorder %s305, %s307
      %p314 = scmp.eq.s32.totalorder %s40, 1
      %p315 = por %p313, %p314
      %p316 = scmp.ne.s32.totalorder %s307, %s308
      %p317 = scmp.eq.s32.totalorder %s40, 0
      %p318 = por %p316, %p317
      %p319 = scmp.ne.s32.totalorder %s307, %s308
      %p320 = scmp.eq.s32.totalorder %s41, 1
      %p321 = por %p319, %p320
      %p323 = scmp.ne.s32.totalorder %s308, %s322
      %p324 = scmp.eq.s32.totalorder %s41, 0
      %p325 = por %p323, %p324
      %s327 = sadd.s32 %s326, 1
      %p330 = scmp.eq.s32.totalorder %s35, 1
      %p331 = scmp.ne.s32.totalorder %s326, %s328
      %p332 = scmp.eq.s32.totalorder %s35, 0
      %p333 = por %p331, %p332
      %p334 = scmp.ne.s32.totalorder %s326, %s328
      %p335 = scmp.eq.s32.totalorder %s40, 1
      %p336 = por %p334, %p335
      %p337 = scmp.ne.s32.totalorder %s328, %s329
      %p338 = scmp.eq.s32.totalorder %s40, 0
      %p339 = por %p337, %p338
      %p340 = scmp.ne.s32.totalorder %s328, %s329
      %p341 = scmp.eq.s32.totalorder %s41, 1
      %p342 = por %p340, %p341
      %p344 = scmp.ne.s32.totalorder %s329, %s343
      %p345 = scmp.eq.s32.totalorder %s41, 0
      %p346 = por %p344, %p345
      %s348 = sadd.s32 %s347, 1
      %p351 = scmp.eq.s32.totalorder %s35, 1
      %p352 = scmp.ne.s32.totalorder %s347, %s349
      %p353 = scmp.eq.s32.totalorder %s35, 0
      %p354 = por %p352, %p353
      %p355 = scmp.ne.s32.totalorder %s347, %s349
      %p356 = scmp.eq.s32.totalorder %s40, 1
      %p357 = por %p355, %p356
      %p358 = scmp.ne.s32.totalorder %s349, %s350
      %p359 = scmp.eq.s32.totalorder %s40, 0
      %p360 = por %p358, %p359
      %p361 = scmp.ne.s32.totalorder %s349, %s350
      %p362 = scmp.eq.s32.totalorder %s41, 1
      %p363 = por %p361, %p362
      %p365 = scmp.ne.s32.totalorder %s350, %s364
      %p366 = scmp.eq.s32.totalorder %s41, 0
      %p367 = por %p365, %p366
      %s369 = sadd.s32 %s368, 1
      %p372 = scmp.eq.s32.totalorder %s35, 1
      %p373 = scmp.ne.s32.totalorder %s368, %s370
      %p374 = scmp.eq.s32.totalorder %s35, 0
      %p375 = por %p373, %p374
      %p376 = scmp.ne.s32.totalorder %s368, %s370
      %p377 = scmp.eq.s32.totalorder %s40, 1
      %p378 = por %p376, %p377
      %p379 = scmp.ne.s32.totalorder %s370, %s371
      %p380 = scmp.eq.s32.totalorder %s40, 0
      %p381 = por %p379, %p380
      %p382 = scmp.ne.s32.totalorder %s370, %s371
      %p383 = scmp.eq.s32.totalorder %s41, 1
      %p384 = por %p382, %p383
      %p386 = scmp.ne.s32.totalorder %s371, %s385
      %p387 = scmp.eq.s32.totalorder %s41, 0
      %p388 = por %p386, %p387
      %s390 = sadd.s32 %s389, 1
      %p393 = scmp.eq.s32.totalorder %s35, 1
      %p394 = scmp.ne.s32.totalorder %s389, %s391
      %p395 = scmp.eq.s32.totalorder %s35, 0
      %p396 = por %p394, %p395
      %p397 = scmp.ne.s32.totalorder %s389, %s391
      %p398 = scmp.eq.s32.totalorder %s40, 1
      %p399 = por %p397, %p398
      %p400 = scmp.ne.s32.totalorder %s391, %s392
      %p401 = scmp.eq.s32.totalorder %s40, 0
      %p402 = por %p400, %p401
      %p403 = scmp.ne.s32.totalorder %s391, %s392
      %p404 = scmp.eq.s32.totalorder %s41, 1
      %p405 = por %p403, %p404
      %p407 = scmp.ne.s32.totalorder %s392, %s406
      %p408 = scmp.eq.s32.totalorder %s41, 0
      %p409 = por %p407, %p408
      %s411 = sadd.s32 %s410, 1
      %p414 = scmp.eq.s32.totalorder %s35, 1
      %p415 = scmp.ne.s32.totalorder %s410, %s412
      %p416 = scmp.eq.s32.totalorder %s35, 0
      %p417 = por %p415, %p416
      %p418 = scmp.ne.s32.totalorder %s410, %s412
      %p419 = scmp.eq.s32.totalorder %s40, 1
      %p420 = por %p418, %p419
      %p421 = scmp.ne.s32.totalorder %s412, %s413
      %p422 = scmp.eq.s32.totalorder %s40, 0
      %p423 = por %p421, %p422
      %p424 = scmp.ne.s32.totalorder %s412, %s413
      %p425 = scmp.eq.s32.totalorder %s41, 1
      %p426 = por %p424, %p425
      %p428 = scmp.ne.s32.totalorder %s413, %s427
      %p429 = scmp.eq.s32.totalorder %s41, 0
      %p430 = por %p428, %p429
      %s432 = sadd.s32 %s431, 1
      %p435 = scmp.eq.s32.totalorder %s35, 1
      %p436 = scmp.ne.s32.totalorder %s431, %s433
      %p437 = scmp.eq.s32.totalorder %s35, 0
      %p438 = por %p436, %p437
      %p439 = scmp.ne.s32.totalorder %s431, %s433
      %p440 = scmp.eq.s32.totalorder %s40, 1
      %p441 = por %p439, %p440
      %p442 = scmp.ne.s32.totalorder %s433, %s434
      %p443 = scmp.eq.s32.totalorder %s40, 0
      %p444 = por %p442, %p443
      %p445 = scmp.ne.s32.totalorder %s433, %s434
      %p446 = scmp.eq.s32.totalorder %s41, 1
      %p447 = por %p445, %p446
      %p449 = scmp.ne.s32.totalorder %s434, %s448
      %p450 = scmp.eq.s32.totalorder %s41, 0
      %p451 = por %p449, %p450
      %s453 = sadd.s32 %s452, 1
      %p456 = scmp.eq.s32.totalorder %s35, 1
      %p457 = scmp.ne.s32.totalorder %s452, %s454
      %p458 = scmp.eq.s32.totalorder %s35, 0
      %p459 = por %p457, %p458
      %p460 = scmp.ne.s32.totalorder %s452, %s454
      %p461 = scmp.eq.s32.totalorder %s40, 1
      %p462 = por %p460, %p461
      %p463 = scmp.ne.s32.totalorder %s454, %s455
      %p464 = scmp.eq.s32.totalorder %s40, 0
      %p465 = por %p463, %p464
      %p466 = scmp.ne.s32.totalorder %s454, %s455
      %p467 = scmp.eq.s32.totalorder %s41, 1
      %p468 = por %p466, %p467
      %p470 = scmp.ne.s32.totalorder %s455, %s469
      %p471 = scmp.eq.s32.totalorder %s41, 0
      %p472 = por %p470, %p471
      %s474 = sadd.s32 %s473, 1
      %p477 = scmp.eq.s32.totalorder %s35, 1
      %p478 = scmp.ne.s32.totalorder %s473, %s475
      %p479 = scmp.eq.s32.totalorder %s35, 0
      %p480 = por %p478, %p479
      %p481 = scmp.ne.s32.totalorder %s473, %s475
      %p482 = scmp.eq.s32.totalorder %s40, 1
      %p483 = por %p481, %p482
      %p484 = scmp.ne.s32.totalorder %s475, %s476
      %p485 = scmp.eq.s32.totalorder %s40, 0
      %p486 = por %p484, %p485
      %p487 = scmp.ne.s32.totalorder %s475, %s476
      %p488 = scmp.eq.s32.totalorder %s41, 1
      %p489 = por %p487, %p488
      %p491 = scmp.ne.s32.totalorder %s476, %s490
      %p492 = scmp.eq.s32.totalorder %s41, 0
      %p493 = por %p491, %p492
      %s495 = sadd.s32 %s494, 1
      %p498 = scmp.eq.s32.totalorder %s35, 1
      %p499 = scmp.ne.s32.totalorder %s494, %s496
      %p500 = scmp.eq.s32.totalorder %s35, 0
      %p501 = por %p499, %p500
      %p502 = scmp.ne.s32.totalorder %s494, %s496
      %p503 = scmp.eq.s32.totalorder %s40, 1
      %p504 = por %p502, %p503
      %p505 = scmp.ne.s32.totalorder %s496, %s497
      %p506 = scmp.eq.s32.totalorder %s40, 0
      %p507 = por %p505, %p506
      %p508 = scmp.ne.s32.totalorder %s496, %s497
      %p509 = scmp.eq.s32.totalorder %s41, 1
      %p510 = por %p508, %p509
      %p512 = scmp.ne.s32.totalorder %s497, %s511
      %p513 = scmp.eq.s32.totalorder %s41, 0
      %p514 = por %p512, %p513
      %s516 = sadd.s32 %s515, 1
      %p519 = scmp.eq.s32.totalorder %s35, 1
      %p520 = scmp.ne.s32.totalorder %s515, %s517
      %p521 = scmp.eq.s32.totalorder %s35, 0
      %p522 = por %p520, %p521
      %p523 = scmp.ne.s32.totalorder %s515, %s517
      %p524 = scmp.eq.s32.totalorder %s40, 1
      %p525 = por %p523, %p524
      %p526 = scmp.ne.s32.totalorder %s517, %s518
      %p527 = scmp.eq.s32.totalorder %s40, 0
      %p528 = por %p526, %p527
      %p529 = scmp.ne.s32.totalorder %s517, %s518
      %p530 = scmp.eq.s32.totalorder %s41, 1
      %p531 = por %p529, %p530
      %p533 = scmp.ne.s32.totalorder %s518, %s532
      %p534 = scmp.eq.s32.totalorder %s41, 0
      %p535 = por %p533, %p534
      %s537 = sadd.s32 %s536, 1
      %p540 = scmp.eq.s32.totalorder %s35, 1
      %p541 = scmp.ne.s32.totalorder %s536, %s538
      %p542 = scmp.eq.s32.totalorder %s35, 0
      %p543 = por %p541, %p542
      %p544 = scmp.ne.s32.totalorder %s536, %s538
      %p545 = scmp.eq.s32.totalorder %s40, 1
      %p546 = por %p544, %p545
      %p547 = scmp.ne.s32.totalorder %s538, %s539
      %p548 = scmp.eq.s32.totalorder %s40, 0
      %p549 = por %p547, %p548
      %p550 = scmp.ne.s32.totalorder %s538, %s539
      %p551 = scmp.eq.s32.totalorder %s41, 1
      %p552 = por %p550, %p551
      %p554 = scmp.ne.s32.totalorder %s539, %s553
      %p555 = scmp.eq.s32.totalorder %s41, 0
      %p556 = por %p554, %p555
      %s557 = ssub.s32 %s35, %s42
      %p558 = scmp.eq.s32.totalorder %s557, 0
      %s560 = sadd.s32 %s559, 1
      %s561 = scalar_select %p558, %s559, %s560
      %p564 = pneg %p558
      %p565 = scmp.eq.s32.totalorder %s35, 1
      %p566 = por %p564, %p565
      %p567 = scmp.ne.s32.totalorder %s559, %s562
      %p568 = scmp.eq.s32.totalorder %s35, 0
      %p569 = por %p567, %p568
      %p570 = scmp.ne.s32.totalorder %s559, %s562
      %p571 = scmp.eq.s32.totalorder %s40, 1
      %p572 = por %p570, %p571
      %p573 = scmp.ne.s32.totalorder %s562, %s563
      %p574 = scmp.eq.s32.totalorder %s40, 0
      %p575 = por %p573, %p574
      %p576 = scmp.ne.s32.totalorder %s562, %s563
      %p577 = scmp.eq.s32.totalorder %s41, 1
      %p578 = por %p576, %p577
      %p580 = scmp.ne.s32.totalorder %s563, %s579
      %p581 = scmp.eq.s32.totalorder %s41, 0
      %p582 = por %p580, %p581
      %p583 = scmp.le.s32.totalorder 1, %s35
      %p584 = scmp.lt.s32.totalorder %s35, 3
      %p585 = pnand %p583, %p584
      %p586 = pneg %p585
      // Predicated region
      $region9: #{_lambda_.2} parent=5 // pred_check
        _
      $region10: #{_lambda_.2} parent=5 // pred_check_branch
        %588 = sbr.rel (%p585) target = $region12
      $region11: #{_lambda_.2} parent=5 // pred_region
        %s589 = ssub.s32 %s35, 1
        // Predicated region
        $region13: #{_lambda_.2} parent=11 // pred_check
          %p590 = pneg %p108
        $region14: #{_lambda_.2} parent=11 // pred_check_branch
          %592 = sbr.rel (%p590) target = $region16
        $region15: #{_lambda_.2} parent=11 // pred_region
          _
        $region16: #{_lambda_.2} parent=11 // pred_fallthru
          _
        // Predicated region
        $region17: #{_lambda_.2} parent=11 // pred_check
          %p593 = pneg %p129
        $region18: #{_lambda_.2} parent=11 // pred_check_branch
          %595 = sbr.rel (%p593) target = $region20
        $region19: #{_lambda_.2} parent=11 // pred_region
          _
        $region20: #{_lambda_.2} parent=11 // pred_fallthru
          _
        // Predicated region
        $region21: #{_lambda_.2} parent=11 // pred_check
          %p596 = pneg %p150
        $region22: #{_lambda_.2} parent=11 // pred_check_branch
          %598 = sbr.rel (%p596) target = $region24
        $region23: #{_lambda_.2} parent=11 // pred_region
          _
        $region24: #{_lambda_.2} parent=11 // pred_fallthru
          _
        // Predicated region
        $region25: #{_lambda_.2} parent=11 // pred_check
          %p599 = pneg %p171
        $region26: #{_lambda_.2} parent=11 // pred_check_branch
          %601 = sbr.rel (%p599) target = $region28
        $region27: #{_lambda_.2} parent=11 // pred_region
          _
        $region28: #{_lambda_.2} parent=11 // pred_fallthru
          _
        // Predicated region
        $region29: #{_lambda_.2} parent=11 // pred_check
          %p602 = pneg %p192
        $region30: #{_lambda_.2} parent=11 // pred_check_branch
          %604 = sbr.rel (%p602) target = $region32
        $region31: #{_lambda_.2} parent=11 // pred_region
          %606 = vsyncadd [#allocation4], 0
          %s607 = sshll.u32 %s6, 4
          %s608 = int_to_ptr.hbm [resolvable:$true] %s607
          %s609 = sshll.u32 [#allocation3], 4
          %s610 = int_to_ptr.vmem [resolvable:$true] %s609
          %615 = dma.hbm_to_vmem [thread:$0]  %s608, 512, %s610, [#allocation4], 64, 64, 4
        $region32: #{_lambda_.2} parent=11 // pred_fallthru
          _
        // Predicated region
        $region33: #{_lambda_.2} parent=11 // pred_check
          %p616 = pneg %p213
        $region34: #{_lambda_.2} parent=11 // pred_check_branch
          %618 = sbr.rel (%p616) target = $region36
        $region35: #{_lambda_.2} parent=11 // pred_region
          _
        $region36: #{_lambda_.2} parent=11 // pred_fallthru
          _
        // Predicated region
        $region37: #{_lambda_.2} parent=11 // pred_check
          %p619 = pneg %p234
        $region38: #{_lambda_.2} parent=11 // pred_check_branch
          %621 = sbr.rel (%p619) target = $region40
        $region39: #{_lambda_.2} parent=11 // pred_region
          _
        $region40: #{_lambda_.2} parent=11 // pred_fallthru
          _
        // Predicated region
        $region41: #{_lambda_.2} parent=11 // pred_check
          %p622 = pneg %p255
        $region42: #{_lambda_.2} parent=11 // pred_check_branch
          %624 = sbr.rel (%p622) target = $region44
        $region43: #{_lambda_.2} parent=11 // pred_region
          _
        $region44: #{_lambda_.2} parent=11 // pred_fallthru
          _
        // Predicated region
        $region45: #{_lambda_.2} parent=11 // pred_check
          %p625 = pneg %p276
        $region46: #{_lambda_.2} parent=11 // pred_check_branch
          %627 = sbr.rel (%p625) target = $region48
        $region47: #{_lambda_.2} parent=11 // pred_region
          %629 = vsyncadd [#allocation6], 0
          %s630 = sshll.u32 %s10, 4
          %s631 = int_to_ptr.hbm [resolvable:$true] %s630
          %s632 = sshll.u32 [#allocation5], 4
          %s633 = int_to_ptr.vmem [resolvable:$true] %s632
          %638 = dma.hbm_to_vmem [thread:$0]  %s631, 512, %s633, [#allocation6], 64, 64, 4
        $region48: #{_lambda_.2} parent=11 // pred_fallthru
          _
        // Predicated region
        $region49: #{_lambda_.2} parent=11 // pred_check
          %p639 = pneg %p297
        $region50: #{_lambda_.2} parent=11 // pred_check_branch
          %641 = sbr.rel (%p639) target = $region52
        $region51: #{_lambda_.2} parent=11 // pred_region
          %643 = vsyncadd [#allocation6], 0
          %s645 = sshll.u32 %s11, 4
          %s646 = int_to_ptr.hbm [resolvable:$true] %s645
          %s647 = sshll.u32 [#allocation7], 4
          %s648 = int_to_ptr.vmem [resolvable:$true] %s647
          %650 = dma.hbm_to_vmem [thread:$0]  %s646, 16, %s648, [#allocation6]
        $region52: #{_lambda_.2} parent=11 // pred_fallthru
          _
        // Predicated region
        $region53: #{_lambda_.2} parent=11 // pred_check
          %p651 = pneg %p318
        $region54: #{_lambda_.2} parent=11 // pred_check_branch
          %653 = sbr.rel (%p651) target = $region56
        $region55: #{_lambda_.2} parent=11 // pred_region
          %655 = vsyncadd [#allocation9], 0
          %s656 = sshll.u32 %s12, 4
          %s657 = int_to_ptr.hbm [resolvable:$true] %s656
          %s658 = sshll.u32 [#allocation8], 4
          %s659 = int_to_ptr.vmem [resolvable:$true] %s658
          %664 = dma.hbm_to_vmem [thread:$0]  %s657, 512, %s659, [#allocation9], 64, 64, 4
        $region56: #{_lambda_.2} parent=11 // pred_fallthru
          _
        // Predicated region
        $region57: #{_lambda_.2} parent=11 // pred_check
          %p665 = pneg %p339
        $region58: #{_lambda_.2} parent=11 // pred_check_branch
          %667 = sbr.rel (%p665) target = $region60
        $region59: #{_lambda_.2} parent=11 // pred_region
          %669 = vsyncadd [#allocation9], 0
          %s671 = sshll.u32 %s13, 4
          %s672 = int_to_ptr.hbm [resolvable:$true] %s671
          %s673 = sshll.u32 [#allocation10], 4
          %s674 = int_to_ptr.vmem [resolvable:$true] %s673
          %676 = dma.hbm_to_vmem [thread:$0]  %s672, 16, %s674, [#allocation9]
        $region60: #{_lambda_.2} parent=11 // pred_fallthru
          _
        // Predicated region
        $region61: #{_lambda_.2} parent=11 // pred_check
          %p677 = pneg %p360
        $region62: #{_lambda_.2} parent=11 // pred_check_branch
          %679 = sbr.rel (%p677) target = $region64
        $region63: #{_lambda_.2} parent=11 // pred_region
          %681 = vsyncadd [#allocation12], 0
          %s682 = sshll.u32 %s14, 4
          %s683 = int_to_ptr.hbm [resolvable:$true] %s682
          %s684 = sshll.u32 [#allocation11], 4
          %s685 = int_to_ptr.vmem [resolvable:$true] %s684
          %690 = dma.hbm_to_vmem [thread:$0]  %s683, 512, %s685, [#allocation12], 64, 64, 4
        $region64: #{_lambda_.2} parent=11 // pred_fallthru
          _
        // Predicated region
        $region65: #{_lambda_.2} parent=11 // pred_check
          %p691 = pneg %p381
        $region66: #{_lambda_.2} parent=11 // pred_check_branch
          %693 = sbr.rel (%p691) target = $region68
        $region67: #{_lambda_.2} parent=11 // pred_region
          %695 = vsyncadd [#allocation12], 0
          %s697 = sshll.u32 %s15, 4
          %s698 = int_to_ptr.hbm [resolvable:$true] %s697
          %s699 = sshll.u32 [#allocation13], 4
          %s700 = int_to_ptr.vmem [resolvable:$true] %s699
          %702 = dma.hbm_to_vmem [thread:$0]  %s698, 16, %s700, [#allocation12]
        $region68: #{_lambda_.2} parent=11 // pred_fallthru
          _
        // Predicated region
        $region69: #{_lambda_.2} parent=11 // pred_check
          %p703 = pneg %p402
        $region70: #{_lambda_.2} parent=11 // pred_check_branch
          %705 = sbr.rel (%p703) target = $region72
        $region71: #{_lambda_.2} parent=11 // pred_region
          _
        $region72: #{_lambda_.2} parent=11 // pred_fallthru
          _
        // Predicated region
        $region73: #{_lambda_.2} parent=11 // pred_check
          %p706 = pneg %p423
        $region74: #{_lambda_.2} parent=11 // pred_check_branch
          %708 = sbr.rel (%p706) target = $region76
        $region75: #{_lambda_.2} parent=11 // pred_region
          %710 = vsyncadd [#allocation15], 0
          %s712 = sshll.u32 %s17, 4
          %s713 = int_to_ptr.hbm [resolvable:$true] %s712
          %s714 = sshll.u32 [#allocation14], 4
          %s715 = int_to_ptr.vmem [resolvable:$true] %s714
          %717 = dma.hbm_to_vmem [thread:$0]  %s713, 16, %s715, [#allocation15]
        $region76: #{_lambda_.2} parent=11 // pred_fallthru
          _
        // Predicated region
        $region77: #{_lambda_.2} parent=11 // pred_check
          %p718 = pneg %p444
        $region78: #{_lambda_.2} parent=11 // pred_check_branch
          %720 = sbr.rel (%p718) target = $region80
        $region79: #{_lambda_.2} parent=11 // pred_region
          _
        $region80: #{_lambda_.2} parent=11 // pred_fallthru
          _
        // Predicated region
        $region81: #{_lambda_.2} parent=11 // pred_check
          %p721 = pneg %p465
        $region82: #{_lambda_.2} parent=11 // pred_check_branch
          %723 = sbr.rel (%p721) target = $region84
        $region83: #{_lambda_.2} parent=11 // pred_region
          _
        $region84: #{_lambda_.2} parent=11 // pred_fallthru
          _
        // Predicated region
        $region85: #{_lambda_.2} parent=11 // pred_check
          %p724 = pneg %p486
        $region86: #{_lambda_.2} parent=11 // pred_check_branch
          %726 = sbr.rel (%p724) target = $region88
        $region87: #{_lambda_.2} parent=11 // pred_region
          _
        $region88: #{_lambda_.2} parent=11 // pred_fallthru
          _
        // Predicated region
        $region89: #{_lambda_.2} parent=11 // pred_check
          %p727 = pneg %p507
        $region90: #{_lambda_.2} parent=11 // pred_check_branch
          %729 = sbr.rel (%p727) target = $region92
        $region91: #{_lambda_.2} parent=11 // pred_region
          _
        $region92: #{_lambda_.2} parent=11 // pred_fallthru
          _
        // Predicated region
        $region93: #{_lambda_.2} parent=11 // pred_check
          %p730 = pneg %p528
        $region94: #{_lambda_.2} parent=11 // pred_check_branch
          %732 = sbr.rel (%p730) target = $region96
        $region95: #{_lambda_.2} parent=11 // pred_region
          _
        $region96: #{_lambda_.2} parent=11 // pred_fallthru
          _
        // Predicated region
        $region97: #{_lambda_.2} parent=11 // pred_check
          %p733 = pneg %p549
        $region98: #{_lambda_.2} parent=11 // pred_check_branch
          %735 = sbr.rel (%p733) target = $region100
        $region99: #{_lambda_.2} parent=11 // pred_region
          _
        $region100: #{_lambda_.2} parent=11 // pred_fallthru
          _
      $region12: #{_lambda_.2} parent=5 // pred_fallthru
        _
      %p736 = scmp.lt.s32.totalorder %s35, 2
      // Predicated region
      $region101: #{_lambda_.2} parent=5 // pred_check
        %p737 = pneg %p736
      $region102: #{_lambda_.2} parent=5 // pred_check_branch
        %739 = sbr.rel (%p737) target = $region104
      $region103: #{_lambda_.2} parent=5 // pred_region
        // Predicated region
        $region105: #{_lambda_.2} parent=103 // pred_check
          %p740 = pneg %p55
        $region106: #{_lambda_.2} parent=103 // pred_check_branch
          %742 = sbr.rel (%p740) target = $region108
        $region107: #{_lambda_.2} parent=103 // pred_region
          %p743 = scmp.lt.s32.totalorder %s35, 1
          %s744 = scalar_select %p743, %s35, 1
          %s745 = smul.addr %s744, 8
          %s746 = scalar_lea.vmem %s0, %s745
        $region108: #{_lambda_.2} parent=103 // pred_fallthru
          _
        // Predicated region
        $region109: #{_lambda_.2} parent=103 // pred_check
          %p747 = pneg %p81
        $region110: #{_lambda_.2} parent=103 // pred_check_branch
          %749 = sbr.rel (%p747) target = $region112
        $region111: #{_lambda_.2} parent=103 // pred_region
          %p750 = scmp.lt.s32.totalorder %s35, 1
          %s751 = scalar_select %p750, %s35, 1
          %s752 = smul.addr %s751, 2
          %s753 = smul.addr %s752, 8
          %s754 = scalar_lea.vmem %s1, %s753
        $region112: #{_lambda_.2} parent=103 // pred_fallthru
          _
      $region104: #{_lambda_.2} parent=5 // pred_fallthru
        _
      %p755 = scmp.le.s32.totalorder 1, %s35
      %p756 = scmp.lt.s32.totalorder %s35, 3
      %p757 = pnand %p755, %p756
      %p758 = pneg %p757
      // Predicated region
      $region113: #{_lambda_.2} parent=5 // pred_check
        _
      $region114: #{_lambda_.2} parent=5 // pred_check_branch
        %760 = sbr.rel (%p757) target = $region116
      $region115: #{_lambda_.2} parent=5 // pred_region
        %s761 = ssub.s32 %s35, 1
        // Predicated region
        $region117: #{_lambda_.2} parent=115 // pred_check
          %p762 = pneg %p192
        $region118: #{_lambda_.2} parent=115 // pred_check_branch
          %764 = sbr.rel (%p762) target = $region120
        $region119: #{_lambda_.2} parent=115 // pred_region
          %766 = dma.done [#allocation4], 512
        $region120: #{_lambda_.2} parent=115 // pred_fallthru
          _
        // Predicated region
        $region121: #{_lambda_.2} parent=115 // pred_check
          %p767 = pneg %p276
        $region122: #{_lambda_.2} parent=115 // pred_check_branch
          %769 = sbr.rel (%p767) target = $region124
        $region123: #{_lambda_.2} parent=115 // pred_region
          %771 = dma.done [#allocation6], 512
        $region124: #{_lambda_.2} parent=115 // pred_fallthru
          _
        // Predicated region
        $region125: #{_lambda_.2} parent=115 // pred_check
          %p772 = pneg %p297
        $region126: #{_lambda_.2} parent=115 // pred_check_branch
          %774 = sbr.rel (%p772) target = $region128
        $region127: #{_lambda_.2} parent=115 // pred_region
          %776 = dma.done [#allocation6], 16
        $region128: #{_lambda_.2} parent=115 // pred_fallthru
          _
        // Predicated region
        $region129: #{_lambda_.2} parent=115 // pred_check
          %p777 = pneg %p318
        $region130: #{_lambda_.2} parent=115 // pred_check_branch
          %779 = sbr.rel (%p777) target = $region132
        $region131: #{_lambda_.2} parent=115 // pred_region
          %781 = dma.done [#allocation9], 512
        $region132: #{_lambda_.2} parent=115 // pred_fallthru
          _
        // Predicated region
        $region133: #{_lambda_.2} parent=115 // pred_check
          %p782 = pneg %p339
        $region134: #{_lambda_.2} parent=115 // pred_check_branch
          %784 = sbr.rel (%p782) target = $region136
        $region135: #{_lambda_.2} parent=115 // pred_region
          %786 = dma.done [#allocation9], 16
        $region136: #{_lambda_.2} parent=115 // pred_fallthru
          _
        // Predicated region
        $region137: #{_lambda_.2} parent=115 // pred_check
          %p787 = pneg %p360
        $region138: #{_lambda_.2} parent=115 // pred_check_branch
          %789 = sbr.rel (%p787) target = $region140
        $region139: #{_lambda_.2} parent=115 // pred_region
          %791 = dma.done [#allocation12], 512
        $region140: #{_lambda_.2} parent=115 // pred_fallthru
          _
        // Predicated region
        $region141: #{_lambda_.2} parent=115 // pred_check
          %p792 = pneg %p381
        $region142: #{_lambda_.2} parent=115 // pred_check_branch
          %794 = sbr.rel (%p792) target = $region144
        $region143: #{_lambda_.2} parent=115 // pred_region
          %796 = dma.done [#allocation12], 16
        $region144: #{_lambda_.2} parent=115 // pred_fallthru
          _
        // Predicated region
        $region145: #{_lambda_.2} parent=115 // pred_check
          %p797 = pneg %p423
        $region146: #{_lambda_.2} parent=115 // pred_check_branch
          %799 = sbr.rel (%p797) target = $region148
        $region147: #{_lambda_.2} parent=115 // pred_region
          %801 = dma.done [#allocation15], 16
        $region148: #{_lambda_.2} parent=115 // pred_fallthru
          _
        %p802 = scmp.lt.s32.totalorder %s40, 1
        %s803 = scalar_select %p802, %s40, 1
        %s804 = smul.addr %s803, 8
        %s805 = scalar_lea.vmem %s0, %s804
        %p806 = pneg %p61
        %p807 = pneg %p58
        %p808 = scmp.lt.s32.totalorder %s40, 1
        %s809 = scalar_select %p808, %s40, 1
        %s810 = smul.addr %s809, 2
        %s811 = smul.addr %s810, 8
        %s812 = scalar_lea.vmem %s1, %s811
        %p813 = pneg %p87
        %p814 = pneg %p84
        %p815 = pneg %p108
        %p816 = pneg %p105
        %p817 = pneg %p129
        %p818 = pneg %p126
        %p819 = pneg %p150
        %p820 = pneg %p147
        %p821 = pneg %p171
        %p822 = pneg %p168
        %p823 = pneg %p192
        %p824 = pneg %p189
        %p825 = pneg %p213
        %p826 = pneg %p210
        %p827 = pneg %p234
        %p828 = pneg %p231
        %p829 = pneg %p255
        %p830 = pneg %p252
        %p831 = pneg %p276
        %p832 = pneg %p273
        %p833 = pneg %p297
        %p834 = pneg %p294
        %p835 = pneg %p318
        %p836 = pneg %p315
        %p837 = pneg %p339
        %p838 = pneg %p336
        %p839 = pneg %p360
        %p840 = pneg %p357
        %p841 = pneg %p381
        %p842 = pneg %p378
        %p843 = pneg %p402
        %p844 = pneg %p399
        %p845 = pneg %p423
        %p846 = pneg %p420
        %p847 = pneg %p444
        %p848 = pneg %p441
        %p849 = pneg %p465
        %p850 = pneg %p462
        %p851 = pneg %p486
        %p852 = pneg %p483
        %p853 = pneg %p507
        %p854 = pneg %p504
        %p855 = pneg %p528
        %p856 = pneg %p525
        %p857 = pneg %p549
        %p858 = pneg %p546
        %p859 = pneg %p575
        %p860 = pneg %p572
        %p861 = scmp.lt.s32.totalorder %s40, 1
        %s862 = scalar_select %p861, %s40, 1
        %s863 = smul.addr %s862, 8
        %s864 = scalar_lea.vmem %s24, %s863
        %p865 = scmp.lt.s32.totalorder %s40, 1
        %s866 = scalar_select %p865, %s40, 1
        %s867 = smul.addr %s866, 8
        %s868 = scalar_lea.vmem %s0, %s867
        %p869 = scmp.lt.s32.totalorder %s40, 1
        %s870 = scalar_select %p869, %s40, 1
        %s871 = smul.addr %s870, 2
        %s872 = smul.addr %s871, 8
        %s873 = scalar_lea.vmem %s1, %s872
        %p874 = scmp.lt.s32.totalorder %s40, 1
        %s875 = scalar_select %p874, %s40, 1
        %s876 = smul.addr %s875, 8
        %s877 = scalar_lea.vmem %s24, %s876
        %v879 = vld [vmem:[%s868] sm:$0xff]
        %v880 = vld [vmem:[%s2] sm:$0x1]
        %v881 = vld [vmem:[%s3] sm:$0x1]
        %vm882 = vcmask 523264
        %v883 = vsel %vm882, %v879, 0.0
        %884 = vadd.xlane.f32.xlu0 %v883
        %v885 = vpop.xlane.xlu0 %884
        %v886 = vrcp.pop 64.0
        %v887 = vmul.f32 64.0, %v886
        %v888 = vsub.f32 1.0, %v887
        %v889 = vmul.f32 %v886, %v888
        %v890 = vadd.f32 %v886, %v889
        %vm891 = vweird.f32 %v886
        %v892 = vsel %vm891, %v886, %v890
        %v893 = vmul.f32 %v885, %v892
        %v894 = vsub.f32 %v879, %v893
        %v895 = vmul.f32 %v894, %v894
        %v896 = vsel %vm882, %v895, 0.0
        %897 = vadd.xlane.f32.xlu0 %v896
        %v898 = vpop.xlane.xlu0 %897
        %v899 = vmul.f32 %v898, %v892
        %v900 = vadd.f32 %v899, 1e-12
        %v901 = vrsqrt.pop %v900
        %v902 = vmul.f32 %v901, %v900
        %v903 = vmul.f32 %v902, %v901
        %v904 = vmul.f32 0.5, %v903
        %v905 = vsub.f32 1.5, %v904
        %v906 = vmul.f32 %v901, %v905
        %vm907 = vweird.f32 %v900
        %vm908 = vweird.f32 %v901
        %vm909 = vmor %vm907, %vm908
        %v910 = vsel %vm909, %v901, %v906
        %v911 = vmul.f32 %v894, %v910
        %v913 = vperm.slane %v880, 0
        %v915 = vmul.f32 %v911, %v913
        %v917 = vperm.slane %v881, 0
        %v919 = vadd.f32 %v915, %v917
        %v920 = vpack.c.bf16 %v919, %v919
        %v921 = vld [vmem:[%s4] sm:$0xff]
        %v922 = vld [vmem:[%s4 + $0x8] sm:$0xff]
        %v923 = vld [vmem:[%s4 + $0x10] sm:$0xff]
        %v924 = vld [vmem:[%s4 + $0x18] sm:$0xff]
        %v925 = vld [vmem:[%s4 + $0x20] sm:$0xff]
        %v926 = vld [vmem:[%s4 + $0x28] sm:$0xff]
        %v927 = vld [vmem:[%s4 + $0x30] sm:$0xff]
        %v928 = vld [vmem:[%s4 + $0x38] sm:$0xff]
        %v929 = vld [vmem:[%s5] sm:$0x3]
        %v931 = vperm.slane %v929, 0
        %v932 = vperm.slane %v929, 1
        %v943 = vunpack.c.l.b16 %v921
        %v944 = vunpack.c.h.b16 %v921
        %v945 = vunpack.c.l.b16 %v922
        %v946 = vunpack.c.h.b16 %v922
        %v947 = vunpack.c.l.b16 %v923
        %v948 = vunpack.c.h.b16 %v923
        %v949 = vunpack.c.l.b16 %v924
        %v950 = vunpack.c.h.b16 %v924
        %v951 = vunpack.c.l.b16 %v925
        %v952 = vunpack.c.h.b16 %v925
        %v953 = vunpack.c.l.b16 %v926
        %v954 = vunpack.c.h.b16 %v926
        %v955 = vunpack.c.l.b16 %v927
        %v956 = vunpack.c.h.b16 %v927
        %v957 = vunpack.c.l.b16 %v928
        %v958 = vunpack.c.h.b16 %v928
        %v959 = vpack.c.b16 %v945, %v943
        %v960 = vpack.c.b16 %v946, %v944
        %v961 = vpack.c.b16 %v949, %v947
        %v962 = vpack.c.b16 %v950, %v948
        %v963 = vpack.c.b16 %v953, %v951
        %v964 = vpack.c.b16 %v954, %v952
        %v965 = vpack.c.b16 %v957, %v955
        %v966 = vpack.c.b16 %v958, %v956
        %v976 = vsel %vm882, %v920, 0
        %978 = vmatpush.bf16.msra.mxu0 0
        %979 = vmatpush.bf16.msra.mxu0 0
        %980 = vmatpush.bf16.msra.mxu0 0
        %981 = vmatpush.bf16.msra.mxu0 0
        %982 = vmatpush.bf16.msra.mxu0 %v965
        %983 = vmatpush.bf16.msra.mxu0 %v963
        %984 = vmatpush.bf16.msra.mxu0 %v961
        %985 = vmatpush.bf16.msra.mxu0 %v959
        %986 = vmatmul.bf16.gmra.mxu0 %v976
        %v987 = vpop.f32.mrf.mxu0
        %v988 = vadd.f32 %v931, %v987
        %v989 = vpop.f32.mrf.mxu0
        %990 = vdwg.mxu0
        %991 = vmatpush.bf16.msra.mxu0 0
        %992 = vmatpush.bf16.msra.mxu0 0
        %993 = vmatpush.bf16.msra.mxu0 0
        %994 = vmatpush.bf16.msra.mxu0 0
        %995 = vmatpush.bf16.msra.mxu0 %v966
        %996 = vmatpush.bf16.msra.mxu0 %v964
        %997 = vmatpush.bf16.msra.mxu0 %v962
        %998 = vmatpush.bf16.msra.mxu0 %v960
        %999 = vmatmul.bf16.gmra.mxu0 %v976
        %v1000 = vpop.f32.mrf.mxu0
        %v1001 = vadd.f32 %v932, %v1000
        %v1002 = vpop.f32.mrf.mxu0
        %1003 = vdwg.mxu0
        %1005 = vrot.lane.b32.xlu0 %v988, 64
        %v1006 = vpop.permute.xlu0 %1005
        %vm1007 = vcmask 31744
        %v1008 = vsel %vm1007, %v988, 0
        %v1010 = vsel %vm1007, %v1006, 0
        %1012 = vmatpush.xpose.msra.mxu0 0.0
        %1013 = vmatpush.xpose.msra.mxu0 0.0
        %1014 = vmatpush.xpose.msra.mxu0 0.0
        %1015 = vmatpush.xpose.msra.mxu0 0.0
        %1016 = vmatpush.xpose.msra.mxu0 0.0
        %1017 = vmatpush.xpose.msra.mxu0 0.0
        %1018 = vmatpush.xpose.msra.mxu0 0.0
        %1019 = vmatpush.xpose.msra.mxu0 0.0
        %1020 = vmatpush.xpose.msra.mxu0 0.0
        %1021 = vmatpush.xpose.msra.mxu0 0.0
        %1022 = vmatpush.xpose.msra.mxu0 0.0
        %1023 = vmatpush.xpose.msra.mxu0 0.0
        %1024 = vmatpush.xpose.msra.mxu0 0.0
        %1025 = vmatpush.xpose.msra.mxu0 0.0
        %1026 = vmatpush.xpose.msra.mxu0 0.0
        %1027 = vmatpush.xpose.msra.mxu0 %v1010
        %1028 = vmatmul.f32.gmra.mxu0 %v1008
        %v1029 = vpop.f32.mrf.mxu0
        %v1030 = vadd.f32 0.0, %v1029
        %1031 = vdwg.mxu0
        %v1032 = vmul.f32 %v1030, 0.5
        %vm1033 = vcmask 64512
        %v1034 = vsel %vm1033, %v1032, -inf
        %1035 = vmax.xlane.f32.xlu0 %v1034
        %v1036 = vpop.xlane.xlu0 %1035
        %v1037 = vsub.f32 %v1032, %v1036
        %v1038 = vmul.f32 %v1037, 1.442695
        %v1039 = vpow.pop %v1038
        %v1040 = vsel %vm1033, %v1039, 0.0
        %1041 = vadd.xlane.f32.xlu0 %v1040
        %v1042 = vpop.xlane.xlu0 %1041
        %v1043 = vrcp.pop %v1042
        %v1044 = vmul.f32 %v1039, %v1043
        %v1046 = vsel %vm1033, %v1044, 0
        %1048 = vmatpush.msra.mxu0 0.0
        %1049 = vmatpush.msra.mxu0 0.0
        %1050 = vmatpush.msra.mxu0 0.0
        %1051 = vmatpush.msra.mxu0 0.0
        %1052 = vmatpush.msra.mxu0 0.0
        %1053 = vmatpush.msra.mxu0 0.0
        %1054 = vmatpush.msra.mxu0 0.0
        %1055 = vmatpush.msra.mxu0 0.0
        %1056 = vmatpush.msra.mxu0 0.0
        %1057 = vmatpush.msra.mxu0 0.0
        %1058 = vmatpush.msra.mxu0 0.0
        %1059 = vmatpush.msra.mxu0 0.0
        %1060 = vmatpush.msra.mxu0 0.0
        %1061 = vmatpush.msra.mxu0 0.0
        %1062 = vmatpush.msra.mxu0 0.0
        %1063 = vmatpush.msra.mxu0 %v1001
        %1064 = vmatmul.f32.gmra.mxu0 %v1046
        %v1065 = vpop.f32.mrf.mxu0
        %v1066 = vadd.f32 0.0, %v1065
        %1067 = vdwg.mxu0
        %1068 = vst.msk [vmem:[#allocation2] sm:$0xff] %vm1007, %v1066
        %1069 = vrot.lane.b32.xlu0 %v988, 124
        %v1070 = vpop.permute.xlu0 %1069
        %1071 = vrot.lane.b32.xlu0 %v988, 60
        %v1072 = vpop.permute.xlu0 %1071
        %v1073 = vsel %vm1007, %v1070, 0
        %v1075 = vsel %vm1007, %v1072, 0
        %1077 = vmatpush.xpose.msra.mxu0 0.0
        %1078 = vmatpush.xpose.msra.mxu0 0.0
        %1079 = vmatpush.xpose.msra.mxu0 0.0
        %1080 = vmatpush.xpose.msra.mxu0 0.0
        %1081 = vmatpush.xpose.msra.mxu0 0.0
        %1082 = vmatpush.xpose.msra.mxu0 0.0
        %1083 = vmatpush.xpose.msra.mxu0 0.0
        %1084 = vmatpush.xpose.msra.mxu0 0.0
        %1085 = vmatpush.xpose.msra.mxu0 0.0
        %1086 = vmatpush.xpose.msra.mxu0 0.0
        %1087 = vmatpush.xpose.msra.mxu0 0.0
        %1088 = vmatpush.xpose.msra.mxu0 0.0
        %1089 = vmatpush.xpose.msra.mxu0 0.0
        %1090 = vmatpush.xpose.msra.mxu0 0.0
        %1091 = vmatpush.xpose.msra.mxu0 0.0
        %1092 = vmatpush.xpose.msra.mxu0 %v1075
        %1093 = vmatmul.f32.gmra.mxu0 %v1073
        %v1094 = vpop.f32.mrf.mxu0
        %v1095 = vadd.f32 0.0, %v1094
        %1096 = vdwg.mxu0
        %v1097 = vmul.f32 %v1095, 0.5
        %v1098 = vsel %vm1033, %v1097, -inf
        %1099 = vmax.xlane.f32.xlu0 %v1098
        %v1100 = vpop.xlane.xlu0 %1099
        %v1101 = vsub.f32 %v1097, %v1100
        %v1102 = vmul.f32 %v1101, 1.442695
        %v1103 = vpow.pop %v1102
        %v1104 = vsel %vm1033, %v1103, 0.0
        %1105 = vadd.xlane.f32.xlu0 %v1104
        %v1106 = vpop.xlane.xlu0 %1105
        %v1107 = vrcp.pop %v1106
        %v1108 = vmul.f32 %v1103, %v1107
        %1110 = vrot.lane.b32.xlu0 %v1001, 124
        %v1111 = vpop.permute.xlu0 %1110
        %v1114 = vsel %vm1033, %v1108, 0
        %1116 = vmatpush.msra.mxu0 0.0
        %1117 = vmatpush.msra.mxu0 0.0
        %1118 = vmatpush.msra.mxu0 0.0
        %1119 = vmatpush.msra.mxu0 0.0
        %1120 = vmatpush.msra.mxu0 0.0
        %1121 = vmatpush.msra.mxu0 0.0
        %1122 = vmatpush.msra.mxu0 0.0
        %1123 = vmatpush.msra.mxu0 0.0
        %1124 = vmatpush.msra.mxu0 0.0
        %1125 = vmatpush.msra.mxu0 0.0
        %1126 = vmatpush.msra.mxu0 0.0
        %1127 = vmatpush.msra.mxu0 0.0
        %1128 = vmatpush.msra.mxu0 0.0
        %1129 = vmatpush.msra.mxu0 0.0
        %1130 = vmatpush.msra.mxu0 0.0
        %1131 = vmatpush.msra.mxu0 %v1111
        %1132 = vmatmul.f32.gmra.mxu0 %v1114
        %v1133 = vpop.f32.mrf.mxu0
        %v1134 = vadd.f32 0.0, %v1133
        %1135 = vdwg.mxu0
        %1137 = vrot.lane.b32.xlu0 %v1134, 4
        %v1138 = vpop.permute.xlu0 %1137
        %vm1140 = vcmask 64544
        %1141 = vst.msk [vmem:[#allocation2] sm:$0xff] %vm1140, %v1138
        %1142 = vrot.lane.b32.xlu0 %v988, 120
        %v1143 = vpop.permute.xlu0 %1142
        %1144 = vrot.lane.b32.xlu0 %v988, 56
        %v1145 = vpop.permute.xlu0 %1144
        %v1146 = vsel %vm1007, %v1143, 0
        %v1148 = vsel %vm1007, %v1145, 0
        %1150 = vmatpush.xpose.msra.mxu0 0.0
        %1151 = vmatpush.xpose.msra.mxu0 0.0
        %1152 = vmatpush.xpose.msra.mxu0 0.0
        %1153 = vmatpush.xpose.msra.mxu0 0.0
        %1154 = vmatpush.xpose.msra.mxu0 0.0
        %1155 = vmatpush.xpose.msra.mxu0 0.0
        %1156 = vmatpush.xpose.msra.mxu0 0.0
        %1157 = vmatpush.xpose.msra.mxu0 0.0
        %1158 = vmatpush.xpose.msra.mxu0 0.0
        %1159 = vmatpush.xpose.msra.mxu0 0.0
        %1160 = vmatpush.xpose.msra.mxu0 0.0
        %1161 = vmatpush.xpose.msra.mxu0 0.0
        %1162 = vmatpush.xpose.msra.mxu0 0.0
        %1163 = vmatpush.xpose.msra.mxu0 0.0
        %1164 = vmatpush.xpose.msra.mxu0 0.0
        %1165 = vmatpush.xpose.msra.mxu0 %v1148
        %1166 = vmatmul.f32.gmra.mxu0 %v1146
        %v1167 = vpop.f32.mrf.mxu0
        %v1168 = vadd.f32 0.0, %v1167
        %1169 = vdwg.mxu0
        %v1170 = vmul.f32 %v1168, 0.5
        %v1171 = vsel %vm1033, %v1170, -inf
        %1172 = vmax.xlane.f32.xlu0 %v1171
        %v1173 = vpop.xlane.xlu0 %1172
        %v1174 = vsub.f32 %v1170, %v1173
        %v1175 = vmul.f32 %v1174, 1.442695
        %v1176 = vpow.pop %v1175
        %v1177 = vsel %vm1033, %v1176, 0.0
        %1178 = vadd.xlane.f32.xlu0 %v1177
        %v1179 = vpop.xlane.xlu0 %1178
        %v1180 = vrcp.pop %v1179
        %v1181 = vmul.f32 %v1176, %v1180
        %1182 = vrot.lane.b32.xlu0 %v1001, 120
        %v1183 = vpop.permute.xlu0 %1182
        %v1186 = vsel %vm1033, %v1181, 0
        %1188 = vmatpush.msra.mxu0 0.0
        %1189 = vmatpush.msra.mxu0 0.0
        %1190 = vmatpush.msra.mxu0 0.0
        %1191 = vmatpush.msra.mxu0 0.0
        %1192 = vmatpush.msra.mxu0 0.0
        %1193 = vmatpush.msra.mxu0 0.0
        %1194 = vmatpush.msra.mxu0 0.0
        %1195 = vmatpush.msra.mxu0 0.0
        %1196 = vmatpush.msra.mxu0 0.0
        %1197 = vmatpush.msra.mxu0 0.0
        %1198 = vmatpush.msra.mxu0 0.0
        %1199 = vmatpush.msra.mxu0 0.0
        %1200 = vmatpush.msra.mxu0 0.0
        %1201 = vmatpush.msra.mxu0 0.0
        %1202 = vmatpush.msra.mxu0 0.0
        %1203 = vmatpush.msra.mxu0 %v1183
        %1204 = vmatmul.f32.gmra.mxu0 %v1186
        %v1205 = vpop.f32.mrf.mxu0
        %v1206 = vadd.f32 0.0, %v1205
        %1207 = vdwg.mxu0
        %1209 = vrot.lane.b32.xlu0 %v1206, 8
        %v1210 = vpop.permute.xlu0 %1209
        %vm1212 = vcmask 97344
        %1213 = vst.msk [vmem:[#allocation2] sm:$0xff] %vm1212, %v1210
        %1214 = vrot.lane.b32.xlu0 %v988, 116
        %v1215 = vpop.permute.xlu0 %1214
        %1216 = vrot.lane.b32.xlu0 %v988, 52
        %v1217 = vpop.permute.xlu0 %1216
        %v1218 = vsel %vm1007, %v1215, 0
        %v1220 = vsel %vm1007, %v1217, 0
        %1222 = vmatpush.xpose.msra.mxu0 0.0
        %1223 = vmatpush.xpose.msra.mxu0 0.0
        %1224 = vmatpush.xpose.msra.mxu0 0.0
        %1225 = vmatpush.xpose.msra.mxu0 0.0
        %1226 = vmatpush.xpose.msra.mxu0 0.0
        %1227 = vmatpush.xpose.msra.mxu0 0.0
        %1228 = vmatpush.xpose.msra.mxu0 0.0
        %1229 = vmatpush.xpose.msra.mxu0 0.0
        %1230 = vmatpush.xpose.msra.mxu0 0.0
        %1231 = vmatpush.xpose.msra.mxu0 0.0
        %1232 = vmatpush.xpose.msra.mxu0 0.0
        %1233 = vmatpush.xpose.msra.mxu0 0.0
        %1234 = vmatpush.xpose.msra.mxu0 0.0
        %1235 = vmatpush.xpose.msra.mxu0 0.0
        %1236 = vmatpush.xpose.msra.mxu0 0.0
        %1237 = vmatpush.xpose.msra.mxu0 %v1220
        %1238 = vmatmul.f32.gmra.mxu0 %v1218
        %v1239 = vpop.f32.mrf.mxu0
        %v1240 = vadd.f32 0.0, %v1239
        %1241 = vdwg.mxu0
        %v1242 = vmul.f32 %v1240, 0.5
        %v1243 = vsel %vm1033, %v1242, -inf
        %1244 = vmax.xlane.f32.xlu0 %v1243
        %v1245 = vpop.xlane.xlu0 %1244
        %v1246 = vsub.f32 %v1242, %v1245
        %v1247 = vmul.f32 %v1246, 1.442695
        %v1248 = vpow.pop %v1247
        %v1249 = vsel %vm1033, %v1248, 0.0
        %1250 = vadd.xlane.f32.xlu0 %v1249
        %v1251 = vpop.xlane.xlu0 %1250
        %v1252 = vrcp.pop %v1251
        %v1253 = vmul.f32 %v1248, %v1252
        %1254 = vrot.lane.b32.xlu0 %v1001, 116
        %v1255 = vpop.permute.xlu0 %1254
        %v1258 = vsel %vm1033, %v1253, 0
        %1260 = vmatpush.msra.mxu0 0.0
        %1261 = vmatpush.msra.mxu0 0.0
        %1262 = vmatpush.msra.mxu0 0.0
        %1263 = vmatpush.msra.mxu0 0.0
        %1264 = vmatpush.msra.mxu0 0.0
        %1265 = vmatpush.msra.mxu0 0.0
        %1266 = vmatpush.msra.mxu0 0.0
        %1267 = vmatpush.msra.mxu0 0.0
        %1268 = vmatpush.msra.mxu0 0.0
        %1269 = vmatpush.msra.mxu0 0.0
        %1270 = vmatpush.msra.mxu0 0.0
        %1271 = vmatpush.msra.mxu0 0.0
        %1272 = vmatpush.msra.mxu0 0.0
        %1273 = vmatpush.msra.mxu0 0.0
        %1274 = vmatpush.msra.mxu0 0.0
        %1275 = vmatpush.msra.mxu0 %v1255
        %1276 = vmatmul.f32.gmra.mxu0 %v1258
        %v1277 = vpop.f32.mrf.mxu0
        %v1278 = vadd.f32 0.0, %v1277
        %1279 = vdwg.mxu0
        %1281 = vrot.lane.b32.xlu0 %v1278, 12
        %v1282 = vpop.permute.xlu0 %1281
        %vm1284 = vcmask 130144
        %1285 = vst.msk [vmem:[#allocation2] sm:$0xff] %vm1284, %v1282
        %1286 = vrot.lane.b32.xlu0 %v988, 112
        %v1287 = vpop.permute.xlu0 %1286
        %1288 = vrot.lane.b32.xlu0 %v988, 48
        %v1289 = vpop.permute.xlu0 %1288
        %v1290 = vsel %vm1007, %v1287, 0
        %v1292 = vsel %vm1007, %v1289, 0
        %1294 = vmatpush.xpose.msra.mxu0 0.0
        %1295 = vmatpush.xpose.msra.mxu0 0.0
        %1296 = vmatpush.xpose.msra.mxu0 0.0
        %1297 = vmatpush.xpose.msra.mxu0 0.0
        %1298 = vmatpush.xpose.msra.mxu0 0.0
        %1299 = vmatpush.xpose.msra.mxu0 0.0
        %1300 = vmatpush.xpose.msra.mxu0 0.0
        %1301 = vmatpush.xpose.msra.mxu0 0.0
        %1302 = vmatpush.xpose.msra.mxu0 0.0
        %1303 = vmatpush.xpose.msra.mxu0 0.0
        %1304 = vmatpush.xpose.msra.mxu0 0.0
        %1305 = vmatpush.xpose.msra.mxu0 0.0
        %1306 = vmatpush.xpose.msra.mxu0 0.0
        %1307 = vmatpush.xpose.msra.mxu0 0.0
        %1308 = vmatpush.xpose.msra.mxu0 0.0
        %1309 = vmatpush.xpose.msra.mxu0 %v1292
        %1310 = vmatmul.f32.gmra.mxu0 %v1290
        %v1311 = vpop.f32.mrf.mxu0
        %v1312 = vadd.f32 0.0, %v1311
        %1313 = vdwg.mxu0
        %v1314 = vmul.f32 %v1312, 0.5
        %v1315 = vsel %vm1033, %v1314, -inf
        %1316 = vmax.xlane.f32.xlu0 %v1315
        %v1317 = vpop.xlane.xlu0 %1316
        %v1318 = vsub.f32 %v1314, %v1317
        %v1319 = vmul.f32 %v1318, 1.442695
        %v1320 = vpow.pop %v1319
        %v1321 = vsel %vm1033, %v1320, 0.0
        %1322 = vadd.xlane.f32.xlu0 %v1321
        %v1323 = vpop.xlane.xlu0 %1322
        %v1324 = vrcp.pop %v1323
        %v1325 = vmul.f32 %v1320, %v1324
        %1326 = vrot.lane.b32.xlu0 %v1001, 112
        %v1327 = vpop.permute.xlu0 %1326
        %v1330 = vsel %vm1033, %v1325, 0
        %1332 = vmatpush.msra.mxu0 0.0
        %1333 = vmatpush.msra.mxu0 0.0
        %1334 = vmatpush.msra.mxu0 0.0
        %1335 = vmatpush.msra.mxu0 0.0
        %1336 = vmatpush.msra.mxu0 0.0
        %1337 = vmatpush.msra.mxu0 0.0
        %1338 = vmatpush.msra.mxu0 0.0
        %1339 = vmatpush.msra.mxu0 0.0
        %1340 = vmatpush.msra.mxu0 0.0
        %1341 = vmatpush.msra.mxu0 0.0
        %1342 = vmatpush.msra.mxu0 0.0
        %1343 = vmatpush.msra.mxu0 0.0
        %1344 = vmatpush.msra.mxu0 0.0
        %1345 = vmatpush.msra.mxu0 0.0
        %1346 = vmatpush.msra.mxu0 0.0
        %1347 = vmatpush.msra.mxu0 %v1327
        %1348 = vmatmul.f32.gmra.mxu0 %v1330
        %v1349 = vpop.f32.mrf.mxu0
        %v1350 = vadd.f32 0.0, %v1349
        %1351 = vdwg.mxu0
        %1353 = vrot.lane.b32.xlu0 %v1350, 16
        %v1354 = vpop.permute.xlu0 %1353
        %vm1356 = vcmask 162944
        %1357 = vst.msk [vmem:[#allocation2] sm:$0xff] %vm1356, %v1354
        %1358 = vrot.lane.b32.xlu0 %v988, 108
        %v1359 = vpop.permute.xlu0 %1358
        %1360 = vrot.lane.b32.xlu0 %v988, 44
        %v1361 = vpop.permute.xlu0 %1360
        %v1362 = vsel %vm1007, %v1359, 0
        %v1364 = vsel %vm1007, %v1361, 0
        %1366 = vmatpush.xpose.msra.mxu0 0.0
        %1367 = vmatpush.xpose.msra.mxu0 0.0
        %1368 = vmatpush.xpose.msra.mxu0 0.0
        %1369 = vmatpush.xpose.msra.mxu0 0.0
        %1370 = vmatpush.xpose.msra.mxu0 0.0
        %1371 = vmatpush.xpose.msra.mxu0 0.0
        %1372 = vmatpush.xpose.msra.mxu0 0.0
        %1373 = vmatpush.xpose.msra.mxu0 0.0
        %1374 = vmatpush.xpose.msra.mxu0 0.0
        %1375 = vmatpush.xpose.msra.mxu0 0.0
        %1376 = vmatpush.xpose.msra.mxu0 0.0
        %1377 = vmatpush.xpose.msra.mxu0 0.0
        %1378 = vmatpush.xpose.msra.mxu0 0.0
        %1379 = vmatpush.xpose.msra.mxu0 0.0
        %1380 = vmatpush.xpose.msra.mxu0 0.0
        %1381 = vmatpush.xpose.msra.mxu0 %v1364
        %1382 = vmatmul.f32.gmra.mxu0 %v1362
        %v1383 = vpop.f32.mrf.mxu0
        %v1384 = vadd.f32 0.0, %v1383
        %1385 = vdwg.mxu0
        %v1386 = vmul.f32 %v1384, 0.5
        %v1387 = vsel %vm1033, %v1386, -inf
        %1388 = vmax.xlane.f32.xlu0 %v1387
        %v1389 = vpop.xlane.xlu0 %1388
        %v1390 = vsub.f32 %v1386, %v1389
        %v1391 = vmul.f32 %v1390, 1.442695
        %v1392 = vpow.pop %v1391
        %v1393 = vsel %vm1033, %v1392, 0.0
        %1394 = vadd.xlane.f32.xlu0 %v1393
        %v1395 = vpop.xlane.xlu0 %1394
        %v1396 = vrcp.pop %v1395
        %v1397 = vmul.f32 %v1392, %v1396
        %1398 = vrot.lane.b32.xlu0 %v1001, 108
        %v1399 = vpop.permute.xlu0 %1398
        %v1402 = vsel %vm1033, %v1397, 0
        %1404 = vmatpush.msra.mxu0 0.0
        %1405 = vmatpush.msra.mxu0 0.0
        %1406 = vmatpush.msra.mxu0 0.0
        %1407 = vmatpush.msra.mxu0 0.0
        %1408 = vmatpush.msra.mxu0 0.0
        %1409 = vmatpush.msra.mxu0 0.0
        %1410 = vmatpush.msra.mxu0 0.0
        %1411 = vmatpush.msra.mxu0 0.0
        %1412 = vmatpush.msra.mxu0 0.0
        %1413 = vmatpush.msra.mxu0 0.0
        %1414 = vmatpush.msra.mxu0 0.0
        %1415 = vmatpush.msra.mxu0 0.0
        %1416 = vmatpush.msra.mxu0 0.0
        %1417 = vmatpush.msra.mxu0 0.0
        %1418 = vmatpush.msra.mxu0 0.0
        %1419 = vmatpush.msra.mxu0 %v1399
        %1420 = vmatmul.f32.gmra.mxu0 %v1402
        %v1421 = vpop.f32.mrf.mxu0
        %v1422 = vadd.f32 0.0, %v1421
        %1423 = vdwg.mxu0
        %1425 = vrot.lane.b32.xlu0 %v1422, 20
        %v1426 = vpop.permute.xlu0 %1425
        %vm1428 = vcmask 195744
        %1429 = vst.msk [vmem:[#allocation2] sm:$0xff] %vm1428, %v1426
        %1430 = vrot.lane.b32.xlu0 %v988, 104
        %v1431 = vpop.permute.xlu0 %1430
        %1432 = vrot.lane.b32.xlu0 %v988, 40
        %v1433 = vpop.permute.xlu0 %1432
        %v1434 = vsel %vm1007, %v1431, 0
        %v1436 = vsel %vm1007, %v1433, 0
        %1438 = vmatpush.xpose.msra.mxu0 0.0
        %1439 = vmatpush.xpose.msra.mxu0 0.0
        %1440 = vmatpush.xpose.msra.mxu0 0.0
        %1441 = vmatpush.xpose.msra.mxu0 0.0
        %1442 = vmatpush.xpose.msra.mxu0 0.0
        %1443 = vmatpush.xpose.msra.mxu0 0.0
        %1444 = vmatpush.xpose.msra.mxu0 0.0
        %1445 = vmatpush.xpose.msra.mxu0 0.0
        %1446 = vmatpush.xpose.msra.mxu0 0.0
        %1447 = vmatpush.xpose.msra.mxu0 0.0
        %1448 = vmatpush.xpose.msra.mxu0 0.0
        %1449 = vmatpush.xpose.msra.mxu0 0.0
        %1450 = vmatpush.xpose.msra.mxu0 0.0
        %1451 = vmatpush.xpose.msra.mxu0 0.0
        %1452 = vmatpush.xpose.msra.mxu0 0.0
        %1453 = vmatpush.xpose.msra.mxu0 %v1436
        %1454 = vmatmul.f32.gmra.mxu0 %v1434
        %v1455 = vpop.f32.mrf.mxu0
        %v1456 = vadd.f32 0.0, %v1455
        %1457 = vdwg.mxu0
        %v1458 = vmul.f32 %v1456, 0.5
        %v1459 = vsel %vm1033, %v1458, -inf
        %1460 = vmax.xlane.f32.xlu0 %v1459
        %v1461 = vpop.xlane.xlu0 %1460
        %v1462 = vsub.f32 %v1458, %v1461
        %v1463 = vmul.f32 %v1462, 1.442695
        %v1464 = vpow.pop %v1463
        %v1465 = vsel %vm1033, %v1464, 0.0
        %1466 = vadd.xlane.f32.xlu0 %v1465
        %v1467 = vpop.xlane.xlu0 %1466
        %v1468 = vrcp.pop %v1467
        %v1469 = vmul.f32 %v1464, %v1468
        %1470 = vrot.lane.b32.xlu0 %v1001, 104
        %v1471 = vpop.permute.xlu0 %1470
        %v1474 = vsel %vm1033, %v1469, 0
        %1476 = vmatpush.msra.mxu0 0.0
        %1477 = vmatpush.msra.mxu0 0.0
        %1478 = vmatpush.msra.mxu0 0.0
        %1479 = vmatpush.msra.mxu0 0.0
        %1480 = vmatpush.msra.mxu0 0.0
        %1481 = vmatpush.msra.mxu0 0.0
        %1482 = vmatpush.msra.mxu0 0.0
        %1483 = vmatpush.msra.mxu0 0.0
        %1484 = vmatpush.msra.mxu0 0.0
        %1485 = vmatpush.msra.mxu0 0.0
        %1486 = vmatpush.msra.mxu0 0.0
        %1487 = vmatpush.msra.mxu0 0.0
        %1488 = vmatpush.msra.mxu0 0.0
        %1489 = vmatpush.msra.mxu0 0.0
        %1490 = vmatpush.msra.mxu0 0.0
        %1491 = vmatpush.msra.mxu0 %v1471
        %1492 = vmatmul.f32.gmra.mxu0 %v1474
        %v1493 = vpop.f32.mrf.mxu0
        %v1494 = vadd.f32 0.0, %v1493
        %1495 = vdwg.mxu0
        %1497 = vrot.lane.b32.xlu0 %v1494, 24
        %v1498 = vpop.permute.xlu0 %1497
        %vm1500 = vcmask 228544
        %1501 = vst.msk [vmem:[#allocation2] sm:$0xff] %vm1500, %v1498
        %1502 = vrot.lane.b32.xlu0 %v988, 100
        %v1503 = vpop.permute.xlu0 %1502
        %1504 = vrot.lane.b32.xlu0 %v988, 36
        %v1505 = vpop.permute.xlu0 %1504
        %v1506 = vsel %vm1007, %v1503, 0
        %v1508 = vsel %vm1007, %v1505, 0
        %1510 = vmatpush.xpose.msra.mxu0 0.0
        %1511 = vmatpush.xpose.msra.mxu0 0.0
        %1512 = vmatpush.xpose.msra.mxu0 0.0
        %1513 = vmatpush.xpose.msra.mxu0 0.0
        %1514 = vmatpush.xpose.msra.mxu0 0.0
        %1515 = vmatpush.xpose.msra.mxu0 0.0
        %1516 = vmatpush.xpose.msra.mxu0 0.0
        %1517 = vmatpush.xpose.msra.mxu0 0.0
        %1518 = vmatpush.xpose.msra.mxu0 0.0
        %1519 = vmatpush.xpose.msra.mxu0 0.0
        %1520 = vmatpush.xpose.msra.mxu0 0.0
        %1521 = vmatpush.xpose.msra.mxu0 0.0
        %1522 = vmatpush.xpose.msra.mxu0 0.0
        %1523 = vmatpush.xpose.msra.mxu0 0.0
        %1524 = vmatpush.xpose.msra.mxu0 0.0
        %1525 = vmatpush.xpose.msra.mxu0 %v1508
        %1526 = vmatmul.f32.gmra.mxu0 %v1506
        %v1527 = vpop.f32.mrf.mxu0
        %v1528 = vadd.f32 0.0, %v1527
        %1529 = vdwg.mxu0
        %v1530 = vmul.f32 %v1528, 0.5
        %v1531 = vsel %vm1033, %v1530, -inf
        %1532 = vmax.xlane.f32.xlu0 %v1531
        %v1533 = vpop.xlane.xlu0 %1532
        %v1534 = vsub.f32 %v1530, %v1533
        %v1535 = vmul.f32 %v1534, 1.442695
        %v1536 = vpow.pop %v1535
        %v1537 = vsel %vm1033, %v1536, 0.0
        %1538 = vadd.xlane.f32.xlu0 %v1537
        %v1539 = vpop.xlane.xlu0 %1538
        %v1540 = vrcp.pop %v1539
        %v1541 = vmul.f32 %v1536, %v1540
        %1542 = vrot.lane.b32.xlu0 %v1001, 100
        %v1543 = vpop.permute.xlu0 %1542
        %v1546 = vsel %vm1033, %v1541, 0
        %1548 = vmatpush.msra.mxu0 0.0
        %1549 = vmatpush.msra.mxu0 0.0
        %1550 = vmatpush.msra.mxu0 0.0
        %1551 = vmatpush.msra.mxu0 0.0
        %1552 = vmatpush.msra.mxu0 0.0
        %1553 = vmatpush.msra.mxu0 0.0
        %1554 = vmatpush.msra.mxu0 0.0
        %1555 = vmatpush.msra.mxu0 0.0
        %1556 = vmatpush.msra.mxu0 0.0
        %1557 = vmatpush.msra.mxu0 0.0
        %1558 = vmatpush.msra.mxu0 0.0
        %1559 = vmatpush.msra.mxu0 0.0
        %1560 = vmatpush.msra.mxu0 0.0
        %1561 = vmatpush.msra.mxu0 0.0
        %1562 = vmatpush.msra.mxu0 0.0
        %1563 = vmatpush.msra.mxu0 %v1543
        %1564 = vmatmul.f32.gmra.mxu0 %v1546
        %v1565 = vpop.f32.mrf.mxu0
        %v1566 = vadd.f32 0.0, %v1565
        %1567 = vdwg.mxu0
        %1569 = vrot.lane.b32.xlu0 %v1566, 28
        %v1570 = vpop.permute.xlu0 %1569
        %vm1572 = vcmask 261344
        %1573 = vst.msk [vmem:[#allocation2] sm:$0xff] %vm1572, %v1570
        %1574 = vrot.lane.b32.xlu0 %v988, 96
        %v1575 = vpop.permute.xlu0 %1574
        %1576 = vrot.lane.b32.xlu0 %v988, 32
        %v1577 = vpop.permute.xlu0 %1576
        %v1578 = vsel %vm1007, %v1575, 0
        %v1580 = vsel %vm1007, %v1577, 0
        %1582 = vmatpush.xpose.msra.mxu0 0.0
        %1583 = vmatpush.xpose.msra.mxu0 0.0
        %1584 = vmatpush.xpose.msra.mxu0 0.0
        %1585 = vmatpush.xpose.msra.mxu0 0.0
        %1586 = vmatpush.xpose.msra.mxu0 0.0
        %1587 = vmatpush.xpose.msra.mxu0 0.0
        %1588 = vmatpush.xpose.msra.mxu0 0.0
        %1589 = vmatpush.xpose.msra.mxu0 0.0
        %1590 = vmatpush.xpose.msra.mxu0 0.0
        %1591 = vmatpush.xpose.msra.mxu0 0.0
        %1592 = vmatpush.xpose.msra.mxu0 0.0
        %1593 = vmatpush.xpose.msra.mxu0 0.0
        %1594 = vmatpush.xpose.msra.mxu0 0.0
        %1595 = vmatpush.xpose.msra.mxu0 0.0
        %1596 = vmatpush.xpose.msra.mxu0 0.0
        %1597 = vmatpush.xpose.msra.mxu0 %v1580
        %1598 = vmatmul.f32.gmra.mxu0 %v1578
        %v1599 = vpop.f32.mrf.mxu0
        %v1600 = vadd.f32 0.0, %v1599
        %1601 = vdwg.mxu0
        %v1602 = vmul.f32 %v1600, 0.5
        %v1603 = vsel %vm1033, %v1602, -inf
        %1604 = vmax.xlane.f32.xlu0 %v1603
        %v1605 = vpop.xlane.xlu0 %1604
        %v1606 = vsub.f32 %v1602, %v1605
        %v1607 = vmul.f32 %v1606, 1.442695
        %v1608 = vpow.pop %v1607
        %v1609 = vsel %vm1033, %v1608, 0.0
        %1610 = vadd.xlane.f32.xlu0 %v1609
        %v1611 = vpop.xlane.xlu0 %1610
        %v1612 = vrcp.pop %v1611
        %v1613 = vmul.f32 %v1608, %v1612
        %1614 = vrot.lane.b32.xlu0 %v1001, 96
        %v1615 = vpop.permute.xlu0 %1614
        %v1618 = vsel %vm1033, %v1613, 0
        %1620 = vmatpush.msra.mxu0 0.0
        %1621 = vmatpush.msra.mxu0 0.0
        %1622 = vmatpush.msra.mxu0 0.0
        %1623 = vmatpush.msra.mxu0 0.0
        %1624 = vmatpush.msra.mxu0 0.0
        %1625 = vmatpush.msra.mxu0 0.0
        %1626 = vmatpush.msra.mxu0 0.0
        %1627 = vmatpush.msra.mxu0 0.0
        %1628 = vmatpush.msra.mxu0 0.0
        %1629 = vmatpush.msra.mxu0 0.0
        %1630 = vmatpush.msra.mxu0 0.0
        %1631 = vmatpush.msra.mxu0 0.0
        %1632 = vmatpush.msra.mxu0 0.0
        %1633 = vmatpush.msra.mxu0 0.0
        %1634 = vmatpush.msra.mxu0 0.0
        %1635 = vmatpush.msra.mxu0 %v1615
        %1636 = vmatmul.f32.gmra.mxu0 %v1618
        %v1637 = vpop.f32.mrf.mxu0
        %v1638 = vadd.f32 0.0, %v1637
        %1639 = vdwg.mxu0
        %1641 = vrot.lane.b32.xlu0 %v1638, 32
        %v1642 = vpop.permute.xlu0 %1641
        %vm1644 = vcmask 294144
        %1645 = vst.msk [vmem:[#allocation2] sm:$0xff] %vm1644, %v1642
        %1646 = vrot.lane.b32.xlu0 %v988, 92
        %v1647 = vpop.permute.xlu0 %1646
        %1648 = vrot.lane.b32.xlu0 %v988, 28
        %v1649 = vpop.permute.xlu0 %1648
        %v1650 = vsel %vm1007, %v1647, 0
        %v1652 = vsel %vm1007, %v1649, 0
        %1654 = vmatpush.xpose.msra.mxu0 0.0
        %1655 = vmatpush.xpose.msra.mxu0 0.0
        %1656 = vmatpush.xpose.msra.mxu0 0.0
        %1657 = vmatpush.xpose.msra.mxu0 0.0
        %1658 = vmatpush.xpose.msra.mxu0 0.0
        %1659 = vmatpush.xpose.msra.mxu0 0.0
        %1660 = vmatpush.xpose.msra.mxu0 0.0
        %1661 = vmatpush.xpose.msra.mxu0 0.0
        %1662 = vmatpush.xpose.msra.mxu0 0.0
        %1663 = vmatpush.xpose.msra.mxu0 0.0
        %1664 = vmatpush.xpose.msra.mxu0 0.0
        %1665 = vmatpush.xpose.msra.mxu0 0.0
        %1666 = vmatpush.xpose.msra.mxu0 0.0
        %1667 = vmatpush.xpose.msra.mxu0 0.0
        %1668 = vmatpush.xpose.msra.mxu0 0.0
        %1669 = vmatpush.xpose.msra.mxu0 %v1652
        %1670 = vmatmul.f32.gmra.mxu0 %v1650
        %v1671 = vpop.f32.mrf.mxu0
        %v1672 = vadd.f32 0.0, %v1671
        %1673 = vdwg.mxu0
        %v1674 = vmul.f32 %v1672, 0.5
        %v1675 = vsel %vm1033, %v1674, -inf
        %1676 = vmax.xlane.f32.xlu0 %v1675
        %v1677 = vpop.xlane.xlu0 %1676
        %v1678 = vsub.f32 %v1674, %v1677
        %v1679 = vmul.f32 %v1678, 1.442695
        %v1680 = vpow.pop %v1679
        %v1681 = vsel %vm1033, %v1680, 0.0
        %1682 = vadd.xlane.f32.xlu0 %v1681
        %v1683 = vpop.xlane.xlu0 %1682
        %v1684 = vrcp.pop %v1683
        %v1685 = vmul.f32 %v1680, %v1684
        %1686 = vrot.lane.b32.xlu0 %v1001, 92
        %v1687 = vpop.permute.xlu0 %1686
        %v1690 = vsel %vm1033, %v1685, 0
        %1692 = vmatpush.msra.mxu0 0.0
        %1693 = vmatpush.msra.mxu0 0.0
        %1694 = vmatpush.msra.mxu0 0.0
        %1695 = vmatpush.msra.mxu0 0.0
        %1696 = vmatpush.msra.mxu0 0.0
        %1697 = vmatpush.msra.mxu0 0.0
        %1698 = vmatpush.msra.mxu0 0.0
        %1699 = vmatpush.msra.mxu0 0.0
        %1700 = vmatpush.msra.mxu0 0.0
        %1701 = vmatpush.msra.mxu0 0.0
        %1702 = vmatpush.msra.mxu0 0.0
        %1703 = vmatpush.msra.mxu0 0.0
        %1704 = vmatpush.msra.mxu0 0.0
        %1705 = vmatpush.msra.mxu0 0.0
        %1706 = vmatpush.msra.mxu0 0.0
        %1707 = vmatpush.msra.mxu0 %v1687
        %1708 = vmatmul.f32.gmra.mxu0 %v1690
        %v1709 = vpop.f32.mrf.mxu0
        %v1710 = vadd.f32 0.0, %v1709
        %1711 = vdwg.mxu0
        %1713 = vrot.lane.b32.xlu0 %v1710, 36
        %v1714 = vpop.permute.xlu0 %1713
        %vm1716 = vcmask 326944
        %1717 = vst.msk [vmem:[#allocation2] sm:$0xff] %vm1716, %v1714
        %1718 = vrot.lane.b32.xlu0 %v988, 88
        %v1719 = vpop.permute.xlu0 %1718
        %1720 = vrot.lane.b32.xlu0 %v988, 24
        %v1721 = vpop.permute.xlu0 %1720
        %v1722 = vsel %vm1007, %v1719, 0
        %v1724 = vsel %vm1007, %v1721, 0
        %1726 = vmatpush.xpose.msra.mxu0 0.0
        %1727 = vmatpush.xpose.msra.mxu0 0.0
        %1728 = vmatpush.xpose.msra.mxu0 0.0
        %1729 = vmatpush.xpose.msra.mxu0 0.0
        %1730 = vmatpush.xpose.msra.mxu0 0.0
        %1731 = vmatpush.xpose.msra.mxu0 0.0
        %1732 = vmatpush.xpose.msra.mxu0 0.0
        %1733 = vmatpush.xpose.msra.mxu0 0.0
        %1734 = vmatpush.xpose.msra.mxu0 0.0
        %1735 = vmatpush.xpose.msra.mxu0 0.0
        %1736 = vmatpush.xpose.msra.mxu0 0.0
        %1737 = vmatpush.xpose.msra.mxu0 0.0
        %1738 = vmatpush.xpose.msra.mxu0 0.0
        %1739 = vmatpush.xpose.msra.mxu0 0.0
        %1740 = vmatpush.xpose.msra.mxu0 0.0
        %1741 = vmatpush.xpose.msra.mxu0 %v1724
        %1742 = vmatmul.f32.gmra.mxu0 %v1722
        %v1743 = vpop.f32.mrf.mxu0
        %v1744 = vadd.f32 0.0, %v1743
        %1745 = vdwg.mxu0
        %v1746 = vmul.f32 %v1744, 0.5
        %v1747 = vsel %vm1033, %v1746, -inf
        %1748 = vmax.xlane.f32.xlu0 %v1747
        %v1749 = vpop.xlane.xlu0 %1748
        %v1750 = vsub.f32 %v1746, %v1749
        %v1751 = vmul.f32 %v1750, 1.442695
        %v1752 = vpow.pop %v1751
        %v1753 = vsel %vm1033, %v1752, 0.0
        %1754 = vadd.xlane.f32.xlu0 %v1753
        %v1755 = vpop.xlane.xlu0 %1754
        %v1756 = vrcp.pop %v1755
        %v1757 = vmul.f32 %v1752, %v1756
        %1758 = vrot.lane.b32.xlu0 %v1001, 88
        %v1759 = vpop.permute.xlu0 %1758
        %v1762 = vsel %vm1033, %v1757, 0
        %1764 = vmatpush.msra.mxu0 0.0
        %1765 = vmatpush.msra.mxu0 0.0
        %1766 = vmatpush.msra.mxu0 0.0
        %1767 = vmatpush.msra.mxu0 0.0
        %1768 = vmatpush.msra.mxu0 0.0
        %1769 = vmatpush.msra.mxu0 0.0
        %1770 = vmatpush.msra.mxu0 0.0
        %1771 = vmatpush.msra.mxu0 0.0
        %1772 = vmatpush.msra.mxu0 0.0
        %1773 = vmatpush.msra.mxu0 0.0
        %1774 = vmatpush.msra.mxu0 0.0
        %1775 = vmatpush.msra.mxu0 0.0
        %1776 = vmatpush.msra.mxu0 0.0
        %1777 = vmatpush.msra.mxu0 0.0
        %1778 = vmatpush.msra.mxu0 0.0
        %1779 = vmatpush.msra.mxu0 %v1759
        %1780 = vmatmul.f32.gmra.mxu0 %v1762
        %v1781 = vpop.f32.mrf.mxu0
        %v1782 = vadd.f32 0.0, %v1781
        %1783 = vdwg.mxu0
        %1785 = vrot.lane.b32.xlu0 %v1782, 40
        %v1786 = vpop.permute.xlu0 %1785
        %vm1788 = vcmask 359744
        %1789 = vst.msk [vmem:[#allocation2] sm:$0xff] %vm1788, %v1786
        %1790 = vrot.lane.b32.xlu0 %v988, 84
        %v1791 = vpop.permute.xlu0 %1790
        %1792 = vrot.lane.b32.xlu0 %v988, 20
        %v1793 = vpop.permute.xlu0 %1792
        %v1794 = vsel %vm1007, %v1791, 0
        %v1796 = vsel %vm1007, %v1793, 0
        %1798 = vmatpush.xpose.msra.mxu0 0.0
        %1799 = vmatpush.xpose.msra.mxu0 0.0
        %1800 = vmatpush.xpose.msra.mxu0 0.0
        %1801 = vmatpush.xpose.msra.mxu0 0.0
        %1802 = vmatpush.xpose.msra.mxu0 0.0
        %1803 = vmatpush.xpose.msra.mxu0 0.0
        %1804 = vmatpush.xpose.msra.mxu0 0.0
        %1805 = vmatpush.xpose.msra.mxu0 0.0
        %1806 = vmatpush.xpose.msra.mxu0 0.0
        %1807 = vmatpush.xpose.msra.mxu0 0.0
        %1808 = vmatpush.xpose.msra.mxu0 0.0
        %1809 = vmatpush.xpose.msra.mxu0 0.0
        %1810 = vmatpush.xpose.msra.mxu0 0.0
        %1811 = vmatpush.xpose.msra.mxu0 0.0
        %1812 = vmatpush.xpose.msra.mxu0 0.0
        %1813 = vmatpush.xpose.msra.mxu0 %v1796
        %1814 = vmatmul.f32.gmra.mxu0 %v1794
        %v1815 = vpop.f32.mrf.mxu0
        %v1816 = vadd.f32 0.0, %v1815
        %1817 = vdwg.mxu0
        %v1818 = vmul.f32 %v1816, 0.5
        %v1819 = vsel %vm1033, %v1818, -inf
        %1820 = vmax.xlane.f32.xlu0 %v1819
        %v1821 = vpop.xlane.xlu0 %1820
        %v1822 = vsub.f32 %v1818, %v1821
        %v1823 = vmul.f32 %v1822, 1.442695
        %v1824 = vpow.pop %v1823
        %v1825 = vsel %vm1033, %v1824, 0.0
        %1826 = vadd.xlane.f32.xlu0 %v1825
        %v1827 = vpop.xlane.xlu0 %1826
        %v1828 = vrcp.pop %v1827
        %v1829 = vmul.f32 %v1824, %v1828
        %1830 = vrot.lane.b32.xlu0 %v1001, 84
        %v1831 = vpop.permute.xlu0 %1830
        %v1834 = vsel %vm1033, %v1829, 0
        %1836 = vmatpush.msra.mxu0 0.0
        %1837 = vmatpush.msra.mxu0 0.0
        %1838 = vmatpush.msra.mxu0 0.0
        %1839 = vmatpush.msra.mxu0 0.0
        %1840 = vmatpush.msra.mxu0 0.0
        %1841 = vmatpush.msra.mxu0 0.0
        %1842 = vmatpush.msra.mxu0 0.0
        %1843 = vmatpush.msra.mxu0 0.0
        %1844 = vmatpush.msra.mxu0 0.0
        %1845 = vmatpush.msra.mxu0 0.0
        %1846 = vmatpush.msra.mxu0 0.0
        %1847 = vmatpush.msra.mxu0 0.0
        %1848 = vmatpush.msra.mxu0 0.0
        %1849 = vmatpush.msra.mxu0 0.0
        %1850 = vmatpush.msra.mxu0 0.0
        %1851 = vmatpush.msra.mxu0 %v1831
        %1852 = vmatmul.f32.gmra.mxu0 %v1834
        %v1853 = vpop.f32.mrf.mxu0
        %v1854 = vadd.f32 0.0, %v1853
        %1855 = vdwg.mxu0
        %1857 = vrot.lane.b32.xlu0 %v1854, 44
        %v1858 = vpop.permute.xlu0 %1857
        %vm1860 = vcmask 392544
        %1861 = vst.msk [vmem:[#allocation2] sm:$0xff] %vm1860, %v1858
        %1862 = vrot.lane.b32.xlu0 %v988, 80
        %v1863 = vpop.permute.xlu0 %1862
        %1864 = vrot.lane.b32.xlu0 %v988, 16
        %v1865 = vpop.permute.xlu0 %1864
        %v1866 = vsel %vm1007, %v1863, 0
        %v1868 = vsel %vm1007, %v1865, 0
        %1870 = vmatpush.xpose.msra.mxu0 0.0
        %1871 = vmatpush.xpose.msra.mxu0 0.0
        %1872 = vmatpush.xpose.msra.mxu0 0.0
        %1873 = vmatpush.xpose.msra.mxu0 0.0
        %1874 = vmatpush.xpose.msra.mxu0 0.0
        %1875 = vmatpush.xpose.msra.mxu0 0.0
        %1876 = vmatpush.xpose.msra.mxu0 0.0
        %1877 = vmatpush.xpose.msra.mxu0 0.0
        %1878 = vmatpush.xpose.msra.mxu0 0.0
        %1879 = vmatpush.xpose.msra.mxu0 0.0
        %1880 = vmatpush.xpose.msra.mxu0 0.0
        %1881 = vmatpush.xpose.msra.mxu0 0.0
        %1882 = vmatpush.xpose.msra.mxu0 0.0
        %1883 = vmatpush.xpose.msra.mxu0 0.0
        %1884 = vmatpush.xpose.msra.mxu0 0.0
        %1885 = vmatpush.xpose.msra.mxu0 %v1868
        %1886 = vmatmul.f32.gmra.mxu0 %v1866
        %v1887 = vpop.f32.mrf.mxu0
        %v1888 = vadd.f32 0.0, %v1887
        %1889 = vdwg.mxu0
        %v1890 = vmul.f32 %v1888, 0.5
        %v1891 = vsel %vm1033, %v1890, -inf
        %1892 = vmax.xlane.f32.xlu0 %v1891
        %v1893 = vpop.xlane.xlu0 %1892
        %v1894 = vsub.f32 %v1890, %v1893
        %v1895 = vmul.f32 %v1894, 1.442695
        %v1896 = vpow.pop %v1895
        %v1897 = vsel %vm1033, %v1896, 0.0
        %1898 = vadd.xlane.f32.xlu0 %v1897
        %v1899 = vpop.xlane.xlu0 %1898
        %v1900 = vrcp.pop %v1899
        %v1901 = vmul.f32 %v1896, %v1900
        %1902 = vrot.lane.b32.xlu0 %v1001, 80
        %v1903 = vpop.permute.xlu0 %1902
        %v1906 = vsel %vm1033, %v1901, 0
        %1908 = vmatpush.msra.mxu0 0.0
        %1909 = vmatpush.msra.mxu0 0.0
        %1910 = vmatpush.msra.mxu0 0.0
        %1911 = vmatpush.msra.mxu0 0.0
        %1912 = vmatpush.msra.mxu0 0.0
        %1913 = vmatpush.msra.mxu0 0.0
        %1914 = vmatpush.msra.mxu0 0.0
        %1915 = vmatpush.msra.mxu0 0.0
        %1916 = vmatpush.msra.mxu0 0.0
        %1917 = vmatpush.msra.mxu0 0.0
        %1918 = vmatpush.msra.mxu0 0.0
        %1919 = vmatpush.msra.mxu0 0.0
        %1920 = vmatpush.msra.mxu0 0.0
        %1921 = vmatpush.msra.mxu0 0.0
        %1922 = vmatpush.msra.mxu0 0.0
        %1923 = vmatpush.msra.mxu0 %v1903
        %1924 = vmatmul.f32.gmra.mxu0 %v1906
        %v1925 = vpop.f32.mrf.mxu0
        %v1926 = vadd.f32 0.0, %v1925
        %1927 = vdwg.mxu0
        %1929 = vrot.lane.b32.xlu0 %v1926, 48
        %v1930 = vpop.permute.xlu0 %1929
        %vm1932 = vcmask 425344
        %1933 = vst.msk [vmem:[#allocation2] sm:$0xff] %vm1932, %v1930
        %1934 = vrot.lane.b32.xlu0 %v988, 76
        %v1935 = vpop.permute.xlu0 %1934
        %1936 = vrot.lane.b32.xlu0 %v988, 12
        %v1937 = vpop.permute.xlu0 %1936
        %v1938 = vsel %vm1007, %v1935, 0
        %v1940 = vsel %vm1007, %v1937, 0
        %1942 = vmatpush.xpose.msra.mxu0 0.0
        %1943 = vmatpush.xpose.msra.mxu0 0.0
        %1944 = vmatpush.xpose.msra.mxu0 0.0
        %1945 = vmatpush.xpose.msra.mxu0 0.0
        %1946 = vmatpush.xpose.msra.mxu0 0.0
        %1947 = vmatpush.xpose.msra.mxu0 0.0
        %1948 = vmatpush.xpose.msra.mxu0 0.0
        %1949 = vmatpush.xpose.msra.mxu0 0.0
        %1950 = vmatpush.xpose.msra.mxu0 0.0
        %1951 = vmatpush.xpose.msra.mxu0 0.0
        %1952 = vmatpush.xpose.msra.mxu0 0.0
        %1953 = vmatpush.xpose.msra.mxu0 0.0
        %1954 = vmatpush.xpose.msra.mxu0 0.0
        %1955 = vmatpush.xpose.msra.mxu0 0.0
        %1956 = vmatpush.xpose.msra.mxu0 0.0
        %1957 = vmatpush.xpose.msra.mxu0 %v1940
        %1958 = vmatmul.f32.gmra.mxu0 %v1938
        %v1959 = vpop.f32.mrf.mxu0
        %v1960 = vadd.f32 0.0, %v1959
        %1961 = vdwg.mxu0
        %v1962 = vmul.f32 %v1960, 0.5
        %v1963 = vsel %vm1033, %v1962, -inf
        %1964 = vmax.xlane.f32.xlu0 %v1963
        %v1965 = vpop.xlane.xlu0 %1964
        %v1966 = vsub.f32 %v1962, %v1965
        %v1967 = vmul.f32 %v1966, 1.442695
        %v1968 = vpow.pop %v1967
        %v1969 = vsel %vm1033, %v1968, 0.0
        %1970 = vadd.xlane.f32.xlu0 %v1969
        %v1971 = vpop.xlane.xlu0 %1970
        %v1972 = vrcp.pop %v1971
        %v1973 = vmul.f32 %v1968, %v1972
        %1974 = vrot.lane.b32.xlu0 %v1001, 76
        %v1975 = vpop.permute.xlu0 %1974
        %v1978 = vsel %vm1033, %v1973, 0
        %1980 = vmatpush.msra.mxu0 0.0
        %1981 = vmatpush.msra.mxu0 0.0
        %1982 = vmatpush.msra.mxu0 0.0
        %1983 = vmatpush.msra.mxu0 0.0
        %1984 = vmatpush.msra.mxu0 0.0
        %1985 = vmatpush.msra.mxu0 0.0
        %1986 = vmatpush.msra.mxu0 0.0
        %1987 = vmatpush.msra.mxu0 0.0
        %1988 = vmatpush.msra.mxu0 0.0
        %1989 = vmatpush.msra.mxu0 0.0
        %1990 = vmatpush.msra.mxu0 0.0
        %1991 = vmatpush.msra.mxu0 0.0
        %1992 = vmatpush.msra.mxu0 0.0
        %1993 = vmatpush.msra.mxu0 0.0
        %1994 = vmatpush.msra.mxu0 0.0
        %1995 = vmatpush.msra.mxu0 %v1975
        %1996 = vmatmul.f32.gmra.mxu0 %v1978
        %v1997 = vpop.f32.mrf.mxu0
        %v1998 = vadd.f32 0.0, %v1997
        %1999 = vdwg.mxu0
        %2001 = vrot.lane.b32.xlu0 %v1998, 52
        %v2002 = vpop.permute.xlu0 %2001
        %vm2004 = vcmask 458144
        %2005 = vst.msk [vmem:[#allocation2] sm:$0xff] %vm2004, %v2002
        %2006 = vrot.lane.b32.xlu0 %v988, 72
        %v2007 = vpop.permute.xlu0 %2006
        %2008 = vrot.lane.b32.xlu0 %v988, 8
        %v2009 = vpop.permute.xlu0 %2008
        %v2010 = vsel %vm1007, %v2007, 0
        %v2012 = vsel %vm1007, %v2009, 0
        %2014 = vmatpush.xpose.msra.mxu0 0.0
        %2015 = vmatpush.xpose.msra.mxu0 0.0
        %2016 = vmatpush.xpose.msra.mxu0 0.0
        %2017 = vmatpush.xpose.msra.mxu0 0.0
        %2018 = vmatpush.xpose.msra.mxu0 0.0
        %2019 = vmatpush.xpose.msra.mxu0 0.0
        %2020 = vmatpush.xpose.msra.mxu0 0.0
        %2021 = vmatpush.xpose.msra.mxu0 0.0
        %2022 = vmatpush.xpose.msra.mxu0 0.0
        %2023 = vmatpush.xpose.msra.mxu0 0.0
        %2024 = vmatpush.xpose.msra.mxu0 0.0
        %2025 = vmatpush.xpose.msra.mxu0 0.0
        %2026 = vmatpush.xpose.msra.mxu0 0.0
        %2027 = vmatpush.xpose.msra.mxu0 0.0
        %2028 = vmatpush.xpose.msra.mxu0 0.0
        %2029 = vmatpush.xpose.msra.mxu0 %v2012
        %2030 = vmatmul.f32.gmra.mxu0 %v2010
        %v2031 = vpop.f32.mrf.mxu0
        %v2032 = vadd.f32 0.0, %v2031
        %2033 = vdwg.mxu0
        %v2034 = vmul.f32 %v2032, 0.5
        %v2035 = vsel %vm1033, %v2034, -inf
        %2036 = vmax.xlane.f32.xlu0 %v2035
        %v2037 = vpop.xlane.xlu0 %2036
        %v2038 = vsub.f32 %v2034, %v2037
        %v2039 = vmul.f32 %v2038, 1.442695
        %v2040 = vpow.pop %v2039
        %v2041 = vsel %vm1033, %v2040, 0.0
        %2042 = vadd.xlane.f32.xlu0 %v2041
        %v2043 = vpop.xlane.xlu0 %2042
        %v2044 = vrcp.pop %v2043
        %v2045 = vmul.f32 %v2040, %v2044
        %2046 = vrot.lane.b32.xlu0 %v1001, 72
        %v2047 = vpop.permute.xlu0 %2046
        %v2050 = vsel %vm1033, %v2045, 0
        %2052 = vmatpush.msra.mxu0 0.0
        %2053 = vmatpush.msra.mxu0 0.0
        %2054 = vmatpush.msra.mxu0 0.0
        %2055 = vmatpush.msra.mxu0 0.0
        %2056 = vmatpush.msra.mxu0 0.0
        %2057 = vmatpush.msra.mxu0 0.0
        %2058 = vmatpush.msra.mxu0 0.0
        %2059 = vmatpush.msra.mxu0 0.0
        %2060 = vmatpush.msra.mxu0 0.0
        %2061 = vmatpush.msra.mxu0 0.0
        %2062 = vmatpush.msra.mxu0 0.0
        %2063 = vmatpush.msra.mxu0 0.0
        %2064 = vmatpush.msra.mxu0 0.0
        %2065 = vmatpush.msra.mxu0 0.0
        %2066 = vmatpush.msra.mxu0 0.0
        %2067 = vmatpush.msra.mxu0 %v2047
        %2068 = vmatmul.f32.gmra.mxu0 %v2050
        %v2069 = vpop.f32.mrf.mxu0
        %v2070 = vadd.f32 0.0, %v2069
        %2071 = vdwg.mxu0
        %2073 = vrot.lane.b32.xlu0 %v2070, 56
        %v2074 = vpop.permute.xlu0 %2073
        %vm2076 = vcmask 490944
        %2077 = vst.msk [vmem:[#allocation2] sm:$0xff] %vm2076, %v2074
        %2078 = vrot.lane.b32.xlu0 %v988, 68
        %v2079 = vpop.permute.xlu0 %2078
        %2080 = vrot.lane.b32.xlu0 %v988, 4
        %v2081 = vpop.permute.xlu0 %2080
        %v2082 = vsel %vm1007, %v2079, 0
        %v2084 = vsel %vm1007, %v2081, 0
        %2086 = vmatpush.xpose.msra.mxu0 0.0
        %2087 = vmatpush.xpose.msra.mxu0 0.0
        %2088 = vmatpush.xpose.msra.mxu0 0.0
        %2089 = vmatpush.xpose.msra.mxu0 0.0
        %2090 = vmatpush.xpose.msra.mxu0 0.0
        %2091 = vmatpush.xpose.msra.mxu0 0.0
        %2092 = vmatpush.xpose.msra.mxu0 0.0
        %2093 = vmatpush.xpose.msra.mxu0 0.0
        %2094 = vmatpush.xpose.msra.mxu0 0.0
        %2095 = vmatpush.xpose.msra.mxu0 0.0
        %2096 = vmatpush.xpose.msra.mxu0 0.0
        %2097 = vmatpush.xpose.msra.mxu0 0.0
        %2098 = vmatpush.xpose.msra.mxu0 0.0
        %2099 = vmatpush.xpose.msra.mxu0 0.0
        %2100 = vmatpush.xpose.msra.mxu0 0.0
        %2101 = vmatpush.xpose.msra.mxu0 %v2084
        %2102 = vmatmul.f32.gmra.mxu0 %v2082
        %v2103 = vpop.f32.mrf.mxu0
        %v2104 = vadd.f32 0.0, %v2103
        %2105 = vdwg.mxu0
        %v2106 = vmul.f32 %v2104, 0.5
        %v2107 = vsel %vm1033, %v2106, -inf
        %2108 = vmax.xlane.f32.xlu0 %v2107
        %v2109 = vpop.xlane.xlu0 %2108
        %v2110 = vsub.f32 %v2106, %v2109
        %v2111 = vmul.f32 %v2110, 1.442695
        %v2112 = vpow.pop %v2111
        %v2113 = vsel %vm1033, %v2112, 0.0
        %2114 = vadd.xlane.f32.xlu0 %v2113
        %v2115 = vpop.xlane.xlu0 %2114
        %v2116 = vrcp.pop %v2115
        %v2117 = vmul.f32 %v2112, %v2116
        %2118 = vrot.lane.b32.xlu0 %v1001, 68
        %v2119 = vpop.permute.xlu0 %2118
        %v2122 = vsel %vm1033, %v2117, 0
        %2124 = vmatpush.msra.mxu0 0.0
        %2125 = vmatpush.msra.mxu0 0.0
        %2126 = vmatpush.msra.mxu0 0.0
        %2127 = vmatpush.msra.mxu0 0.0
        %2128 = vmatpush.msra.mxu0 0.0
        %2129 = vmatpush.msra.mxu0 0.0
        %2130 = vmatpush.msra.mxu0 0.0
        %2131 = vmatpush.msra.mxu0 0.0
        %2132 = vmatpush.msra.mxu0 0.0
        %2133 = vmatpush.msra.mxu0 0.0
        %2134 = vmatpush.msra.mxu0 0.0
        %2135 = vmatpush.msra.mxu0 0.0
        %2136 = vmatpush.msra.mxu0 0.0
        %2137 = vmatpush.msra.mxu0 0.0
        %2138 = vmatpush.msra.mxu0 0.0
        %2139 = vmatpush.msra.mxu0 %v2119
        %2140 = vmatmul.f32.gmra.mxu0 %v2122
        %v2141 = vpop.f32.mrf.mxu0
        %v2142 = vadd.f32 0.0, %v2141
        %2143 = vdwg.mxu0
        %2145 = vrot.lane.b32.xlu0 %v2142, 60
        %v2146 = vpop.permute.xlu0 %2145
        %vm2148 = vcmask 523744
        %2149 = vst.msk [vmem:[#allocation2] sm:$0xff] %vm2148, %v2146
        %v2150 = vld [vmem:[#allocation2] sm:$0xff]
        %v2151 = vpack.c.bf16 %v2150, %v2150
        %v2152 = vld [vmem:[#allocation3] sm:$0xf]
        %v2153 = vld [vmem:[#allocation3 + $0x4] sm:$0xf]
        %v2154 = vld [vmem:[#allocation3 + $0x8] sm:$0xf]
        %v2155 = vld [vmem:[#allocation3 + $0xc] sm:$0xf]
        %v2156 = vld [vmem:[#allocation3 + $0x10] sm:$0xf]
        %v2157 = vld [vmem:[#allocation3 + $0x14] sm:$0xf]
        %v2158 = vld [vmem:[#allocation3 + $0x18] sm:$0xf]
        %v2159 = vld [vmem:[#allocation3 + $0x1c] sm:$0xf]
        %v2160 = vld [vmem:[%s7] sm:$0x1]
        %v2162 = vperm.slane %v2160, 0
        %v2172 = vunpack.c.l.b16 %v2152
        %v2173 = vunpack.c.l.b16 %v2153
        %v2174 = vunpack.c.l.b16 %v2154
        %v2175 = vunpack.c.l.b16 %v2155
        %v2176 = vunpack.c.l.b16 %v2156
        %v2177 = vunpack.c.l.b16 %v2157
        %v2178 = vunpack.c.l.b16 %v2158
        %v2179 = vunpack.c.l.b16 %v2159
        %v2180 = vpack.c.b16 %v2173, %v2172
        %v2181 = vpack.c.b16 %v2175, %v2174
        %v2182 = vpack.c.b16 %v2177, %v2176
        %v2183 = vpack.c.b16 %v2179, %v2178
        %v2189 = vsel %vm882, %v2151, 0
        %2191 = vmatpush.bf16.msra.mxu0 0
        %2192 = vmatpush.bf16.msra.mxu0 0
        %2193 = vmatpush.bf16.msra.mxu0 0
        %2194 = vmatpush.bf16.msra.mxu0 0
        %2195 = vmatpush.bf16.msra.mxu0 %v2183
        %2196 = vmatpush.bf16.msra.mxu0 %v2182
        %2197 = vmatpush.bf16.msra.mxu0 %v2181
        %2198 = vmatpush.bf16.msra.mxu0 %v2180
        %2199 = vmatmul.bf16.gmra.mxu0 %v2189
        %v2200 = vpop.f32.mrf.mxu0
        %v2201 = vadd.f32 %v2162, %v2200
        %v2202 = vpop.f32.mrf.mxu0
        %2203 = vdwg.mxu0
        %v2204 = vadd.f32 %v2201, %v919
        %v2205 = vld [vmem:[%s8] sm:$0x1]
        %v2206 = vld [vmem:[%s9] sm:$0x1]
        %v2207 = vsel %vm882, %v2204, 0.0
        %2208 = vadd.xlane.f32.xlu0 %v2207
        %v2209 = vpop.xlane.xlu0 %2208
        %v2210 = vmul.f32 %v2209, %v892
        %v2211 = vsub.f32 %v2204, %v2210
        %v2212 = vmul.f32 %v2211, %v2211
        %v2213 = vsel %vm882, %v2212, 0.0
        %2214 = vadd.xlane.f32.xlu0 %v2213
        %v2215 = vpop.xlane.xlu0 %2214
        %v2216 = vmul.f32 %v2215, %v892
        %v2217 = vadd.f32 %v2216, 1e-12
        %v2218 = vrsqrt.pop %v2217
        %v2219 = vmul.f32 %v2218, %v2217
        %v2220 = vmul.f32 %v2219, %v2218
        %v2221 = vmul.f32 0.5, %v2220
        %v2222 = vsub.f32 1.5, %v2221
        %v2223 = vmul.f32 %v2218, %v2222
        %vm2224 = vweird.f32 %v2217
        %vm2225 = vweird.f32 %v2218
        %vm2226 = vmor %vm2224, %vm2225
        %v2227 = vsel %vm2226, %v2218, %v2223
        %v2228 = vmul.f32 %v2211, %v2227
        %v2230 = vperm.slane %v2205, 0
        %v2232 = vmul.f32 %v2228, %v2230
        %v2234 = vperm.slane %v2206, 0
        %v2236 = vadd.f32 %v2232, %v2234
        %v2237 = vpack.c.bf16 %v2236, %v2236
        %v2238 = vld [vmem:[#allocation5] sm:$0xf]
        %v2239 = vld [vmem:[#allocation5 + $0x4] sm:$0xf]
        %v2240 = vld [vmem:[#allocation5 + $0x8] sm:$0xf]
        %v2241 = vld [vmem:[#allocation5 + $0xc] sm:$0xf]
        %v2242 = vld [vmem:[#allocation5 + $0x10] sm:$0xf]
        %v2243 = vld [vmem:[#allocation5 + $0x14] sm:$0xf]
        %v2244 = vld [vmem:[#allocation5 + $0x18] sm:$0xf]
        %v2245 = vld [vmem:[#allocation5 + $0x1c] sm:$0xf]
        %v2246 = vld [vmem:[#allocation7] sm:$0x1]
        %v2248 = vperm.slane %v2246, 0
        %v2258 = vunpack.c.l.b16 %v2238
        %v2259 = vunpack.c.l.b16 %v2239
        %v2260 = vunpack.c.l.b16 %v2240
        %v2261 = vunpack.c.l.b16 %v2241
        %v2262 = vunpack.c.l.b16 %v2242
        %v2263 = vunpack.c.l.b16 %v2243
        %v2264 = vunpack.c.l.b16 %v2244
        %v2265 = vunpack.c.l.b16 %v2245
        %v2266 = vpack.c.b16 %v2259, %v2258
        %v2267 = vpack.c.b16 %v2261, %v2260
        %v2268 = vpack.c.b16 %v2263, %v2262
        %v2269 = vpack.c.b16 %v2265, %v2264
        %v2275 = vsel %vm882, %v2237, 0
        %2277 = vmatpush.bf16.msra.mxu0 0
        %2278 = vmatpush.bf16.msra.mxu0 0
        %2279 = vmatpush.bf16.msra.mxu0 0
        %2280 = vmatpush.bf16.msra.mxu0 0
        %2281 = vmatpush.bf16.msra.mxu0 %v2269
        %2282 = vmatpush.bf16.msra.mxu0 %v2268
        %2283 = vmatpush.bf16.msra.mxu0 %v2267
        %2284 = vmatpush.bf16.msra.mxu0 %v2266
        %2285 = vmatmul.bf16.gmra.mxu0 %v2275
        %v2286 = vpop.f32.mrf.mxu0
        %v2287 = vadd.f32 %v2248, %v2286
        %v2288 = vpop.f32.mrf.mxu0
        %2289 = vdwg.mxu0
        %v2290 = vld [vmem:[%s873] sm:$0xff]
        %v2291 = vld [vmem:[%s873 + $0x8] sm:$0xff]
        %v2292 = vpack.c.bf16 %v2291, %v2290
        %v2293 = vld [vmem:[#allocation8] sm:$0xf]
        %v2294 = vld [vmem:[#allocation8 + $0x4] sm:$0xf]
        %v2295 = vld [vmem:[#allocation8 + $0x8] sm:$0xf]
        %v2296 = vld [vmem:[#allocation8 + $0xc] sm:$0xf]
        %v2297 = vld [vmem:[#allocation8 + $0x10] sm:$0xf]
        %v2298 = vld [vmem:[#allocation8 + $0x14] sm:$0xf]
        %v2299 = vld [vmem:[#allocation8 + $0x18] sm:$0xf]
        %v2300 = vld [vmem:[#allocation8 + $0x1c] sm:$0xf]
        %v2301 = vld [vmem:[#allocation10] sm:$0x1]
        %v2303 = vperm.slane %v2301, 0
        %v2313 = vunpack.c.l.b16 %v2293
        %v2314 = vunpack.c.l.b16 %v2294
        %v2315 = vunpack.c.l.b16 %v2295
        %v2316 = vunpack.c.l.b16 %v2296
        %v2317 = vunpack.c.l.b16 %v2297
        %v2318 = vunpack.c.l.b16 %v2298
        %v2319 = vunpack.c.l.b16 %v2299
        %v2320 = vunpack.c.l.b16 %v2300
        %v2321 = vpack.c.b16 %v2314, %v2313
        %v2322 = vpack.c.b16 %v2316, %v2315
        %v2323 = vpack.c.b16 %v2318, %v2317
        %v2324 = vpack.c.b16 %v2320, %v2319
        %v2330 = vsel %vm882, %v2292, 0
        %2332 = vmatpush.bf16.msra.mxu0 0
        %2333 = vmatpush.bf16.msra.mxu0 0
        %2334 = vmatpush.bf16.msra.mxu0 0
        %2335 = vmatpush.bf16.msra.mxu0 0
        %2336 = vmatpush.bf16.msra.mxu0 %v2324
        %2337 = vmatpush.bf16.msra.mxu0 %v2323
        %2338 = vmatpush.bf16.msra.mxu0 %v2322
        %2339 = vmatpush.bf16.msra.mxu0 %v2321
        %2340 = vmatmul.bf16.gmra.mxu0 %v2330
        %v2341 = vpop.f32.mrf.mxu0
        %v2342 = vadd.f32 %v2303, %v2341
        %v2343 = vpop.f32.mrf.mxu0
        %v2344 = vadd.f32 %v2303, %v2343
        %2345 = vdwg.mxu0
        %v2347 = vsel %vm1007, %v2287, 0
        %v2350 = vsel %vm1007, %v2342, 0
        %v2353 = vsel %vm1007, %v2344, 0
        %2355 = vmatpush.xpose.msra.mxu0 0.0
        %2356 = vmatpush.xpose.msra.mxu0 0.0
        %2357 = vmatpush.xpose.msra.mxu0 0.0
        %2358 = vmatpush.xpose.msra.mxu0 0.0
        %2359 = vmatpush.xpose.msra.mxu0 0.0
        %2360 = vmatpush.xpose.msra.mxu0 0.0
        %2361 = vmatpush.xpose.msra.mxu0 0.0
        %2362 = vmatpush.xpose.msra.mxu0 0.0
        %2363 = vmatpush.xpose.msra.mxu0 0.0
        %2364 = vmatpush.xpose.msra.mxu0 0.0
        %2365 = vmatpush.xpose.msra.mxu0 0.0
        %2366 = vmatpush.xpose.msra.mxu0 0.0
        %2367 = vmatpush.xpose.msra.mxu0 0.0
        %2368 = vmatpush.xpose.msra.mxu0 0.0
        %2369 = vmatpush.xpose.msra.mxu0 %v2353
        %2370 = vmatpush.xpose.msra.mxu0 %v2350
        %2371 = vmatmul.f32.gmra.mxu0 %v2347
        %v2372 = vpop.f32.mrf.mxu0
        %v2373 = vadd.f32 0.0, %v2372
        %2374 = vdwg.mxu0
        %v2375 = vmul.f32 %v2373, 0.5
        %vm2376 = vcmask 130048
        %v2377 = vsel %vm2376, %v2375, -inf
        %2378 = vmax.xlane.f32.xlu0 %v2377
        %v2379 = vpop.xlane.xlu0 %2378
        %v2380 = vsub.f32 %v2375, %v2379
        %v2381 = vmul.f32 %v2380, 1.442695
        %v2382 = vpow.pop %v2381
        %v2383 = vsel %vm2376, %v2382, 0.0
        %2384 = vadd.xlane.f32.xlu0 %v2383
        %v2385 = vpop.xlane.xlu0 %2384
        %v2386 = vrcp.pop %v2385
        %v2387 = vmul.f32 %v2382, %v2386
        %2388 = vrot.lane.b32.xlu0 %v2342, 64
        %v2389 = vpop.permute.xlu0 %2388
        %2390 = vrot.lane.b32.xlu0 %v2344, 64
        %v2391 = vpop.permute.xlu0 %2390
        %v2395 = vsel %vm2376, %v2387, 0
        %2397 = vmatpush.msra.mxu0 0.0
        %2398 = vmatpush.msra.mxu0 0.0
        %2399 = vmatpush.msra.mxu0 0.0
        %2400 = vmatpush.msra.mxu0 0.0
        %2401 = vmatpush.msra.mxu0 0.0
        %2402 = vmatpush.msra.mxu0 0.0
        %2403 = vmatpush.msra.mxu0 0.0
        %2404 = vmatpush.msra.mxu0 0.0
        %2405 = vmatpush.msra.mxu0 0.0
        %2406 = vmatpush.msra.mxu0 0.0
        %2407 = vmatpush.msra.mxu0 0.0
        %2408 = vmatpush.msra.mxu0 0.0
        %2409 = vmatpush.msra.mxu0 0.0
        %2410 = vmatpush.msra.mxu0 0.0
        %2411 = vmatpush.msra.mxu0 %v2391
        %2412 = vmatpush.msra.mxu0 %v2389
        %2413 = vmatmul.f32.gmra.mxu0 %v2395
        %v2414 = vpop.f32.mrf.mxu0
        %v2415 = vadd.f32 0.0, %v2414
        %2416 = vdwg.mxu0
        %2417 = vst.msk [vmem:[#allocation2] sm:$0xff] %vm1007, %v2415
        %2418 = vrot.lane.b32.xlu0 %v2287, 124
        %v2419 = vpop.permute.xlu0 %2418
        %2420 = vrot.lane.b32.xlu0 %v2342, 124
        %v2421 = vpop.permute.xlu0 %2420
        %2422 = vrot.lane.b32.xlu0 %v2344, 124
        %v2423 = vpop.permute.xlu0 %2422
        %v2424 = vsel %vm1007, %v2419, 0
        %v2426 = vsel %vm1007, %v2421, 0
        %v2428 = vsel %vm1007, %v2423, 0
        %2430 = vmatpush.xpose.msra.mxu0 0.0
        %2431 = vmatpush.xpose.msra.mxu0 0.0
        %2432 = vmatpush.xpose.msra.mxu0 0.0
        %2433 = vmatpush.xpose.msra.mxu0 0.0
        %2434 = vmatpush.xpose.msra.mxu0 0.0
        %2435 = vmatpush.xpose.msra.mxu0 0.0
        %2436 = vmatpush.xpose.msra.mxu0 0.0
        %2437 = vmatpush.xpose.msra.mxu0 0.0
        %2438 = vmatpush.xpose.msra.mxu0 0.0
        %2439 = vmatpush.xpose.msra.mxu0 0.0
        %2440 = vmatpush.xpose.msra.mxu0 0.0
        %2441 = vmatpush.xpose.msra.mxu0 0.0
        %2442 = vmatpush.xpose.msra.mxu0 0.0
        %2443 = vmatpush.xpose.msra.mxu0 0.0
        %2444 = vmatpush.xpose.msra.mxu0 %v2428
        %2445 = vmatpush.xpose.msra.mxu0 %v2426
        %2446 = vmatmul.f32.gmra.mxu0 %v2424
        %v2447 = vpop.f32.mrf.mxu0
        %v2448 = vadd.f32 0.0, %v2447
        %2449 = vdwg.mxu0
        %v2450 = vmul.f32 %v2448, 0.5
        %v2451 = vsel %vm2376, %v2450, -inf
        %2452 = vmax.xlane.f32.xlu0 %v2451
        %v2453 = vpop.xlane.xlu0 %2452
        %v2454 = vsub.f32 %v2450, %v2453
        %v2455 = vmul.f32 %v2454, 1.442695
        %v2456 = vpow.pop %v2455
        %v2457 = vsel %vm2376, %v2456, 0.0
        %2458 = vadd.xlane.f32.xlu0 %v2457
        %v2459 = vpop.xlane.xlu0 %2458
        %v2460 = vrcp.pop %v2459
        %v2461 = vmul.f32 %v2456, %v2460
        %2462 = vrot.lane.b32.xlu0 %v2342, 60
        %v2463 = vpop.permute.xlu0 %2462
        %2464 = vrot.lane.b32.xlu0 %v2344, 60
        %v2465 = vpop.permute.xlu0 %2464
        %v2469 = vsel %vm2376, %v2461, 0
        %2471 = vmatpush.msra.mxu0 0.0
        %2472 = vmatpush.msra.mxu0 0.0
        %2473 = vmatpush.msra.mxu0 0.0
        %2474 = vmatpush.msra.mxu0 0.0
        %2475 = vmatpush.msra.mxu0 0.0
        %2476 = vmatpush.msra.mxu0 0.0
        %2477 = vmatpush.msra.mxu0 0.0
        %2478 = vmatpush.msra.mxu0 0.0
        %2479 = vmatpush.msra.mxu0 0.0
        %2480 = vmatpush.msra.mxu0 0.0
        %2481 = vmatpush.msra.mxu0 0.0
        %2482 = vmatpush.msra.mxu0 0.0
        %2483 = vmatpush.msra.mxu0 0.0
        %2484 = vmatpush.msra.mxu0 0.0
        %2485 = vmatpush.msra.mxu0 %v2465
        %2486 = vmatpush.msra.mxu0 %v2463
        %2487 = vmatmul.f32.gmra.mxu0 %v2469
        %v2488 = vpop.f32.mrf.mxu0
        %v2489 = vadd.f32 0.0, %v2488
        %2490 = vdwg.mxu0
        %2492 = vrot.lane.b32.xlu0 %v2489, 4
        %v2493 = vpop.permute.xlu0 %2492
        %2495 = vst.msk [vmem:[#allocation2] sm:$0xff] %vm1140, %v2493
        %2496 = vrot.lane.b32.xlu0 %v2287, 120
        %v2497 = vpop.permute.xlu0 %2496
        %2498 = vrot.lane.b32.xlu0 %v2342, 120
        %v2499 = vpop.permute.xlu0 %2498
        %2500 = vrot.lane.b32.xlu0 %v2344, 120
        %v2501 = vpop.permute.xlu0 %2500
        %v2502 = vsel %vm1007, %v2497, 0
        %v2504 = vsel %vm1007, %v2499, 0
        %v2506 = vsel %vm1007, %v2501, 0
        %2508 = vmatpush.xpose.msra.mxu0 0.0
        %2509 = vmatpush.xpose.msra.mxu0 0.0
        %2510 = vmatpush.xpose.msra.mxu0 0.0
        %2511 = vmatpush.xpose.msra.mxu0 0.0
        %2512 = vmatpush.xpose.msra.mxu0 0.0
        %2513 = vmatpush.xpose.msra.mxu0 0.0
        %2514 = vmatpush.xpose.msra.mxu0 0.0
        %2515 = vmatpush.xpose.msra.mxu0 0.0
        %2516 = vmatpush.xpose.msra.mxu0 0.0
        %2517 = vmatpush.xpose.msra.mxu0 0.0
        %2518 = vmatpush.xpose.msra.mxu0 0.0
        %2519 = vmatpush.xpose.msra.mxu0 0.0
        %2520 = vmatpush.xpose.msra.mxu0 0.0
        %2521 = vmatpush.xpose.msra.mxu0 0.0
        %2522 = vmatpush.xpose.msra.mxu0 %v2506
        %2523 = vmatpush.xpose.msra.mxu0 %v2504
        %2524 = vmatmul.f32.gmra.mxu0 %v2502
        %v2525 = vpop.f32.mrf.mxu0
        %v2526 = vadd.f32 0.0, %v2525
        %2527 = vdwg.mxu0
        %v2528 = vmul.f32 %v2526, 0.5
        %v2529 = vsel %vm2376, %v2528, -inf
        %2530 = vmax.xlane.f32.xlu0 %v2529
        %v2531 = vpop.xlane.xlu0 %2530
        %v2532 = vsub.f32 %v2528, %v2531
        %v2533 = vmul.f32 %v2532, 1.442695
        %v2534 = vpow.pop %v2533
        %v2535 = vsel %vm2376, %v2534, 0.0
        %2536 = vadd.xlane.f32.xlu0 %v2535
        %v2537 = vpop.xlane.xlu0 %2536
        %v2538 = vrcp.pop %v2537
        %v2539 = vmul.f32 %v2534, %v2538
        %2540 = vrot.lane.b32.xlu0 %v2342, 56
        %v2541 = vpop.permute.xlu0 %2540
        %2542 = vrot.lane.b32.xlu0 %v2344, 56
        %v2543 = vpop.permute.xlu0 %2542
        %v2547 = vsel %vm2376, %v2539, 0
        %2549 = vmatpush.msra.mxu0 0.0
        %2550 = vmatpush.msra.mxu0 0.0
        %2551 = vmatpush.msra.mxu0 0.0
        %2552 = vmatpush.msra.mxu0 0.0
        %2553 = vmatpush.msra.mxu0 0.0
        %2554 = vmatpush.msra.mxu0 0.0
        %2555 = vmatpush.msra.mxu0 0.0
        %2556 = vmatpush.msra.mxu0 0.0
        %2557 = vmatpush.msra.mxu0 0.0
        %2558 = vmatpush.msra.mxu0 0.0
        %2559 = vmatpush.msra.mxu0 0.0
        %2560 = vmatpush.msra.mxu0 0.0
        %2561 = vmatpush.msra.mxu0 0.0
        %2562 = vmatpush.msra.mxu0 0.0
        %2563 = vmatpush.msra.mxu0 %v2543
        %2564 = vmatpush.msra.mxu0 %v2541
        %2565 = vmatmul.f32.gmra.mxu0 %v2547
        %v2566 = vpop.f32.mrf.mxu0
        %v2567 = vadd.f32 0.0, %v2566
        %2568 = vdwg.mxu0
        %2570 = vrot.lane.b32.xlu0 %v2567, 8
        %v2571 = vpop.permute.xlu0 %2570
        %2573 = vst.msk [vmem:[#allocation2] sm:$0xff] %vm1212, %v2571
        %2574 = vrot.lane.b32.xlu0 %v2287, 116
        %v2575 = vpop.permute.xlu0 %2574
        %2576 = vrot.lane.b32.xlu0 %v2342, 116
        %v2577 = vpop.permute.xlu0 %2576
        %2578 = vrot.lane.b32.xlu0 %v2344, 116
        %v2579 = vpop.permute.xlu0 %2578
        %v2580 = vsel %vm1007, %v2575, 0
        %v2582 = vsel %vm1007, %v2577, 0
        %v2584 = vsel %vm1007, %v2579, 0
        %2586 = vmatpush.xpose.msra.mxu0 0.0
        %2587 = vmatpush.xpose.msra.mxu0 0.0
        %2588 = vmatpush.xpose.msra.mxu0 0.0
        %2589 = vmatpush.xpose.msra.mxu0 0.0
        %2590 = vmatpush.xpose.msra.mxu0 0.0
        %2591 = vmatpush.xpose.msra.mxu0 0.0
        %2592 = vmatpush.xpose.msra.mxu0 0.0
        %2593 = vmatpush.xpose.msra.mxu0 0.0
        %2594 = vmatpush.xpose.msra.mxu0 0.0
        %2595 = vmatpush.xpose.msra.mxu0 0.0
        %2596 = vmatpush.xpose.msra.mxu0 0.0
        %2597 = vmatpush.xpose.msra.mxu0 0.0
        %2598 = vmatpush.xpose.msra.mxu0 0.0
        %2599 = vmatpush.xpose.msra.mxu0 0.0
        %2600 = vmatpush.xpose.msra.mxu0 %v2584
        %2601 = vmatpush.xpose.msra.mxu0 %v2582
        %2602 = vmatmul.f32.gmra.mxu0 %v2580
        %v2603 = vpop.f32.mrf.mxu0
        %v2604 = vadd.f32 0.0, %v2603
        %2605 = vdwg.mxu0
        %v2606 = vmul.f32 %v2604, 0.5
        %v2607 = vsel %vm2376, %v2606, -inf
        %2608 = vmax.xlane.f32.xlu0 %v2607
        %v2609 = vpop.xlane.xlu0 %2608
        %v2610 = vsub.f32 %v2606, %v2609
        %v2611 = vmul.f32 %v2610, 1.442695
        %v2612 = vpow.pop %v2611
        %v2613 = vsel %vm2376, %v2612, 0.0
        %2614 = vadd.xlane.f32.xlu0 %v2613
        %v2615 = vpop.xlane.xlu0 %2614
        %v2616 = vrcp.pop %v2615
        %v2617 = vmul.f32 %v2612, %v2616
        %2618 = vrot.lane.b32.xlu0 %v2342, 52
        %v2619 = vpop.permute.xlu0 %2618
        %2620 = vrot.lane.b32.xlu0 %v2344, 52
        %v2621 = vpop.permute.xlu0 %2620
        %v2625 = vsel %vm2376, %v2617, 0
        %2627 = vmatpush.msra.mxu0 0.0
        %2628 = vmatpush.msra.mxu0 0.0
        %2629 = vmatpush.msra.mxu0 0.0
        %2630 = vmatpush.msra.mxu0 0.0
        %2631 = vmatpush.msra.mxu0 0.0
        %2632 = vmatpush.msra.mxu0 0.0
        %2633 = vmatpush.msra.mxu0 0.0
        %2634 = vmatpush.msra.mxu0 0.0
        %2635 = vmatpush.msra.mxu0 0.0
        %2636 = vmatpush.msra.mxu0 0.0
        %2637 = vmatpush.msra.mxu0 0.0
        %2638 = vmatpush.msra.mxu0 0.0
        %2639 = vmatpush.msra.mxu0 0.0
        %2640 = vmatpush.msra.mxu0 0.0
        %2641 = vmatpush.msra.mxu0 %v2621
        %2642 = vmatpush.msra.mxu0 %v2619
        %2643 = vmatmul.f32.gmra.mxu0 %v2625
        %v2644 = vpop.f32.mrf.mxu0
        %v2645 = vadd.f32 0.0, %v2644
        %2646 = vdwg.mxu0
        %2648 = vrot.lane.b32.xlu0 %v2645, 12
        %v2649 = vpop.permute.xlu0 %2648
        %2651 = vst.msk [vmem:[#allocation2] sm:$0xff] %vm1284, %v2649
        %2652 = vrot.lane.b32.xlu0 %v2287, 112
        %v2653 = vpop.permute.xlu0 %2652
        %2654 = vrot.lane.b32.xlu0 %v2342, 112
        %v2655 = vpop.permute.xlu0 %2654
        %2656 = vrot.lane.b32.xlu0 %v2344, 112
        %v2657 = vpop.permute.xlu0 %2656
        %v2658 = vsel %vm1007, %v2653, 0
        %v2660 = vsel %vm1007, %v2655, 0
        %v2662 = vsel %vm1007, %v2657, 0
        %2664 = vmatpush.xpose.msra.mxu0 0.0
        %2665 = vmatpush.xpose.msra.mxu0 0.0
        %2666 = vmatpush.xpose.msra.mxu0 0.0
        %2667 = vmatpush.xpose.msra.mxu0 0.0
        %2668 = vmatpush.xpose.msra.mxu0 0.0
        %2669 = vmatpush.xpose.msra.mxu0 0.0
        %2670 = vmatpush.xpose.msra.mxu0 0.0
        %2671 = vmatpush.xpose.msra.mxu0 0.0
        %2672 = vmatpush.xpose.msra.mxu0 0.0
        %2673 = vmatpush.xpose.msra.mxu0 0.0
        %2674 = vmatpush.xpose.msra.mxu0 0.0
        %2675 = vmatpush.xpose.msra.mxu0 0.0
        %2676 = vmatpush.xpose.msra.mxu0 0.0
        %2677 = vmatpush.xpose.msra.mxu0 0.0
        %2678 = vmatpush.xpose.msra.mxu0 %v2662
        %2679 = vmatpush.xpose.msra.mxu0 %v2660
        %2680 = vmatmul.f32.gmra.mxu0 %v2658
        %v2681 = vpop.f32.mrf.mxu0
        %v2682 = vadd.f32 0.0, %v2681
        %2683 = vdwg.mxu0
        %v2684 = vmul.f32 %v2682, 0.5
        %v2685 = vsel %vm2376, %v2684, -inf
        %2686 = vmax.xlane.f32.xlu0 %v2685
        %v2687 = vpop.xlane.xlu0 %2686
        %v2688 = vsub.f32 %v2684, %v2687
        %v2689 = vmul.f32 %v2688, 1.442695
        %v2690 = vpow.pop %v2689
        %v2691 = vsel %vm2376, %v2690, 0.0
        %2692 = vadd.xlane.f32.xlu0 %v2691
        %v2693 = vpop.xlane.xlu0 %2692
        %v2694 = vrcp.pop %v2693
        %v2695 = vmul.f32 %v2690, %v2694
        %2696 = vrot.lane.b32.xlu0 %v2342, 48
        %v2697 = vpop.permute.xlu0 %2696
        %2698 = vrot.lane.b32.xlu0 %v2344, 48
        %v2699 = vpop.permute.xlu0 %2698
        %v2703 = vsel %vm2376, %v2695, 0
        %2705 = vmatpush.msra.mxu0 0.0
        %2706 = vmatpush.msra.mxu0 0.0
        %2707 = vmatpush.msra.mxu0 0.0
        %2708 = vmatpush.msra.mxu0 0.0
        %2709 = vmatpush.msra.mxu0 0.0
        %2710 = vmatpush.msra.mxu0 0.0
        %2711 = vmatpush.msra.mxu0 0.0
        %2712 = vmatpush.msra.mxu0 0.0
        %2713 = vmatpush.msra.mxu0 0.0
        %2714 = vmatpush.msra.mxu0 0.0
        %2715 = vmatpush.msra.mxu0 0.0
        %2716 = vmatpush.msra.mxu0 0.0
        %2717 = vmatpush.msra.mxu0 0.0
        %2718 = vmatpush.msra.mxu0 0.0
        %2719 = vmatpush.msra.mxu0 %v2699
        %2720 = vmatpush.msra.mxu0 %v2697
        %2721 = vmatmul.f32.gmra.mxu0 %v2703
        %v2722 = vpop.f32.mrf.mxu0
        %v2723 = vadd.f32 0.0, %v2722
        %2724 = vdwg.mxu0
        %2726 = vrot.lane.b32.xlu0 %v2723, 16
        %v2727 = vpop.permute.xlu0 %2726
        %2729 = vst.msk [vmem:[#allocation2] sm:$0xff] %vm1356, %v2727
        %2730 = vrot.lane.b32.xlu0 %v2287, 108
        %v2731 = vpop.permute.xlu0 %2730
        %2732 = vrot.lane.b32.xlu0 %v2342, 108
        %v2733 = vpop.permute.xlu0 %2732
        %2734 = vrot.lane.b32.xlu0 %v2344, 108
        %v2735 = vpop.permute.xlu0 %2734
        %v2736 = vsel %vm1007, %v2731, 0
        %v2738 = vsel %vm1007, %v2733, 0
        %v2740 = vsel %vm1007, %v2735, 0
        %2742 = vmatpush.xpose.msra.mxu0 0.0
        %2743 = vmatpush.xpose.msra.mxu0 0.0
        %2744 = vmatpush.xpose.msra.mxu0 0.0
        %2745 = vmatpush.xpose.msra.mxu0 0.0
        %2746 = vmatpush.xpose.msra.mxu0 0.0
        %2747 = vmatpush.xpose.msra.mxu0 0.0
        %2748 = vmatpush.xpose.msra.mxu0 0.0
        %2749 = vmatpush.xpose.msra.mxu0 0.0
        %2750 = vmatpush.xpose.msra.mxu0 0.0
        %2751 = vmatpush.xpose.msra.mxu0 0.0
        %2752 = vmatpush.xpose.msra.mxu0 0.0
        %2753 = vmatpush.xpose.msra.mxu0 0.0
        %2754 = vmatpush.xpose.msra.mxu0 0.0
        %2755 = vmatpush.xpose.msra.mxu0 0.0
        %2756 = vmatpush.xpose.msra.mxu0 %v2740
        %2757 = vmatpush.xpose.msra.mxu0 %v2738
        %2758 = vmatmul.f32.gmra.mxu0 %v2736
        %v2759 = vpop.f32.mrf.mxu0
        %v2760 = vadd.f32 0.0, %v2759
        %2761 = vdwg.mxu0
        %v2762 = vmul.f32 %v2760, 0.5
        %v2763 = vsel %vm2376, %v2762, -inf
        %2764 = vmax.xlane.f32.xlu0 %v2763
        %v2765 = vpop.xlane.xlu0 %2764
        %v2766 = vsub.f32 %v2762, %v2765
        %v2767 = vmul.f32 %v2766, 1.442695
        %v2768 = vpow.pop %v2767
        %v2769 = vsel %vm2376, %v2768, 0.0
        %2770 = vadd.xlane.f32.xlu0 %v2769
        %v2771 = vpop.xlane.xlu0 %2770
        %v2772 = vrcp.pop %v2771
        %v2773 = vmul.f32 %v2768, %v2772
        %2774 = vrot.lane.b32.xlu0 %v2342, 44
        %v2775 = vpop.permute.xlu0 %2774
        %2776 = vrot.lane.b32.xlu0 %v2344, 44
        %v2777 = vpop.permute.xlu0 %2776
        %v2781 = vsel %vm2376, %v2773, 0
        %2783 = vmatpush.msra.mxu0 0.0
        %2784 = vmatpush.msra.mxu0 0.0
        %2785 = vmatpush.msra.mxu0 0.0
        %2786 = vmatpush.msra.mxu0 0.0
        %2787 = vmatpush.msra.mxu0 0.0
        %2788 = vmatpush.msra.mxu0 0.0
        %2789 = vmatpush.msra.mxu0 0.0
        %2790 = vmatpush.msra.mxu0 0.0
        %2791 = vmatpush.msra.mxu0 0.0
        %2792 = vmatpush.msra.mxu0 0.0
        %2793 = vmatpush.msra.mxu0 0.0
        %2794 = vmatpush.msra.mxu0 0.0
        %2795 = vmatpush.msra.mxu0 0.0
        %2796 = vmatpush.msra.mxu0 0.0
        %2797 = vmatpush.msra.mxu0 %v2777
        %2798 = vmatpush.msra.mxu0 %v2775
        %2799 = vmatmul.f32.gmra.mxu0 %v2781
        %v2800 = vpop.f32.mrf.mxu0
        %v2801 = vadd.f32 0.0, %v2800
        %2802 = vdwg.mxu0
        %2804 = vrot.lane.b32.xlu0 %v2801, 20
        %v2805 = vpop.permute.xlu0 %2804
        %2807 = vst.msk [vmem:[#allocation2] sm:$0xff] %vm1428, %v2805
        %2808 = vrot.lane.b32.xlu0 %v2287, 104
        %v2809 = vpop.permute.xlu0 %2808
        %2810 = vrot.lane.b32.xlu0 %v2342, 104
        %v2811 = vpop.permute.xlu0 %2810
        %2812 = vrot.lane.b32.xlu0 %v2344, 104
        %v2813 = vpop.permute.xlu0 %2812
        %v2814 = vsel %vm1007, %v2809, 0
        %v2816 = vsel %vm1007, %v2811, 0
        %v2818 = vsel %vm1007, %v2813, 0
        %2820 = vmatpush.xpose.msra.mxu0 0.0
        %2821 = vmatpush.xpose.msra.mxu0 0.0
        %2822 = vmatpush.xpose.msra.mxu0 0.0
        %2823 = vmatpush.xpose.msra.mxu0 0.0
        %2824 = vmatpush.xpose.msra.mxu0 0.0
        %2825 = vmatpush.xpose.msra.mxu0 0.0
        %2826 = vmatpush.xpose.msra.mxu0 0.0
        %2827 = vmatpush.xpose.msra.mxu0 0.0
        %2828 = vmatpush.xpose.msra.mxu0 0.0
        %2829 = vmatpush.xpose.msra.mxu0 0.0
        %2830 = vmatpush.xpose.msra.mxu0 0.0
        %2831 = vmatpush.xpose.msra.mxu0 0.0
        %2832 = vmatpush.xpose.msra.mxu0 0.0
        %2833 = vmatpush.xpose.msra.mxu0 0.0
        %2834 = vmatpush.xpose.msra.mxu0 %v2818
        %2835 = vmatpush.xpose.msra.mxu0 %v2816
        %2836 = vmatmul.f32.gmra.mxu0 %v2814
        %v2837 = vpop.f32.mrf.mxu0
        %v2838 = vadd.f32 0.0, %v2837
        %2839 = vdwg.mxu0
        %v2840 = vmul.f32 %v2838, 0.5
        %v2841 = vsel %vm2376, %v2840, -inf
        %2842 = vmax.xlane.f32.xlu0 %v2841
        %v2843 = vpop.xlane.xlu0 %2842
        %v2844 = vsub.f32 %v2840, %v2843
        %v2845 = vmul.f32 %v2844, 1.442695
        %v2846 = vpow.pop %v2845
        %v2847 = vsel %vm2376, %v2846, 0.0
        %2848 = vadd.xlane.f32.xlu0 %v2847
        %v2849 = vpop.xlane.xlu0 %2848
        %v2850 = vrcp.pop %v2849
        %v2851 = vmul.f32 %v2846, %v2850
        %2852 = vrot.lane.b32.xlu0 %v2342, 40
        %v2853 = vpop.permute.xlu0 %2852
        %2854 = vrot.lane.b32.xlu0 %v2344, 40
        %v2855 = vpop.permute.xlu0 %2854
        %v2859 = vsel %vm2376, %v2851, 0
        %2861 = vmatpush.msra.mxu0 0.0
        %2862 = vmatpush.msra.mxu0 0.0
        %2863 = vmatpush.msra.mxu0 0.0
        %2864 = vmatpush.msra.mxu0 0.0
        %2865 = vmatpush.msra.mxu0 0.0
        %2866 = vmatpush.msra.mxu0 0.0
        %2867 = vmatpush.msra.mxu0 0.0
        %2868 = vmatpush.msra.mxu0 0.0
        %2869 = vmatpush.msra.mxu0 0.0
        %2870 = vmatpush.msra.mxu0 0.0
        %2871 = vmatpush.msra.mxu0 0.0
        %2872 = vmatpush.msra.mxu0 0.0
        %2873 = vmatpush.msra.mxu0 0.0
        %2874 = vmatpush.msra.mxu0 0.0
        %2875 = vmatpush.msra.mxu0 %v2855
        %2876 = vmatpush.msra.mxu0 %v2853
        %2877 = vmatmul.f32.gmra.mxu0 %v2859
        %v2878 = vpop.f32.mrf.mxu0
        %v2879 = vadd.f32 0.0, %v2878
        %2880 = vdwg.mxu0
        %2882 = vrot.lane.b32.xlu0 %v2879, 24
        %v2883 = vpop.permute.xlu0 %2882
        %2885 = vst.msk [vmem:[#allocation2] sm:$0xff] %vm1500, %v2883
        %2886 = vrot.lane.b32.xlu0 %v2287, 100
        %v2887 = vpop.permute.xlu0 %2886
        %2888 = vrot.lane.b32.xlu0 %v2342, 100
        %v2889 = vpop.permute.xlu0 %2888
        %2890 = vrot.lane.b32.xlu0 %v2344, 100
        %v2891 = vpop.permute.xlu0 %2890
        %v2892 = vsel %vm1007, %v2887, 0
        %v2894 = vsel %vm1007, %v2889, 0
        %v2896 = vsel %vm1007, %v2891, 0
        %2898 = vmatpush.xpose.msra.mxu0 0.0
        %2899 = vmatpush.xpose.msra.mxu0 0.0
        %2900 = vmatpush.xpose.msra.mxu0 0.0
        %2901 = vmatpush.xpose.msra.mxu0 0.0
        %2902 = vmatpush.xpose.msra.mxu0 0.0
        %2903 = vmatpush.xpose.msra.mxu0 0.0
        %2904 = vmatpush.xpose.msra.mxu0 0.0
        %2905 = vmatpush.xpose.msra.mxu0 0.0
        %2906 = vmatpush.xpose.msra.mxu0 0.0
        %2907 = vmatpush.xpose.msra.mxu0 0.0
        %2908 = vmatpush.xpose.msra.mxu0 0.0
        %2909 = vmatpush.xpose.msra.mxu0 0.0
        %2910 = vmatpush.xpose.msra.mxu0 0.0
        %2911 = vmatpush.xpose.msra.mxu0 0.0
        %2912 = vmatpush.xpose.msra.mxu0 %v2896
        %2913 = vmatpush.xpose.msra.mxu0 %v2894
        %2914 = vmatmul.f32.gmra.mxu0 %v2892
        %v2915 = vpop.f32.mrf.mxu0
        %v2916 = vadd.f32 0.0, %v2915
        %2917 = vdwg.mxu0
        %v2918 = vmul.f32 %v2916, 0.5
        %v2919 = vsel %vm2376, %v2918, -inf
        %2920 = vmax.xlane.f32.xlu0 %v2919
        %v2921 = vpop.xlane.xlu0 %2920
        %v2922 = vsub.f32 %v2918, %v2921
        %v2923 = vmul.f32 %v2922, 1.442695
        %v2924 = vpow.pop %v2923
        %v2925 = vsel %vm2376, %v2924, 0.0
        %2926 = vadd.xlane.f32.xlu0 %v2925
        %v2927 = vpop.xlane.xlu0 %2926
        %v2928 = vrcp.pop %v2927
        %v2929 = vmul.f32 %v2924, %v2928
        %2930 = vrot.lane.b32.xlu0 %v2342, 36
        %v2931 = vpop.permute.xlu0 %2930
        %2932 = vrot.lane.b32.xlu0 %v2344, 36
        %v2933 = vpop.permute.xlu0 %2932
        %v2937 = vsel %vm2376, %v2929, 0
        %2939 = vmatpush.msra.mxu0 0.0
        %2940 = vmatpush.msra.mxu0 0.0
        %2941 = vmatpush.msra.mxu0 0.0
        %2942 = vmatpush.msra.mxu0 0.0
        %2943 = vmatpush.msra.mxu0 0.0
        %2944 = vmatpush.msra.mxu0 0.0
        %2945 = vmatpush.msra.mxu0 0.0
        %2946 = vmatpush.msra.mxu0 0.0
        %2947 = vmatpush.msra.mxu0 0.0
        %2948 = vmatpush.msra.mxu0 0.0
        %2949 = vmatpush.msra.mxu0 0.0
        %2950 = vmatpush.msra.mxu0 0.0
        %2951 = vmatpush.msra.mxu0 0.0
        %2952 = vmatpush.msra.mxu0 0.0
        %2953 = vmatpush.msra.mxu0 %v2933
        %2954 = vmatpush.msra.mxu0 %v2931
        %2955 = vmatmul.f32.gmra.mxu0 %v2937
        %v2956 = vpop.f32.mrf.mxu0
        %v2957 = vadd.f32 0.0, %v2956
        %2958 = vdwg.mxu0
        %2960 = vrot.lane.b32.xlu0 %v2957, 28
        %v2961 = vpop.permute.xlu0 %2960
        %2963 = vst.msk [vmem:[#allocation2] sm:$0xff] %vm1572, %v2961
        %2964 = vrot.lane.b32.xlu0 %v2287, 96
        %v2965 = vpop.permute.xlu0 %2964
        %2966 = vrot.lane.b32.xlu0 %v2342, 96
        %v2967 = vpop.permute.xlu0 %2966
        %2968 = vrot.lane.b32.xlu0 %v2344, 96
        %v2969 = vpop.permute.xlu0 %2968
        %v2970 = vsel %vm1007, %v2965, 0
        %v2972 = vsel %vm1007, %v2967, 0
        %v2974 = vsel %vm1007, %v2969, 0
        %2976 = vmatpush.xpose.msra.mxu0 0.0
        %2977 = vmatpush.xpose.msra.mxu0 0.0
        %2978 = vmatpush.xpose.msra.mxu0 0.0
        %2979 = vmatpush.xpose.msra.mxu0 0.0
        %2980 = vmatpush.xpose.msra.mxu0 0.0
        %2981 = vmatpush.xpose.msra.mxu0 0.0
        %2982 = vmatpush.xpose.msra.mxu0 0.0
        %2983 = vmatpush.xpose.msra.mxu0 0.0
        %2984 = vmatpush.xpose.msra.mxu0 0.0
        %2985 = vmatpush.xpose.msra.mxu0 0.0
        %2986 = vmatpush.xpose.msra.mxu0 0.0
        %2987 = vmatpush.xpose.msra.mxu0 0.0
        %2988 = vmatpush.xpose.msra.mxu0 0.0
        %2989 = vmatpush.xpose.msra.mxu0 0.0
        %2990 = vmatpush.xpose.msra.mxu0 %v2974
        %2991 = vmatpush.xpose.msra.mxu0 %v2972
        %2992 = vmatmul.f32.gmra.mxu0 %v2970
        %v2993 = vpop.f32.mrf.mxu0
        %v2994 = vadd.f32 0.0, %v2993
        %2995 = vdwg.mxu0
        %v2996 = vmul.f32 %v2994, 0.5
        %v2997 = vsel %vm2376, %v2996, -inf
        %2998 = vmax.xlane.f32.xlu0 %v2997
        %v2999 = vpop.xlane.xlu0 %2998
        %v3000 = vsub.f32 %v2996, %v2999
        %v3001 = vmul.f32 %v3000, 1.442695
        %v3002 = vpow.pop %v3001
        %v3003 = vsel %vm2376, %v3002, 0.0
        %3004 = vadd.xlane.f32.xlu0 %v3003
        %v3005 = vpop.xlane.xlu0 %3004
        %v3006 = vrcp.pop %v3005
        %v3007 = vmul.f32 %v3002, %v3006
        %3008 = vrot.lane.b32.xlu0 %v2342, 32
        %v3009 = vpop.permute.xlu0 %3008
        %3010 = vrot.lane.b32.xlu0 %v2344, 32
        %v3011 = vpop.permute.xlu0 %3010
        %v3015 = vsel %vm2376, %v3007, 0
        %3017 = vmatpush.msra.mxu0 0.0
        %3018 = vmatpush.msra.mxu0 0.0
        %3019 = vmatpush.msra.mxu0 0.0
        %3020 = vmatpush.msra.mxu0 0.0
        %3021 = vmatpush.msra.mxu0 0.0
        %3022 = vmatpush.msra.mxu0 0.0
        %3023 = vmatpush.msra.mxu0 0.0
        %3024 = vmatpush.msra.mxu0 0.0
        %3025 = vmatpush.msra.mxu0 0.0
        %3026 = vmatpush.msra.mxu0 0.0
        %3027 = vmatpush.msra.mxu0 0.0
        %3028 = vmatpush.msra.mxu0 0.0
        %3029 = vmatpush.msra.mxu0 0.0
        %3030 = vmatpush.msra.mxu0 0.0
        %3031 = vmatpush.msra.mxu0 %v3011
        %3032 = vmatpush.msra.mxu0 %v3009
        %3033 = vmatmul.f32.gmra.mxu0 %v3015
        %v3034 = vpop.f32.mrf.mxu0
        %v3035 = vadd.f32 0.0, %v3034
        %3036 = vdwg.mxu0
        %3038 = vrot.lane.b32.xlu0 %v3035, 32
        %v3039 = vpop.permute.xlu0 %3038
        %3041 = vst.msk [vmem:[#allocation2] sm:$0xff] %vm1644, %v3039
        %3042 = vrot.lane.b32.xlu0 %v2287, 92
        %v3043 = vpop.permute.xlu0 %3042
        %3044 = vrot.lane.b32.xlu0 %v2342, 92
        %v3045 = vpop.permute.xlu0 %3044
        %3046 = vrot.lane.b32.xlu0 %v2344, 92
        %v3047 = vpop.permute.xlu0 %3046
        %v3048 = vsel %vm1007, %v3043, 0
        %v3050 = vsel %vm1007, %v3045, 0
        %v3052 = vsel %vm1007, %v3047, 0
        %3054 = vmatpush.xpose.msra.mxu0 0.0
        %3055 = vmatpush.xpose.msra.mxu0 0.0
        %3056 = vmatpush.xpose.msra.mxu0 0.0
        %3057 = vmatpush.xpose.msra.mxu0 0.0
        %3058 = vmatpush.xpose.msra.mxu0 0.0
        %3059 = vmatpush.xpose.msra.mxu0 0.0
        %3060 = vmatpush.xpose.msra.mxu0 0.0
        %3061 = vmatpush.xpose.msra.mxu0 0.0
        %3062 = vmatpush.xpose.msra.mxu0 0.0
        %3063 = vmatpush.xpose.msra.mxu0 0.0
        %3064 = vmatpush.xpose.msra.mxu0 0.0
        %3065 = vmatpush.xpose.msra.mxu0 0.0
        %3066 = vmatpush.xpose.msra.mxu0 0.0
        %3067 = vmatpush.xpose.msra.mxu0 0.0
        %3068 = vmatpush.xpose.msra.mxu0 %v3052
        %3069 = vmatpush.xpose.msra.mxu0 %v3050
        %3070 = vmatmul.f32.gmra.mxu0 %v3048
        %v3071 = vpop.f32.mrf.mxu0
        %v3072 = vadd.f32 0.0, %v3071
        %3073 = vdwg.mxu0
        %v3074 = vmul.f32 %v3072, 0.5
        %v3075 = vsel %vm2376, %v3074, -inf
        %3076 = vmax.xlane.f32.xlu0 %v3075
        %v3077 = vpop.xlane.xlu0 %3076
        %v3078 = vsub.f32 %v3074, %v3077
        %v3079 = vmul.f32 %v3078, 1.442695
        %v3080 = vpow.pop %v3079
        %v3081 = vsel %vm2376, %v3080, 0.0
        %3082 = vadd.xlane.f32.xlu0 %v3081
        %v3083 = vpop.xlane.xlu0 %3082
        %v3084 = vrcp.pop %v3083
        %v3085 = vmul.f32 %v3080, %v3084
        %3086 = vrot.lane.b32.xlu0 %v2342, 28
        %v3087 = vpop.permute.xlu0 %3086
        %3088 = vrot.lane.b32.xlu0 %v2344, 28
        %v3089 = vpop.permute.xlu0 %3088
        %v3093 = vsel %vm2376, %v3085, 0
        %3095 = vmatpush.msra.mxu0 0.0
        %3096 = vmatpush.msra.mxu0 0.0
        %3097 = vmatpush.msra.mxu0 0.0
        %3098 = vmatpush.msra.mxu0 0.0
        %3099 = vmatpush.msra.mxu0 0.0
        %3100 = vmatpush.msra.mxu0 0.0
        %3101 = vmatpush.msra.mxu0 0.0
        %3102 = vmatpush.msra.mxu0 0.0
        %3103 = vmatpush.msra.mxu0 0.0
        %3104 = vmatpush.msra.mxu0 0.0
        %3105 = vmatpush.msra.mxu0 0.0
        %3106 = vmatpush.msra.mxu0 0.0
        %3107 = vmatpush.msra.mxu0 0.0
        %3108 = vmatpush.msra.mxu0 0.0
        %3109 = vmatpush.msra.mxu0 %v3089
        %3110 = vmatpush.msra.mxu0 %v3087
        %3111 = vmatmul.f32.gmra.mxu0 %v3093
        %v3112 = vpop.f32.mrf.mxu0
        %v3113 = vadd.f32 0.0, %v3112
        %3114 = vdwg.mxu0
        %3116 = vrot.lane.b32.xlu0 %v3113, 36
        %v3117 = vpop.permute.xlu0 %3116
        %3119 = vst.msk [vmem:[#allocation2] sm:$0xff] %vm1716, %v3117
        %3120 = vrot.lane.b32.xlu0 %v2287, 88
        %v3121 = vpop.permute.xlu0 %3120
        %3122 = vrot.lane.b32.xlu0 %v2342, 88
        %v3123 = vpop.permute.xlu0 %3122
        %3124 = vrot.lane.b32.xlu0 %v2344, 88
        %v3125 = vpop.permute.xlu0 %3124
        %v3126 = vsel %vm1007, %v3121, 0
        %v3128 = vsel %vm1007, %v3123, 0
        %v3130 = vsel %vm1007, %v3125, 0
        %3132 = vmatpush.xpose.msra.mxu0 0.0
        %3133 = vmatpush.xpose.msra.mxu0 0.0
        %3134 = vmatpush.xpose.msra.mxu0 0.0
        %3135 = vmatpush.xpose.msra.mxu0 0.0
        %3136 = vmatpush.xpose.msra.mxu0 0.0
        %3137 = vmatpush.xpose.msra.mxu0 0.0
        %3138 = vmatpush.xpose.msra.mxu0 0.0
        %3139 = vmatpush.xpose.msra.mxu0 0.0
        %3140 = vmatpush.xpose.msra.mxu0 0.0
        %3141 = vmatpush.xpose.msra.mxu0 0.0
        %3142 = vmatpush.xpose.msra.mxu0 0.0
        %3143 = vmatpush.xpose.msra.mxu0 0.0
        %3144 = vmatpush.xpose.msra.mxu0 0.0
        %3145 = vmatpush.xpose.msra.mxu0 0.0
        %3146 = vmatpush.xpose.msra.mxu0 %v3130
        %3147 = vmatpush.xpose.msra.mxu0 %v3128
        %3148 = vmatmul.f32.gmra.mxu0 %v3126
        %v3149 = vpop.f32.mrf.mxu0
        %v3150 = vadd.f32 0.0, %v3149
        %3151 = vdwg.mxu0
        %v3152 = vmul.f32 %v3150, 0.5
        %v3153 = vsel %vm2376, %v3152, -inf
        %3154 = vmax.xlane.f32.xlu0 %v3153
        %v3155 = vpop.xlane.xlu0 %3154
        %v3156 = vsub.f32 %v3152, %v3155
        %v3157 = vmul.f32 %v3156, 1.442695
        %v3158 = vpow.pop %v3157
        %v3159 = vsel %vm2376, %v3158, 0.0
        %3160 = vadd.xlane.f32.xlu0 %v3159
        %v3161 = vpop.xlane.xlu0 %3160
        %v3162 = vrcp.pop %v3161
        %v3163 = vmul.f32 %v3158, %v3162
        %3164 = vrot.lane.b32.xlu0 %v2342, 24
        %v3165 = vpop.permute.xlu0 %3164
        %3166 = vrot.lane.b32.xlu0 %v2344, 24
        %v3167 = vpop.permute.xlu0 %3166
        %v3171 = vsel %vm2376, %v3163, 0
        %3173 = vmatpush.msra.mxu0 0.0
        %3174 = vmatpush.msra.mxu0 0.0
        %3175 = vmatpush.msra.mxu0 0.0
        %3176 = vmatpush.msra.mxu0 0.0
        %3177 = vmatpush.msra.mxu0 0.0
        %3178 = vmatpush.msra.mxu0 0.0
        %3179 = vmatpush.msra.mxu0 0.0
        %3180 = vmatpush.msra.mxu0 0.0
        %3181 = vmatpush.msra.mxu0 0.0
        %3182 = vmatpush.msra.mxu0 0.0
        %3183 = vmatpush.msra.mxu0 0.0
        %3184 = vmatpush.msra.mxu0 0.0
        %3185 = vmatpush.msra.mxu0 0.0
        %3186 = vmatpush.msra.mxu0 0.0
        %3187 = vmatpush.msra.mxu0 %v3167
        %3188 = vmatpush.msra.mxu0 %v3165
        %3189 = vmatmul.f32.gmra.mxu0 %v3171
        %v3190 = vpop.f32.mrf.mxu0
        %v3191 = vadd.f32 0.0, %v3190
        %3192 = vdwg.mxu0
        %3194 = vrot.lane.b32.xlu0 %v3191, 40
        %v3195 = vpop.permute.xlu0 %3194
        %3197 = vst.msk [vmem:[#allocation2] sm:$0xff] %vm1788, %v3195
        %3198 = vrot.lane.b32.xlu0 %v2287, 84
        %v3199 = vpop.permute.xlu0 %3198
        %3200 = vrot.lane.b32.xlu0 %v2342, 84
        %v3201 = vpop.permute.xlu0 %3200
        %3202 = vrot.lane.b32.xlu0 %v2344, 84
        %v3203 = vpop.permute.xlu0 %3202
        %v3204 = vsel %vm1007, %v3199, 0
        %v3206 = vsel %vm1007, %v3201, 0
        %v3208 = vsel %vm1007, %v3203, 0
        %3210 = vmatpush.xpose.msra.mxu0 0.0
        %3211 = vmatpush.xpose.msra.mxu0 0.0
        %3212 = vmatpush.xpose.msra.mxu0 0.0
        %3213 = vmatpush.xpose.msra.mxu0 0.0
        %3214 = vmatpush.xpose.msra.mxu0 0.0
        %3215 = vmatpush.xpose.msra.mxu0 0.0
        %3216 = vmatpush.xpose.msra.mxu0 0.0
        %3217 = vmatpush.xpose.msra.mxu0 0.0
        %3218 = vmatpush.xpose.msra.mxu0 0.0
        %3219 = vmatpush.xpose.msra.mxu0 0.0
        %3220 = vmatpush.xpose.msra.mxu0 0.0
        %3221 = vmatpush.xpose.msra.mxu0 0.0
        %3222 = vmatpush.xpose.msra.mxu0 0.0
        %3223 = vmatpush.xpose.msra.mxu0 0.0
        %3224 = vmatpush.xpose.msra.mxu0 %v3208
        %3225 = vmatpush.xpose.msra.mxu0 %v3206
        %3226 = vmatmul.f32.gmra.mxu0 %v3204
        %v3227 = vpop.f32.mrf.mxu0
        %v3228 = vadd.f32 0.0, %v3227
        %3229 = vdwg.mxu0
        %v3230 = vmul.f32 %v3228, 0.5
        %v3231 = vsel %vm2376, %v3230, -inf
        %3232 = vmax.xlane.f32.xlu0 %v3231
        %v3233 = vpop.xlane.xlu0 %3232
        %v3234 = vsub.f32 %v3230, %v3233
        %v3235 = vmul.f32 %v3234, 1.442695
        %v3236 = vpow.pop %v3235
        %v3237 = vsel %vm2376, %v3236, 0.0
        %3238 = vadd.xlane.f32.xlu0 %v3237
        %v3239 = vpop.xlane.xlu0 %3238
        %v3240 = vrcp.pop %v3239
        %v3241 = vmul.f32 %v3236, %v3240
        %3242 = vrot.lane.b32.xlu0 %v2342, 20
        %v3243 = vpop.permute.xlu0 %3242
        %3244 = vrot.lane.b32.xlu0 %v2344, 20
        %v3245 = vpop.permute.xlu0 %3244
        %v3249 = vsel %vm2376, %v3241, 0
        %3251 = vmatpush.msra.mxu0 0.0
        %3252 = vmatpush.msra.mxu0 0.0
        %3253 = vmatpush.msra.mxu0 0.0
        %3254 = vmatpush.msra.mxu0 0.0
        %3255 = vmatpush.msra.mxu0 0.0
        %3256 = vmatpush.msra.mxu0 0.0
        %3257 = vmatpush.msra.mxu0 0.0
        %3258 = vmatpush.msra.mxu0 0.0
        %3259 = vmatpush.msra.mxu0 0.0
        %3260 = vmatpush.msra.mxu0 0.0
        %3261 = vmatpush.msra.mxu0 0.0
        %3262 = vmatpush.msra.mxu0 0.0
        %3263 = vmatpush.msra.mxu0 0.0
        %3264 = vmatpush.msra.mxu0 0.0
        %3265 = vmatpush.msra.mxu0 %v3245
        %3266 = vmatpush.msra.mxu0 %v3243
        %3267 = vmatmul.f32.gmra.mxu0 %v3249
        %v3268 = vpop.f32.mrf.mxu0
        %v3269 = vadd.f32 0.0, %v3268
        %3270 = vdwg.mxu0
        %3272 = vrot.lane.b32.xlu0 %v3269, 44
        %v3273 = vpop.permute.xlu0 %3272
        %3275 = vst.msk [vmem:[#allocation2] sm:$0xff] %vm1860, %v3273
        %3276 = vrot.lane.b32.xlu0 %v2287, 80
        %v3277 = vpop.permute.xlu0 %3276
        %3278 = vrot.lane.b32.xlu0 %v2342, 80
        %v3279 = vpop.permute.xlu0 %3278
        %3280 = vrot.lane.b32.xlu0 %v2344, 80
        %v3281 = vpop.permute.xlu0 %3280
        %v3282 = vsel %vm1007, %v3277, 0
        %v3284 = vsel %vm1007, %v3279, 0
        %v3286 = vsel %vm1007, %v3281, 0
        %3288 = vmatpush.xpose.msra.mxu0 0.0
        %3289 = vmatpush.xpose.msra.mxu0 0.0
        %3290 = vmatpush.xpose.msra.mxu0 0.0
        %3291 = vmatpush.xpose.msra.mxu0 0.0
        %3292 = vmatpush.xpose.msra.mxu0 0.0
        %3293 = vmatpush.xpose.msra.mxu0 0.0
        %3294 = vmatpush.xpose.msra.mxu0 0.0
        %3295 = vmatpush.xpose.msra.mxu0 0.0
        %3296 = vmatpush.xpose.msra.mxu0 0.0
        %3297 = vmatpush.xpose.msra.mxu0 0.0
        %3298 = vmatpush.xpose.msra.mxu0 0.0
        %3299 = vmatpush.xpose.msra.mxu0 0.0
        %3300 = vmatpush.xpose.msra.mxu0 0.0
        %3301 = vmatpush.xpose.msra.mxu0 0.0
        %3302 = vmatpush.xpose.msra.mxu0 %v3286
        %3303 = vmatpush.xpose.msra.mxu0 %v3284
        %3304 = vmatmul.f32.gmra.mxu0 %v3282
        %v3305 = vpop.f32.mrf.mxu0
        %v3306 = vadd.f32 0.0, %v3305
        %3307 = vdwg.mxu0
        %v3308 = vmul.f32 %v3306, 0.5
        %v3309 = vsel %vm2376, %v3308, -inf
        %3310 = vmax.xlane.f32.xlu0 %v3309
        %v3311 = vpop.xlane.xlu0 %3310
        %v3312 = vsub.f32 %v3308, %v3311
        %v3313 = vmul.f32 %v3312, 1.442695
        %v3314 = vpow.pop %v3313
        %v3315 = vsel %vm2376, %v3314, 0.0
        %3316 = vadd.xlane.f32.xlu0 %v3315
        %v3317 = vpop.xlane.xlu0 %3316
        %v3318 = vrcp.pop %v3317
        %v3319 = vmul.f32 %v3314, %v3318
        %3320 = vrot.lane.b32.xlu0 %v2342, 16
        %v3321 = vpop.permute.xlu0 %3320
        %3322 = vrot.lane.b32.xlu0 %v2344, 16
        %v3323 = vpop.permute.xlu0 %3322
        %v3327 = vsel %vm2376, %v3319, 0
        %3329 = vmatpush.msra.mxu0 0.0
        %3330 = vmatpush.msra.mxu0 0.0
        %3331 = vmatpush.msra.mxu0 0.0
        %3332 = vmatpush.msra.mxu0 0.0
        %3333 = vmatpush.msra.mxu0 0.0
        %3334 = vmatpush.msra.mxu0 0.0
        %3335 = vmatpush.msra.mxu0 0.0
        %3336 = vmatpush.msra.mxu0 0.0
        %3337 = vmatpush.msra.mxu0 0.0
        %3338 = vmatpush.msra.mxu0 0.0
        %3339 = vmatpush.msra.mxu0 0.0
        %3340 = vmatpush.msra.mxu0 0.0
        %3341 = vmatpush.msra.mxu0 0.0
        %3342 = vmatpush.msra.mxu0 0.0
        %3343 = vmatpush.msra.mxu0 %v3323
        %3344 = vmatpush.msra.mxu0 %v3321
        %3345 = vmatmul.f32.gmra.mxu0 %v3327
        %v3346 = vpop.f32.mrf.mxu0
        %v3347 = vadd.f32 0.0, %v3346
        %3348 = vdwg.mxu0
        %3350 = vrot.lane.b32.xlu0 %v3347, 48
        %v3351 = vpop.permute.xlu0 %3350
        %3353 = vst.msk [vmem:[#allocation2] sm:$0xff] %vm1932, %v3351
        %3354 = vrot.lane.b32.xlu0 %v2287, 76
        %v3355 = vpop.permute.xlu0 %3354
        %3356 = vrot.lane.b32.xlu0 %v2342, 76
        %v3357 = vpop.permute.xlu0 %3356
        %3358 = vrot.lane.b32.xlu0 %v2344, 76
        %v3359 = vpop.permute.xlu0 %3358
        %v3360 = vsel %vm1007, %v3355, 0
        %v3362 = vsel %vm1007, %v3357, 0
        %v3364 = vsel %vm1007, %v3359, 0
        %3366 = vmatpush.xpose.msra.mxu0 0.0
        %3367 = vmatpush.xpose.msra.mxu0 0.0
        %3368 = vmatpush.xpose.msra.mxu0 0.0
        %3369 = vmatpush.xpose.msra.mxu0 0.0
        %3370 = vmatpush.xpose.msra.mxu0 0.0
        %3371 = vmatpush.xpose.msra.mxu0 0.0
        %3372 = vmatpush.xpose.msra.mxu0 0.0
        %3373 = vmatpush.xpose.msra.mxu0 0.0
        %3374 = vmatpush.xpose.msra.mxu0 0.0
        %3375 = vmatpush.xpose.msra.mxu0 0.0
        %3376 = vmatpush.xpose.msra.mxu0 0.0
        %3377 = vmatpush.xpose.msra.mxu0 0.0
        %3378 = vmatpush.xpose.msra.mxu0 0.0
        %3379 = vmatpush.xpose.msra.mxu0 0.0
        %3380 = vmatpush.xpose.msra.mxu0 %v3364
        %3381 = vmatpush.xpose.msra.mxu0 %v3362
        %3382 = vmatmul.f32.gmra.mxu0 %v3360
        %v3383 = vpop.f32.mrf.mxu0
        %v3384 = vadd.f32 0.0, %v3383
        %3385 = vdwg.mxu0
        %v3386 = vmul.f32 %v3384, 0.5
        %v3387 = vsel %vm2376, %v3386, -inf
        %3388 = vmax.xlane.f32.xlu0 %v3387
        %v3389 = vpop.xlane.xlu0 %3388
        %v3390 = vsub.f32 %v3386, %v3389
        %v3391 = vmul.f32 %v3390, 1.442695
        %v3392 = vpow.pop %v3391
        %v3393 = vsel %vm2376, %v3392, 0.0
        %3394 = vadd.xlane.f32.xlu0 %v3393
        %v3395 = vpop.xlane.xlu0 %3394
        %v3396 = vrcp.pop %v3395
        %v3397 = vmul.f32 %v3392, %v3396
        %3398 = vrot.lane.b32.xlu0 %v2342, 12
        %v3399 = vpop.permute.xlu0 %3398
        %3400 = vrot.lane.b32.xlu0 %v2344, 12
        %v3401 = vpop.permute.xlu0 %3400
        %v3405 = vsel %vm2376, %v3397, 0
        %3407 = vmatpush.msra.mxu0 0.0
        %3408 = vmatpush.msra.mxu0 0.0
        %3409 = vmatpush.msra.mxu0 0.0
        %3410 = vmatpush.msra.mxu0 0.0
        %3411 = vmatpush.msra.mxu0 0.0
        %3412 = vmatpush.msra.mxu0 0.0
        %3413 = vmatpush.msra.mxu0 0.0
        %3414 = vmatpush.msra.mxu0 0.0
        %3415 = vmatpush.msra.mxu0 0.0
        %3416 = vmatpush.msra.mxu0 0.0
        %3417 = vmatpush.msra.mxu0 0.0
        %3418 = vmatpush.msra.mxu0 0.0
        %3419 = vmatpush.msra.mxu0 0.0
        %3420 = vmatpush.msra.mxu0 0.0
        %3421 = vmatpush.msra.mxu0 %v3401
        %3422 = vmatpush.msra.mxu0 %v3399
        %3423 = vmatmul.f32.gmra.mxu0 %v3405
        %v3424 = vpop.f32.mrf.mxu0
        %v3425 = vadd.f32 0.0, %v3424
        %3426 = vdwg.mxu0
        %3428 = vrot.lane.b32.xlu0 %v3425, 52
        %v3429 = vpop.permute.xlu0 %3428
        %3431 = vst.msk [vmem:[#allocation2] sm:$0xff] %vm2004, %v3429
        %3432 = vrot.lane.b32.xlu0 %v2287, 72
        %v3433 = vpop.permute.xlu0 %3432
        %3434 = vrot.lane.b32.xlu0 %v2342, 72
        %v3435 = vpop.permute.xlu0 %3434
        %3436 = vrot.lane.b32.xlu0 %v2344, 72
        %v3437 = vpop.permute.xlu0 %3436
        %v3438 = vsel %vm1007, %v3433, 0
        %v3440 = vsel %vm1007, %v3435, 0
        %v3442 = vsel %vm1007, %v3437, 0
        %3444 = vmatpush.xpose.msra.mxu0 0.0
        %3445 = vmatpush.xpose.msra.mxu0 0.0
        %3446 = vmatpush.xpose.msra.mxu0 0.0
        %3447 = vmatpush.xpose.msra.mxu0 0.0
        %3448 = vmatpush.xpose.msra.mxu0 0.0
        %3449 = vmatpush.xpose.msra.mxu0 0.0
        %3450 = vmatpush.xpose.msra.mxu0 0.0
        %3451 = vmatpush.xpose.msra.mxu0 0.0
        %3452 = vmatpush.xpose.msra.mxu0 0.0
        %3453 = vmatpush.xpose.msra.mxu0 0.0
        %3454 = vmatpush.xpose.msra.mxu0 0.0
        %3455 = vmatpush.xpose.msra.mxu0 0.0
        %3456 = vmatpush.xpose.msra.mxu0 0.0
        %3457 = vmatpush.xpose.msra.mxu0 0.0
        %3458 = vmatpush.xpose.msra.mxu0 %v3442
        %3459 = vmatpush.xpose.msra.mxu0 %v3440
        %3460 = vmatmul.f32.gmra.mxu0 %v3438
        %v3461 = vpop.f32.mrf.mxu0
        %v3462 = vadd.f32 0.0, %v3461
        %3463 = vdwg.mxu0
        %v3464 = vmul.f32 %v3462, 0.5
        %v3465 = vsel %vm2376, %v3464, -inf
        %3466 = vmax.xlane.f32.xlu0 %v3465
        %v3467 = vpop.xlane.xlu0 %3466
        %v3468 = vsub.f32 %v3464, %v3467
        %v3469 = vmul.f32 %v3468, 1.442695
        %v3470 = vpow.pop %v3469
        %v3471 = vsel %vm2376, %v3470, 0.0
        %3472 = vadd.xlane.f32.xlu0 %v3471
        %v3473 = vpop.xlane.xlu0 %3472
        %v3474 = vrcp.pop %v3473
        %v3475 = vmul.f32 %v3470, %v3474
        %3476 = vrot.lane.b32.xlu0 %v2342, 8
        %v3477 = vpop.permute.xlu0 %3476
        %3478 = vrot.lane.b32.xlu0 %v2344, 8
        %v3479 = vpop.permute.xlu0 %3478
        %v3483 = vsel %vm2376, %v3475, 0
        %3485 = vmatpush.msra.mxu0 0.0
        %3486 = vmatpush.msra.mxu0 0.0
        %3487 = vmatpush.msra.mxu0 0.0
        %3488 = vmatpush.msra.mxu0 0.0
        %3489 = vmatpush.msra.mxu0 0.0
        %3490 = vmatpush.msra.mxu0 0.0
        %3491 = vmatpush.msra.mxu0 0.0
        %3492 = vmatpush.msra.mxu0 0.0
        %3493 = vmatpush.msra.mxu0 0.0
        %3494 = vmatpush.msra.mxu0 0.0
        %3495 = vmatpush.msra.mxu0 0.0
        %3496 = vmatpush.msra.mxu0 0.0
        %3497 = vmatpush.msra.mxu0 0.0
        %3498 = vmatpush.msra.mxu0 0.0
        %3499 = vmatpush.msra.mxu0 %v3479
        %3500 = vmatpush.msra.mxu0 %v3477
        %3501 = vmatmul.f32.gmra.mxu0 %v3483
        %v3502 = vpop.f32.mrf.mxu0
        %v3503 = vadd.f32 0.0, %v3502
        %3504 = vdwg.mxu0
        %3506 = vrot.lane.b32.xlu0 %v3503, 56
        %v3507 = vpop.permute.xlu0 %3506
        %3509 = vst.msk [vmem:[#allocation2] sm:$0xff] %vm2076, %v3507
        %3510 = vrot.lane.b32.xlu0 %v2287, 68
        %v3511 = vpop.permute.xlu0 %3510
        %3512 = vrot.lane.b32.xlu0 %v2342, 68
        %v3513 = vpop.permute.xlu0 %3512
        %3514 = vrot.lane.b32.xlu0 %v2344, 68
        %v3515 = vpop.permute.xlu0 %3514
        %v3516 = vsel %vm1007, %v3511, 0
        %v3518 = vsel %vm1007, %v3513, 0
        %v3520 = vsel %vm1007, %v3515, 0
        %3522 = vmatpush.xpose.msra.mxu0 0.0
        %3523 = vmatpush.xpose.msra.mxu0 0.0
        %3524 = vmatpush.xpose.msra.mxu0 0.0
        %3525 = vmatpush.xpose.msra.mxu0 0.0
        %3526 = vmatpush.xpose.msra.mxu0 0.0
        %3527 = vmatpush.xpose.msra.mxu0 0.0
        %3528 = vmatpush.xpose.msra.mxu0 0.0
        %3529 = vmatpush.xpose.msra.mxu0 0.0
        %3530 = vmatpush.xpose.msra.mxu0 0.0
        %3531 = vmatpush.xpose.msra.mxu0 0.0
        %3532 = vmatpush.xpose.msra.mxu0 0.0
        %3533 = vmatpush.xpose.msra.mxu0 0.0
        %3534 = vmatpush.xpose.msra.mxu0 0.0
        %3535 = vmatpush.xpose.msra.mxu0 0.0
        %3536 = vmatpush.xpose.msra.mxu0 %v3520
        %3537 = vmatpush.xpose.msra.mxu0 %v3518
        %3538 = vmatmul.f32.gmra.mxu0 %v3516
        %v3539 = vpop.f32.mrf.mxu0
        %v3540 = vadd.f32 0.0, %v3539
        %3541 = vdwg.mxu0
        %v3542 = vmul.f32 %v3540, 0.5
        %v3543 = vsel %vm2376, %v3542, -inf
        %3544 = vmax.xlane.f32.xlu0 %v3543
        %v3545 = vpop.xlane.xlu0 %3544
        %v3546 = vsub.f32 %v3542, %v3545
        %v3547 = vmul.f32 %v3546, 1.442695
        %v3548 = vpow.pop %v3547
        %v3549 = vsel %vm2376, %v3548, 0.0
        %3550 = vadd.xlane.f32.xlu0 %v3549
        %v3551 = vpop.xlane.xlu0 %3550
        %v3552 = vrcp.pop %v3551
        %v3553 = vmul.f32 %v3548, %v3552
        %3554 = vrot.lane.b32.xlu0 %v2342, 4
        %v3555 = vpop.permute.xlu0 %3554
        %3556 = vrot.lane.b32.xlu0 %v2344, 4
        %v3557 = vpop.permute.xlu0 %3556
        %v3561 = vsel %vm2376, %v3553, 0
        %3563 = vmatpush.msra.mxu0 0.0
        %3564 = vmatpush.msra.mxu0 0.0
        %3565 = vmatpush.msra.mxu0 0.0
        %3566 = vmatpush.msra.mxu0 0.0
        %3567 = vmatpush.msra.mxu0 0.0
        %3568 = vmatpush.msra.mxu0 0.0
        %3569 = vmatpush.msra.mxu0 0.0
        %3570 = vmatpush.msra.mxu0 0.0
        %3571 = vmatpush.msra.mxu0 0.0
        %3572 = vmatpush.msra.mxu0 0.0
        %3573 = vmatpush.msra.mxu0 0.0
        %3574 = vmatpush.msra.mxu0 0.0
        %3575 = vmatpush.msra.mxu0 0.0
        %3576 = vmatpush.msra.mxu0 0.0
        %3577 = vmatpush.msra.mxu0 %v3557
        %3578 = vmatpush.msra.mxu0 %v3555
        %3579 = vmatmul.f32.gmra.mxu0 %v3561
        %v3580 = vpop.f32.mrf.mxu0
        %v3581 = vadd.f32 0.0, %v3580
        %3582 = vdwg.mxu0
        %3584 = vrot.lane.b32.xlu0 %v3581, 60
        %v3585 = vpop.permute.xlu0 %3584
        %3587 = vst.msk [vmem:[#allocation2] sm:$0xff] %vm2148, %v3585
        %v3588 = vld [vmem:[#allocation2] sm:$0xff]
        %v3589 = vpack.c.bf16 %v3588, %v3588
        %v3590 = vld [vmem:[#allocation11] sm:$0xf]
        %v3591 = vld [vmem:[#allocation11 + $0x4] sm:$0xf]
        %v3592 = vld [vmem:[#allocation11 + $0x8] sm:$0xf]
        %v3593 = vld [vmem:[#allocation11 + $0xc] sm:$0xf]
        %v3594 = vld [vmem:[#allocation11 + $0x10] sm:$0xf]
        %v3595 = vld [vmem:[#allocation11 + $0x14] sm:$0xf]
        %v3596 = vld [vmem:[#allocation11 + $0x18] sm:$0xf]
        %v3597 = vld [vmem:[#allocation11 + $0x1c] sm:$0xf]
        %v3598 = vld [vmem:[#allocation13] sm:$0x1]
        %v3600 = vperm.slane %v3598, 0
        %v3610 = vunpack.c.l.b16 %v3590
        %v3611 = vunpack.c.l.b16 %v3591
        %v3612 = vunpack.c.l.b16 %v3592
        %v3613 = vunpack.c.l.b16 %v3593
        %v3614 = vunpack.c.l.b16 %v3594
        %v3615 = vunpack.c.l.b16 %v3595
        %v3616 = vunpack.c.l.b16 %v3596
        %v3617 = vunpack.c.l.b16 %v3597
        %v3618 = vpack.c.b16 %v3611, %v3610
        %v3619 = vpack.c.b16 %v3613, %v3612
        %v3620 = vpack.c.b16 %v3615, %v3614
        %v3621 = vpack.c.b16 %v3617, %v3616
        %v3627 = vsel %vm882, %v3589, 0
        %3629 = vmatpush.bf16.msra.mxu0 0
        %3630 = vmatpush.bf16.msra.mxu0 0
        %3631 = vmatpush.bf16.msra.mxu0 0
        %3632 = vmatpush.bf16.msra.mxu0 0
        %3633 = vmatpush.bf16.msra.mxu0 %v3621
        %3634 = vmatpush.bf16.msra.mxu0 %v3620
        %3635 = vmatpush.bf16.msra.mxu0 %v3619
        %3636 = vmatpush.bf16.msra.mxu0 %v3618
        %3637 = vmatmul.bf16.gmra.mxu0 %v3627
        %v3638 = vpop.f32.mrf.mxu0
        %v3639 = vadd.f32 %v3600, %v3638
        %v3640 = vpop.f32.mrf.mxu0
        %3641 = vdwg.mxu0
        %v3642 = vadd.f32 %v3639, %v2236
        %v3643 = vld [vmem:[%s16] sm:$0x1]
        %v3644 = vld [vmem:[#allocation14] sm:$0x1]
        %v3645 = vsel %vm882, %v3642, 0.0
        %3646 = vadd.xlane.f32.xlu0 %v3645
        %v3647 = vpop.xlane.xlu0 %3646
        %v3648 = vmul.f32 %v3647, %v892
        %v3649 = vsub.f32 %v3642, %v3648
        %v3650 = vmul.f32 %v3649, %v3649
        %v3651 = vsel %vm882, %v3650, 0.0
        %3652 = vadd.xlane.f32.xlu0 %v3651
        %v3653 = vpop.xlane.xlu0 %3652
        %v3654 = vmul.f32 %v3653, %v892
        %v3655 = vadd.f32 %v3654, 1e-12
        %v3656 = vrsqrt.pop %v3655
        %v3657 = vmul.f32 %v3656, %v3655
        %v3658 = vmul.f32 %v3657, %v3656
        %v3659 = vmul.f32 0.5, %v3658
        %v3660 = vsub.f32 1.5, %v3659
        %v3661 = vmul.f32 %v3656, %v3660
        %vm3662 = vweird.f32 %v3655
        %vm3663 = vweird.f32 %v3656
        %vm3664 = vmor %vm3662, %vm3663
        %v3665 = vsel %vm3664, %v3656, %v3661
        %v3666 = vmul.f32 %v3649, %v3665
        %v3668 = vperm.slane %v3643, 0
        %v3670 = vmul.f32 %v3666, %v3668
        %v3672 = vperm.slane %v3644, 0
        %v3674 = vadd.f32 %v3670, %v3672
        %v3675 = vpack.c.bf16 %v3674, %v3674
        %v3676 = vld [vmem:[%s18] sm:$0xff]
        %v3677 = vld [vmem:[%s18 + $0x8] sm:$0xff]
        %v3678 = vld [vmem:[%s18 + $0x10] sm:$0xff]
        %v3679 = vld [vmem:[%s18 + $0x18] sm:$0xff]
        %v3680 = vld [vmem:[%s18 + $0x20] sm:$0xff]
        %v3681 = vld [vmem:[%s18 + $0x28] sm:$0xff]
        %v3682 = vld [vmem:[%s18 + $0x30] sm:$0xff]
        %v3683 = vld [vmem:[%s18 + $0x38] sm:$0xff]
        %v3684 = vld [vmem:[%s19] sm:$0x3]
        %v3686 = vperm.slane %v3684, 0
        %v3687 = vperm.slane %v3684, 1
        %v3698 = vunpack.c.l.b16 %v3676
        %v3699 = vunpack.c.h.b16 %v3676
        %v3700 = vunpack.c.l.b16 %v3677
        %v3701 = vunpack.c.h.b16 %v3677
        %v3702 = vunpack.c.l.b16 %v3678
        %v3703 = vunpack.c.h.b16 %v3678
        %v3704 = vunpack.c.l.b16 %v3679
        %v3705 = vunpack.c.h.b16 %v3679
        %v3706 = vunpack.c.l.b16 %v3680
        %v3707 = vunpack.c.h.b16 %v3680
        %v3708 = vunpack.c.l.b16 %v3681
        %v3709 = vunpack.c.h.b16 %v3681
        %v3710 = vunpack.c.l.b16 %v3682
        %v3711 = vunpack.c.h.b16 %v3682
        %v3712 = vunpack.c.l.b16 %v3683
        %v3713 = vunpack.c.h.b16 %v3683
        %v3714 = vpack.c.b16 %v3700, %v3698
        %v3715 = vpack.c.b16 %v3701, %v3699
        %v3716 = vpack.c.b16 %v3704, %v3702
        %v3717 = vpack.c.b16 %v3705, %v3703
        %v3718 = vpack.c.b16 %v3708, %v3706
        %v3719 = vpack.c.b16 %v3709, %v3707
        %v3720 = vpack.c.b16 %v3712, %v3710
        %v3721 = vpack.c.b16 %v3713, %v3711
        %v3731 = vsel %vm882, %v3675, 0
        %3733 = vmatpush.bf16.msra.mxu0 0
        %3734 = vmatpush.bf16.msra.mxu0 0
        %3735 = vmatpush.bf16.msra.mxu0 0
        %3736 = vmatpush.bf16.msra.mxu0 0
        %3737 = vmatpush.bf16.msra.mxu0 %v3720
        %3738 = vmatpush.bf16.msra.mxu0 %v3718
        %3739 = vmatpush.bf16.msra.mxu0 %v3716
        %3740 = vmatpush.bf16.msra.mxu0 %v3714
        %3741 = vmatmul.bf16.gmra.mxu0 %v3731
        %v3742 = vpop.f32.mrf.mxu0
        %v3743 = vadd.f32 %v3686, %v3742
        %v3744 = vpop.f32.mrf.mxu0
        %3745 = vdwg.mxu0
        %3746 = vmatpush.bf16.msra.mxu0 0
        %3747 = vmatpush.bf16.msra.mxu0 0
        %3748 = vmatpush.bf16.msra.mxu0 0
        %3749 = vmatpush.bf16.msra.mxu0 0
        %3750 = vmatpush.bf16.msra.mxu0 %v3721
        %3751 = vmatpush.bf16.msra.mxu0 %v3719
        %3752 = vmatpush.bf16.msra.mxu0 %v3717
        %3753 = vmatpush.bf16.msra.mxu0 %v3715
        %3754 = vmatmul.bf16.gmra.mxu0 %v3731
        %v3755 = vpop.f32.mrf.mxu0
        %v3756 = vadd.f32 %v3687, %v3755
        %v3757 = vpop.f32.mrf.mxu0
        %3758 = vdwg.mxu0
        %v3759 = vmul.f32 %v3743, 0.5
        %v3760 = vmul.f32 %v3756, 0.5
        %v3761 = vmul.f32 %v3743, 0.70710677
        %v3762 = vmul.f32 %v3756, 0.70710677
        %v3763 = vand.u32 2147483647, %v3761
        %v3764 = vand.u32 2147483647, %v3762
        %v3765 = vmul.f32 %v3763, 0.3275911
        %v3766 = vmul.f32 %v3764, 0.3275911
        %v3767 = vadd.f32 %v3765, 1.0
        %v3768 = vadd.f32 %v3766, 1.0
        %v3769 = vrcp.pop %v3767
        %v3770 = vmul.f32 %v3767, %v3769
        %v3771 = vsub.f32 1.0, %v3770
        %v3772 = vmul.f32 %v3769, %v3771
        %v3773 = vadd.f32 %v3769, %v3772
        %vm3774 = vweird.f32 %v3767
        %vm3775 = vweird.f32 %v3769
        %vm3776 = vmor %vm3774, %vm3775
        %v3777 = vsel %vm3776, %v3769, %v3773
        %v3778 = vand.u32 2147483647, %v3767
        %vm3779 = vcmp.eq.f32.partialorder %v3778, 8.507059e+37
        %v3780 = vand.u32 %v3767, 2147483648
        %v3781 = vor.u32 1.1754944e-38, %v3780
        %v3782 = vsel %vm3779, %v3781, %v3777
        %v3783 = vmul.f32 1.0, %v3782
        %v3784 = vrcp.pop %v3768
        %v3785 = vmul.f32 %v3768, %v3784
        %v3786 = vsub.f32 1.0, %v3785
        %v3787 = vmul.f32 %v3784, %v3786
        %v3788 = vadd.f32 %v3784, %v3787
        %vm3789 = vweird.f32 %v3768
        %vm3790 = vweird.f32 %v3784
        %vm3791 = vmor %vm3789, %vm3790
        %v3792 = vsel %vm3791, %v3784, %v3788
        %v3793 = vand.u32 2147483647, %v3768
        %vm3794 = vcmp.eq.f32.partialorder %v3793, 8.507059e+37
        %v3795 = vand.u32 %v3768, 2147483648
        %v3796 = vor.u32 1.1754944e-38, %v3795
        %v3797 = vsel %vm3794, %v3796, %v3792
        %v3798 = vmul.f32 1.0, %v3797
        %v3799 = vmul.f32 %v3783, 1.0614054
        %v3800 = vmul.f32 %v3798, 1.0614054
        %v3801 = vadd.f32 %v3799, -1.4531521
        %v3802 = vadd.f32 %v3800, -1.4531521
        %v3803 = vmul.f32 %v3801, %v3783
        %v3804 = vmul.f32 %v3802, %v3798
        %v3805 = vadd.f32 %v3803, 1.4214138
        %v3806 = vadd.f32 %v3804, 1.4214138
        %v3807 = vmul.f32 %v3805, %v3783
        %v3808 = vmul.f32 %v3806, %v3798
        %v3809 = vadd.f32 %v3807, -0.28449672
        %v3810 = vadd.f32 %v3808, -0.28449672
        %v3811 = vmul.f32 %v3809, %v3783
        %v3812 = vmul.f32 %v3810, %v3798
        %v3813 = vadd.f32 %v3811, 0.2548296
        %v3814 = vadd.f32 %v3812, 0.2548296
        %v3815 = vmul.f32 %v3813, %v3783
        %v3816 = vmul.f32 %v3814, %v3798
        %v3817 = vsub.f32 0.0, %v3763
        %v3818 = vsub.f32 0.0, %v3764
        %v3819 = vmul.f32 %v3817, %v3763
        %v3820 = vmul.f32 %v3818, %v3764
        %v3821 = vmul.f32 %v3819, 1.442695
        %v3822 = vpow.pop %v3821
        %v3823 = vmul.f32 %v3820, 1.442695
        %v3824 = vpow.pop %v3823
        %v3825 = vmul.f32 %v3815, %v3822
        %v3826 = vmul.f32 %v3816, %v3824
        %v3827 = vsub.f32 1.0, %v3825
        %v3828 = vsub.f32 1.0, %v3826
        %vm3829 = vcmp.ge.f32.partialorder %v3761, 0.0
        %vm3830 = vcmp.ge.f32.partialorder %v3762, 0.0
        %v3831 = vsub.f32 0.0, %v3827
        %v3832 = vsub.f32 0.0, %v3828
        %v3833 = vsel %vm3829, %v3827, %v3831
        %v3834 = vsel %vm3830, %v3828, %v3832
        %v3835 = vadd.f32 %v3833, 1.0
        %v3836 = vadd.f32 %v3834, 1.0
        %v3837 = vmul.f32 %v3759, %v3835
        %v3838 = vmul.f32 %v3760, %v3836
        %v3839 = vpack.c.bf16 %v3837, %v3837
        %v3840 = vpack.c.bf16 %v3838, %v3838
        %v3841 = vld [vmem:[%s20] sm:$0xf]
        %v3842 = vld [vmem:[%s20 + $0x4] sm:$0xf]
        %v3843 = vld [vmem:[%s20 + $0x8] sm:$0xf]
        %v3844 = vld [vmem:[%s20 + $0xc] sm:$0xf]
        %v3845 = vld [vmem:[%s20 + $0x10] sm:$0xf]
        %v3846 = vld [vmem:[%s20 + $0x14] sm:$0xf]
        %v3847 = vld [vmem:[%s20 + $0x18] sm:$0xf]
        %v3848 = vld [vmem:[%s20 + $0x1c] sm:$0xf]
        %v3849 = vld [vmem:[%s20 + $0x20] sm:$0xf]
        %v3850 = vld [vmem:[%s20 + $0x24] sm:$0xf]
        %v3851 = vld [vmem:[%s20 + $0x28] sm:$0xf]
        %v3852 = vld [vmem:[%s20 + $0x2c] sm:$0xf]
        %v3853 = vld [vmem:[%s20 + $0x30] sm:$0xf]
        %v3854 = vld [vmem:[%s20 + $0x34] sm:$0xf]
        %v3855 = vld [vmem:[%s20 + $0x38] sm:$0xf]
        %v3856 = vld [vmem:[%s20 + $0x3c] sm:$0xf]
        %v3857 = vld [vmem:[%s20 + $0x40] sm:$0xf]
        %v3858 = vld [vmem:[%s20 + $0x44] sm:$0xf]
        %v3859 = vld [vmem:[%s20 + $0x48] sm:$0xf]
        %v3860 = vld [vmem:[%s20 + $0x4c] sm:$0xf]
        %v3861 = vld [vmem:[%s20 + $0x50] sm:$0xf]
        %v3862 = vld [vmem:[%s20 + $0x54] sm:$0xf]
        %v3863 = vld [vmem:[%s20 + $0x58] sm:$0xf]
        %v3864 = vld [vmem:[%s20 + $0x5c] sm:$0xf]
        %v3865 = vld [vmem:[%s20 + $0x60] sm:$0xf]
        %v3866 = vld [vmem:[%s20 + $0x64] sm:$0xf]
        %v3867 = vld [vmem:[%s20 + $0x68] sm:$0xf]
        %v3868 = vld [vmem:[%s20 + $0x6c] sm:$0xf]
        %v3869 = vld [vmem:[%s20 + $0x70] sm:$0xf]
        %v3870 = vld [vmem:[%s20 + $0x74] sm:$0xf]
        %v3871 = vld [vmem:[%s20 + $0x78] sm:$0xf]
        %v3872 = vld [vmem:[%s20 + $0x7c] sm:$0xf]
        %v3873 = vld [vmem:[%s21] sm:$0x1]
        %v3875 = vperm.slane %v3873, 0
        %v3909 = vunpack.c.l.b16 %v3841
        %v3910 = vunpack.c.l.b16 %v3842
        %v3911 = vunpack.c.l.b16 %v3843
        %v3912 = vunpack.c.l.b16 %v3844
        %v3913 = vunpack.c.l.b16 %v3845
        %v3914 = vunpack.c.l.b16 %v3846
        %v3915 = vunpack.c.l.b16 %v3847
        %v3916 = vunpack.c.l.b16 %v3848
        %v3917 = vunpack.c.l.b16 %v3849
        %v3918 = vunpack.c.l.b16 %v3850
        %v3919 = vunpack.c.l.b16 %v3851
        %v3920 = vunpack.c.l.b16 %v3852
        %v3921 = vunpack.c.l.b16 %v3853
        %v3922 = vunpack.c.l.b16 %v3854
        %v3923 = vunpack.c.l.b16 %v3855
        %v3924 = vunpack.c.l.b16 %v3856
        %v3925 = vunpack.c.l.b16 %v3857
        %v3926 = vunpack.c.l.b16 %v3858
        %v3927 = vunpack.c.l.b16 %v3859
        %v3928 = vunpack.c.l.b16 %v3860
        %v3929 = vunpack.c.l.b16 %v3861
        %v3930 = vunpack.c.l.b16 %v3862
        %v3931 = vunpack.c.l.b16 %v3863
        %v3932 = vunpack.c.l.b16 %v3864
        %v3933 = vunpack.c.l.b16 %v3865
        %v3934 = vunpack.c.l.b16 %v3866
        %v3935 = vunpack.c.l.b16 %v3867
        %v3936 = vunpack.c.l.b16 %v3868
        %v3937 = vunpack.c.l.b16 %v3869
        %v3938 = vunpack.c.l.b16 %v3870
        %v3939 = vunpack.c.l.b16 %v3871
        %v3940 = vunpack.c.l.b16 %v3872
        %v3941 = vpack.c.b16 %v3910, %v3909
        %v3942 = vpack.c.b16 %v3912, %v3911
        %v3943 = vpack.c.b16 %v3914, %v3913
        %v3944 = vpack.c.b16 %v3916, %v3915
        %v3945 = vpack.c.b16 %v3918, %v3917
        %v3946 = vpack.c.b16 %v3920, %v3919
        %v3947 = vpack.c.b16 %v3922, %v3921
        %v3948 = vpack.c.b16 %v3924, %v3923
        %v3949 = vpack.c.b16 %v3926, %v3925
        %v3950 = vpack.c.b16 %v3928, %v3927
        %v3951 = vpack.c.b16 %v3930, %v3929
        %v3952 = vpack.c.b16 %v3932, %v3931
        %v3953 = vpack.c.b16 %v3934, %v3933
        %v3954 = vpack.c.b16 %v3936, %v3935
        %v3955 = vpack.c.b16 %v3938, %v3937
        %v3956 = vpack.c.b16 %v3940, %v3939
        %3973 = vmatpush.bf16.msra.mxu0 %v3948
        %3974 = vmatpush.bf16.msra.mxu0 %v3947
        %3975 = vmatpush.bf16.msra.mxu0 %v3946
        %3976 = vmatpush.bf16.msra.mxu0 %v3945
        %3977 = vmatpush.bf16.msra.mxu0 %v3944
        %3978 = vmatpush.bf16.msra.mxu0 %v3943
        %3979 = vmatpush.bf16.msra.mxu0 %v3942
        %3980 = vmatpush.bf16.msra.mxu0 %v3941
        %3981 = vmatmul.bf16.gmra.mxu0 %v3839
        %v3982 = vpop.f32.mrf.mxu0
        %v3983 = vadd.f32 %v3875, %v3982
        %v3984 = vpop.f32.mrf.mxu0
        %3985 = vdwg.mxu0
        %3986 = vmatpush.bf16.msra.mxu0 %v3956
        %3987 = vmatpush.bf16.msra.mxu0 %v3955
        %3988 = vmatpush.bf16.msra.mxu0 %v3954
        %3989 = vmatpush.bf16.msra.mxu0 %v3953
        %3990 = vmatpush.bf16.msra.mxu0 %v3952
        %3991 = vmatpush.bf16.msra.mxu0 %v3951
        %3992 = vmatpush.bf16.msra.mxu0 %v3950
        %3993 = vmatpush.bf16.msra.mxu0 %v3949
        %3994 = vmatmul.bf16.gmra.mxu0 %v3840
        %v3995 = vpop.f32.mrf.mxu0
        %v3996 = vadd.f32 %v3983, %v3995
        %v3997 = vpop.f32.mrf.mxu0
        %3998 = vdwg.mxu0
        %v3999 = vadd.f32 %v3996, %v3674
        %v4000 = vld [vmem:[%s22] sm:$0x1]
        %v4001 = vld [vmem:[%s23] sm:$0x1]
        %v4002 = vsel %vm882, %v3999, 0.0
        %4003 = vadd.xlane.f32.xlu0 %v4002
        %v4004 = vpop.xlane.xlu0 %4003
        %v4005 = vmul.f32 %v4004, %v892
        %v4006 = vsub.f32 %v3999, %v4005
        %v4007 = vmul.f32 %v4006, %v4006
        %v4008 = vsel %vm882, %v4007, 0.0
        %4009 = vadd.xlane.f32.xlu0 %v4008
        %v4010 = vpop.xlane.xlu0 %4009
        %v4011 = vmul.f32 %v4010, %v892
        %v4012 = vadd.f32 %v4011, 1e-12
        %v4013 = vrsqrt.pop %v4012
        %v4014 = vmul.f32 %v4013, %v4012
        %v4015 = vmul.f32 %v4014, %v4013
        %v4016 = vmul.f32 0.5, %v4015
        %v4017 = vsub.f32 1.5, %v4016
        %v4018 = vmul.f32 %v4013, %v4017
        %vm4019 = vweird.f32 %v4012
        %vm4020 = vweird.f32 %v4013
        %vm4021 = vmor %vm4019, %vm4020
        %v4022 = vsel %vm4021, %v4013, %v4018
        %v4023 = vmul.f32 %v4006, %v4022
        %v4025 = vperm.slane %v4000, 0
        %v4027 = vmul.f32 %v4023, %v4025
        %v4029 = vperm.slane %v4001, 0
        %v4031 = vadd.f32 %v4027, %v4029
        %4032 = vst.msk [vmem:[%s877] sm:$0xff] %vm882, %v4031
        %p4033 = scmp.lt.s32.totalorder %s40, 1
        %s4034 = scalar_select %p4033, %s40, 1
        %s4035 = smul.addr %s4034, 8
        %s4036 = scalar_lea.vmem %s24, %s4035
        // Predicated region
        $region149: #{_lambda_.2} parent=115 // pred_check
          %p4037 = pneg %p572
        $region150: #{_lambda_.2} parent=115 // pred_check_branch
          %4039 = sbr.rel (%p4037) target = $region152
        $region151: #{_lambda_.2} parent=115 // pred_region
          _
        $region152: #{_lambda_.2} parent=115 // pred_fallthru
          _
      $region116: #{_lambda_.2} parent=5 // pred_fallthru
        _
      %p4040 = scmp.le.s32.totalorder 2, %s35
      // Predicated region
      $region153: #{_lambda_.2} parent=5 // pred_check
        %p4041 = pneg %p4040
      $region154: #{_lambda_.2} parent=5 // pred_check_branch
        %4043 = sbr.rel (%p4041) target = $region156
      $region155: #{_lambda_.2} parent=5 // pred_region
        %s4044 = ssub.s32 %s35, 2
        // Predicated region
        $region157: #{_lambda_.2} parent=155 // pred_check
          %p4045 = pneg %p578
        $region158: #{_lambda_.2} parent=155 // pred_check_branch
          %4047 = sbr.rel (%p4045) target = $region160
        $region159: #{_lambda_.2} parent=155 // pred_region
          %p4048 = scmp.lt.s32.totalorder %s41, 1
          %s4049 = scalar_select %p4048, %s41, 1
          %s4050 = smul.addr %s4049, 8
          %s4051 = scalar_lea.vmem %s24, %s4050
        $region160: #{_lambda_.2} parent=155 // pred_fallthru
          _
      $region156: #{_lambda_.2} parent=5 // pred_fallthru
        _
    $region6: #{_lambda_.2} parent=1 // loop_footer
      %s39 = sadd.s32 1, %s35
    $region7: #{_lambda_.2} parent=1 // loop_footer_branch
      %34 = sbr.rel target = $region3
    $region8: #{_lambda_.2} parent=1 // loop_exit
      _
    %4052 = vsyncpa [#allocation4], 1
    %s4053 = scalar_lea.sflag [#allocation4], 1
    %4054 = vsyncpa %s4053, 1
    %4055 = vsyncpa [#allocation6], 1
    %4056 = vsyncpa [#allocation9], 1
    %4057 = vsyncpa [#allocation12], 1
    %4058 = vsyncpa [#allocation15], 1

</llo_original>
